<compile_context>
chip_gen: v7x
topology: tpu7x:2x2x1
jax: 0.10.0
libtpu: 0.0.40
codegen_flags: <defaults>
</compile_context>

<pallas_src>
import functools

import jax
import jax.numpy as jnp
from jax.experimental import pallas as pl
from jax.experimental.pallas import tpu as pltpu


NUM_CLASSES = 6
FC_IN_DIM = 512
OUT_FEATURES = 512
FEAT_C = 1280
STEM_C = 32
THRESHOLD = 0.5
LEAKY_SLOPE = 0.2
FC_PAD = 128                          # lane-dense padded width for fc_6 output


def _tpu_kind():
    try:
        return jax.devices()[0].device_kind.lower()
    except Exception:
        return ""


_KIND = _tpu_kind()
_IS_V5 = "v5" in _KIND
_IS_V7 = ("v7" in _KIND) or ("7x" in _KIND)

# Generation-specific knobs (resolved once at import time).
MAX_SPATIAL_TILE = 1024 if _IS_V7 else 2048          # rows per spatial M-tile
VMEM_LIMIT_BYTES = (48 if _IS_V7 else 64) * 1024 * 1024
EPILOGUE_BF16 = not _IS_V5                           # bf16 VPU/EUP on v6e/v7x
N_CSPLIT = 2 if _IS_V7 else 1                        # FEAT_C split: 2 TCs on v7x
C_BLOCK = FEAT_C // N_CSPLIT                         # 1280 or 640
HEAD_CHUNK = C_BLOCK // 5                            # 256 or 128 (both %128==0)


def _vmem_spec():
    return pl.BlockSpec(memory_space=pltpu.MemorySpace.VMEM)


def _spatial_tiling(s):
    """Pick a multiple-of-8 tile <= MAX_SPATIAL_TILE, preferring a divisor of S."""
    s8 = ((s + 7) // 8) * 8
    ts = min(MAX_SPATIAL_TILE, s8)
    t = ts
    while t >= max(8, ts - 512):
        if s8 % t == 0:
            ts = t
            break
        t -= 8
    s_padded = ((s8 + ts - 1) // ts) * ts
    return ts, s_padded


def _silu(x):
    # SiLU via single-EUP tanh form: x*sigmoid(x) = x/2 + (x/2)*tanh(x/2).
    half = x * 0.5
    return half * jnp.tanh(half) + half


# ---------------------------------------------------------------------------
# Fused backbone kernel: stem conv + SiLU + chunked 1x1 head + SiLU + GAP
# ---------------------------------------------------------------------------
def _backbone_kernel(patches_ref, stem_w_ref, stem_b_ref, head_w_ref,
                     head_b_ref, o_ref, acc_ref, *, s_valid, epilogue_bf16):
    s_idx = pl.program_id(2)

    @pl.when(s_idx == 0)
    def _():
        acc_ref[...] = jnp.zeros_like(acc_ref)

    p = patches_ref[0]                                   # (ts, 9*Cin) bf16
    ts = p.shape[0]

    # Stem 3x3/s2 conv as matmul (bf16 MXU, f32 accumulate) + SiLU.
    h1 = jnp.dot(p, stem_w_ref[...], preferred_element_type=jnp.float32)
    h1 = _silu(h1 + stem_b_ref[...]).astype(jnp.bfloat16)        # (ts, 32)

    # Pad-row mask folded into the (1, ts) GAP reduce vector; the reduce itself
    # is a bf16 MXU matmul (MXU is nearly idle here), freeing the VPU.
    col = jax.lax.broadcasted_iota(jnp.int32, (1, ts), 1) + s_idx * ts
    ones_row = (col < s_valid).astype(jnp.bfloat16)              # (1, ts)

    # 1x1 head conv processed in HEAD_CHUNK-column slices: matmul -> bias ->
    # SiLU -> MXU column-sum into acc.  The full (ts, C_BLOCK) f32 intermediate
    # never exists, cutting peak live temporaries and VMEM ld/st traffic.
    for ci in range(C_BLOCK // HEAD_CHUNK):
        c0 = ci * HEAD_CHUNK
        h2 = jnp.dot(h1, head_w_ref[:, c0:c0 + HEAD_CHUNK],
                     preferred_element_type=jnp.float32)
        h2 = h2 + head_b_ref[:, c0:c0 + HEAD_CHUNK]
        if epilogue_bf16:                  # bf16 VPU/EUP path on v6e/v7x only
            h2 = h2.astype(jnp.bfloat16)
        h2 = _silu(h2).astype(jnp.bfloat16)
        acc_ref[:, c0:c0 + HEAD_CHUNK] += jnp.dot(
            ones_row, h2, preferred_element_type=jnp.float32)

    @pl.when(s_idx == pl.num_programs(2) - 1)
    def _():
        # Fused global-average-pool normalization + store.
        o_ref[0] = acc_ref[...] * (1.0 / float(s_valid))


def pallas_backbone_pooled(patches, stem_w, stem_b, head_w, head_b,
                           *, s_valid, ts):
    b, s_padded, kp = patches.shape
    n_s = s_padded // ts
    kernel = functools.partial(_backbone_kernel, s_valid=s_valid,
                               epilogue_bf16=EPILOGUE_BF16)
    pooled = pl.pallas_call(
        kernel,
        out_shape=jax.ShapeDtypeStruct((b, 1, FEAT_C), jnp.float32),
        grid_spec=pltpu.PrefetchScalarGridSpec(
            num_scalar_prefetch=0,
            grid=(b, N_CSPLIT, n_s),
            in_specs=[
                pl.BlockSpec((1, ts, kp), lambda bi, ci, si: (bi, si, 0)),
                pl.BlockSpec((kp, STEM_C), lambda bi, ci, si: (0, 0)),
                pl.BlockSpec((1, STEM_C), lambda bi, ci, si: (0, 0)),
                pl.BlockSpec((STEM_C, C_BLOCK), lambda bi, ci, si: (0, ci)),
                pl.BlockSpec((1, C_BLOCK), lambda bi, ci, si: (0, ci)),
            ],
            out_specs=pl.BlockSpec((1, 1, C_BLOCK),
                                   lambda bi, ci, si: (bi, 0, ci)),
            scratch_shapes=[pltpu.VMEM((1, C_BLOCK), jnp.float32)],
        ),
        compiler_params=pltpu.CompilerParams(
            dimension_semantics=("parallel", "parallel", "arbitrary"),
            vmem_limit_bytes=VMEM_LIMIT_BYTES,
        ),
    )(patches, stem_w, stem_b, head_w, head_b)
    return pooled.reshape(b, FEAT_C)


# ---------------------------------------------------------------------------
# Fused tail kernel: classifier -> cos-sim -> GUS1 -> LeakyReLU -> cos-sim
#                    -> GUS2 -> fc_6 (lane-dense padded output)
# ---------------------------------------------------------------------------
def _tail_kernel(feat_ref, cls_w_ref, cls_b_ref, g1_w_ref, g1_b_ref,
                 g2_w_ref, g2_b_ref, fc_w_ref, fc_b_ref, o_ref, *, threshold):
    pooled = feat_ref[...]                                   # (B, 1280) f32

    # features.classifier: Linear(1280 -> 512)  (bf16 MXU, f32 accumulate)
    x = jnp.dot(pooled.astype(jnp.bfloat16), cls_w_ref[...],
                preferred_element_type=jnp.float32) + cls_b_ref[...]

    def gus_block(x, w_ref, b_ref, leaky):
        # Cosine similarity across the batch (rsqrt -> EUP slot), kept in f32
        # since values near the 0.5 threshold decide the adjacency pattern.
        sq = jnp.sum(x * x, axis=-1, keepdims=True)
        xn = x * jax.lax.rsqrt(jnp.maximum(sq, 1e-24))
        cs = jax.lax.dot_general(xn, xn, (((1,), (1,)), ((), ())),
                                 preferred_element_type=jnp.float32)
        # GCN-style aggregation: thresholded adjacency, exact row normalization
        # (deg is a tiny integer-valued tensor; exact division is free).
        adj = (cs > threshold).astype(jnp.float32)
        deg = jnp.sum(adj, axis=-1, keepdims=True)
        adj = adj / jnp.maximum(deg, 1.0)
        agg = jnp.dot(adj, x, preferred_element_type=jnp.float32)
        y = jnp.dot(agg.astype(jnp.bfloat16), w_ref[...],
                    preferred_element_type=jnp.float32) + b_ref[...]
        if leaky:
            y = jnp.where(y >= 0, y, LEAKY_SLOPE * y)
        return y

    x = gus_block(x, g1_w_ref, g1_b_ref, leaky=True)     # gus1 + LeakyReLU(0.2)
    x = gus_block(x, g2_w_ref, g2_b_ref, leaky=False)    # gus2
    # fc_6, padded to 128 lanes (unmasked lane-dense store); sliced in wrapper.
    out = jnp.dot(x.astype(jnp.bfloat16), fc_w_ref[...],
                  preferred_element_type=jnp.float32) + fc_b_ref[...]
    o_ref[...] = out


def pallas_tail(feats, cls_w, cls_b, g1_w, g1_b, g2_w, g2_b, fc_w, fc_b):
    b = feats.shape[0]
    kernel = functools.partial(_tail_kernel, threshold=THRESHOLD)
    out = pl.pallas_call(
        kernel,
        out_shape=jax.ShapeDtypeStruct((b, FC_PAD), jnp.float32),
        in_specs=[_vmem_spec()] * 9,
        out_specs=_vmem_spec(),
    )(feats, cls_w, cls_b, g1_w, g1_b, g2_w, g2_b, fc_w, fc_b)
    return out[:, :NUM_CLASSES]


# ---------------------------------------------------------------------------
# Plain-JAX glue (bf16 end-to-end to halve pre-kernel HBM traffic)
# ---------------------------------------------------------------------------
def _im2col_3x3_s2(x_nhwc):
    # 3x3 conv, stride 2, padding 1 (PyTorch pad=1 semantics).
    b, h, w, c = x_nhwc.shape
    oh, ow = h // 2, w // 2
    xp = jnp.pad(x_nhwc, ((0, 0), (1, 1), (1, 1), (0, 0)))
    taps = []
    for dh in range(3):
        for dw in range(3):
            taps.append(xp[:, dh:dh + 2 * oh:2, dw:dw + 2 * ow:2, :])
    p = jnp.concatenate(taps, axis=-1)               # (B, OH, OW, 9*C) bf16
    return p.reshape(b, oh * ow, 9 * c), oh * ow


def init_params(key, in_channels=3):
    ks = jax.random.split(key, 6)

    def lin(k, fan_in, fan_out):
        w = jax.random.normal(k, (fan_in, fan_out), jnp.float32) / jnp.sqrt(
            jnp.float32(fan_in))
        b = jnp.zeros((fan_out,), jnp.float32)
        return w, b

    stem_w, stem_b = lin(ks[0], 9 * in_channels, STEM_C)     # 3x3 stem conv
    head_w, head_b = lin(ks[1], STEM_C, FEAT_C)              # 1x1 head -> 1280
    cls_w, cls_b = lin(ks[2], FEAT_C, OUT_FEATURES)          # features.classifier
    gus1_w, gus1_b = lin(ks[3], FC_IN_DIM, FC_IN_DIM)
    gus2_w, gus2_b = lin(ks[4], FC_IN_DIM, FC_IN_DIM)
    fc6_w, fc6_b = lin(ks[5], FC_IN_DIM, NUM_CLASSES)
    # Pre-pad fc_6 to the lane-dense width once (no per-call pad/scatter).
    fc6_w_pad = jnp.zeros((FC_IN_DIM, FC_PAD), jnp.float32)
    fc6_w_pad = fc6_w_pad.at[:, :NUM_CLASSES].set(fc6_w)
    fc6_b_pad = jnp.zeros((1, FC_PAD), jnp.float32)
    fc6_b_pad = fc6_b_pad.at[:, :NUM_CLASSES].set(fc6_b)
    return dict(stem_w=stem_w, stem_b=stem_b, head_w=head_w, head_b=head_b,
                cls_w=cls_w, cls_b=cls_b, gus1_w=gus1_w, gus1_b=gus1_b,
                gus2_w=gus2_w, gus2_b=gus2_b,
                fc6_w_pad=fc6_w_pad, fc6_b_pad=fc6_b_pad)


@jax.jit
def hsemotion_forward(params, x_nchw):
    """Eval-mode forward. x_nchw: (B, C, H, W) float32 (PyTorch layout)."""
    bf16 = jnp.bfloat16
    x = jnp.transpose(x_nchw, (0, 2, 3, 1)).astype(bf16)          # NCHW -> NHWC
    patches, s = _im2col_3x3_s2(x)                                # (B, S, 9C) bf16
    ts, s_padded = _spatial_tiling(s)
    if s_padded != s:
        patches = jnp.pad(patches, ((0, 0), (0, s_padded - s), (0, 0)))

    # Fused frozen-backbone stand-in: stem conv + SiLU + 1x1 head + SiLU + GAP.
    pooled = pallas_backbone_pooled(
        patches,
        params["stem_w"].astype(bf16), params["stem_b"].reshape(1, STEM_C),
        params["head_w"].astype(bf16), params["head_b"].reshape(1, FEAT_C),
        s_valid=s, ts=ts)                                         # (B, 1280)

    # Fused tail: classifier -> cos-sim -> GUS1 -> LeakyReLU -> cos-sim ->
    # GUS2 -> fc_6 (lane-dense padded to 128 columns, sliced to 6 here).
    out = pallas_tail(
        pooled,
        params["cls_w"].astype(bf16), params["cls_b"].reshape(1, OUT_FEATURES),
        params["gus1_w"].astype(bf16), params["gus1_b"].reshape(1, FC_IN_DIM),
        params["gus2_w"].astype(bf16), params["gus2_b"].reshape(1, FC_IN_DIM),
        params["fc6_w_pad"].astype(bf16), params["fc6_b_pad"])
    return out                                                    # (B, 6)


if __name__ == "__main__":
    key = jax.random.PRNGKey(0)
    pkey, xkey = jax.random.split(key)
    params = init_params(pkey, in_channels=3)
    x = jax.random.normal(xkey, (2, 3, 16, 16), jnp.float32)      # NCHW input
    out = hsemotion_forward(params, x)
    out = jax.block_until_ready(out)
    assert out.shape == (2, NUM_CLASSES), out.shape
    assert jnp.all(jnp.isfinite(out))
    print("KERNEL_OK")
</pallas_src>

<mosaic_0001>
module attributes {stable_mosaic.version = 11 : i64} {
  func.func @_backbone_kernel(%arg0: i32, %arg1: i32, %arg2: i32, %arg3: memref<1x64x27xbf16, #tpu.memory_space<vmem>>, %arg4: memref<27x32xbf16, #tpu.memory_space<vmem>>, %arg5: memref<1x32xf32, #tpu.memory_space<vmem>>, %arg6: memref<32x1280xbf16, #tpu.memory_space<vmem>>, %arg7: memref<1x1280xf32, #tpu.memory_space<vmem>>, %arg8: memref<1x1x1280xf32, #tpu.memory_space<vmem>>, %arg9: memref<1x1280xf32, #tpu.memory_space<vmem>>) attributes {dimension_semantics = [#tpu.dimension_semantics<parallel>, #tpu.dimension_semantics<parallel>, #tpu.dimension_semantics<arbitrary>], iteration_bounds = array<i64: 2, 1, 1>, scalar_prefetch = 0 : i64, scratch_operands = 1 : i64, tpu.core_type = #tpu.core_type<tc>, window_params = [{transform_indices = @transform_0, window_bounds = array<i64: 1, 64, 27>}, {pipeline_mode = #tpu.pipeline_mode<synchronous>, transform_indices = @transform_1, window_bounds = array<i64: 27, 32>}, {pipeline_mode = #tpu.pipeline_mode<synchronous>, transform_indices = @transform_2, window_bounds = array<i64: 1, 32>}, {transform_indices = @transform_3, window_bounds = array<i64: 32, 1280>}, {transform_indices = @transform_4, window_bounds = array<i64: 1, 1280>}, {transform_indices = @transform_5, window_bounds = array<i64: 1, 1, 1280>}]} {
    %c0_i32 = arith.constant 0 : i32
    %0 = arith.cmpi eq, %arg2, %c0_i32 : i32
    %1 = arith.extui %0 : i1 to i32
    %c0_i32_0 = arith.constant 0 : i32
    %2 = arith.cmpi ne, %1, %c0_i32_0 : i32
    scf.if %2 {
      %cst_62 = arith.constant 0.000000e+00 : f32
      %103 = vector.broadcast %cst_62 : f32 to vector<1x1280xf32>
      %c0_63 = arith.constant 0 : index
      %c0_64 = arith.constant 0 : index
      %104 = vector.load %arg9[%c0_63, %c0_64] : memref<1x1280xf32, #tpu.memory_space<vmem>>, vector<1x1280xf32>
      tpu.vector_store %arg9[%c0_63, %c0_64], %103 {strides = array<i32>} : memref<1x1280xf32, #tpu.memory_space<vmem>>, vector<1x1280xf32>,
    } else {
    }
    %c0 = arith.constant 0 : index
    %c0_1 = arith.constant 0 : index
    %c0_2 = arith.constant 0 : index
    %3 = vector.load %arg3[%c0, %c0_1, %c0_2] : memref<1x64x27xbf16, #tpu.memory_space<vmem>>, vector<1x64x27xbf16>
    %4 = vector.shape_cast %3 : vector<1x64x27xbf16> to vector<64x27xbf16>
    %c0_3 = arith.constant 0 : index
    %c0_4 = arith.constant 0 : index
    %5 = vector.load %arg4[%c0_3, %c0_4] : memref<27x32xbf16, #tpu.memory_space<vmem>>, vector<27x32xbf16>
    %cst = arith.constant dense<0.000000e+00> : vector<64x32xf32>
    %6 = tpu.matmul %4, %5, %cst {dimension_numbers = #tpu.dot_dimension_numbers<[1], [0], [0], [1], [0, 0, 1, 1], [], []>} : vector<64x27xbf16>, vector<27x32xbf16>, vector<64x32xf32> -> vector<64x32xf32>
    %c0_5 = arith.constant 0 : index
    %c0_6 = arith.constant 0 : index
    %7 = vector.load %arg5[%c0_5, %c0_6] : memref<1x32xf32, #tpu.memory_space<vmem>>, vector<1x32xf32>
    %8 = vector.broadcast %7 : vector<1x32xf32> to vector<64x32xf32>
    %9 = arith.addf %6, %8 : vector<64x32xf32>
    %cst_7 = arith.constant 5.000000e-01 : f32
    %10 = vector.broadcast %cst_7 : f32 to vector<64x32xf32>
    %11 = arith.mulf %9, %10 : vector<64x32xf32>
    %12 = math.tanh %11 : vector<64x32xf32>
    %13 = arith.mulf %11, %12 : vector<64x32xf32>
    %14 = arith.addf %13, %11 : vector<64x32xf32>
    %15 = arith.truncf %14 : vector<64x32xf32> to vector<64x32xbf16>
    %16 = tpu.iota {dimensions = array<i32: 1>} : vector<1x64xi32>
    %c64_i32 = arith.constant 64 : i32
    %17 = arith.muli %arg2, %c64_i32 : i32
    %18 = vector.broadcast %17 : i32 to vector<1x64xi32>
    %19 = arith.addi %16, %18 : vector<1x64xi32>
    %c64_i32_8 = arith.constant 64 : i32
    %20 = vector.broadcast %c64_i32_8 : i32 to vector<1x64xi32>
    %21 = arith.cmpi slt, %19, %20 : vector<1x64xi32>
    %22 = arith.extui %21 : vector<1x64xi1> to vector<1x64xi32>
    %23 = arith.sitofp %22 : vector<1x64xi32> to vector<1x64xf32>
    %24 = arith.truncf %23 : vector<1x64xf32> to vector<1x64xbf16>
    %c0_9 = arith.constant 0 : index
    %c0_10 = arith.constant 0 : index
    %25 = vector.load %arg6[%c0_9, %c0_10] : memref<32x1280xbf16, #tpu.memory_space<vmem>>, vector<32x256xbf16>
    %cst_11 = arith.constant dense<0.000000e+00> : vector<64x256xf32>
    %26 = tpu.matmul %15, %25, %cst_11 {dimension_numbers = #tpu.dot_dimension_numbers<[1], [0], [0], [1], [0, 0, 1, 1], [], []>} : vector<64x32xbf16>, vector<32x256xbf16>, vector<64x256xf32> -> vector<64x256xf32>
    %c0_12 = arith.constant 0 : index
    %c0_13 = arith.constant 0 : index
    %27 = vector.load %arg7[%c0_12, %c0_13] : memref<1x1280xf32, #tpu.memory_space<vmem>>, vector<1x256xf32>
    %28 = vector.broadcast %27 : vector<1x256xf32> to vector<64x256xf32>
    %29 = arith.addf %26, %28 : vector<64x256xf32>
    %30 = arith.truncf %29 : vector<64x256xf32> to vector<64x256xbf16>
    %cst_14 = arith.constant 5.000000e-01 : bf16
    %31 = vector.broadcast %cst_14 : bf16 to vector<64x256xbf16>
    %32 = arith.mulf %30, %31 : vector<64x256xbf16>
    %33 = math.tanh %32 : vector<64x256xbf16>
    %34 = arith.mulf %32, %33 : vector<64x256xbf16>
    %35 = arith.addf %34, %32 : vector<64x256xbf16>
    %c0_15 = arith.constant 0 : index
    %c0_16 = arith.constant 0 : index
    %36 = vector.load %arg9[%c0_15, %c0_16] : memref<1x1280xf32, #tpu.memory_space<vmem>>, vector<1x256xf32>
    %cst_17 = arith.constant dense<0.000000e+00> : vector<1x256xf32>
    %37 = tpu.matmul %24, %35, %cst_17 {dimension_numbers = #tpu.dot_dimension_numbers<[1], [0], [0], [1], [0, 0, 1, 1], [], []>} : vector<1x64xbf16>, vector<64x256xbf16>, vector<1x256xf32> -> vector<1x256xf32>
    %38 = arith.addf %36, %37 : vector<1x256xf32>
    %c0_18 = arith.constant 0 : index
    %c0_19 = arith.constant 0 : index
    %39 = vector.load %arg9[%c0_18, %c0_19] : memref<1x1280xf32, #tpu.memory_space<vmem>>, vector<1x256xf32>
    tpu.vector_store %arg9[%c0_18, %c0_19], %38 {strides = array<i32>} : memref<1x1280xf32, #tpu.memory_space<vmem>>, vector<1x256xf32>,
    %c0_20 = arith.constant 0 : index
    %c256 = arith.constant 256 : index
    %40 = vector.load %arg6[%c0_20, %c256] : memref<32x1280xbf16, #tpu.memory_space<vmem>>, vector<32x256xbf16>
    %cst_21 = arith.constant dense<0.000000e+00> : vector<64x256xf32>
    %41 = tpu.matmul %15, %40, %cst_21 {dimension_numbers = #tpu.dot_dimension_numbers<[1], [0], [0], [1], [0, 0, 1, 1], [], []>} : vector<64x32xbf16>, vector<32x256xbf16>, vector<64x256xf32> -> vector<64x256xf32>
    %c0_22 = arith.constant 0 : index
    %c256_23 = arith.constant 256 : index
    %42 = vector.load %arg7[%c0_22, %c256_23] : memref<1x1280xf32, #tpu.memory_space<vmem>>, vector<1x256xf32>
    %43 = vector.broadcast %42 : vector<1x256xf32> to vector<64x256xf32>
    %44 = arith.addf %41, %43 : vector<64x256xf32>
    %45 = arith.truncf %44 : vector<64x256xf32> to vector<64x256xbf16>
    %cst_24 = arith.constant 5.000000e-01 : bf16
    %46 = vector.broadcast %cst_24 : bf16 to vector<64x256xbf16>
    %47 = arith.mulf %45, %46 : vector<64x256xbf16>
    %48 = math.tanh %47 : vector<64x256xbf16>
    %49 = arith.mulf %47, %48 : vector<64x256xbf16>
    %50 = arith.addf %49, %47 : vector<64x256xbf16>
    %c0_25 = arith.constant 0 : index
    %c256_26 = arith.constant 256 : index
    %51 = vector.load %arg9[%c0_25, %c256_26] : memref<1x1280xf32, #tpu.memory_space<vmem>>, vector<1x256xf32>
    %cst_27 = arith.constant dense<0.000000e+00> : vector<1x256xf32>
    %52 = tpu.matmul %24, %50, %cst_27 {dimension_numbers = #tpu.dot_dimension_numbers<[1], [0], [0], [1], [0, 0, 1, 1], [], []>} : vector<1x64xbf16>, vector<64x256xbf16>, vector<1x256xf32> -> vector<1x256xf32>
    %53 = arith.addf %51, %52 : vector<1x256xf32>
    %c0_28 = arith.constant 0 : index
    %c256_29 = arith.constant 256 : index
    %54 = vector.load %arg9[%c0_28, %c256_29] : memref<1x1280xf32, #tpu.memory_space<vmem>>, vector<1x256xf32>
    tpu.vector_store %arg9[%c0_28, %c256_29], %53 {strides = array<i32>} : memref<1x1280xf32, #tpu.memory_space<vmem>>, vector<1x256xf32>,
    %c0_30 = arith.constant 0 : index
    %c512 = arith.constant 512 : index
    %55 = vector.load %arg6[%c0_30, %c512] : memref<32x1280xbf16, #tpu.memory_space<vmem>>, vector<32x256xbf16>
    %cst_31 = arith.constant dense<0.000000e+00> : vector<64x256xf32>
    %56 = tpu.matmul %15, %55, %cst_31 {dimension_numbers = #tpu.dot_dimension_numbers<[1], [0], [0], [1], [0, 0, 1, 1], [], []>} : vector<64x32xbf16>, vector<32x256xbf16>, vector<64x256xf32> -> vector<64x256xf32>
    %c0_32 = arith.constant 0 : index
    %c512_33 = arith.constant 512 : index
    %57 = vector.load %arg7[%c0_32, %c512_33] : memref<1x1280xf32, #tpu.memory_space<vmem>>, vector<1x256xf32>
    %58 = vector.broadcast %57 : vector<1x256xf32> to vector<64x256xf32>
    %59 = arith.addf %56, %58 : vector<64x256xf32>
    %60 = arith.truncf %59 : vector<64x256xf32> to vector<64x256xbf16>
    %cst_34 = arith.constant 5.000000e-01 : bf16
    %61 = vector.broadcast %cst_34 : bf16 to vector<64x256xbf16>
    %62 = arith.mulf %60, %61 : vector<64x256xbf16>
    %63 = math.tanh %62 : vector<64x256xbf16>
    %64 = arith.mulf %62, %63 : vector<64x256xbf16>
    %65 = arith.addf %64, %62 : vector<64x256xbf16>
    %c0_35 = arith.constant 0 : index
    %c512_36 = arith.constant 512 : index
    %66 = vector.load %arg9[%c0_35, %c512_36] : memref<1x1280xf32, #tpu.memory_space<vmem>>, vector<1x256xf32>
    %cst_37 = arith.constant dense<0.000000e+00> : vector<1x256xf32>
    %67 = tpu.matmul %24, %65, %cst_37 {dimension_numbers = #tpu.dot_dimension_numbers<[1], [0], [0], [1], [0, 0, 1, 1], [], []>} : vector<1x64xbf16>, vector<64x256xbf16>, vector<1x256xf32> -> vector<1x256xf32>
    %68 = arith.addf %66, %67 : vector<1x256xf32>
    %c0_38 = arith.constant 0 : index
    %c512_39 = arith.constant 512 : index
    %69 = vector.load %arg9[%c0_38, %c512_39] : memref<1x1280xf32, #tpu.memory_space<vmem>>, vector<1x256xf32>
    tpu.vector_store %arg9[%c0_38, %c512_39], %68 {strides = array<i32>} : memref<1x1280xf32, #tpu.memory_space<vmem>>, vector<1x256xf32>,
    %c0_40 = arith.constant 0 : index
    %c768 = arith.constant 768 : index
    %70 = vector.load %arg6[%c0_40, %c768] : memref<32x1280xbf16, #tpu.memory_space<vmem>>, vector<32x256xbf16>
    %cst_41 = arith.constant dense<0.000000e+00> : vector<64x256xf32>
    %71 = tpu.matmul %15, %70, %cst_41 {dimension_numbers = #tpu.dot_dimension_numbers<[1], [0], [0], [1], [0, 0, 1, 1], [], []>} : vector<64x32xbf16>, vector<32x256xbf16>, vector<64x256xf32> -> vector<64x256xf32>
    %c0_42 = arith.constant 0 : index
    %c768_43 = arith.constant 768 : index
    %72 = vector.load %arg7[%c0_42, %c768_43] : memref<1x1280xf32, #tpu.memory_space<vmem>>, vector<1x256xf32>
    %73 = vector.broadcast %72 : vector<1x256xf32> to vector<64x256xf32>
    %74 = arith.addf %71, %73 : vector<64x256xf32>
    %75 = arith.truncf %74 : vector<64x256xf32> to vector<64x256xbf16>
    %cst_44 = arith.constant 5.000000e-01 : bf16
    %76 = vector.broadcast %cst_44 : bf16 to vector<64x256xbf16>
    %77 = arith.mulf %75, %76 : vector<64x256xbf16>
    %78 = math.tanh %77 : vector<64x256xbf16>
    %79 = arith.mulf %77, %78 : vector<64x256xbf16>
    %80 = arith.addf %79, %77 : vector<64x256xbf16>
    %c0_45 = arith.constant 0 : index
    %c768_46 = arith.constant 768 : index
    %81 = vector.load %arg9[%c0_45, %c768_46] : memref<1x1280xf32, #tpu.memory_space<vmem>>, vector<1x256xf32>
    %cst_47 = arith.constant dense<0.000000e+00> : vector<1x256xf32>
    %82 = tpu.matmul %24, %80, %cst_47 {dimension_numbers = #tpu.dot_dimension_numbers<[1], [0], [0], [1], [0, 0, 1, 1], [], []>} : vector<1x64xbf16>, vector<64x256xbf16>, vector<1x256xf32> -> vector<1x256xf32>
    %83 = arith.addf %81, %82 : vector<1x256xf32>
    %c0_48 = arith.constant 0 : index
    %c768_49 = arith.constant 768 : index
    %84 = vector.load %arg9[%c0_48, %c768_49] : memref<1x1280xf32, #tpu.memory_space<vmem>>, vector<1x256xf32>
    tpu.vector_store %arg9[%c0_48, %c768_49], %83 {strides = array<i32>} : memref<1x1280xf32, #tpu.memory_space<vmem>>, vector<1x256xf32>,
    %c0_50 = arith.constant 0 : index
    %c1024 = arith.constant 1024 : index
    %85 = vector.load %arg6[%c0_50, %c1024] : memref<32x1280xbf16, #tpu.memory_space<vmem>>, vector<32x256xbf16>
    %cst_51 = arith.constant dense<0.000000e+00> : vector<64x256xf32>
    %86 = tpu.matmul %15, %85, %cst_51 {dimension_numbers = #tpu.dot_dimension_numbers<[1], [0], [0], [1], [0, 0, 1, 1], [], []>} : vector<64x32xbf16>, vector<32x256xbf16>, vector<64x256xf32> -> vector<64x256xf32>
    %c0_52 = arith.constant 0 : index
    %c1024_53 = arith.constant 1024 : index
    %87 = vector.load %arg7[%c0_52, %c1024_53] : memref<1x1280xf32, #tpu.memory_space<vmem>>, vector<1x256xf32>
    %88 = vector.broadcast %87 : vector<1x256xf32> to vector<64x256xf32>
    %89 = arith.addf %86, %88 : vector<64x256xf32>
    %90 = arith.truncf %89 : vector<64x256xf32> to vector<64x256xbf16>
    %cst_54 = arith.constant 5.000000e-01 : bf16
    %91 = vector.broadcast %cst_54 : bf16 to vector<64x256xbf16>
    %92 = arith.mulf %90, %91 : vector<64x256xbf16>
    %93 = math.tanh %92 : vector<64x256xbf16>
    %94 = arith.mulf %92, %93 : vector<64x256xbf16>
    %95 = arith.addf %94, %92 : vector<64x256xbf16>
    %c0_55 = arith.constant 0 : index
    %c1024_56 = arith.constant 1024 : index
    %96 = vector.load %arg9[%c0_55, %c1024_56] : memref<1x1280xf32, #tpu.memory_space<vmem>>, vector<1x256xf32>
    %cst_57 = arith.constant dense<0.000000e+00> : vector<1x256xf32>
    %97 = tpu.matmul %24, %95, %cst_57 {dimension_numbers = #tpu.dot_dimension_numbers<[1], [0], [0], [1], [0, 0, 1, 1], [], []>} : vector<1x64xbf16>, vector<64x256xbf16>, vector<1x256xf32> -> vector<1x256xf32>
    %98 = arith.addf %96, %97 : vector<1x256xf32>
    %c0_58 = arith.constant 0 : index
    %c1024_59 = arith.constant 1024 : index
    %99 = vector.load %arg9[%c0_58, %c1024_59] : memref<1x1280xf32, #tpu.memory_space<vmem>>, vector<1x256xf32>
    tpu.vector_store %arg9[%c0_58, %c1024_59], %98 {strides = array<i32>} : memref<1x1280xf32, #tpu.memory_space<vmem>>, vector<1x256xf32>,
    %c0_i32_60 = arith.constant 0 : i32
    %100 = arith.cmpi eq, %arg2, %c0_i32_60 : i32
    %101 = arith.extui %100 : i1 to i32
    %c0_i32_61 = arith.constant 0 : i32
    %102 = arith.cmpi ne, %101, %c0_i32_61 : i32
    scf.if %102 {
      %c0_62 = arith.constant 0 : index
      %c0_63 = arith.constant 0 : index
      %103 = vector.load %arg9[%c0_62, %c0_63] : memref<1x1280xf32, #tpu.memory_space<vmem>>, vector<1x1280xf32>
      %cst_64 = arith.constant 1.562500e-02 : f32
      %104 = vector.broadcast %cst_64 : f32 to vector<1x1280xf32>
      %105 = arith.mulf %103, %104 : vector<1x1280xf32>
      %c0_65 = arith.constant 0 : index
      %c0_66 = arith.constant 0 : index
      %c0_67 = arith.constant 0 : index
      %106 = vector.load %arg8[%c0_65, %c0_66, %c0_67] : memref<1x1x1280xf32, #tpu.memory_space<vmem>>, vector<1x1x1280xf32>
      %107 = vector.shape_cast %106 : vector<1x1x1280xf32> to vector<1x1280xf32>
      %108 = vector.shape_cast %105 : vector<1x1280xf32> to vector<1x1x1280xf32>
      tpu.vector_store %arg8[%c0_65, %c0_66, %c0_67], %108 {strides = array<i32>} : memref<1x1x1280xf32, #tpu.memory_space<vmem>>, vector<1x1x1280xf32>,
    } else {
    }
    return
  }
  func.func @transform_0(%arg0: i32, %arg1: i32, %arg2: i32) -> (i32, i32, i32) {
    %c0_i32 = arith.constant 0 : i32
    %c0_i32_0 = arith.constant 0 : i32
    return %arg0, %arg2, %c0_i32 : i32, i32, i32
  }
  func.func @transform_1(%arg0: i32, %arg1: i32, %arg2: i32) -> (i32, i32) {
    %c0_i32 = arith.constant 0 : i32
    %c0_i32_0 = arith.constant 0 : i32
    %c0_i32_1 = arith.constant 0 : i32
    return %c0_i32, %c0_i32_0 : i32, i32
  }
  func.func @transform_2(%arg0: i32, %arg1: i32, %arg2: i32) -> (i32, i32) {
    %c0_i32 = arith.constant 0 : i32
    %c0_i32_0 = arith.constant 0 : i32
    %c0_i32_1 = arith.constant 0 : i32
    return %c0_i32, %c0_i32_0 : i32, i32
  }
  func.func @transform_3(%arg0: i32, %arg1: i32, %arg2: i32) -> (i32, i32) {
    %c0_i32 = arith.constant 0 : i32
    %c0_i32_0 = arith.constant 0 : i32
    return %c0_i32, %arg1 : i32, i32
  }
  func.func @transform_4(%arg0: i32, %arg1: i32, %arg2: i32) -> (i32, i32) {
    %c0_i32 = arith.constant 0 : i32
    %c0_i32_0 = arith.constant 0 : i32
    return %c0_i32, %arg1 : i32, i32
  }
  func.func @transform_5(%arg0: i32, %arg1: i32, %arg2: i32) -> (i32, i32, i32) {
    %c0_i32 = arith.constant 0 : i32
    %c0_i32_0 = arith.constant 0 : i32
    return %arg0, %c0_i32, %arg1 : i32, i32, i32
  }
}

module attributes {stable_mosaic.version = 11 : i64} {
  func.func @_tail_kernel(%arg0: memref<2x1280xf32, #tpu.memory_space<vmem>>, %arg1: memref<1280x512xbf16, #tpu.memory_space<vmem>>, %arg2: memref<1x512xf32, #tpu.memory_space<vmem>>, %arg3: memref<512x512xbf16, #tpu.memory_space<vmem>>, %arg4: memref<1x512xf32, #tpu.memory_space<vmem>>, %arg5: memref<512x512xbf16, #tpu.memory_space<vmem>>, %arg6: memref<1x512xf32, #tpu.memory_space<vmem>>, %arg7: memref<512x128xbf16, #tpu.memory_space<vmem>>, %arg8: memref<1x128xf32, #tpu.memory_space<vmem>>, %arg9: memref<2x128xf32, #tpu.memory_space<vmem>>) attributes {dimension_semantics = [], scalar_prefetch = 0 : i64, scratch_operands = 0 : i64, tpu.core_type = #tpu.core_type<tc>} {
    %c0 = arith.constant 0 : index
    %c0_0 = arith.constant 0 : index
    %0 = vector.load %arg0[%c0, %c0_0] : memref<2x1280xf32, #tpu.memory_space<vmem>>, vector<2x1280xf32>
    %1 = arith.truncf %0 : vector<2x1280xf32> to vector<2x1280xbf16>
    %c0_1 = arith.constant 0 : index
    %c0_2 = arith.constant 0 : index
    %2 = vector.load %arg1[%c0_1, %c0_2] : memref<1280x512xbf16, #tpu.memory_space<vmem>>, vector<1280x512xbf16>
    %cst = arith.constant dense<0.000000e+00> : vector<2x512xf32>
    %3 = tpu.matmul %1, %2, %cst {dimension_numbers = #tpu.dot_dimension_numbers<[1], [0], [0], [1], [0, 0, 1, 1], [], []>} : vector<2x1280xbf16>, vector<1280x512xbf16>, vector<2x512xf32> -> vector<2x512xf32>
    %c0_3 = arith.constant 0 : index
    %c0_4 = arith.constant 0 : index
    %4 = vector.load %arg2[%c0_3, %c0_4] : memref<1x512xf32, #tpu.memory_space<vmem>>, vector<1x512xf32>
    %5 = vector.broadcast %4 : vector<1x512xf32> to vector<2x512xf32>
    %6 = arith.addf %3, %5 : vector<2x512xf32>
    %7 = arith.mulf %6, %6 : vector<2x512xf32>
    %cst_5 = arith.constant dense<0.000000e+00> : vector<2xf32>
    %8 = vector.multi_reduction <add>, %7, %cst_5 [1] : vector<2x512xf32> to vector<2xf32>
    %9 = vector.shape_cast %8 : vector<2xf32> to vector<2x1xf32>
    %cst_6 = arith.constant 1.000000e-24 : f32
    %10 = vector.broadcast %cst_6 : f32 to vector<2x1xf32>
    %11 = arith.maximumf %9, %10 : vector<2x1xf32>
    %12 = math.rsqrt %11 : vector<2x1xf32>
    %13 = vector.broadcast %12 : vector<2x1xf32> to vector<2x512xf32>
    %14 = arith.mulf %6, %13 : vector<2x512xf32>
    %cst_7 = arith.constant dense<0.000000e+00> : vector<2x2xf32>
    %15 = tpu.matmul %14, %14, %cst_7 {dimension_numbers = #tpu.dot_dimension_numbers<[1], [1], [0], [0], [0, 0, 1, 0], [], []>} : vector<2x512xf32>, vector<2x512xf32>, vector<2x2xf32> -> vector<2x2xf32>
    %cst_8 = arith.constant 5.000000e-01 : f32
    %16 = vector.broadcast %cst_8 : f32 to vector<2x2xf32>
    %17 = arith.cmpf ogt, %15, %16 : vector<2x2xf32>
    %18 = arith.extui %17 : vector<2x2xi1> to vector<2x2xi32>
    %19 = arith.sitofp %18 : vector<2x2xi32> to vector<2x2xf32>
    %cst_9 = arith.constant dense<0.000000e+00> : vector<2xf32>
    %20 = vector.multi_reduction <add>, %19, %cst_9 [1] : vector<2x2xf32> to vector<2xf32>
    %21 = vector.shape_cast %20 : vector<2xf32> to vector<2x1xf32>
    %cst_10 = arith.constant 1.000000e+00 : f32
    %22 = vector.broadcast %cst_10 : f32 to vector<2x1xf32>
    %23 = arith.maximumf %21, %22 : vector<2x1xf32>
    %24 = vector.broadcast %23 : vector<2x1xf32> to vector<2x2xf32>
    %25 = arith.divf %19, %24 : vector<2x2xf32>
    %cst_11 = arith.constant dense<0.000000e+00> : vector<2x512xf32>
    %26 = tpu.matmul %25, %6, %cst_11 {dimension_numbers = #tpu.dot_dimension_numbers<[1], [0], [0], [1], [0, 0, 1, 1], [], []>} : vector<2x2xf32>, vector<2x512xf32>, vector<2x512xf32> -> vector<2x512xf32>
    %27 = arith.truncf %26 : vector<2x512xf32> to vector<2x512xbf16>
    %c0_12 = arith.constant 0 : index
    %c0_13 = arith.constant 0 : index
    %28 = vector.load %arg3[%c0_12, %c0_13] : memref<512x512xbf16, #tpu.memory_space<vmem>>, vector<512x512xbf16>
    %cst_14 = arith.constant dense<0.000000e+00> : vector<2x512xf32>
    %29 = tpu.matmul %27, %28, %cst_14 {dimension_numbers = #tpu.dot_dimension_numbers<[1], [0], [0], [1], [0, 0, 1, 1], [], []>} : vector<2x512xbf16>, vector<512x512xbf16>, vector<2x512xf32> -> vector<2x512xf32>
    %c0_15 = arith.constant 0 : index
    %c0_16 = arith.constant 0 : index
    %30 = vector.load %arg4[%c0_15, %c0_16] : memref<1x512xf32, #tpu.memory_space<vmem>>, vector<1x512xf32>
    %31 = vector.broadcast %30 : vector<1x512xf32> to vector<2x512xf32>
    %32 = arith.addf %29, %31 : vector<2x512xf32>
    %cst_17 = arith.constant 0.000000e+00 : f32
    %33 = vector.broadcast %cst_17 : f32 to vector<2x512xf32>
    %34 = arith.cmpf oge, %32, %33 : vector<2x512xf32>
    %cst_18 = arith.constant 2.000000e-01 : f32
    %35 = vector.broadcast %cst_18 : f32 to vector<2x512xf32>
    %36 = arith.mulf %35, %32 : vector<2x512xf32>
    %37 = arith.select %34, %32, %36 : vector<2x512xi1>, vector<2x512xf32>
    %38 = arith.mulf %37, %37 : vector<2x512xf32>
    %cst_19 = arith.constant dense<0.000000e+00> : vector<2xf32>
    %39 = vector.multi_reduction <add>, %38, %cst_19 [1] : vector<2x512xf32> to vector<2xf32>
    %40 = vector.shape_cast %39 : vector<2xf32> to vector<2x1xf32>
    %cst_20 = arith.constant 1.000000e-24 : f32
    %41 = vector.broadcast %cst_20 : f32 to vector<2x1xf32>
    %42 = arith.maximumf %40, %41 : vector<2x1xf32>
    %43 = math.rsqrt %42 : vector<2x1xf32>
    %44 = vector.broadcast %43 : vector<2x1xf32> to vector<2x512xf32>
    %45 = arith.mulf %37, %44 : vector<2x512xf32>
    %cst_21 = arith.constant dense<0.000000e+00> : vector<2x2xf32>
    %46 = tpu.matmul %45, %45, %cst_21 {dimension_numbers = #tpu.dot_dimension_numbers<[1], [1], [0], [0], [0, 0, 1, 0], [], []>} : vector<2x512xf32>, vector<2x512xf32>, vector<2x2xf32> -> vector<2x2xf32>
    %cst_22 = arith.constant 5.000000e-01 : f32
    %47 = vector.broadcast %cst_22 : f32 to vector<2x2xf32>
    %48 = arith.cmpf ogt, %46, %47 : vector<2x2xf32>
    %49 = arith.extui %48 : vector<2x2xi1> to vector<2x2xi32>
    %50 = arith.sitofp %49 : vector<2x2xi32> to vector<2x2xf32>
    %cst_23 = arith.constant dense<0.000000e+00> : vector<2xf32>
    %51 = vector.multi_reduction <add>, %50, %cst_23 [1] : vector<2x2xf32> to vector<2xf32>
    %52 = vector.shape_cast %51 : vector<2xf32> to vector<2x1xf32>
    %cst_24 = arith.constant 1.000000e+00 : f32
    %53 = vector.broadcast %cst_24 : f32 to vector<2x1xf32>
    %54 = arith.maximumf %52, %53 : vector<2x1xf32>
    %55 = vector.broadcast %54 : vector<2x1xf32> to vector<2x2xf32>
    %56 = arith.divf %50, %55 : vector<2x2xf32>
    %cst_25 = arith.constant dense<0.000000e+00> : vector<2x512xf32>
    %57 = tpu.matmul %56, %37, %cst_25 {dimension_numbers = #tpu.dot_dimension_numbers<[1], [0], [0], [1], [0, 0, 1, 1], [], []>} : vector<2x2xf32>, vector<2x512xf32>, vector<2x512xf32> -> vector<2x512xf32>
    %58 = arith.truncf %57 : vector<2x512xf32> to vector<2x512xbf16>
    %c0_26 = arith.constant 0 : index
    %c0_27 = arith.constant 0 : index
    %59 = vector.load %arg5[%c0_26, %c0_27] : memref<512x512xbf16, #tpu.memory_space<vmem>>, vector<512x512xbf16>
    %cst_28 = arith.constant dense<0.000000e+00> : vector<2x512xf32>
    %60 = tpu.matmul %58, %59, %cst_28 {dimension_numbers = #tpu.dot_dimension_numbers<[1], [0], [0], [1], [0, 0, 1, 1], [], []>} : vector<2x512xbf16>, vector<512x512xbf16>, vector<2x512xf32> -> vector<2x512xf32>
    %c0_29 = arith.constant 0 : index
    %c0_30 = arith.constant 0 : index
    %61 = vector.load %arg6[%c0_29, %c0_30] : memref<1x512xf32, #tpu.memory_space<vmem>>, vector<1x512xf32>
    %62 = vector.broadcast %61 : vector<1x512xf32> to vector<2x512xf32>
    %63 = arith.addf %60, %62 : vector<2x512xf32>
    %64 = arith.truncf %63 : vector<2x512xf32> to vector<2x512xbf16>
    %c0_31 = arith.constant 0 : index
    %c0_32 = arith.constant 0 : index
    %65 = vector.load %arg7[%c0_31, %c0_32] : memref<512x128xbf16, #tpu.memory_space<vmem>>, vector<512x128xbf16>
    %cst_33 = arith.constant dense<0.000000e+00> : vector<2x128xf32>
    %66 = tpu.matmul %64, %65, %cst_33 {dimension_numbers = #tpu.dot_dimension_numbers<[1], [0], [0], [1], [0, 0, 1, 1], [], []>} : vector<2x512xbf16>, vector<512x128xbf16>, vector<2x128xf32> -> vector<2x128xf32>
    %c0_34 = arith.constant 0 : index
    %c0_35 = arith.constant 0 : index
    %67 = vector.load %arg8[%c0_34, %c0_35] : memref<1x128xf32, #tpu.memory_space<vmem>>, vector<1x128xf32>
    %68 = vector.broadcast %67 : vector<1x128xf32> to vector<2x128xf32>
    %69 = arith.addf %66, %68 : vector<2x128xf32>
    %c0_36 = arith.constant 0 : index
    %c0_37 = arith.constant 0 : index
    %70 = vector.load %arg9[%c0_36, %c0_37] : memref<2x128xf32, #tpu.memory_space<vmem>>, vector<2x128xf32>
    tpu.vector_store %arg9[%c0_36, %c0_37], %69 {strides = array<i32>} : memref<2x128xf32, #tpu.memory_space<vmem>>, vector<2x128xf32>,
    return
  }
}

</mosaic_0001>

<llo_original>
// kernel: hsemotion_forward.2
$region0: #{hsemotion_forward.2}
  #allocation0 [shape = 'u32[]', space=smem, size = 0x4, offset = 0x4, fixed_abs, tag = 'smem constant byte address 0x4 - core index']
  #allocation1 [shape = 'u32[144,128]{1,0:T(1,128)}', space=vmem, size = 0x12000, scoped, tag = 'internal scratch']
  #allocation2 [shape = 'f32[1,1280]{1,0:T(1,128)}', space=vmem, size = 0x1400, scoped, tag = 'scratch operand']
  %s0 = inlined_call_operand.hbm [shape: bf16[2,64,27], index: 0, kind: input, shape index: {}]
  %s1 = inlined_call_operand.hbm [shape: bf16[27,32], index: 1, kind: input, shape index: {}]
  %s2 = inlined_call_operand.hbm [shape: f32[1,32], index: 2, kind: input, shape index: {}]
  %s3 = inlined_call_operand.hbm [shape: bf16[32,1280], index: 3, kind: input, shape index: {}]
  %s4 = inlined_call_operand.hbm [shape: f32[1,1280], index: 4, kind: input, shape index: {}]
  %s5 = inlined_call_operand.hbm [shape: f32[2,1,1280], index: 5, kind: output, shape index: {}]
  %s6 = sld [smem:[#allocation0]]
  $region81: #{hsemotion_forward.2} parent=0
    _
  %s8 = ssub.s32 1, %s6
  %s9 = scalar_select 0, %s8, %s6
  $region1: #{hsemotion_forward.2} parent=0
    #allocation3 [shape = 'u8[32768]{0}', space=vmem, size = 0x8000, scoped, tag = 'input window, operand 0']
    #allocation4 [shape = 's32[2]{0}', space=sflag, size = 0x8, scoped, tag = 'scoped memory for hsemotion_forward.2']
    #allocation5 [shape = 's32[2]{0}', space=sflag, size = 0x8, scoped, tag = 'scoped memory for hsemotion_forward.2']
    #allocation6 [shape = 'u8[8192]{0}', space=vmem, size = 0x2000, scoped, tag = 'input window, operand 1, single buffered']
    #allocation7 [shape = 's32[1]{0}', space=sflag, size = 0x4, scoped, tag = 'scoped memory for hsemotion_forward.2']
    #allocation8 [shape = 'u8[512]{0}', space=vmem, size = 0x400, scoped, tag = 'input window, operand 2, single buffered']
    #allocation9 [shape = 'u8[81920]{0}', space=vmem, size = 0x14000, scoped, tag = 'input window, operand 3, single buffered']
    #allocation10 [shape = 's32[1]{0}', space=sflag, size = 0x4, scoped, tag = 'scoped memory for hsemotion_forward.2']
    #allocation11 [shape = 'u8[5120]{0}', space=vmem, size = 0x1400, scoped, tag = 'input window, operand 4, single buffered']
    #allocation12 [shape = 'u8[10240]{0}', space=vmem, size = 0x2800, scoped, tag = 'output window, operand 0']
    %10 = vsyncpa [#allocation4], 0
    %s11 = scalar_lea.sflag [#allocation4], 1
    %12 = vsyncpa %s11, 0
    %13 = vsyncpa [#allocation7], 0
    %14 = vsyncpa [#allocation10], 0
    %15 = vsyncpa [#allocation5], 0
    %s16 = scalar_lea.sflag [#allocation5], 1
    %17 = vsyncpa %s16, 0
    loop: start=0, step=1, limit=4
    $region2: #{hsemotion_forward.2} parent=1 // loop_pre_header
      _
    $region3: #{hsemotion_forward.2} parent=1 // loop_header
      %s19 = sphi 0, %s23
      %p20 = scmp.ge.s32.totalorder %s19, 4
      %s26 = sphi 0, %s45
      %s27 = sphi 0, %s41
      %s28 = sphi 0, %s37
      %s29 = sphi 0, %s26
      %s30 = sphi 0, %s27
      %s31 = sphi 0, %s28
      %s32 = sphi 0, %s29
      %s33 = sphi 0, %s30
      %s34 = sphi 0, %s31
      %s50 = sphi 0, %s52
      %s53 = sphi 0, %s50
      %s54 = sphi 0, %s53
      %s70 = sphi 0, %s54
      %s74 = sphi 0, %s74
      %s76 = sphi 0, %s74
      %s77 = sphi 0, %s76
      %s91 = sphi 0, %s77
      %s95 = sphi 0, %s95
      %s97 = sphi 0, %s95
      %s98 = sphi 0, %s97
      %s112 = sphi 0, %s98
      %s118 = sphi 0, %s120
      %s121 = sphi 0, %s118
      %s122 = sphi 0, %s121
      %s138 = sphi 0, %s122
      %s144 = sphi 0, %s146
      %s147 = sphi 0, %s144
      %s148 = sphi 0, %s147
      %s164 = sphi 0, %s148
      %s172 = sphi 0, %s174
      %s175 = sphi 0, %s172
      %s176 = sphi 0, %s175
      %s192 = sphi 0, %s176
    $region4: #{hsemotion_forward.2} parent=1 // loop_header_branch
      %22 = sbr.rel (%p20) target = $region8
    $region5: #{hsemotion_forward.2} parent=1 // loop_body
      %s24 = ssub.s32 %s19, 1
      %s25 = ssub.s32 %s19, 2
      %s35 = sadd.s32 1, %s28
      %p36 = scmp.ge.s32.totalorder %s35, 1
      %s37 = scalar_select %p36, 0, %s35
      %s38 = sadd.s32 1, %s27
      %s39 = scalar_select %p36, %s38, %s27
      %p40 = scmp.ge.s32.totalorder %s39, 1
      %s41 = scalar_select %p40, 0, %s39
      %s42 = sadd.s32 1, %s26
      %s43 = scalar_select %p40, %s42, %s26
      %p44 = scmp.ge.s32.totalorder %s43, 2
      %s45 = scalar_select %p44, 0, %s43
      %s46 = ssub.s32 %s26, %s45
      %s47 = ssub.s32 %s28, %s37
      %s48 = sor.u32 %s46, %s47
      %p49 = scmp.eq.s32.totalorder %s48, 0
      %s51 = sadd.s32 %s50, 1
      %s52 = scalar_select %p49, %s50, %s51
      %p55 = pneg %p49
      %p56 = scmp.eq.s32.totalorder %s19, 1
      %p57 = por %p55, %p56
      %p58 = scmp.ne.s32.totalorder %s50, %s53
      %p59 = scmp.eq.s32.totalorder %s19, 0
      %p60 = por %p58, %p59
      %p61 = scmp.ne.s32.totalorder %s50, %s53
      %p62 = scmp.eq.s32.totalorder %s24, 1
      %p63 = por %p61, %p62
      %p64 = scmp.ne.s32.totalorder %s53, %s54
      %p65 = scmp.eq.s32.totalorder %s24, 0
      %p66 = por %p64, %p65
      %p67 = scmp.ne.s32.totalorder %s53, %s54
      %p68 = scmp.eq.s32.totalorder %s25, 1
      %p69 = por %p67, %p68
      %p71 = scmp.ne.s32.totalorder %s54, %s70
      %p72 = scmp.eq.s32.totalorder %s25, 0
      %p73 = por %p71, %p72
      %s75 = sadd.s32 %s74, 1
      %p78 = scmp.eq.s32.totalorder %s19, 1
      %p79 = scmp.ne.s32.totalorder %s74, %s76
      %p80 = scmp.eq.s32.totalorder %s19, 0
      %p81 = por %p79, %p80
      %p82 = scmp.ne.s32.totalorder %s74, %s76
      %p83 = scmp.eq.s32.totalorder %s24, 1
      %p84 = por %p82, %p83
      %p85 = scmp.ne.s32.totalorder %s76, %s77
      %p86 = scmp.eq.s32.totalorder %s24, 0
      %p87 = por %p85, %p86
      %p88 = scmp.ne.s32.totalorder %s76, %s77
      %p89 = scmp.eq.s32.totalorder %s25, 1
      %p90 = por %p88, %p89
      %p92 = scmp.ne.s32.totalorder %s77, %s91
      %p93 = scmp.eq.s32.totalorder %s25, 0
      %p94 = por %p92, %p93
      %s96 = sadd.s32 %s95, 1
      %p99 = scmp.eq.s32.totalorder %s19, 1
      %p100 = scmp.ne.s32.totalorder %s95, %s97
      %p101 = scmp.eq.s32.totalorder %s19, 0
      %p102 = por %p100, %p101
      %p103 = scmp.ne.s32.totalorder %s95, %s97
      %p104 = scmp.eq.s32.totalorder %s24, 1
      %p105 = por %p103, %p104
      %p106 = scmp.ne.s32.totalorder %s97, %s98
      %p107 = scmp.eq.s32.totalorder %s24, 0
      %p108 = por %p106, %p107
      %p109 = scmp.ne.s32.totalorder %s97, %s98
      %p110 = scmp.eq.s32.totalorder %s25, 1
      %p111 = por %p109, %p110
      %p113 = scmp.ne.s32.totalorder %s98, %s112
      %p114 = scmp.eq.s32.totalorder %s25, 0
      %p115 = por %p113, %p114
      %s116 = ssub.s32 %s27, %s41
      %p117 = scmp.eq.s32.totalorder %s116, 0
      %s119 = sadd.s32 %s118, 1
      %s120 = scalar_select %p117, %s118, %s119
      %p123 = pneg %p117
      %p124 = scmp.eq.s32.totalorder %s19, 1
      %p125 = por %p123, %p124
      %p126 = scmp.ne.s32.totalorder %s118, %s121
      %p127 = scmp.eq.s32.totalorder %s19, 0
      %p128 = por %p126, %p127
      %p129 = scmp.ne.s32.totalorder %s118, %s121
      %p130 = scmp.eq.s32.totalorder %s24, 1
      %p131 = por %p129, %p130
      %p132 = scmp.ne.s32.totalorder %s121, %s122
      %p133 = scmp.eq.s32.totalorder %s24, 0
      %p134 = por %p132, %p133
      %p135 = scmp.ne.s32.totalorder %s121, %s122
      %p136 = scmp.eq.s32.totalorder %s25, 1
      %p137 = por %p135, %p136
      %p139 = scmp.ne.s32.totalorder %s122, %s138
      %p140 = scmp.eq.s32.totalorder %s25, 0
      %p141 = por %p139, %p140
      %s142 = ssub.s32 %s27, %s41
      %p143 = scmp.eq.s32.totalorder %s142, 0
      %s145 = sadd.s32 %s144, 1
      %s146 = scalar_select %p143, %s144, %s145
      %p149 = pneg %p143
      %p150 = scmp.eq.s32.totalorder %s19, 1
      %p151 = por %p149, %p150
      %p152 = scmp.ne.s32.totalorder %s144, %s147
      %p153 = scmp.eq.s32.totalorder %s19, 0
      %p154 = por %p152, %p153
      %p155 = scmp.ne.s32.totalorder %s144, %s147
      %p156 = scmp.eq.s32.totalorder %s24, 1
      %p157 = por %p155, %p156
      %p158 = scmp.ne.s32.totalorder %s147, %s148
      %p159 = scmp.eq.s32.totalorder %s24, 0
      %p160 = por %p158, %p159
      %p161 = scmp.ne.s32.totalorder %s147, %s148
      %p162 = scmp.eq.s32.totalorder %s25, 1
      %p163 = por %p161, %p162
      %p165 = scmp.ne.s32.totalorder %s148, %s164
      %p166 = scmp.eq.s32.totalorder %s25, 0
      %p167 = por %p165, %p166
      %s168 = ssub.s32 %s26, %s45
      %s169 = ssub.s32 %s27, %s41
      %s170 = sor.u32 %s168, %s169
      %p171 = scmp.eq.s32.totalorder %s170, 0
      %s173 = sadd.s32 %s172, 1
      %s174 = scalar_select %p171, %s172, %s173
      %p177 = pneg %p171
      %p178 = scmp.eq.s32.totalorder %s19, 1
      %p179 = por %p177, %p178
      %p180 = scmp.ne.s32.totalorder %s172, %s175
      %p181 = scmp.eq.s32.totalorder %s19, 0
      %p182 = por %p180, %p181
      %p183 = scmp.ne.s32.totalorder %s172, %s175
      %p184 = scmp.eq.s32.totalorder %s24, 1
      %p185 = por %p183, %p184
      %p186 = scmp.ne.s32.totalorder %s175, %s176
      %p187 = scmp.eq.s32.totalorder %s24, 0
      %p188 = por %p186, %p187
      %p189 = scmp.ne.s32.totalorder %s175, %s176
      %p190 = scmp.eq.s32.totalorder %s25, 1
      %p191 = por %p189, %p190
      %p193 = scmp.ne.s32.totalorder %s176, %s192
      %p194 = scmp.eq.s32.totalorder %s25, 0
      %p195 = por %p193, %p194
      %p196 = scmp.le.s32.totalorder 1, %s19
      %p197 = scmp.lt.s32.totalorder %s19, 3
      %p198 = pnand %p196, %p197
      %p199 = pneg %p198
      // Predicated region
      $region9: #{hsemotion_forward.2} parent=5 // pred_check
        _
      $region10: #{hsemotion_forward.2} parent=5 // pred_check_branch
        %201 = sbr.rel (%p198) target = $region12
      $region11: #{hsemotion_forward.2} parent=5 // pred_region
        %s202 = ssub.s32 %s19, 1
        // Predicated region
        $region13: #{hsemotion_forward.2} parent=11 // pred_check
          %p203 = pneg %p87
        $region14: #{hsemotion_forward.2} parent=11 // pred_check_branch
          %205 = sbr.rel (%p203) target = $region16
        $region15: #{hsemotion_forward.2} parent=11 // pred_region
          %s207 = ssub.s32 256, 256
          %208 = vsyncadd [#allocation7], %s207
          %s209 = sshll.u32 [#allocation6], 4
          %s210 = int_to_ptr.vmem [resolvable:$true] %s209
          %215 = dma.hbm_to_vmem [thread:$0]  %s1, 256, %s210, [#allocation7], 64, 64, 4
        $region16: #{hsemotion_forward.2} parent=11 // pred_fallthru
          _
        // Predicated region
        $region17: #{hsemotion_forward.2} parent=11 // pred_check
          %p216 = pneg %p108
        $region18: #{hsemotion_forward.2} parent=11 // pred_check_branch
          %218 = sbr.rel (%p216) target = $region20
        $region19: #{hsemotion_forward.2} parent=11 // pred_region
          %s220 = ssub.s32 16, 16
          %221 = vsyncadd [#allocation7], %s220
          %s223 = sshll.u32 [#allocation8], 4
          %s224 = int_to_ptr.vmem [resolvable:$true] %s223
          %226 = dma.hbm_to_vmem [thread:$0]  %s2, 16, %s224, [#allocation7]
        $region20: #{hsemotion_forward.2} parent=11 // pred_fallthru
          _
        // Predicated region
        $region21: #{hsemotion_forward.2} parent=11 // pred_check
          %p227 = pneg %p134
        $region22: #{hsemotion_forward.2} parent=11 // pred_check_branch
          %229 = sbr.rel (%p227) target = $region24
        $region23: #{hsemotion_forward.2} parent=11 // pred_region
          %s230 = smul.u32 10, %s30
          %s232 = ssub.s32 2560, 2560
          %233 = vsyncadd [#allocation10], %s232
          %s234 = smul.addr %s230, 64
          %s235 = scalar_lea.hbm %s3, %s234
          %s236 = sshll.u32 [#allocation9], 4
          %s237 = int_to_ptr.vmem [resolvable:$true] %s236
          %242 = dma.hbm_to_vmem [thread:$0]  %s235, 2560, %s237, [#allocation10], 640, 640, 40
        $region24: #{hsemotion_forward.2} parent=11 // pred_fallthru
          _
        // Predicated region
        $region25: #{hsemotion_forward.2} parent=11 // pred_check
          %p243 = pneg %p160
        $region26: #{hsemotion_forward.2} parent=11 // pred_check_branch
          %245 = sbr.rel (%p243) target = $region28
        $region27: #{hsemotion_forward.2} parent=11 // pred_region
          %s246 = smul.u32 10, %s30
          %s248 = ssub.s32 160, 160
          %249 = vsyncadd [#allocation10], %s248
          %s250 = smul.addr %s246, 16
          %s251 = scalar_lea.hbm %s4, %s250
          %s253 = sshll.u32 [#allocation11], 4
          %s254 = int_to_ptr.vmem [resolvable:$true] %s253
          %256 = dma.hbm_to_vmem [thread:$0]  %s251, 160, %s254, [#allocation10]
        $region28: #{hsemotion_forward.2} parent=11 // pred_fallthru
          _
      $region12: #{hsemotion_forward.2} parent=5 // pred_fallthru
        _
      %p257 = scmp.lt.s32.totalorder %s19, 2
      // Predicated region
      $region29: #{hsemotion_forward.2} parent=5 // pred_check
        %p258 = pneg %p257
      $region30: #{hsemotion_forward.2} parent=5 // pred_check_branch
        %260 = sbr.rel (%p258) target = $region32
      $region31: #{hsemotion_forward.2} parent=5 // pred_region
        // Predicated region
        $region33: #{hsemotion_forward.2} parent=31 // pred_check
          %p261 = pneg %p60
        $region34: #{hsemotion_forward.2} parent=31 // pred_check_branch
          %263 = sbr.rel (%p261) target = $region36
        $region35: #{hsemotion_forward.2} parent=31 // pred_region
          %s264 = sand.u32 %s50, 1
          %s265 = scalar_lea.sflag [#allocation4], %s264
          %s266 = sand.u32 %s50, 1
          %s267 = smul.addr %s266, 32
          %s268 = scalar_lea.vmem [#allocation3], %s267
          %s269 = smul.u32 8, %s28
          %s271 = ssub.s32 512, 512
          %272 = vsyncadd %s265, %s271
          %s273 = smul.addr %s26, 8
          %s274 = sadd.s32 %s269, %s273
          %s275 = smul.addr %s274, 64
          %s276 = scalar_lea.hbm %s0, %s275
          %s277 = sshll.u32 %s268, 4
          %s278 = int_to_ptr.vmem [resolvable:$true] %s277
          %283 = dma.hbm_to_vmem [thread:$0]  %s276, 512, %s278, %s265, 64, 64, 4
        $region36: #{hsemotion_forward.2} parent=31 // pred_fallthru
          _
      $region32: #{hsemotion_forward.2} parent=5 // pred_fallthru
        _
      %p284 = scmp.le.s32.totalorder 1, %s19
      %p285 = scmp.lt.s32.totalorder %s19, 3
      %p286 = pnand %p284, %p285
      %p287 = pneg %p286
      // Predicated region
      $region37: #{hsemotion_forward.2} parent=5 // pred_check
        _
      $region38: #{hsemotion_forward.2} parent=5 // pred_check_branch
        %289 = sbr.rel (%p286) target = $region40
      $region39: #{hsemotion_forward.2} parent=5 // pred_region
        %s290 = ssub.s32 %s19, 1
        %s291 = sand.u32 %s53, 1
        %s292 = scalar_lea.sflag [#allocation4], %s291
        %s293 = sand.u32 %s53, 1
        %s294 = smul.addr %s293, 32
        %s295 = scalar_lea.vmem [#allocation3], %s294
        // Predicated region
        $region41: #{hsemotion_forward.2} parent=39 // pred_check
          %p296 = pneg %p66
        $region42: #{hsemotion_forward.2} parent=39 // pred_check_branch
          %298 = sbr.rel (%p296) target = $region44
        $region43: #{hsemotion_forward.2} parent=39 // pred_region
          %299 = dma.done %s292, 512
        $region44: #{hsemotion_forward.2} parent=39 // pred_fallthru
          _
        // Predicated region
        $region45: #{hsemotion_forward.2} parent=39 // pred_check
          %p300 = pneg %p87
        $region46: #{hsemotion_forward.2} parent=39 // pred_check_branch
          %302 = sbr.rel (%p300) target = $region48
        $region47: #{hsemotion_forward.2} parent=39 // pred_region
          %303 = dma.done [#allocation7], 256
        $region48: #{hsemotion_forward.2} parent=39 // pred_fallthru
          _
        // Predicated region
        $region49: #{hsemotion_forward.2} parent=39 // pred_check
          %p304 = pneg %p108
        $region50: #{hsemotion_forward.2} parent=39 // pred_check_branch
          %306 = sbr.rel (%p304) target = $region52
        $region51: #{hsemotion_forward.2} parent=39 // pred_region
          %307 = dma.done [#allocation7], 16
        $region52: #{hsemotion_forward.2} parent=39 // pred_fallthru
          _
        // Predicated region
        $region53: #{hsemotion_forward.2} parent=39 // pred_check
          %p308 = pneg %p134
        $region54: #{hsemotion_forward.2} parent=39 // pred_check_branch
          %310 = sbr.rel (%p308) target = $region56
        $region55: #{hsemotion_forward.2} parent=39 // pred_region
          %311 = dma.done [#allocation10], 2560
        $region56: #{hsemotion_forward.2} parent=39 // pred_fallthru
          _
        // Predicated region
        $region57: #{hsemotion_forward.2} parent=39 // pred_check
          %p312 = pneg %p160
        $region58: #{hsemotion_forward.2} parent=39 // pred_check_branch
          %314 = sbr.rel (%p312) target = $region60
        $region59: #{hsemotion_forward.2} parent=39 // pred_region
          %315 = dma.done [#allocation10], 160
        $region60: #{hsemotion_forward.2} parent=39 // pred_fallthru
          _
        %s316 = sand.u32 %s53, 1
        %s317 = scalar_lea.sflag [#allocation4], %s316
        %s318 = sand.u32 %s53, 1
        %s319 = smul.addr %s318, 32
        %s320 = scalar_lea.vmem [#allocation3], %s319
        %p321 = pneg %p66
        %p322 = pneg %p63
        %p323 = pneg %p87
        %p324 = pneg %p84
        %p325 = pneg %p108
        %p326 = pneg %p105
        %p327 = pneg %p134
        %p328 = pneg %p131
        %p329 = pneg %p160
        %p330 = pneg %p157
        %p331 = pneg %p188
        %p332 = pneg %p185
        %s333 = sand.u32 %s175, 1
        %s334 = scalar_lea.sflag [#allocation5], %s333
        %s335 = sand.u32 %s175, 1
        %s336 = smul.addr %s335, 10
        %s337 = scalar_lea.vmem [#allocation12], %s336
        %s338 = smul.u32 8, %s31
        %s339 = smul.u32 10, %s30
        %s340 = smul.u32 10, %s30
        %s341 = smul.u32 10, %s30
        %p344 = scmp.eq.s32.totalorder %s31, 0
        // Predicated region
        $region61: #{hsemotion_forward.2} parent=39 // pred_check
          %p345 = pneg %p344
        $region62: #{hsemotion_forward.2} parent=39 // pred_check_branch
          %347 = sbr.rel (%p345) target = $region64
        $region63: #{hsemotion_forward.2} parent=39 // pred_region
          %348 = vst [vmem:[#allocation2] sm:$0xff] 0.0
          %v349 = vlaneseq
          %vm350 = vcmp.ge.s32.totalorder %v349, 0
          %vm351 = vcmp.lt.s32.totalorder %v349, 256
          %vm352 = vmand %vm350, %vm351
          %353 = vst.msk [vmem:[#allocation2 + $0x8] sm:$0x3] %vm352, 0.0
        $region64: #{hsemotion_forward.2} parent=39 // pred_fallthru
          _
        %v354 = vld [vmem:[%s295] sm:$0xf]
        %v355 = vld [vmem:[%s295 + $0x4] sm:$0xf]
        %v356 = vld [vmem:[%s295 + $0x8] sm:$0xf]
        %v357 = vld [vmem:[%s295 + $0xc] sm:$0xf]
        %v358 = vld [vmem:[%s295 + $0x10] sm:$0xf]
        %v359 = vld [vmem:[%s295 + $0x14] sm:$0xf]
        %v360 = vld [vmem:[%s295 + $0x18] sm:$0xf]
        %v361 = vld [vmem:[%s295 + $0x1c] sm:$0xf]
        %v362 = vld [vmem:[#allocation6] sm:$0xf]
        %v363 = vld [vmem:[#allocation6 + $0x4] sm:$0xf]
        %v364 = vld [vmem:[#allocation6 + $0x8] sm:$0xf]
        %v365 = vld [vmem:[#allocation6 + $0xc] sm:$0x3]
        %v366 = vld [vmem:[#allocation8] sm:$0x1]
        %v368 = vlaneseq
        %v369 = vshrl.u32 %v368, 7
        %v370 = vsub.s32 0, %v369
        %v371 = vrot.slane %v366, %v370
        %v381 = vunpack.c.l.b16 %v354
        %v382 = vunpack.c.l.b16 %v355
        %v383 = vunpack.c.l.b16 %v356
        %v384 = vunpack.c.l.b16 %v357
        %v385 = vunpack.c.l.b16 %v358
        %v386 = vunpack.c.l.b16 %v359
        %v387 = vunpack.c.l.b16 %v360
        %v388 = vunpack.c.l.b16 %v361
        %v389 = vpack.c.b16 %v382, %v381
        %v390 = vpack.c.b16 %v384, %v383
        %v391 = vpack.c.b16 %v386, %v385
        %v392 = vpack.c.b16 %v388, %v387
        %v397 = vunpack.c.l.b16 %v362
        %v398 = vunpack.c.l.b16 %v363
        %v399 = vunpack.c.l.b16 %v364
        %v400 = vunpack.c.l.b16 %v365
        %v401 = vpack.c.b16 %v398, %v397
        %v402 = vpack.c.b16 %v400, %v399
        %vm404 = vcmask 220160
        %v406 = vsel %vm404, %v389, 0
        %v409 = vsel %vm404, %v390, 0
        %v412 = vsel %vm404, %v391, 0
        %v415 = vsel %vm404, %v392, 0
        %vm417 = vcmask 1044480
        %vm418 = vcmask 1045504
        %v419 = vsel %vm417, 4294967295, 65535
        %v420 = vsel %vm418, %v419, 0
        %v422 = vand.u32 %v402, %v420
        %424 = vmatprep.subr.bf16.mxu0 0
        %425 = vmatpush1.bf16.msra.mxu0 %v401
        %426 = vmatprep.subr.bf16.mxu0 0
        %427 = vmatpush1.bf16.msra.mxu0 %v422
        %428 = vmatprep.subr.bf16.mxu0 0
        %429 = vmatpush1.bf16.msra.mxu0 0
        %430 = vmatprep.subr.bf16.mxu0 0
        %431 = vmatpush1.bf16.msra.mxu0 0
        %432 = vmatprep.subr.bf16.mxu0 0
        %433 = vmatpush1.bf16.msra.mxu0 0
        %434 = vmatprep.subr.bf16.mxu0 0
        %435 = vmatpush1.bf16.msra.mxu0 0
        %436 = vmatprep.subr.bf16.mxu0 0
        %437 = vmatpush1.bf16.msra.mxu0 0
        %438 = vmatprep.subr.bf16.mxu0 0
        %439 = vmatpush1.bf16.msra.mxu0 0
        %440 = vmatprep.subr.bf16.mxu0 0
        %441 = vmatpush1.bf16.msra.mxu0 0
        %442 = vmatprep.subr.bf16.mxu0 0
        %443 = vmatpush1.bf16.msra.mxu0 0
        %444 = vmatprep.subr.bf16.mxu0 0
        %445 = vmatpush1.bf16.msra.mxu0 0
        %446 = vmatprep.subr.bf16.mxu0 0
        %447 = vmatpush1.bf16.msra.mxu0 0
        %448 = vmatprep.subr.bf16.mxu0 0
        %449 = vmatpush1.bf16.msra.mxu0 0
        %450 = vmatprep.subr.bf16.mxu0 0
        %451 = vmatpush1.bf16.msra.mxu0 0
        %452 = vmatprep.subr.bf16.mxu0 0
        %453 = vmatpush1.bf16.msra.mxu0 0
        %454 = vmatprep.subr.bf16.mxu0 0
        %455 = vmatpush1.bf16.msra.mxu0 0
        %456 = vmatprep.mubr.bf16.mxu0 0
        %457 = vmatmul.mubr.bf16.gmra.mrb[0].mxu0 %v406
        %v458 = vpop.f32.mrb[0].mxu0
        %v459 = vadd.f32 %v371, %v458
        %v460 = vpop.f32.mrb[0].mxu0
        %v461 = vpop.f32.mrb[0].mxu0
        %v462 = vadd.f32 %v371, %v461
        %v463 = vpop.f32.mrb[0].mxu0
        %464 = vmatprep.mubr.bf16.mxu0 0
        %465 = vmatmul.mubr.bf16.gmra.mrb[0].mxu0 %v409
        %v466 = vpop.f32.mrb[0].mxu0
        %v467 = vadd.f32 %v371, %v466
        %v468 = vpop.f32.mrb[0].mxu0
        %v469 = vpop.f32.mrb[0].mxu0
        %v470 = vadd.f32 %v371, %v469
        %v471 = vpop.f32.mrb[0].mxu0
        %472 = vmatprep.mubr.bf16.mxu0 0
        %473 = vmatmul.mubr.bf16.gmra.mrb[0].mxu0 %v412
        %v474 = vpop.f32.mrb[0].mxu0
        %v475 = vadd.f32 %v371, %v474
        %v476 = vpop.f32.mrb[0].mxu0
        %v477 = vpop.f32.mrb[0].mxu0
        %v478 = vadd.f32 %v371, %v477
        %v479 = vpop.f32.mrb[0].mxu0
        %480 = vmatprep.mubr.bf16.mxu0 0
        %481 = vmatmul.mubr.bf16.gmra.mrb[0].mxu0 %v415
        %v482 = vpop.f32.mrb[0].mxu0
        %v483 = vadd.f32 %v371, %v482
        %v484 = vpop.f32.mrb[0].mxu0
        %v485 = vpop.f32.mrb[0].mxu0
        %v486 = vadd.f32 %v371, %v485
        %v487 = vpop.f32.mrb[0].mxu0
        %488 = vdwg.mxu0
        %v489 = vmul.f32 %v459, 0.5
        %v490 = vmul.f32 %v462, 0.5
        %v491 = vmul.f32 %v467, 0.5
        %v492 = vmul.f32 %v470, 0.5
        %v493 = vmul.f32 %v475, 0.5
        %v494 = vmul.f32 %v478, 0.5
        %v495 = vmul.f32 %v483, 0.5
        %v496 = vmul.f32 %v486, 0.5
        %v497 = vtanh.pop %v489
        %v498 = vtanh.pop %v490
        %v499 = vtanh.pop %v491
        %v500 = vtanh.pop %v492
        %v501 = vtanh.pop %v493
        %v502 = vtanh.pop %v494
        %v503 = vtanh.pop %v495
        %v504 = vtanh.pop %v496
        %v505 = vmul.f32 %v489, %v497
        %v506 = vmul.f32 %v490, %v498
        %v507 = vmul.f32 %v491, %v499
        %v508 = vmul.f32 %v492, %v500
        %v509 = vmul.f32 %v493, %v501
        %v510 = vmul.f32 %v494, %v502
        %v511 = vmul.f32 %v495, %v503
        %v512 = vmul.f32 %v496, %v504
        %v513 = vadd.f32 %v505, %v489
        %v514 = vadd.f32 %v506, %v490
        %v515 = vadd.f32 %v507, %v491
        %v516 = vadd.f32 %v508, %v492
        %v517 = vadd.f32 %v509, %v493
        %v518 = vadd.f32 %v510, %v494
        %v519 = vadd.f32 %v511, %v495
        %v520 = vadd.f32 %v512, %v496
        %v521 = vpack.c.bf16 %v514, %v513
        %v522 = vpack.c.bf16 %v516, %v515
        %v523 = vpack.c.bf16 %v518, %v517
        %v524 = vpack.c.bf16 %v520, %v519
        %v525 = vlaneseq
        %v526 = vand.u32 %v525, 127
        %s527 = smul.u32 %s31, 64
        %v528 = vstv %s527
        %v529 = vadd.s32 %v526, %v528
        %vm530 = vcmp.lt.s32.totalorder %v529, 64
        %v531 = vsel %vm530, 1, 0
        %v532 = vcvt.s32.f32 %v531
        %v533 = vpack.c.bf16 %v532, %v532
        %v534 = vld [vmem:[#allocation9] sm:$0xff]
        %v535 = vld [vmem:[#allocation9 + $0x28] sm:$0xff]
        %v536 = vld [vmem:[#allocation9 + $0x50] sm:$0xff]
        %v537 = vld [vmem:[#allocation9 + $0x78] sm:$0xff]
        %v538 = vld [vmem:[#allocation11] sm:$0x3]
        %v540 = vlaneseq
        %v541 = vshrl.u32 %v540, 7
        %v542 = vsub.s32 0, %v541
        %v543 = vrot.slane %v538, %v542
        %v544 = vlaneseq
        %v545 = vshrl.u32 %v544, 7
        %v546 = vsub.s32 1, %v545
        %v547 = vrot.slane %v538, %v546
        %v554 = vunpack.c.l.b16 %v534
        %v555 = vunpack.c.h.b16 %v534
        %v556 = vunpack.c.l.b16 %v535
        %v557 = vunpack.c.h.b16 %v535
        %v558 = vunpack.c.l.b16 %v536
        %v559 = vunpack.c.h.b16 %v536
        %v560 = vunpack.c.l.b16 %v537
        %v561 = vunpack.c.h.b16 %v537
        %v562 = vpack.c.b16 %v556, %v554
        %v563 = vpack.c.b16 %v557, %v555
        %v564 = vpack.c.b16 %v560, %v558
        %v565 = vpack.c.b16 %v561, %v559
        %vm570 = vcmask 261120
        %v572 = vsel %vm570, %v521, 0
        %v575 = vsel %vm570, %v522, 0
        %v578 = vsel %vm570, %v523, 0
        %v581 = vsel %vm570, %v524, 0
        %583 = vmatprep.subr.bf16.mxu0 %v563
        %584 = vmatpush1.bf16.msra.mxu0 %v562
        %585 = vmatprep.subr.bf16.mxu0 %v565
        %586 = vmatpush1.bf16.msra.mxu0 %v564
        %587 = vmatprep.subr.bf16.mxu0 0
        %588 = vmatpush1.bf16.msra.mxu0 0
        %589 = vmatprep.subr.bf16.mxu0 0
        %590 = vmatpush1.bf16.msra.mxu0 0
        %591 = vmatprep.subr.bf16.mxu0 0
        %592 = vmatpush1.bf16.msra.mxu0 0
        %593 = vmatprep.subr.bf16.mxu0 0
        %594 = vmatpush1.bf16.msra.mxu0 0
        %595 = vmatprep.subr.bf16.mxu0 0
        %596 = vmatpush1.bf16.msra.mxu0 0
        %597 = vmatprep.subr.bf16.mxu0 0
        %598 = vmatpush1.bf16.msra.mxu0 0
        %599 = vmatprep.subr.bf16.mxu0 0
        %600 = vmatpush1.bf16.msra.mxu0 0
        %601 = vmatprep.subr.bf16.mxu0 0
        %602 = vmatpush1.bf16.msra.mxu0 0
        %603 = vmatprep.subr.bf16.mxu0 0
        %604 = vmatpush1.bf16.msra.mxu0 0
        %605 = vmatprep.subr.bf16.mxu0 0
        %606 = vmatpush1.bf16.msra.mxu0 0
        %607 = vmatprep.subr.bf16.mxu0 0
        %608 = vmatpush1.bf16.msra.mxu0 0
        %609 = vmatprep.subr.bf16.mxu0 0
        %610 = vmatpush1.bf16.msra.mxu0 0
        %611 = vmatprep.subr.bf16.mxu0 0
        %612 = vmatpush1.bf16.msra.mxu0 0
        %613 = vmatprep.subr.bf16.mxu0 0
        %614 = vmatpush1.bf16.msra.mxu0 0
        %615 = vmatprep.mubr.bf16.mxu0 0
        %616 = vmatmul.mubr.bf16.gmra.mrb[0].mxu0 %v572
        %v617 = vpop.f32.mrb[0].mxu0
        %v618 = vadd.f32 %v543, %v617
        %v619 = vpop.f32.mrb[0].mxu0
        %v620 = vadd.f32 %v547, %v619
        %v621 = vpop.f32.mrb[0].mxu0
        %v622 = vadd.f32 %v543, %v621
        %v623 = vpop.f32.mrb[0].mxu0
        %v624 = vadd.f32 %v547, %v623
        %625 = vmatprep.mubr.bf16.mxu0 0
        %626 = vmatmul.mubr.bf16.gmra.mrb[0].mxu0 %v575
        %v627 = vpop.f32.mrb[0].mxu0
        %v628 = vadd.f32 %v543, %v627
        %v629 = vpop.f32.mrb[0].mxu0
        %v630 = vadd.f32 %v547, %v629
        %v631 = vpop.f32.mrb[0].mxu0
        %v632 = vadd.f32 %v543, %v631
        %v633 = vpop.f32.mrb[0].mxu0
        %v634 = vadd.f32 %v547, %v633
        %635 = vmatprep.mubr.bf16.mxu0 0
        %636 = vmatmul.mubr.bf16.gmra.mrb[0].mxu0 %v578
        %v637 = vpop.f32.mrb[0].mxu0
        %v638 = vadd.f32 %v543, %v637
        %v639 = vpop.f32.mrb[0].mxu0
        %v640 = vadd.f32 %v547, %v639
        %v641 = vpop.f32.mrb[0].mxu0
        %v642 = vadd.f32 %v543, %v641
        %v643 = vpop.f32.mrb[0].mxu0
        %v644 = vadd.f32 %v547, %v643
        %645 = vmatprep.mubr.bf16.mxu0 0
        %646 = vmatmul.mubr.bf16.gmra.mrb[0].mxu0 %v581
        %v647 = vpop.f32.mrb[0].mxu0
        %v648 = vadd.f32 %v543, %v647
        %v649 = vpop.f32.mrb[0].mxu0
        %v650 = vadd.f32 %v547, %v649
        %v651 = vpop.f32.mrb[0].mxu0
        %v652 = vadd.f32 %v543, %v651
        %v653 = vpop.f32.mrb[0].mxu0
        %v654 = vadd.f32 %v547, %v653
        %655 = vdwg.mxu0
        %v656 = vpack.c.bf16 %v622, %v618
        %v657 = vpack.c.bf16 %v624, %v620
        %v658 = vpack.c.bf16 %v632, %v628
        %v659 = vpack.c.bf16 %v634, %v630
        %v660 = vpack.c.bf16 %v642, %v638
        %v661 = vpack.c.bf16 %v644, %v640
        %v662 = vpack.c.bf16 %v652, %v648
        %v663 = vpack.c.bf16 %v654, %v650
        %v664 = vmul.bf16 %v656, 1056980736
        %v665 = vmul.bf16 %v657, 1056980736
        %v666 = vmul.bf16 %v658, 1056980736
        %v667 = vmul.bf16 %v659, 1056980736
        %v668 = vmul.bf16 %v660, 1056980736
        %v669 = vmul.bf16 %v661, 1056980736
        %v670 = vmul.bf16 %v662, 1056980736
        %v671 = vmul.bf16 %v663, 1056980736
        %v672 = vtanh.bf16.pop %v664
        %v673 = vtanh.bf16.pop %v665
        %v674 = vtanh.bf16.pop %v666
        %v675 = vtanh.bf16.pop %v667
        %v676 = vtanh.bf16.pop %v668
        %v677 = vtanh.bf16.pop %v669
        %v678 = vtanh.bf16.pop %v670
        %v679 = vtanh.bf16.pop %v671
        %v680 = vmul.bf16 %v664, %v672
        %v681 = vmul.bf16 %v665, %v673
        %v682 = vmul.bf16 %v666, %v674
        %v683 = vmul.bf16 %v667, %v675
        %v684 = vmul.bf16 %v668, %v676
        %v685 = vmul.bf16 %v669, %v677
        %v686 = vmul.bf16 %v670, %v678
        %v687 = vmul.bf16 %v671, %v679
        %v688 = vadd.bf16 %v680, %v664
        %v689 = vadd.bf16 %v681, %v665
        %v690 = vadd.bf16 %v682, %v666
        %v691 = vadd.bf16 %v683, %v667
        %v692 = vadd.bf16 %v684, %v668
        %v693 = vadd.bf16 %v685, %v669
        %v694 = vadd.bf16 %v686, %v670
        %v695 = vadd.bf16 %v687, %v671
        %v696 = vld [vmem:[#allocation2] sm:$0x3]
        %vm697 = vcmask 523264
        %v699 = vsel %vm697, %v533, 0
        %701 = vmatprep.subr.bf16.mxu0 %v689
        %702 = vmatpush1.bf16.msra.mxu0 %v688
        %703 = vmatprep.subr.bf16.mxu0 %v691
        %704 = vmatpush1.bf16.msra.mxu0 %v690
        %705 = vmatprep.subr.bf16.mxu0 %v693
        %706 = vmatpush1.bf16.msra.mxu0 %v692
        %707 = vmatprep.subr.bf16.mxu0 %v695
        %708 = vmatpush1.bf16.msra.mxu0 %v694
        %709 = vmatprep.subr.bf16.mxu0 0
        %710 = vmatpush1.bf16.msra.mxu0 0
        %711 = vmatprep.subr.bf16.mxu0 0
        %712 = vmatpush1.bf16.msra.mxu0 0
        %713 = vmatprep.subr.bf16.mxu0 0
        %714 = vmatpush1.bf16.msra.mxu0 0
        %715 = vmatprep.subr.bf16.mxu0 0
        %716 = vmatpush1.bf16.msra.mxu0 0
        %717 = vmatprep.subr.bf16.mxu0 0
        %718 = vmatpush1.bf16.msra.mxu0 0
        %719 = vmatprep.subr.bf16.mxu0 0
        %720 = vmatpush1.bf16.msra.mxu0 0
        %721 = vmatprep.subr.bf16.mxu0 0
        %722 = vmatpush1.bf16.msra.mxu0 0
        %723 = vmatprep.subr.bf16.mxu0 0
        %724 = vmatpush1.bf16.msra.mxu0 0
        %725 = vmatprep.subr.bf16.mxu0 0
        %726 = vmatpush1.bf16.msra.mxu0 0
        %727 = vmatprep.subr.bf16.mxu0 0
        %728 = vmatpush1.bf16.msra.mxu0 0
        %729 = vmatprep.subr.bf16.mxu0 0
        %730 = vmatpush1.bf16.msra.mxu0 0
        %731 = vmatprep.subr.bf16.mxu0 0
        %732 = vmatpush1.bf16.msra.mxu0 0
        %733 = vmatprep.mubr.bf16.mxu0 0
        %734 = vmatmul.mubr.bf16.gmra.mrb[0].mxu0 %v699
        %v735 = vpop.f32.mrb[0].mxu0
        %v736 = vadd.f32 0.0, %v735
        %v737 = vpop.f32.mrb[0].mxu0
        %v738 = vadd.f32 0.0, %v737
        %v739 = vpop.f32.mrb[0].mxu0
        %v740 = vpop.f32.mrb[0].mxu0
        %741 = vdwg.mxu0
        %v744 = vcombine.low %v736, %v738
        %v746 = vunpack.c.l.s4 1966171168
        %v747 = vunpack.c.0.s8 %v746
        %v748 = vlaneseq
        %v749 = vshrl.u32 %v748, 7
        %v750 = vsub.s32 %v747, %v749
        %v751 = vrot.slane %v744, %v750
        %v753 = vunpack.c.l.s4 1966171168
        %v754 = vunpack.c.0.s8 %v753
        %v755 = vlaneseq
        %v756 = vshrl.u32 %v755, 7
        %v757 = vsub.s32 %v754, %v756
        %v758 = vrot.slane %v751, %v757
        %v760 = vadd.f32 %v696, %v758
        %v761 = vlaneseq
        %vm762 = vcmp.ge.s32.totalorder %v761, 0
        %vm763 = vcmp.lt.s32.totalorder %v761, 256
        %vm764 = vmand %vm762, %vm763
        %765 = vst.msk [vmem:[#allocation2] sm:$0x3] %vm764, %v760
        %v766 = vld [vmem:[#allocation9 + $0x8] sm:$0xff]
        %v767 = vld [vmem:[#allocation9 + $0x30] sm:$0xff]
        %v768 = vld [vmem:[#allocation9 + $0x58] sm:$0xff]
        %v769 = vld [vmem:[#allocation9 + $0x80] sm:$0xff]
        %v770 = vld [vmem:[#allocation11 + $0x2] sm:$0x3]
        %v772 = vlaneseq
        %v773 = vshrl.u32 %v772, 7
        %v774 = vsub.s32 0, %v773
        %v775 = vrot.slane %v770, %v774
        %v776 = vlaneseq
        %v777 = vshrl.u32 %v776, 7
        %v778 = vsub.s32 1, %v777
        %v779 = vrot.slane %v770, %v778
        %v786 = vunpack.c.l.b16 %v766
        %v787 = vunpack.c.h.b16 %v766
        %v788 = vunpack.c.l.b16 %v767
        %v789 = vunpack.c.h.b16 %v767
        %v790 = vunpack.c.l.b16 %v768
        %v791 = vunpack.c.h.b16 %v768
        %v792 = vunpack.c.l.b16 %v769
        %v793 = vunpack.c.h.b16 %v769
        %v794 = vpack.c.b16 %v788, %v786
        %v795 = vpack.c.b16 %v789, %v787
        %v796 = vpack.c.b16 %v792, %v790
        %v797 = vpack.c.b16 %v793, %v791
        %802 = vmatprep.subr.bf16.mxu0 %v795
        %803 = vmatpush1.bf16.msra.mxu0 %v794
        %804 = vmatprep.subr.bf16.mxu0 %v797
        %805 = vmatpush1.bf16.msra.mxu0 %v796
        %806 = vmatprep.subr.bf16.mxu0 0
        %807 = vmatpush1.bf16.msra.mxu0 0
        %808 = vmatprep.subr.bf16.mxu0 0
        %809 = vmatpush1.bf16.msra.mxu0 0
        %810 = vmatprep.subr.bf16.mxu0 0
        %811 = vmatpush1.bf16.msra.mxu0 0
        %812 = vmatprep.subr.bf16.mxu0 0
        %813 = vmatpush1.bf16.msra.mxu0 0
        %814 = vmatprep.subr.bf16.mxu0 0
        %815 = vmatpush1.bf16.msra.mxu0 0
        %816 = vmatprep.subr.bf16.mxu0 0
        %817 = vmatpush1.bf16.msra.mxu0 0
        %818 = vmatprep.subr.bf16.mxu0 0
        %819 = vmatpush1.bf16.msra.mxu0 0
        %820 = vmatprep.subr.bf16.mxu0 0
        %821 = vmatpush1.bf16.msra.mxu0 0
        %822 = vmatprep.subr.bf16.mxu0 0
        %823 = vmatpush1.bf16.msra.mxu0 0
        %824 = vmatprep.subr.bf16.mxu0 0
        %825 = vmatpush1.bf16.msra.mxu0 0
        %826 = vmatprep.subr.bf16.mxu0 0
        %827 = vmatpush1.bf16.msra.mxu0 0
        %828 = vmatprep.subr.bf16.mxu0 0
        %829 = vmatpush1.bf16.msra.mxu0 0
        %830 = vmatprep.subr.bf16.mxu0 0
        %831 = vmatpush1.bf16.msra.mxu0 0
        %832 = vmatprep.subr.bf16.mxu0 0
        %833 = vmatpush1.bf16.msra.mxu0 0
        %834 = vmatprep.mubr.bf16.mxu0 0
        %835 = vmatmul.mubr.bf16.gmra.mrb[0].mxu0 %v572
        %v836 = vpop.f32.mrb[0].mxu0
        %v837 = vadd.f32 %v775, %v836
        %v838 = vpop.f32.mrb[0].mxu0
        %v839 = vadd.f32 %v779, %v838
        %v840 = vpop.f32.mrb[0].mxu0
        %v841 = vadd.f32 %v775, %v840
        %v842 = vpop.f32.mrb[0].mxu0
        %v843 = vadd.f32 %v779, %v842
        %844 = vmatprep.mubr.bf16.mxu0 0
        %845 = vmatmul.mubr.bf16.gmra.mrb[0].mxu0 %v575
        %v846 = vpop.f32.mrb[0].mxu0
        %v847 = vadd.f32 %v775, %v846
        %v848 = vpop.f32.mrb[0].mxu0
        %v849 = vadd.f32 %v779, %v848
        %v850 = vpop.f32.mrb[0].mxu0
        %v851 = vadd.f32 %v775, %v850
        %v852 = vpop.f32.mrb[0].mxu0
        %v853 = vadd.f32 %v779, %v852
        %854 = vmatprep.mubr.bf16.mxu0 0
        %855 = vmatmul.mubr.bf16.gmra.mrb[0].mxu0 %v578
        %v856 = vpop.f32.mrb[0].mxu0
        %v857 = vadd.f32 %v775, %v856
        %v858 = vpop.f32.mrb[0].mxu0
        %v859 = vadd.f32 %v779, %v858
        %v860 = vpop.f32.mrb[0].mxu0
        %v861 = vadd.f32 %v775, %v860
        %v862 = vpop.f32.mrb[0].mxu0
        %v863 = vadd.f32 %v779, %v862
        %864 = vmatprep.mubr.bf16.mxu0 0
        %865 = vmatmul.mubr.bf16.gmra.mrb[0].mxu0 %v581
        %v866 = vpop.f32.mrb[0].mxu0
        %v867 = vadd.f32 %v775, %v866
        %v868 = vpop.f32.mrb[0].mxu0
        %v869 = vadd.f32 %v779, %v868
        %v870 = vpop.f32.mrb[0].mxu0
        %v871 = vadd.f32 %v775, %v870
        %v872 = vpop.f32.mrb[0].mxu0
        %v873 = vadd.f32 %v779, %v872
        %874 = vdwg.mxu0
        %v875 = vpack.c.bf16 %v841, %v837
        %v876 = vpack.c.bf16 %v843, %v839
        %v877 = vpack.c.bf16 %v851, %v847
        %v878 = vpack.c.bf16 %v853, %v849
        %v879 = vpack.c.bf16 %v861, %v857
        %v880 = vpack.c.bf16 %v863, %v859
        %v881 = vpack.c.bf16 %v871, %v867
        %v882 = vpack.c.bf16 %v873, %v869
        %v883 = vmul.bf16 %v875, 1056980736
        %v884 = vmul.bf16 %v876, 1056980736
        %v885 = vmul.bf16 %v877, 1056980736
        %v886 = vmul.bf16 %v878, 1056980736
        %v887 = vmul.bf16 %v879, 1056980736
        %v888 = vmul.bf16 %v880, 1056980736
        %v889 = vmul.bf16 %v881, 1056980736
        %v890 = vmul.bf16 %v882, 1056980736
        %v891 = vtanh.bf16.pop %v883
        %v892 = vtanh.bf16.pop %v884
        %v893 = vtanh.bf16.pop %v885
        %v894 = vtanh.bf16.pop %v886
        %v895 = vtanh.bf16.pop %v887
        %v896 = vtanh.bf16.pop %v888
        %v897 = vtanh.bf16.pop %v889
        %v898 = vtanh.bf16.pop %v890
        %v899 = vmul.bf16 %v883, %v891
        %v900 = vmul.bf16 %v884, %v892
        %v901 = vmul.bf16 %v885, %v893
        %v902 = vmul.bf16 %v886, %v894
        %v903 = vmul.bf16 %v887, %v895
        %v904 = vmul.bf16 %v888, %v896
        %v905 = vmul.bf16 %v889, %v897
        %v906 = vmul.bf16 %v890, %v898
        %v907 = vadd.bf16 %v899, %v883
        %v908 = vadd.bf16 %v900, %v884
        %v909 = vadd.bf16 %v901, %v885
        %v910 = vadd.bf16 %v902, %v886
        %v911 = vadd.bf16 %v903, %v887
        %v912 = vadd.bf16 %v904, %v888
        %v913 = vadd.bf16 %v905, %v889
        %v914 = vadd.bf16 %v906, %v890
        %v915 = vld [vmem:[#allocation2 + $0x2] sm:$0x3]
        %916 = vmatprep.subr.bf16.mxu0 %v908
        %917 = vmatpush1.bf16.msra.mxu0 %v907
        %918 = vmatprep.subr.bf16.mxu0 %v910
        %919 = vmatpush1.bf16.msra.mxu0 %v909
        %920 = vmatprep.subr.bf16.mxu0 %v912
        %921 = vmatpush1.bf16.msra.mxu0 %v911
        %922 = vmatprep.subr.bf16.mxu0 %v914
        %923 = vmatpush1.bf16.msra.mxu0 %v913
        %924 = vmatprep.subr.bf16.mxu0 0
        %925 = vmatpush1.bf16.msra.mxu0 0
        %926 = vmatprep.subr.bf16.mxu0 0
        %927 = vmatpush1.bf16.msra.mxu0 0
        %928 = vmatprep.subr.bf16.mxu0 0
        %929 = vmatpush1.bf16.msra.mxu0 0
        %930 = vmatprep.subr.bf16.mxu0 0
        %931 = vmatpush1.bf16.msra.mxu0 0
        %932 = vmatprep.subr.bf16.mxu0 0
        %933 = vmatpush1.bf16.msra.mxu0 0
        %934 = vmatprep.subr.bf16.mxu0 0
        %935 = vmatpush1.bf16.msra.mxu0 0
        %936 = vmatprep.subr.bf16.mxu0 0
        %937 = vmatpush1.bf16.msra.mxu0 0
        %938 = vmatprep.subr.bf16.mxu0 0
        %939 = vmatpush1.bf16.msra.mxu0 0
        %940 = vmatprep.subr.bf16.mxu0 0
        %941 = vmatpush1.bf16.msra.mxu0 0
        %942 = vmatprep.subr.bf16.mxu0 0
        %943 = vmatpush1.bf16.msra.mxu0 0
        %944 = vmatprep.subr.bf16.mxu0 0
        %945 = vmatpush1.bf16.msra.mxu0 0
        %946 = vmatprep.subr.bf16.mxu0 0
        %947 = vmatpush1.bf16.msra.mxu0 0
        %948 = vmatprep.mubr.bf16.mxu0 0
        %949 = vmatmul.mubr.bf16.gmra.mrb[0].mxu0 %v699
        %v950 = vpop.f32.mrb[0].mxu0
        %v951 = vadd.f32 0.0, %v950
        %v952 = vpop.f32.mrb[0].mxu0
        %v953 = vadd.f32 0.0, %v952
        %v954 = vpop.f32.mrb[0].mxu0
        %v955 = vpop.f32.mrb[0].mxu0
        %956 = vdwg.mxu0
        %v959 = vcombine.low %v951, %v953
        %v961 = vunpack.c.l.s4 1966171168
        %v962 = vunpack.c.0.s8 %v961
        %v963 = vlaneseq
        %v964 = vshrl.u32 %v963, 7
        %v965 = vsub.s32 %v962, %v964
        %v966 = vrot.slane %v959, %v965
        %v968 = vunpack.c.l.s4 1966171168
        %v969 = vunpack.c.0.s8 %v968
        %v970 = vlaneseq
        %v971 = vshrl.u32 %v970, 7
        %v972 = vsub.s32 %v969, %v971
        %v973 = vrot.slane %v966, %v972
        %v975 = vadd.f32 %v915, %v973
        %976 = vst.msk [vmem:[#allocation2 + $0x2] sm:$0x3] %vm764, %v975
        %v977 = vld [vmem:[#allocation9 + $0x10] sm:$0xff]
        %v978 = vld [vmem:[#allocation9 + $0x38] sm:$0xff]
        %v979 = vld [vmem:[#allocation9 + $0x60] sm:$0xff]
        %v980 = vld [vmem:[#allocation9 + $0x88] sm:$0xff]
        %v981 = vld [vmem:[#allocation11 + $0x4] sm:$0x3]
        %v983 = vlaneseq
        %v984 = vshrl.u32 %v983, 7
        %v985 = vsub.s32 0, %v984
        %v986 = vrot.slane %v981, %v985
        %v987 = vlaneseq
        %v988 = vshrl.u32 %v987, 7
        %v989 = vsub.s32 1, %v988
        %v990 = vrot.slane %v981, %v989
        %v997 = vunpack.c.l.b16 %v977
        %v998 = vunpack.c.h.b16 %v977
        %v999 = vunpack.c.l.b16 %v978
        %v1000 = vunpack.c.h.b16 %v978
        %v1001 = vunpack.c.l.b16 %v979
        %v1002 = vunpack.c.h.b16 %v979
        %v1003 = vunpack.c.l.b16 %v980
        %v1004 = vunpack.c.h.b16 %v980
        %v1005 = vpack.c.b16 %v999, %v997
        %v1006 = vpack.c.b16 %v1000, %v998
        %v1007 = vpack.c.b16 %v1003, %v1001
        %v1008 = vpack.c.b16 %v1004, %v1002
        %1013 = vmatprep.subr.bf16.mxu0 %v1006
        %1014 = vmatpush1.bf16.msra.mxu0 %v1005
        %1015 = vmatprep.subr.bf16.mxu0 %v1008
        %1016 = vmatpush1.bf16.msra.mxu0 %v1007
        %1017 = vmatprep.subr.bf16.mxu0 0
        %1018 = vmatpush1.bf16.msra.mxu0 0
        %1019 = vmatprep.subr.bf16.mxu0 0
        %1020 = vmatpush1.bf16.msra.mxu0 0
        %1021 = vmatprep.subr.bf16.mxu0 0
        %1022 = vmatpush1.bf16.msra.mxu0 0
        %1023 = vmatprep.subr.bf16.mxu0 0
        %1024 = vmatpush1.bf16.msra.mxu0 0
        %1025 = vmatprep.subr.bf16.mxu0 0
        %1026 = vmatpush1.bf16.msra.mxu0 0
        %1027 = vmatprep.subr.bf16.mxu0 0
        %1028 = vmatpush1.bf16.msra.mxu0 0
        %1029 = vmatprep.subr.bf16.mxu0 0
        %1030 = vmatpush1.bf16.msra.mxu0 0
        %1031 = vmatprep.subr.bf16.mxu0 0
        %1032 = vmatpush1.bf16.msra.mxu0 0
        %1033 = vmatprep.subr.bf16.mxu0 0
        %1034 = vmatpush1.bf16.msra.mxu0 0
        %1035 = vmatprep.subr.bf16.mxu0 0
        %1036 = vmatpush1.bf16.msra.mxu0 0
        %1037 = vmatprep.subr.bf16.mxu0 0
        %1038 = vmatpush1.bf16.msra.mxu0 0
        %1039 = vmatprep.subr.bf16.mxu0 0
        %1040 = vmatpush1.bf16.msra.mxu0 0
        %1041 = vmatprep.subr.bf16.mxu0 0
        %1042 = vmatpush1.bf16.msra.mxu0 0
        %1043 = vmatprep.subr.bf16.mxu0 0
        %1044 = vmatpush1.bf16.msra.mxu0 0
        %1045 = vmatprep.mubr.bf16.mxu0 0
        %1046 = vmatmul.mubr.bf16.gmra.mrb[0].mxu0 %v572
        %v1047 = vpop.f32.mrb[0].mxu0
        %v1048 = vadd.f32 %v986, %v1047
        %v1049 = vpop.f32.mrb[0].mxu0
        %v1050 = vadd.f32 %v990, %v1049
        %v1051 = vpop.f32.mrb[0].mxu0
        %v1052 = vadd.f32 %v986, %v1051
        %v1053 = vpop.f32.mrb[0].mxu0
        %v1054 = vadd.f32 %v990, %v1053
        %1055 = vmatprep.mubr.bf16.mxu0 0
        %1056 = vmatmul.mubr.bf16.gmra.mrb[0].mxu0 %v575
        %v1057 = vpop.f32.mrb[0].mxu0
        %v1058 = vadd.f32 %v986, %v1057
        %v1059 = vpop.f32.mrb[0].mxu0
        %v1060 = vadd.f32 %v990, %v1059
        %v1061 = vpop.f32.mrb[0].mxu0
        %v1062 = vadd.f32 %v986, %v1061
        %v1063 = vpop.f32.mrb[0].mxu0
        %v1064 = vadd.f32 %v990, %v1063
        %1065 = vmatprep.mubr.bf16.mxu0 0
        %1066 = vmatmul.mubr.bf16.gmra.mrb[0].mxu0 %v578
        %v1067 = vpop.f32.mrb[0].mxu0
        %v1068 = vadd.f32 %v986, %v1067
        %v1069 = vpop.f32.mrb[0].mxu0
        %v1070 = vadd.f32 %v990, %v1069
        %v1071 = vpop.f32.mrb[0].mxu0
        %v1072 = vadd.f32 %v986, %v1071
        %v1073 = vpop.f32.mrb[0].mxu0
        %v1074 = vadd.f32 %v990, %v1073
        %1075 = vmatprep.mubr.bf16.mxu0 0
        %1076 = vmatmul.mubr.bf16.gmra.mrb[0].mxu0 %v581
        %v1077 = vpop.f32.mrb[0].mxu0
        %v1078 = vadd.f32 %v986, %v1077
        %v1079 = vpop.f32.mrb[0].mxu0
        %v1080 = vadd.f32 %v990, %v1079
        %v1081 = vpop.f32.mrb[0].mxu0
        %v1082 = vadd.f32 %v986, %v1081
        %v1083 = vpop.f32.mrb[0].mxu0
        %v1084 = vadd.f32 %v990, %v1083
        %1085 = vdwg.mxu0
        %v1086 = vpack.c.bf16 %v1052, %v1048
        %v1087 = vpack.c.bf16 %v1054, %v1050
        %v1088 = vpack.c.bf16 %v1062, %v1058
        %v1089 = vpack.c.bf16 %v1064, %v1060
        %v1090 = vpack.c.bf16 %v1072, %v1068
        %v1091 = vpack.c.bf16 %v1074, %v1070
        %v1092 = vpack.c.bf16 %v1082, %v1078
        %v1093 = vpack.c.bf16 %v1084, %v1080
        %v1094 = vmul.bf16 %v1086, 1056980736
        %v1095 = vmul.bf16 %v1087, 1056980736
        %v1096 = vmul.bf16 %v1088, 1056980736
        %v1097 = vmul.bf16 %v1089, 1056980736
        %v1098 = vmul.bf16 %v1090, 1056980736
        %v1099 = vmul.bf16 %v1091, 1056980736
        %v1100 = vmul.bf16 %v1092, 1056980736
        %v1101 = vmul.bf16 %v1093, 1056980736
        %v1102 = vtanh.bf16.pop %v1094
        %v1103 = vtanh.bf16.pop %v1095
        %v1104 = vtanh.bf16.pop %v1096
        %v1105 = vtanh.bf16.pop %v1097
        %v1106 = vtanh.bf16.pop %v1098
        %v1107 = vtanh.bf16.pop %v1099
        %v1108 = vtanh.bf16.pop %v1100
        %v1109 = vtanh.bf16.pop %v1101
        %v1110 = vmul.bf16 %v1094, %v1102
        %v1111 = vmul.bf16 %v1095, %v1103
        %v1112 = vmul.bf16 %v1096, %v1104
        %v1113 = vmul.bf16 %v1097, %v1105
        %v1114 = vmul.bf16 %v1098, %v1106
        %v1115 = vmul.bf16 %v1099, %v1107
        %v1116 = vmul.bf16 %v1100, %v1108
        %v1117 = vmul.bf16 %v1101, %v1109
        %v1118 = vadd.bf16 %v1110, %v1094
        %v1119 = vadd.bf16 %v1111, %v1095
        %v1120 = vadd.bf16 %v1112, %v1096
        %v1121 = vadd.bf16 %v1113, %v1097
        %v1122 = vadd.bf16 %v1114, %v1098
        %v1123 = vadd.bf16 %v1115, %v1099
        %v1124 = vadd.bf16 %v1116, %v1100
        %v1125 = vadd.bf16 %v1117, %v1101
        %v1126 = vld [vmem:[#allocation2 + $0x4] sm:$0x3]
        %1127 = vmatprep.subr.bf16.mxu0 %v1119
        %1128 = vmatpush1.bf16.msra.mxu0 %v1118
        %1129 = vmatprep.subr.bf16.mxu0 %v1121
        %1130 = vmatpush1.bf16.msra.mxu0 %v1120
        %1131 = vmatprep.subr.bf16.mxu0 %v1123
        %1132 = vmatpush1.bf16.msra.mxu0 %v1122
        %1133 = vmatprep.subr.bf16.mxu0 %v1125
        %1134 = vmatpush1.bf16.msra.mxu0 %v1124
        %1135 = vmatprep.subr.bf16.mxu0 0
        %1136 = vmatpush1.bf16.msra.mxu0 0
        %1137 = vmatprep.subr.bf16.mxu0 0
        %1138 = vmatpush1.bf16.msra.mxu0 0
        %1139 = vmatprep.subr.bf16.mxu0 0
        %1140 = vmatpush1.bf16.msra.mxu0 0
        %1141 = vmatprep.subr.bf16.mxu0 0
        %1142 = vmatpush1.bf16.msra.mxu0 0
        %1143 = vmatprep.subr.bf16.mxu0 0
        %1144 = vmatpush1.bf16.msra.mxu0 0
        %1145 = vmatprep.subr.bf16.mxu0 0
        %1146 = vmatpush1.bf16.msra.mxu0 0
        %1147 = vmatprep.subr.bf16.mxu0 0
        %1148 = vmatpush1.bf16.msra.mxu0 0
        %1149 = vmatprep.subr.bf16.mxu0 0
        %1150 = vmatpush1.bf16.msra.mxu0 0
        %1151 = vmatprep.subr.bf16.mxu0 0
        %1152 = vmatpush1.bf16.msra.mxu0 0
        %1153 = vmatprep.subr.bf16.mxu0 0
        %1154 = vmatpush1.bf16.msra.mxu0 0
        %1155 = vmatprep.subr.bf16.mxu0 0
        %1156 = vmatpush1.bf16.msra.mxu0 0
        %1157 = vmatprep.subr.bf16.mxu0 0
        %1158 = vmatpush1.bf16.msra.mxu0 0
        %1159 = vmatprep.mubr.bf16.mxu0 0
        %1160 = vmatmul.mubr.bf16.gmra.mrb[0].mxu0 %v699
        %v1161 = vpop.f32.mrb[0].mxu0
        %v1162 = vadd.f32 0.0, %v1161
        %v1163 = vpop.f32.mrb[0].mxu0
        %v1164 = vadd.f32 0.0, %v1163
        %v1165 = vpop.f32.mrb[0].mxu0
        %v1166 = vpop.f32.mrb[0].mxu0
        %1167 = vdwg.mxu0
        %v1170 = vcombine.low %v1162, %v1164
        %v1172 = vunpack.c.l.s4 1966171168
        %v1173 = vunpack.c.0.s8 %v1172
        %v1174 = vlaneseq
        %v1175 = vshrl.u32 %v1174, 7
        %v1176 = vsub.s32 %v1173, %v1175
        %v1177 = vrot.slane %v1170, %v1176
        %v1179 = vunpack.c.l.s4 1966171168
        %v1180 = vunpack.c.0.s8 %v1179
        %v1181 = vlaneseq
        %v1182 = vshrl.u32 %v1181, 7
        %v1183 = vsub.s32 %v1180, %v1182
        %v1184 = vrot.slane %v1177, %v1183
        %v1186 = vadd.f32 %v1126, %v1184
        %1187 = vst.msk [vmem:[#allocation2 + $0x4] sm:$0x3] %vm764, %v1186
        %v1188 = vld [vmem:[#allocation9 + $0x18] sm:$0xff]
        %v1189 = vld [vmem:[#allocation9 + $0x40] sm:$0xff]
        %v1190 = vld [vmem:[#allocation9 + $0x68] sm:$0xff]
        %v1191 = vld [vmem:[#allocation9 + $0x90] sm:$0xff]
        %v1192 = vld [vmem:[#allocation11 + $0x6] sm:$0x3]
        %v1194 = vlaneseq
        %v1195 = vshrl.u32 %v1194, 7
        %v1196 = vsub.s32 0, %v1195
        %v1197 = vrot.slane %v1192, %v1196
        %v1198 = vlaneseq
        %v1199 = vshrl.u32 %v1198, 7
        %v1200 = vsub.s32 1, %v1199
        %v1201 = vrot.slane %v1192, %v1200
        %v1208 = vunpack.c.l.b16 %v1188
        %v1209 = vunpack.c.h.b16 %v1188
        %v1210 = vunpack.c.l.b16 %v1189
        %v1211 = vunpack.c.h.b16 %v1189
        %v1212 = vunpack.c.l.b16 %v1190
        %v1213 = vunpack.c.h.b16 %v1190
        %v1214 = vunpack.c.l.b16 %v1191
        %v1215 = vunpack.c.h.b16 %v1191
        %v1216 = vpack.c.b16 %v1210, %v1208
        %v1217 = vpack.c.b16 %v1211, %v1209
        %v1218 = vpack.c.b16 %v1214, %v1212
        %v1219 = vpack.c.b16 %v1215, %v1213
        %1224 = vmatprep.subr.bf16.mxu0 %v1217
        %1225 = vmatpush1.bf16.msra.mxu0 %v1216
        %1226 = vmatprep.subr.bf16.mxu0 %v1219
        %1227 = vmatpush1.bf16.msra.mxu0 %v1218
        %1228 = vmatprep.subr.bf16.mxu0 0
        %1229 = vmatpush1.bf16.msra.mxu0 0
        %1230 = vmatprep.subr.bf16.mxu0 0
        %1231 = vmatpush1.bf16.msra.mxu0 0
        %1232 = vmatprep.subr.bf16.mxu0 0
        %1233 = vmatpush1.bf16.msra.mxu0 0
        %1234 = vmatprep.subr.bf16.mxu0 0
        %1235 = vmatpush1.bf16.msra.mxu0 0
        %1236 = vmatprep.subr.bf16.mxu0 0
        %1237 = vmatpush1.bf16.msra.mxu0 0
        %1238 = vmatprep.subr.bf16.mxu0 0
        %1239 = vmatpush1.bf16.msra.mxu0 0
        %1240 = vmatprep.subr.bf16.mxu0 0
        %1241 = vmatpush1.bf16.msra.mxu0 0
        %1242 = vmatprep.subr.bf16.mxu0 0
        %1243 = vmatpush1.bf16.msra.mxu0 0
        %1244 = vmatprep.subr.bf16.mxu0 0
        %1245 = vmatpush1.bf16.msra.mxu0 0
        %1246 = vmatprep.subr.bf16.mxu0 0
        %1247 = vmatpush1.bf16.msra.mxu0 0
        %1248 = vmatprep.subr.bf16.mxu0 0
        %1249 = vmatpush1.bf16.msra.mxu0 0
        %1250 = vmatprep.subr.bf16.mxu0 0
        %1251 = vmatpush1.bf16.msra.mxu0 0
        %1252 = vmatprep.subr.bf16.mxu0 0
        %1253 = vmatpush1.bf16.msra.mxu0 0
        %1254 = vmatprep.subr.bf16.mxu0 0
        %1255 = vmatpush1.bf16.msra.mxu0 0
        %1256 = vmatprep.mubr.bf16.mxu0 0
        %1257 = vmatmul.mubr.bf16.gmra.mrb[0].mxu0 %v572
        %v1258 = vpop.f32.mrb[0].mxu0
        %v1259 = vadd.f32 %v1197, %v1258
        %v1260 = vpop.f32.mrb[0].mxu0
        %v1261 = vadd.f32 %v1201, %v1260
        %v1262 = vpop.f32.mrb[0].mxu0
        %v1263 = vadd.f32 %v1197, %v1262
        %v1264 = vpop.f32.mrb[0].mxu0
        %v1265 = vadd.f32 %v1201, %v1264
        %1266 = vmatprep.mubr.bf16.mxu0 0
        %1267 = vmatmul.mubr.bf16.gmra.mrb[0].mxu0 %v575
        %v1268 = vpop.f32.mrb[0].mxu0
        %v1269 = vadd.f32 %v1197, %v1268
        %v1270 = vpop.f32.mrb[0].mxu0
        %v1271 = vadd.f32 %v1201, %v1270
        %v1272 = vpop.f32.mrb[0].mxu0
        %v1273 = vadd.f32 %v1197, %v1272
        %v1274 = vpop.f32.mrb[0].mxu0
        %v1275 = vadd.f32 %v1201, %v1274
        %1276 = vmatprep.mubr.bf16.mxu0 0
        %1277 = vmatmul.mubr.bf16.gmra.mrb[0].mxu0 %v578
        %v1278 = vpop.f32.mrb[0].mxu0
        %v1279 = vadd.f32 %v1197, %v1278
        %v1280 = vpop.f32.mrb[0].mxu0
        %v1281 = vadd.f32 %v1201, %v1280
        %v1282 = vpop.f32.mrb[0].mxu0
        %v1283 = vadd.f32 %v1197, %v1282
        %v1284 = vpop.f32.mrb[0].mxu0
        %v1285 = vadd.f32 %v1201, %v1284
        %1286 = vmatprep.mubr.bf16.mxu0 0
        %1287 = vmatmul.mubr.bf16.gmra.mrb[0].mxu0 %v581
        %v1288 = vpop.f32.mrb[0].mxu0
        %v1289 = vadd.f32 %v1197, %v1288
        %v1290 = vpop.f32.mrb[0].mxu0
        %v1291 = vadd.f32 %v1201, %v1290
        %v1292 = vpop.f32.mrb[0].mxu0
        %v1293 = vadd.f32 %v1197, %v1292
        %v1294 = vpop.f32.mrb[0].mxu0
        %v1295 = vadd.f32 %v1201, %v1294
        %1296 = vdwg.mxu0
        %v1297 = vpack.c.bf16 %v1263, %v1259
        %v1298 = vpack.c.bf16 %v1265, %v1261
        %v1299 = vpack.c.bf16 %v1273, %v1269
        %v1300 = vpack.c.bf16 %v1275, %v1271
        %v1301 = vpack.c.bf16 %v1283, %v1279
        %v1302 = vpack.c.bf16 %v1285, %v1281
        %v1303 = vpack.c.bf16 %v1293, %v1289
        %v1304 = vpack.c.bf16 %v1295, %v1291
        %v1305 = vmul.bf16 %v1297, 1056980736
        %v1306 = vmul.bf16 %v1298, 1056980736
        %v1307 = vmul.bf16 %v1299, 1056980736
        %v1308 = vmul.bf16 %v1300, 1056980736
        %v1309 = vmul.bf16 %v1301, 1056980736
        %v1310 = vmul.bf16 %v1302, 1056980736
        %v1311 = vmul.bf16 %v1303, 1056980736
        %v1312 = vmul.bf16 %v1304, 1056980736
        %v1313 = vtanh.bf16.pop %v1305
        %v1314 = vtanh.bf16.pop %v1306
        %v1315 = vtanh.bf16.pop %v1307
        %v1316 = vtanh.bf16.pop %v1308
        %v1317 = vtanh.bf16.pop %v1309
        %v1318 = vtanh.bf16.pop %v1310
        %v1319 = vtanh.bf16.pop %v1311
        %v1320 = vtanh.bf16.pop %v1312
        %v1321 = vmul.bf16 %v1305, %v1313
        %v1322 = vmul.bf16 %v1306, %v1314
        %v1323 = vmul.bf16 %v1307, %v1315
        %v1324 = vmul.bf16 %v1308, %v1316
        %v1325 = vmul.bf16 %v1309, %v1317
        %v1326 = vmul.bf16 %v1310, %v1318
        %v1327 = vmul.bf16 %v1311, %v1319
        %v1328 = vmul.bf16 %v1312, %v1320
        %v1329 = vadd.bf16 %v1321, %v1305
        %v1330 = vadd.bf16 %v1322, %v1306
        %v1331 = vadd.bf16 %v1323, %v1307
        %v1332 = vadd.bf16 %v1324, %v1308
        %v1333 = vadd.bf16 %v1325, %v1309
        %v1334 = vadd.bf16 %v1326, %v1310
        %v1335 = vadd.bf16 %v1327, %v1311
        %v1336 = vadd.bf16 %v1328, %v1312
        %v1337 = vld [vmem:[#allocation2 + $0x6] sm:$0x3]
        %1338 = vmatprep.subr.bf16.mxu0 %v1330
        %1339 = vmatpush1.bf16.msra.mxu0 %v1329
        %1340 = vmatprep.subr.bf16.mxu0 %v1332
        %1341 = vmatpush1.bf16.msra.mxu0 %v1331
        %1342 = vmatprep.subr.bf16.mxu0 %v1334
        %1343 = vmatpush1.bf16.msra.mxu0 %v1333
        %1344 = vmatprep.subr.bf16.mxu0 %v1336
        %1345 = vmatpush1.bf16.msra.mxu0 %v1335
        %1346 = vmatprep.subr.bf16.mxu0 0
        %1347 = vmatpush1.bf16.msra.mxu0 0
        %1348 = vmatprep.subr.bf16.mxu0 0
        %1349 = vmatpush1.bf16.msra.mxu0 0
        %1350 = vmatprep.subr.bf16.mxu0 0
        %1351 = vmatpush1.bf16.msra.mxu0 0
        %1352 = vmatprep.subr.bf16.mxu0 0
        %1353 = vmatpush1.bf16.msra.mxu0 0
        %1354 = vmatprep.subr.bf16.mxu0 0
        %1355 = vmatpush1.bf16.msra.mxu0 0
        %1356 = vmatprep.subr.bf16.mxu0 0
        %1357 = vmatpush1.bf16.msra.mxu0 0
        %1358 = vmatprep.subr.bf16.mxu0 0
        %1359 = vmatpush1.bf16.msra.mxu0 0
        %1360 = vmatprep.subr.bf16.mxu0 0
        %1361 = vmatpush1.bf16.msra.mxu0 0
        %1362 = vmatprep.subr.bf16.mxu0 0
        %1363 = vmatpush1.bf16.msra.mxu0 0
        %1364 = vmatprep.subr.bf16.mxu0 0
        %1365 = vmatpush1.bf16.msra.mxu0 0
        %1366 = vmatprep.subr.bf16.mxu0 0
        %1367 = vmatpush1.bf16.msra.mxu0 0
        %1368 = vmatprep.subr.bf16.mxu0 0
        %1369 = vmatpush1.bf16.msra.mxu0 0
        %1370 = vmatprep.mubr.bf16.mxu0 0
        %1371 = vmatmul.mubr.bf16.gmra.mrb[0].mxu0 %v699
        %v1372 = vpop.f32.mrb[0].mxu0
        %v1373 = vadd.f32 0.0, %v1372
        %v1374 = vpop.f32.mrb[0].mxu0
        %v1375 = vadd.f32 0.0, %v1374
        %v1376 = vpop.f32.mrb[0].mxu0
        %v1377 = vpop.f32.mrb[0].mxu0
        %1378 = vdwg.mxu0
        %v1381 = vcombine.low %v1373, %v1375
        %v1383 = vunpack.c.l.s4 1966171168
        %v1384 = vunpack.c.0.s8 %v1383
        %v1385 = vlaneseq
        %v1386 = vshrl.u32 %v1385, 7
        %v1387 = vsub.s32 %v1384, %v1386
        %v1388 = vrot.slane %v1381, %v1387
        %v1390 = vunpack.c.l.s4 1966171168
        %v1391 = vunpack.c.0.s8 %v1390
        %v1392 = vlaneseq
        %v1393 = vshrl.u32 %v1392, 7
        %v1394 = vsub.s32 %v1391, %v1393
        %v1395 = vrot.slane %v1388, %v1394
        %v1397 = vadd.f32 %v1337, %v1395
        %1398 = vst.msk [vmem:[#allocation2 + $0x6] sm:$0x3] %vm764, %v1397
        %v1399 = vld [vmem:[#allocation9 + $0x20] sm:$0xff]
        %v1400 = vld [vmem:[#allocation9 + $0x48] sm:$0xff]
        %v1401 = vld [vmem:[#allocation9 + $0x70] sm:$0xff]
        %v1402 = vld [vmem:[#allocation9 + $0x98] sm:$0xff]
        %v1403 = vld [vmem:[#allocation11 + $0x8] sm:$0x3]
        %v1405 = vlaneseq
        %v1406 = vshrl.u32 %v1405, 7
        %v1407 = vsub.s32 0, %v1406
        %v1408 = vrot.slane %v1403, %v1407
        %v1409 = vlaneseq
        %v1410 = vshrl.u32 %v1409, 7
        %v1411 = vsub.s32 1, %v1410
        %v1412 = vrot.slane %v1403, %v1411
        %v1419 = vunpack.c.l.b16 %v1399
        %v1420 = vunpack.c.h.b16 %v1399
        %v1421 = vunpack.c.l.b16 %v1400
        %v1422 = vunpack.c.h.b16 %v1400
        %v1423 = vunpack.c.l.b16 %v1401
        %v1424 = vunpack.c.h.b16 %v1401
        %v1425 = vunpack.c.l.b16 %v1402
        %v1426 = vunpack.c.h.b16 %v1402
        %v1427 = vpack.c.b16 %v1421, %v1419
        %v1428 = vpack.c.b16 %v1422, %v1420
        %v1429 = vpack.c.b16 %v1425, %v1423
        %v1430 = vpack.c.b16 %v1426, %v1424
        %1435 = vmatprep.subr.bf16.mxu0 %v1428
        %1436 = vmatpush1.bf16.msra.mxu0 %v1427
        %1437 = vmatprep.subr.bf16.mxu0 %v1430
        %1438 = vmatpush1.bf16.msra.mxu0 %v1429
        %1439 = vmatprep.subr.bf16.mxu0 0
        %1440 = vmatpush1.bf16.msra.mxu0 0
        %1441 = vmatprep.subr.bf16.mxu0 0
        %1442 = vmatpush1.bf16.msra.mxu0 0
        %1443 = vmatprep.subr.bf16.mxu0 0
        %1444 = vmatpush1.bf16.msra.mxu0 0
        %1445 = vmatprep.subr.bf16.mxu0 0
        %1446 = vmatpush1.bf16.msra.mxu0 0
        %1447 = vmatprep.subr.bf16.mxu0 0
        %1448 = vmatpush1.bf16.msra.mxu0 0
        %1449 = vmatprep.subr.bf16.mxu0 0
        %1450 = vmatpush1.bf16.msra.mxu0 0
        %1451 = vmatprep.subr.bf16.mxu0 0
        %1452 = vmatpush1.bf16.msra.mxu0 0
        %1453 = vmatprep.subr.bf16.mxu0 0
        %1454 = vmatpush1.bf16.msra.mxu0 0
        %1455 = vmatprep.subr.bf16.mxu0 0
        %1456 = vmatpush1.bf16.msra.mxu0 0
        %1457 = vmatprep.subr.bf16.mxu0 0
        %1458 = vmatpush1.bf16.msra.mxu0 0
        %1459 = vmatprep.subr.bf16.mxu0 0
        %1460 = vmatpush1.bf16.msra.mxu0 0
        %1461 = vmatprep.subr.bf16.mxu0 0
        %1462 = vmatpush1.bf16.msra.mxu0 0
        %1463 = vmatprep.subr.bf16.mxu0 0
        %1464 = vmatpush1.bf16.msra.mxu0 0
        %1465 = vmatprep.subr.bf16.mxu0 0
        %1466 = vmatpush1.bf16.msra.mxu0 0
        %1467 = vmatprep.mubr.bf16.mxu0 0
        %1468 = vmatmul.mubr.bf16.gmra.mrb[0].mxu0 %v572
        %v1469 = vpop.f32.mrb[0].mxu0
        %v1470 = vadd.f32 %v1408, %v1469
        %v1471 = vpop.f32.mrb[0].mxu0
        %v1472 = vadd.f32 %v1412, %v1471
        %v1473 = vpop.f32.mrb[0].mxu0
        %v1474 = vadd.f32 %v1408, %v1473
        %v1475 = vpop.f32.mrb[0].mxu0
        %v1476 = vadd.f32 %v1412, %v1475
        %1477 = vmatprep.mubr.bf16.mxu0 0
        %1478 = vmatmul.mubr.bf16.gmra.mrb[0].mxu0 %v575
        %v1479 = vpop.f32.mrb[0].mxu0
        %v1480 = vadd.f32 %v1408, %v1479
        %v1481 = vpop.f32.mrb[0].mxu0
        %v1482 = vadd.f32 %v1412, %v1481
        %v1483 = vpop.f32.mrb[0].mxu0
        %v1484 = vadd.f32 %v1408, %v1483
        %v1485 = vpop.f32.mrb[0].mxu0
        %v1486 = vadd.f32 %v1412, %v1485
        %1487 = vmatprep.mubr.bf16.mxu0 0
        %1488 = vmatmul.mubr.bf16.gmra.mrb[0].mxu0 %v578
        %v1489 = vpop.f32.mrb[0].mxu0
        %v1490 = vadd.f32 %v1408, %v1489
        %v1491 = vpop.f32.mrb[0].mxu0
        %v1492 = vadd.f32 %v1412, %v1491
        %v1493 = vpop.f32.mrb[0].mxu0
        %v1494 = vadd.f32 %v1408, %v1493
        %v1495 = vpop.f32.mrb[0].mxu0
        %v1496 = vadd.f32 %v1412, %v1495
        %1497 = vmatprep.mubr.bf16.mxu0 0
        %1498 = vmatmul.mubr.bf16.gmra.mrb[0].mxu0 %v581
        %v1499 = vpop.f32.mrb[0].mxu0
        %v1500 = vadd.f32 %v1408, %v1499
        %v1501 = vpop.f32.mrb[0].mxu0
        %v1502 = vadd.f32 %v1412, %v1501
        %v1503 = vpop.f32.mrb[0].mxu0
        %v1504 = vadd.f32 %v1408, %v1503
        %v1505 = vpop.f32.mrb[0].mxu0
        %v1506 = vadd.f32 %v1412, %v1505
        %1507 = vdwg.mxu0
        %v1508 = vpack.c.bf16 %v1474, %v1470
        %v1509 = vpack.c.bf16 %v1476, %v1472
        %v1510 = vpack.c.bf16 %v1484, %v1480
        %v1511 = vpack.c.bf16 %v1486, %v1482
        %v1512 = vpack.c.bf16 %v1494, %v1490
        %v1513 = vpack.c.bf16 %v1496, %v1492
        %v1514 = vpack.c.bf16 %v1504, %v1500
        %v1515 = vpack.c.bf16 %v1506, %v1502
        %v1516 = vmul.bf16 %v1508, 1056980736
        %v1517 = vmul.bf16 %v1509, 1056980736
        %v1518 = vmul.bf16 %v1510, 1056980736
        %v1519 = vmul.bf16 %v1511, 1056980736
        %v1520 = vmul.bf16 %v1512, 1056980736
        %v1521 = vmul.bf16 %v1513, 1056980736
        %v1522 = vmul.bf16 %v1514, 1056980736
        %v1523 = vmul.bf16 %v1515, 1056980736
        %v1524 = vtanh.bf16.pop %v1516
        %v1525 = vtanh.bf16.pop %v1517
        %v1526 = vtanh.bf16.pop %v1518
        %v1527 = vtanh.bf16.pop %v1519
        %v1528 = vtanh.bf16.pop %v1520
        %v1529 = vtanh.bf16.pop %v1521
        %v1530 = vtanh.bf16.pop %v1522
        %v1531 = vtanh.bf16.pop %v1523
        %v1532 = vmul.bf16 %v1516, %v1524
        %v1533 = vmul.bf16 %v1517, %v1525
        %v1534 = vmul.bf16 %v1518, %v1526
        %v1535 = vmul.bf16 %v1519, %v1527
        %v1536 = vmul.bf16 %v1520, %v1528
        %v1537 = vmul.bf16 %v1521, %v1529
        %v1538 = vmul.bf16 %v1522, %v1530
        %v1539 = vmul.bf16 %v1523, %v1531
        %v1540 = vadd.bf16 %v1532, %v1516
        %v1541 = vadd.bf16 %v1533, %v1517
        %v1542 = vadd.bf16 %v1534, %v1518
        %v1543 = vadd.bf16 %v1535, %v1519
        %v1544 = vadd.bf16 %v1536, %v1520
        %v1545 = vadd.bf16 %v1537, %v1521
        %v1546 = vadd.bf16 %v1538, %v1522
        %v1547 = vadd.bf16 %v1539, %v1523
        %v1548 = vld [vmem:[#allocation2 + $0x8] sm:$0x3]
        %1549 = vmatprep.subr.bf16.mxu0 %v1541
        %1550 = vmatpush1.bf16.msra.mxu0 %v1540
        %1551 = vmatprep.subr.bf16.mxu0 %v1543
        %1552 = vmatpush1.bf16.msra.mxu0 %v1542
        %1553 = vmatprep.subr.bf16.mxu0 %v1545
        %1554 = vmatpush1.bf16.msra.mxu0 %v1544
        %1555 = vmatprep.subr.bf16.mxu0 %v1547
        %1556 = vmatpush1.bf16.msra.mxu0 %v1546
        %1557 = vmatprep.subr.bf16.mxu0 0
        %1558 = vmatpush1.bf16.msra.mxu0 0
        %1559 = vmatprep.subr.bf16.mxu0 0
        %1560 = vmatpush1.bf16.msra.mxu0 0
        %1561 = vmatprep.subr.bf16.mxu0 0
        %1562 = vmatpush1.bf16.msra.mxu0 0
        %1563 = vmatprep.subr.bf16.mxu0 0
        %1564 = vmatpush1.bf16.msra.mxu0 0
        %1565 = vmatprep.subr.bf16.mxu0 0
        %1566 = vmatpush1.bf16.msra.mxu0 0
        %1567 = vmatprep.subr.bf16.mxu0 0
        %1568 = vmatpush1.bf16.msra.mxu0 0
        %1569 = vmatprep.subr.bf16.mxu0 0
        %1570 = vmatpush1.bf16.msra.mxu0 0
        %1571 = vmatprep.subr.bf16.mxu0 0
        %1572 = vmatpush1.bf16.msra.mxu0 0
        %1573 = vmatprep.subr.bf16.mxu0 0
        %1574 = vmatpush1.bf16.msra.mxu0 0
        %1575 = vmatprep.subr.bf16.mxu0 0
        %1576 = vmatpush1.bf16.msra.mxu0 0
        %1577 = vmatprep.subr.bf16.mxu0 0
        %1578 = vmatpush1.bf16.msra.mxu0 0
        %1579 = vmatprep.subr.bf16.mxu0 0
        %1580 = vmatpush1.bf16.msra.mxu0 0
        %1581 = vmatprep.mubr.bf16.mxu0 0
        %1582 = vmatmul.mubr.bf16.gmra.mrb[0].mxu0 %v699
        %v1583 = vpop.f32.mrb[0].mxu0
        %v1584 = vadd.f32 0.0, %v1583
        %v1585 = vpop.f32.mrb[0].mxu0
        %v1586 = vadd.f32 0.0, %v1585
        %v1587 = vpop.f32.mrb[0].mxu0
        %v1588 = vpop.f32.mrb[0].mxu0
        %1589 = vdwg.mxu0
        %v1592 = vcombine.low %v1584, %v1586
        %v1594 = vunpack.c.l.s4 1966171168
        %v1595 = vunpack.c.0.s8 %v1594
        %v1596 = vlaneseq
        %v1597 = vshrl.u32 %v1596, 7
        %v1598 = vsub.s32 %v1595, %v1597
        %v1599 = vrot.slane %v1592, %v1598
        %v1601 = vunpack.c.l.s4 1966171168
        %v1602 = vunpack.c.0.s8 %v1601
        %v1603 = vlaneseq
        %v1604 = vshrl.u32 %v1603, 7
        %v1605 = vsub.s32 %v1602, %v1604
        %v1606 = vrot.slane %v1599, %v1605
        %v1608 = vadd.f32 %v1548, %v1606
        %1609 = vst.msk [vmem:[#allocation2 + $0x8] sm:$0x3] %vm764, %v1608
        // Predicated region
        $region65: #{hsemotion_forward.2} parent=39 // pred_check
          %p1610 = pneg %p344
        $region66: #{hsemotion_forward.2} parent=39 // pred_check_branch
          %1612 = sbr.rel (%p1610) target = $region68
        $region67: #{hsemotion_forward.2} parent=39 // pred_region
          %v1613 = vld [vmem:[#allocation2] sm:$0xff]
          %v1614 = vld [vmem:[#allocation2 + $0x8] sm:$0x3]
          %v1615 = vmul.f32 %v1613, 0.015625
          %v1616 = vmul.f32 %v1614, 0.015625
          %1617 = vst [vmem:[%s337] sm:$0xff] %v1615
          %1618 = vst.msk [vmem:[%s337 + $0x8] sm:$0x3] %vm764, %v1616
        $region68: #{hsemotion_forward.2} parent=39 // pred_fallthru
          _
        %s1619 = sand.u32 %s175, 1
        %s1620 = scalar_lea.sflag [#allocation5], %s1619
        %s1621 = sand.u32 %s175, 1
        %s1622 = smul.addr %s1621, 10
        %s1623 = scalar_lea.vmem [#allocation12], %s1622
        // Predicated region
        $region69: #{hsemotion_forward.2} parent=39 // pred_check
          %p1624 = pneg %p185
        $region70: #{hsemotion_forward.2} parent=39 // pred_check_branch
          %1626 = sbr.rel (%p1624) target = $region72
        $region71: #{hsemotion_forward.2} parent=39 // pred_region
          %s1627 = smul.u32 10, %s30
          %s1629 = ssub.s32 160, 160
          %1630 = vsyncadd %s1620, %s1629
          %s1631 = smul.addr %s29, 10
          %s1632 = sadd.s32 %s1627, %s1631
          %s1633 = smul.addr %s1632, 16
          %s1634 = scalar_lea.hbm %s5, %s1633
          %s1636 = sshll.u32 %s1623, 4
          %s1637 = int_to_ptr.vmem [resolvable:$true] %s1636
          %1639 = dma.vmem_to_hbm [thread:$0]  %s1637, 160, %s1634, %s1620
        $region72: #{hsemotion_forward.2} parent=39 // pred_fallthru
          _
      $region40: #{hsemotion_forward.2} parent=5 // pred_fallthru
        _
      %p1640 = scmp.le.s32.totalorder 2, %s19
      // Predicated region
      $region73: #{hsemotion_forward.2} parent=5 // pred_check
        %p1641 = pneg %p1640
      $region74: #{hsemotion_forward.2} parent=5 // pred_check_branch
        %1643 = sbr.rel (%p1641) target = $region76
      $region75: #{hsemotion_forward.2} parent=5 // pred_region
        %s1644 = ssub.s32 %s19, 2
        // Predicated region
        $region77: #{hsemotion_forward.2} parent=75 // pred_check
          %p1645 = pneg %p191
        $region78: #{hsemotion_forward.2} parent=75 // pred_check_branch
          %1647 = sbr.rel (%p1645) target = $region80
        $region79: #{hsemotion_forward.2} parent=75 // pred_region
          %s1648 = sand.u32 %s176, 1
          %s1649 = scalar_lea.sflag [#allocation5], %s1648
          %s1650 = sand.u32 %s176, 1
          %s1651 = smul.addr %s1650, 10
          %s1652 = scalar_lea.vmem [#allocation12], %s1651
          %1653 = dma.done %s1649, 160
        $region80: #{hsemotion_forward.2} parent=75 // pred_fallthru
          _
      $region76: #{hsemotion_forward.2} parent=5 // pred_fallthru
        _
    $region6: #{hsemotion_forward.2} parent=1 // loop_footer
      %s23 = sadd.s32 1, %s19
    $region7: #{hsemotion_forward.2} parent=1 // loop_footer_branch
      %18 = sbr.rel target = $region3
    $region8: #{hsemotion_forward.2} parent=1 // loop_exit
      _
    %1654 = vsyncpa [#allocation4], 1
    %s1655 = scalar_lea.sflag [#allocation4], 1
    %1656 = vsyncpa %s1655, 1
    %1657 = vsyncpa [#allocation7], 1
    %1658 = vsyncpa [#allocation10], 1
    %1659 = vsyncpa [#allocation5], 1
    %s1660 = scalar_lea.sflag [#allocation5], 1
    %1661 = vsyncpa %s1660, 1

// kernel: hsemotion_forward.3
$region0: #{hsemotion_forward.3}
  #allocation0 [shape = 'u32[]', space=smem, size = 0x4, offset = 0x4, fixed_abs, tag = 'smem constant byte address 0x4 - core index']
  #allocation1 [shape = 'u32[144,128]{1,0:T(1,128)}', space=vmem, size = 0x12000, scoped, tag = 'internal scratch']
  %s0 = inlined_call_operand.vmem [shape: f32[2,1280], index: 0, kind: input, shape index: {}]
  %s1 = inlined_call_operand.vmem [shape: bf16[1280,512], index: 1, kind: input, shape index: {}]
  %s2 = inlined_call_operand.vmem [shape: f32[1,512], index: 2, kind: input, shape index: {}]
  %s3 = inlined_call_operand.vmem [shape: bf16[512,512], index: 3, kind: input, shape index: {}]
  %s4 = inlined_call_operand.vmem [shape: f32[1,512], index: 4, kind: input, shape index: {}]
  %s5 = inlined_call_operand.vmem [shape: bf16[512,512], index: 5, kind: input, shape index: {}]
  %s6 = inlined_call_operand.vmem [shape: f32[1,512], index: 6, kind: input, shape index: {}]
  %s7 = inlined_call_operand.vmem [shape: bf16[512,128], index: 7, kind: input, shape index: {}]
  %s8 = inlined_call_operand.vmem [shape: f32[1,128], index: 8, kind: input, shape index: {}]
  %s9 = inlined_call_operand.hbm [shape: f32[2,128], index: 9, kind: output, shape index: {}]
  %s10 = sld [smem:[#allocation0]]
  $region46: #{hsemotion_forward.3} parent=0
    _
  %s12 = ssub.s32 1, %s10
  %s13 = scalar_select 0, %s12, %s10
  $region1: #{hsemotion_forward.3} parent=0
    #allocation2 [shape = 'u8[1024]{0}', space=vmem, size = 0x400, scoped, tag = 'output window, operand 0, single buffered']
    #allocation3 [shape = 's32[1]{0}', space=sflag, size = 0x4, scoped, tag = 'scoped memory for hsemotion_forward.3']
    %14 = vsyncpa [#allocation3], 0
    // Predicated region
    $region2: #{hsemotion_forward.3} parent=1 // pred_check
      _
    $region3: #{hsemotion_forward.3} parent=1 // pred_check_branch
      %16 = sbr.rel (0) target = $region5
    $region4: #{hsemotion_forward.3} parent=1 // pred_region
      _
    $region5: #{hsemotion_forward.3} parent=1 // pred_fallthru
      _
    // Predicated region
    $region6: #{hsemotion_forward.3} parent=1 // pred_check
      _
    $region7: #{hsemotion_forward.3} parent=1 // pred_check_branch
      %18 = sbr.rel (0) target = $region9
    $region8: #{hsemotion_forward.3} parent=1 // pred_region
      _
    $region9: #{hsemotion_forward.3} parent=1 // pred_fallthru
      _
    // Predicated region
    $region10: #{hsemotion_forward.3} parent=1 // pred_check
      _
    $region11: #{hsemotion_forward.3} parent=1 // pred_check_branch
      %20 = sbr.rel (0) target = $region13
    $region12: #{hsemotion_forward.3} parent=1 // pred_region
      _
    $region13: #{hsemotion_forward.3} parent=1 // pred_fallthru
      _
    // Predicated region
    $region14: #{hsemotion_forward.3} parent=1 // pred_check
      _
    $region15: #{hsemotion_forward.3} parent=1 // pred_check_branch
      %22 = sbr.rel (0) target = $region17
    $region16: #{hsemotion_forward.3} parent=1 // pred_region
      _
    $region17: #{hsemotion_forward.3} parent=1 // pred_fallthru
      _
    // Predicated region
    $region18: #{hsemotion_forward.3} parent=1 // pred_check
      _
    $region19: #{hsemotion_forward.3} parent=1 // pred_check_branch
      %24 = sbr.rel (0) target = $region21
    $region20: #{hsemotion_forward.3} parent=1 // pred_region
      _
    $region21: #{hsemotion_forward.3} parent=1 // pred_fallthru
      _
    // Predicated region
    $region22: #{hsemotion_forward.3} parent=1 // pred_check
      _
    $region23: #{hsemotion_forward.3} parent=1 // pred_check_branch
      %26 = sbr.rel (0) target = $region25
    $region24: #{hsemotion_forward.3} parent=1 // pred_region
      _
    $region25: #{hsemotion_forward.3} parent=1 // pred_fallthru
      _
    // Predicated region
    $region26: #{hsemotion_forward.3} parent=1 // pred_check
      _
    $region27: #{hsemotion_forward.3} parent=1 // pred_check_branch
      %28 = sbr.rel (0) target = $region29
    $region28: #{hsemotion_forward.3} parent=1 // pred_region
      _
    $region29: #{hsemotion_forward.3} parent=1 // pred_fallthru
      _
    // Predicated region
    $region30: #{hsemotion_forward.3} parent=1 // pred_check
      _
    $region31: #{hsemotion_forward.3} parent=1 // pred_check_branch
      %30 = sbr.rel (0) target = $region33
    $region32: #{hsemotion_forward.3} parent=1 // pred_region
      _
    $region33: #{hsemotion_forward.3} parent=1 // pred_fallthru
      _
    // Predicated region
    $region34: #{hsemotion_forward.3} parent=1 // pred_check
      _
    $region35: #{hsemotion_forward.3} parent=1 // pred_check_branch
      %32 = sbr.rel (0) target = $region37
    $region36: #{hsemotion_forward.3} parent=1 // pred_region
      _
    $region37: #{hsemotion_forward.3} parent=1 // pred_fallthru
      _
    %v34 = vld [vmem:[%s0] sm:$0xff]
    %v35 = vld [vmem:[%s0 + $0x8] sm:$0xff]
    %v36 = vld [vmem:[%s0 + $0x10] sm:$0xf]
    %v40 = vcombine.high %v34, %v34
    %v42 = vunpack.c.l.s4 1983009808
    %v43 = vunpack.c.0.s8 %v42
    %v44 = vlaneseq
    %v45 = vshrl.u32 %v44, 7
    %v46 = vsub.s32 %v43, %v45
    %v47 = vrot.slane %v34, %v46
    %v49 = vunpack.c.l.s4 1983009808
    %v50 = vunpack.c.0.s8 %v49
    %v51 = vlaneseq
    %v52 = vshrl.u32 %v51, 7
    %v53 = vsub.s32 %v50, %v52
    %v54 = vrot.slane %v40, %v53
    %v55 = vcombine.high %v47, %v47
    %v56 = vcombine.high %v54, %v54
    %v57 = vcombine.high %v35, %v35
    %v59 = vunpack.c.l.s4 1983009808
    %v60 = vunpack.c.0.s8 %v59
    %v61 = vlaneseq
    %v62 = vshrl.u32 %v61, 7
    %v63 = vsub.s32 %v60, %v62
    %v64 = vrot.slane %v35, %v63
    %v66 = vunpack.c.l.s4 1983009808
    %v67 = vunpack.c.0.s8 %v66
    %v68 = vlaneseq
    %v69 = vshrl.u32 %v68, 7
    %v70 = vsub.s32 %v67, %v69
    %v71 = vrot.slane %v57, %v70
    %v72 = vcombine.high %v64, %v64
    %v73 = vcombine.high %v71, %v71
    %v75 = vunpack.c.l.s4 1983009808
    %v76 = vunpack.c.0.s8 %v75
    %v77 = vlaneseq
    %v78 = vshrl.u32 %v77, 7
    %v79 = vsub.s32 %v76, %v78
    %v80 = vrot.slane %v36, %v79
    %v81 = vcombine.high %v80, %v80
    %v92 = vpack.c.bf16 %v47, %v47
    %v93 = vpack.c.bf16 %v55, %v55
    %v94 = vpack.c.bf16 %v54, %v54
    %v95 = vpack.c.bf16 %v56, %v56
    %v96 = vpack.c.bf16 %v64, %v64
    %v97 = vpack.c.bf16 %v72, %v72
    %v98 = vpack.c.bf16 %v71, %v71
    %v99 = vpack.c.bf16 %v73, %v73
    %v100 = vpack.c.bf16 %v80, %v80
    %v101 = vpack.c.bf16 %v81, %v81
    %v102 = vld [vmem:[%s1] sm:$0xff]
    %v103 = vld [vmem:[%s1 + $0x8] sm:$0xff]
    %v104 = vld [vmem:[%s1 + $0x10] sm:$0xff]
    %v105 = vld [vmem:[%s1 + $0x18] sm:$0xff]
    %v106 = vld [vmem:[%s1 + $0x20] sm:$0xff]
    %v107 = vld [vmem:[%s1 + $0x28] sm:$0xff]
    %v108 = vld [vmem:[%s1 + $0x30] sm:$0xff]
    %v109 = vld [vmem:[%s1 + $0x38] sm:$0xff]
    %v110 = vld [vmem:[%s1 + $0x40] sm:$0xff]
    %v111 = vld [vmem:[%s1 + $0x48] sm:$0xff]
    %v112 = vld [vmem:[%s1 + $0x50] sm:$0xff]
    %v113 = vld [vmem:[%s1 + $0x58] sm:$0xff]
    %v114 = vld [vmem:[%s1 + $0x60] sm:$0xff]
    %v115 = vld [vmem:[%s1 + $0x68] sm:$0xff]
    %v116 = vld [vmem:[%s1 + $0x70] sm:$0xff]
    %v117 = vld [vmem:[%s1 + $0x78] sm:$0xff]
    %v118 = vld [vmem:[%s1 + $0x80] sm:$0xff]
    %v119 = vld [vmem:[%s1 + $0x88] sm:$0xff]
    %v120 = vld [vmem:[%s1 + $0x90] sm:$0xff]
    %v121 = vld [vmem:[%s1 + $0x98] sm:$0xff]
    %v122 = vld [vmem:[%s1 + $0xa0] sm:$0xff]
    %v123 = vld [vmem:[%s1 + $0xa8] sm:$0xff]
    %v124 = vld [vmem:[%s1 + $0xb0] sm:$0xff]
    %v125 = vld [vmem:[%s1 + $0xb8] sm:$0xff]
    %v126 = vld [vmem:[%s1 + $0xc0] sm:$0xff]
    %v127 = vld [vmem:[%s1 + $0xc8] sm:$0xff]
    %v128 = vld [vmem:[%s1 + $0xd0] sm:$0xff]
    %v129 = vld [vmem:[%s1 + $0xd8] sm:$0xff]
    %v130 = vld [vmem:[%s1 + $0xe0] sm:$0xff]
    %v131 = vld [vmem:[%s1 + $0xe8] sm:$0xff]
    %v132 = vld [vmem:[%s1 + $0xf0] sm:$0xff]
    %v133 = vld [vmem:[%s1 + $0xf8] sm:$0xff]
    %v134 = vld [vmem:[%s1 + $0x100] sm:$0xff]
    %v135 = vld [vmem:[%s1 + $0x108] sm:$0xff]
    %v136 = vld [vmem:[%s1 + $0x110] sm:$0xff]
    %v137 = vld [vmem:[%s1 + $0x118] sm:$0xff]
    %v138 = vld [vmem:[%s1 + $0x120] sm:$0xff]
    %v139 = vld [vmem:[%s1 + $0x128] sm:$0xff]
    %v140 = vld [vmem:[%s1 + $0x130] sm:$0xff]
    %v141 = vld [vmem:[%s1 + $0x138] sm:$0xff]
    %v142 = vld [vmem:[%s1 + $0x140] sm:$0xff]
    %v143 = vld [vmem:[%s1 + $0x148] sm:$0xff]
    %v144 = vld [vmem:[%s1 + $0x150] sm:$0xff]
    %v145 = vld [vmem:[%s1 + $0x158] sm:$0xff]
    %v146 = vld [vmem:[%s1 + $0x160] sm:$0xff]
    %v147 = vld [vmem:[%s1 + $0x168] sm:$0xff]
    %v148 = vld [vmem:[%s1 + $0x170] sm:$0xff]
    %v149 = vld [vmem:[%s1 + $0x178] sm:$0xff]
    %v150 = vld [vmem:[%s1 + $0x180] sm:$0xff]
    %v151 = vld [vmem:[%s1 + $0x188] sm:$0xff]
    %v152 = vld [vmem:[%s1 + $0x190] sm:$0xff]
    %v153 = vld [vmem:[%s1 + $0x198] sm:$0xff]
    %v154 = vld [vmem:[%s1 + $0x1a0] sm:$0xff]
    %v155 = vld [vmem:[%s1 + $0x1a8] sm:$0xff]
    %v156 = vld [vmem:[%s1 + $0x1b0] sm:$0xff]
    %v157 = vld [vmem:[%s1 + $0x1b8] sm:$0xff]
    %v158 = vld [vmem:[%s1 + $0x1c0] sm:$0xff]
    %v159 = vld [vmem:[%s1 + $0x1c8] sm:$0xff]
    %v160 = vld [vmem:[%s1 + $0x1d0] sm:$0xff]
    %v161 = vld [vmem:[%s1 + $0x1d8] sm:$0xff]
    %v162 = vld [vmem:[%s1 + $0x1e0] sm:$0xff]
    %v163 = vld [vmem:[%s1 + $0x1e8] sm:$0xff]
    %v164 = vld [vmem:[%s1 + $0x1f0] sm:$0xff]
    %v165 = vld [vmem:[%s1 + $0x1f8] sm:$0xff]
    %v166 = vld [vmem:[%s1 + $0x200] sm:$0xff]
    %v167 = vld [vmem:[%s1 + $0x208] sm:$0xff]
    %v168 = vld [vmem:[%s1 + $0x210] sm:$0xff]
    %v169 = vld [vmem:[%s1 + $0x218] sm:$0xff]
    %v170 = vld [vmem:[%s1 + $0x220] sm:$0xff]
    %v171 = vld [vmem:[%s1 + $0x228] sm:$0xff]
    %v172 = vld [vmem:[%s1 + $0x230] sm:$0xff]
    %v173 = vld [vmem:[%s1 + $0x238] sm:$0xff]
    %v174 = vld [vmem:[%s1 + $0x240] sm:$0xff]
    %v175 = vld [vmem:[%s1 + $0x248] sm:$0xff]
    %v176 = vld [vmem:[%s1 + $0x250] sm:$0xff]
    %v177 = vld [vmem:[%s1 + $0x258] sm:$0xff]
    %v178 = vld [vmem:[%s1 + $0x260] sm:$0xff]
    %v179 = vld [vmem:[%s1 + $0x268] sm:$0xff]
    %v180 = vld [vmem:[%s1 + $0x270] sm:$0xff]
    %v181 = vld [vmem:[%s1 + $0x278] sm:$0xff]
    %v182 = vld [vmem:[%s1 + $0x280] sm:$0xff]
    %v183 = vld [vmem:[%s1 + $0x288] sm:$0xff]
    %v184 = vld [vmem:[%s1 + $0x290] sm:$0xff]
    %v185 = vld [vmem:[%s1 + $0x298] sm:$0xff]
    %v186 = vld [vmem:[%s1 + $0x2a0] sm:$0xff]
    %v187 = vld [vmem:[%s1 + $0x2a8] sm:$0xff]
    %v188 = vld [vmem:[%s1 + $0x2b0] sm:$0xff]
    %v189 = vld [vmem:[%s1 + $0x2b8] sm:$0xff]
    %v190 = vld [vmem:[%s1 + $0x2c0] sm:$0xff]
    %v191 = vld [vmem:[%s1 + $0x2c8] sm:$0xff]
    %v192 = vld [vmem:[%s1 + $0x2d0] sm:$0xff]
    %v193 = vld [vmem:[%s1 + $0x2d8] sm:$0xff]
    %v194 = vld [vmem:[%s1 + $0x2e0] sm:$0xff]
    %v195 = vld [vmem:[%s1 + $0x2e8] sm:$0xff]
    %v196 = vld [vmem:[%s1 + $0x2f0] sm:$0xff]
    %v197 = vld [vmem:[%s1 + $0x2f8] sm:$0xff]
    %v198 = vld [vmem:[%s1 + $0x300] sm:$0xff]
    %v199 = vld [vmem:[%s1 + $0x308] sm:$0xff]
    %v200 = vld [vmem:[%s1 + $0x310] sm:$0xff]
    %v201 = vld [vmem:[%s1 + $0x318] sm:$0xff]
    %v202 = vld [vmem:[%s1 + $0x320] sm:$0xff]
    %v203 = vld [vmem:[%s1 + $0x328] sm:$0xff]
    %v204 = vld [vmem:[%s1 + $0x330] sm:$0xff]
    %v205 = vld [vmem:[%s1 + $0x338] sm:$0xff]
    %v206 = vld [vmem:[%s1 + $0x340] sm:$0xff]
    %v207 = vld [vmem:[%s1 + $0x348] sm:$0xff]
    %v208 = vld [vmem:[%s1 + $0x350] sm:$0xff]
    %v209 = vld [vmem:[%s1 + $0x358] sm:$0xff]
    %v210 = vld [vmem:[%s1 + $0x360] sm:$0xff]
    %v211 = vld [vmem:[%s1 + $0x368] sm:$0xff]
    %v212 = vld [vmem:[%s1 + $0x370] sm:$0xff]
    %v213 = vld [vmem:[%s1 + $0x378] sm:$0xff]
    %v214 = vld [vmem:[%s1 + $0x380] sm:$0xff]
    %v215 = vld [vmem:[%s1 + $0x388] sm:$0xff]
    %v216 = vld [vmem:[%s1 + $0x390] sm:$0xff]
    %v217 = vld [vmem:[%s1 + $0x398] sm:$0xff]
    %v218 = vld [vmem:[%s1 + $0x3a0] sm:$0xff]
    %v219 = vld [vmem:[%s1 + $0x3a8] sm:$0xff]
    %v220 = vld [vmem:[%s1 + $0x3b0] sm:$0xff]
    %v221 = vld [vmem:[%s1 + $0x3b8] sm:$0xff]
    %v222 = vld [vmem:[%s1 + $0x3c0] sm:$0xff]
    %v223 = vld [vmem:[%s1 + $0x3c8] sm:$0xff]
    %v224 = vld [vmem:[%s1 + $0x3d0] sm:$0xff]
    %v225 = vld [vmem:[%s1 + $0x3d8] sm:$0xff]
    %v226 = vld [vmem:[%s1 + $0x3e0] sm:$0xff]
    %v227 = vld [vmem:[%s1 + $0x3e8] sm:$0xff]
    %v228 = vld [vmem:[%s1 + $0x3f0] sm:$0xff]
    %v229 = vld [vmem:[%s1 + $0x3f8] sm:$0xff]
    %v230 = vld [vmem:[%s1 + $0x400] sm:$0xff]
    %v231 = vld [vmem:[%s1 + $0x408] sm:$0xff]
    %v232 = vld [vmem:[%s1 + $0x410] sm:$0xff]
    %v233 = vld [vmem:[%s1 + $0x418] sm:$0xff]
    %v234 = vld [vmem:[%s1 + $0x420] sm:$0xff]
    %v235 = vld [vmem:[%s1 + $0x428] sm:$0xff]
    %v236 = vld [vmem:[%s1 + $0x430] sm:$0xff]
    %v237 = vld [vmem:[%s1 + $0x438] sm:$0xff]
    %v238 = vld [vmem:[%s1 + $0x440] sm:$0xff]
    %v239 = vld [vmem:[%s1 + $0x448] sm:$0xff]
    %v240 = vld [vmem:[%s1 + $0x450] sm:$0xff]
    %v241 = vld [vmem:[%s1 + $0x458] sm:$0xff]
    %v242 = vld [vmem:[%s1 + $0x460] sm:$0xff]
    %v243 = vld [vmem:[%s1 + $0x468] sm:$0xff]
    %v244 = vld [vmem:[%s1 + $0x470] sm:$0xff]
    %v245 = vld [vmem:[%s1 + $0x478] sm:$0xff]
    %v246 = vld [vmem:[%s1 + $0x480] sm:$0xff]
    %v247 = vld [vmem:[%s1 + $0x488] sm:$0xff]
    %v248 = vld [vmem:[%s1 + $0x490] sm:$0xff]
    %v249 = vld [vmem:[%s1 + $0x498] sm:$0xff]
    %v250 = vld [vmem:[%s1 + $0x4a0] sm:$0xff]
    %v251 = vld [vmem:[%s1 + $0x4a8] sm:$0xff]
    %v252 = vld [vmem:[%s1 + $0x4b0] sm:$0xff]
    %v253 = vld [vmem:[%s1 + $0x4b8] sm:$0xff]
    %v254 = vld [vmem:[%s1 + $0x4c0] sm:$0xff]
    %v255 = vld [vmem:[%s1 + $0x4c8] sm:$0xff]
    %v256 = vld [vmem:[%s1 + $0x4d0] sm:$0xff]
    %v257 = vld [vmem:[%s1 + $0x4d8] sm:$0xff]
    %v258 = vld [vmem:[%s1 + $0x4e0] sm:$0xff]
    %v259 = vld [vmem:[%s1 + $0x4e8] sm:$0xff]
    %v260 = vld [vmem:[%s1 + $0x4f0] sm:$0xff]
    %v261 = vld [vmem:[%s1 + $0x4f8] sm:$0xff]
    %v262 = vld [vmem:[%s1 + $0x500] sm:$0xff]
    %v263 = vld [vmem:[%s1 + $0x508] sm:$0xff]
    %v264 = vld [vmem:[%s1 + $0x510] sm:$0xff]
    %v265 = vld [vmem:[%s1 + $0x518] sm:$0xff]
    %v266 = vld [vmem:[%s1 + $0x520] sm:$0xff]
    %v267 = vld [vmem:[%s1 + $0x528] sm:$0xff]
    %v268 = vld [vmem:[%s1 + $0x530] sm:$0xff]
    %v269 = vld [vmem:[%s1 + $0x538] sm:$0xff]
    %v270 = vld [vmem:[%s1 + $0x540] sm:$0xff]
    %v271 = vld [vmem:[%s1 + $0x548] sm:$0xff]
    %v272 = vld [vmem:[%s1 + $0x550] sm:$0xff]
    %v273 = vld [vmem:[%s1 + $0x558] sm:$0xff]
    %v274 = vld [vmem:[%s1 + $0x560] sm:$0xff]
    %v275 = vld [vmem:[%s1 + $0x568] sm:$0xff]
    %v276 = vld [vmem:[%s1 + $0x570] sm:$0xff]
    %v277 = vld [vmem:[%s1 + $0x578] sm:$0xff]
    %v278 = vld [vmem:[%s1 + $0x580] sm:$0xff]
    %v279 = vld [vmem:[%s1 + $0x588] sm:$0xff]
    %v280 = vld [vmem:[%s1 + $0x590] sm:$0xff]
    %v281 = vld [vmem:[%s1 + $0x598] sm:$0xff]
    %v282 = vld [vmem:[%s1 + $0x5a0] sm:$0xff]
    %v283 = vld [vmem:[%s1 + $0x5a8] sm:$0xff]
    %v284 = vld [vmem:[%s1 + $0x5b0] sm:$0xff]
    %v285 = vld [vmem:[%s1 + $0x5b8] sm:$0xff]
    %v286 = vld [vmem:[%s1 + $0x5c0] sm:$0xff]
    %v287 = vld [vmem:[%s1 + $0x5c8] sm:$0xff]
    %v288 = vld [vmem:[%s1 + $0x5d0] sm:$0xff]
    %v289 = vld [vmem:[%s1 + $0x5d8] sm:$0xff]
    %v290 = vld [vmem:[%s1 + $0x5e0] sm:$0xff]
    %v291 = vld [vmem:[%s1 + $0x5e8] sm:$0xff]
    %v292 = vld [vmem:[%s1 + $0x5f0] sm:$0xff]
    %v293 = vld [vmem:[%s1 + $0x5f8] sm:$0xff]
    %v294 = vld [vmem:[%s1 + $0x600] sm:$0xff]
    %v295 = vld [vmem:[%s1 + $0x608] sm:$0xff]
    %v296 = vld [vmem:[%s1 + $0x610] sm:$0xff]
    %v297 = vld [vmem:[%s1 + $0x618] sm:$0xff]
    %v298 = vld [vmem:[%s1 + $0x620] sm:$0xff]
    %v299 = vld [vmem:[%s1 + $0x628] sm:$0xff]
    %v300 = vld [vmem:[%s1 + $0x630] sm:$0xff]
    %v301 = vld [vmem:[%s1 + $0x638] sm:$0xff]
    %v302 = vld [vmem:[%s1 + $0x640] sm:$0xff]
    %v303 = vld [vmem:[%s1 + $0x648] sm:$0xff]
    %v304 = vld [vmem:[%s1 + $0x650] sm:$0xff]
    %v305 = vld [vmem:[%s1 + $0x658] sm:$0xff]
    %v306 = vld [vmem:[%s1 + $0x660] sm:$0xff]
    %v307 = vld [vmem:[%s1 + $0x668] sm:$0xff]
    %v308 = vld [vmem:[%s1 + $0x670] sm:$0xff]
    %v309 = vld [vmem:[%s1 + $0x678] sm:$0xff]
    %v310 = vld [vmem:[%s1 + $0x680] sm:$0xff]
    %v311 = vld [vmem:[%s1 + $0x688] sm:$0xff]
    %v312 = vld [vmem:[%s1 + $0x690] sm:$0xff]
    %v313 = vld [vmem:[%s1 + $0x698] sm:$0xff]
    %v314 = vld [vmem:[%s1 + $0x6a0] sm:$0xff]
    %v315 = vld [vmem:[%s1 + $0x6a8] sm:$0xff]
    %v316 = vld [vmem:[%s1 + $0x6b0] sm:$0xff]
    %v317 = vld [vmem:[%s1 + $0x6b8] sm:$0xff]
    %v318 = vld [vmem:[%s1 + $0x6c0] sm:$0xff]
    %v319 = vld [vmem:[%s1 + $0x6c8] sm:$0xff]
    %v320 = vld [vmem:[%s1 + $0x6d0] sm:$0xff]
    %v321 = vld [vmem:[%s1 + $0x6d8] sm:$0xff]
    %v322 = vld [vmem:[%s1 + $0x6e0] sm:$0xff]
    %v323 = vld [vmem:[%s1 + $0x6e8] sm:$0xff]
    %v324 = vld [vmem:[%s1 + $0x6f0] sm:$0xff]
    %v325 = vld [vmem:[%s1 + $0x6f8] sm:$0xff]
    %v326 = vld [vmem:[%s1 + $0x700] sm:$0xff]
    %v327 = vld [vmem:[%s1 + $0x708] sm:$0xff]
    %v328 = vld [vmem:[%s1 + $0x710] sm:$0xff]
    %v329 = vld [vmem:[%s1 + $0x718] sm:$0xff]
    %v330 = vld [vmem:[%s1 + $0x720] sm:$0xff]
    %v331 = vld [vmem:[%s1 + $0x728] sm:$0xff]
    %v332 = vld [vmem:[%s1 + $0x730] sm:$0xff]
    %v333 = vld [vmem:[%s1 + $0x738] sm:$0xff]
    %v334 = vld [vmem:[%s1 + $0x740] sm:$0xff]
    %v335 = vld [vmem:[%s1 + $0x748] sm:$0xff]
    %v336 = vld [vmem:[%s1 + $0x750] sm:$0xff]
    %v337 = vld [vmem:[%s1 + $0x758] sm:$0xff]
    %v338 = vld [vmem:[%s1 + $0x760] sm:$0xff]
    %v339 = vld [vmem:[%s1 + $0x768] sm:$0xff]
    %v340 = vld [vmem:[%s1 + $0x770] sm:$0xff]
    %v341 = vld [vmem:[%s1 + $0x778] sm:$0xff]
    %v342 = vld [vmem:[%s1 + $0x780] sm:$0xff]
    %v343 = vld [vmem:[%s1 + $0x788] sm:$0xff]
    %v344 = vld [vmem:[%s1 + $0x790] sm:$0xff]
    %v345 = vld [vmem:[%s1 + $0x798] sm:$0xff]
    %v346 = vld [vmem:[%s1 + $0x7a0] sm:$0xff]
    %v347 = vld [vmem:[%s1 + $0x7a8] sm:$0xff]
    %v348 = vld [vmem:[%s1 + $0x7b0] sm:$0xff]
    %v349 = vld [vmem:[%s1 + $0x7b8] sm:$0xff]
    %v350 = vld [vmem:[%s1 + $0x7c0] sm:$0xff]
    %v351 = vld [vmem:[%s1 + $0x7c8] sm:$0xff]
    %v352 = vld [vmem:[%s1 + $0x7d0] sm:$0xff]
    %v353 = vld [vmem:[%s1 + $0x7d8] sm:$0xff]
    %v354 = vld [vmem:[%s1 + $0x7e0] sm:$0xff]
    %v355 = vld [vmem:[%s1 + $0x7e8] sm:$0xff]
    %v356 = vld [vmem:[%s1 + $0x7f0] sm:$0xff]
    %v357 = vld [vmem:[%s1 + $0x7f8] sm:$0xff]
    %v358 = vld [vmem:[%s1 + $0x800] sm:$0xff]
    %v359 = vld [vmem:[%s1 + $0x808] sm:$0xff]
    %v360 = vld [vmem:[%s1 + $0x810] sm:$0xff]
    %v361 = vld [vmem:[%s1 + $0x818] sm:$0xff]
    %v362 = vld [vmem:[%s1 + $0x820] sm:$0xff]
    %v363 = vld [vmem:[%s1 + $0x828] sm:$0xff]
    %v364 = vld [vmem:[%s1 + $0x830] sm:$0xff]
    %v365 = vld [vmem:[%s1 + $0x838] sm:$0xff]
    %v366 = vld [vmem:[%s1 + $0x840] sm:$0xff]
    %v367 = vld [vmem:[%s1 + $0x848] sm:$0xff]
    %v368 = vld [vmem:[%s1 + $0x850] sm:$0xff]
    %v369 = vld [vmem:[%s1 + $0x858] sm:$0xff]
    %v370 = vld [vmem:[%s1 + $0x860] sm:$0xff]
    %v371 = vld [vmem:[%s1 + $0x868] sm:$0xff]
    %v372 = vld [vmem:[%s1 + $0x870] sm:$0xff]
    %v373 = vld [vmem:[%s1 + $0x878] sm:$0xff]
    %v374 = vld [vmem:[%s1 + $0x880] sm:$0xff]
    %v375 = vld [vmem:[%s1 + $0x888] sm:$0xff]
    %v376 = vld [vmem:[%s1 + $0x890] sm:$0xff]
    %v377 = vld [vmem:[%s1 + $0x898] sm:$0xff]
    %v378 = vld [vmem:[%s1 + $0x8a0] sm:$0xff]
    %v379 = vld [vmem:[%s1 + $0x8a8] sm:$0xff]
    %v380 = vld [vmem:[%s1 + $0x8b0] sm:$0xff]
    %v381 = vld [vmem:[%s1 + $0x8b8] sm:$0xff]
    %v382 = vld [vmem:[%s1 + $0x8c0] sm:$0xff]
    %v383 = vld [vmem:[%s1 + $0x8c8] sm:$0xff]
    %v384 = vld [vmem:[%s1 + $0x8d0] sm:$0xff]
    %v385 = vld [vmem:[%s1 + $0x8d8] sm:$0xff]
    %v386 = vld [vmem:[%s1 + $0x8e0] sm:$0xff]
    %v387 = vld [vmem:[%s1 + $0x8e8] sm:$0xff]
    %v388 = vld [vmem:[%s1 + $0x8f0] sm:$0xff]
    %v389 = vld [vmem:[%s1 + $0x8f8] sm:$0xff]
    %v390 = vld [vmem:[%s1 + $0x900] sm:$0xff]
    %v391 = vld [vmem:[%s1 + $0x908] sm:$0xff]
    %v392 = vld [vmem:[%s1 + $0x910] sm:$0xff]
    %v393 = vld [vmem:[%s1 + $0x918] sm:$0xff]
    %v394 = vld [vmem:[%s1 + $0x920] sm:$0xff]
    %v395 = vld [vmem:[%s1 + $0x928] sm:$0xff]
    %v396 = vld [vmem:[%s1 + $0x930] sm:$0xff]
    %v397 = vld [vmem:[%s1 + $0x938] sm:$0xff]
    %v398 = vld [vmem:[%s1 + $0x940] sm:$0xff]
    %v399 = vld [vmem:[%s1 + $0x948] sm:$0xff]
    %v400 = vld [vmem:[%s1 + $0x950] sm:$0xff]
    %v401 = vld [vmem:[%s1 + $0x958] sm:$0xff]
    %v402 = vld [vmem:[%s1 + $0x960] sm:$0xff]
    %v403 = vld [vmem:[%s1 + $0x968] sm:$0xff]
    %v404 = vld [vmem:[%s1 + $0x970] sm:$0xff]
    %v405 = vld [vmem:[%s1 + $0x978] sm:$0xff]
    %v406 = vld [vmem:[%s1 + $0x980] sm:$0xff]
    %v407 = vld [vmem:[%s1 + $0x988] sm:$0xff]
    %v408 = vld [vmem:[%s1 + $0x990] sm:$0xff]
    %v409 = vld [vmem:[%s1 + $0x998] sm:$0xff]
    %v410 = vld [vmem:[%s1 + $0x9a0] sm:$0xff]
    %v411 = vld [vmem:[%s1 + $0x9a8] sm:$0xff]
    %v412 = vld [vmem:[%s1 + $0x9b0] sm:$0xff]
    %v413 = vld [vmem:[%s1 + $0x9b8] sm:$0xff]
    %v414 = vld [vmem:[%s1 + $0x9c0] sm:$0xff]
    %v415 = vld [vmem:[%s1 + $0x9c8] sm:$0xff]
    %v416 = vld [vmem:[%s1 + $0x9d0] sm:$0xff]
    %v417 = vld [vmem:[%s1 + $0x9d8] sm:$0xff]
    %v418 = vld [vmem:[%s1 + $0x9e0] sm:$0xff]
    %v419 = vld [vmem:[%s1 + $0x9e8] sm:$0xff]
    %v420 = vld [vmem:[%s1 + $0x9f0] sm:$0xff]
    %v421 = vld [vmem:[%s1 + $0x9f8] sm:$0xff]
    %v422 = vld [vmem:[%s2] sm:$0xf]
    %v424 = vlaneseq
    %v425 = vshrl.u32 %v424, 7
    %v426 = vsub.s32 0, %v425
    %v427 = vrot.slane %v422, %v426
    %v428 = vlaneseq
    %v429 = vshrl.u32 %v428, 7
    %v430 = vsub.s32 1, %v429
    %v431 = vrot.slane %v422, %v430
    %v432 = vlaneseq
    %v433 = vshrl.u32 %v432, 7
    %v434 = vsub.s32 2, %v433
    %v435 = vrot.slane %v422, %v434
    %v436 = vlaneseq
    %v437 = vshrl.u32 %v436, 7
    %v438 = vsub.s32 3, %v437
    %v439 = vrot.slane %v422, %v438
    %v764 = vunpack.c.l.b16 %v102
    %v765 = vunpack.c.h.b16 %v102
    %v766 = vunpack.c.l.b16 %v103
    %v767 = vunpack.c.h.b16 %v103
    %v768 = vunpack.c.l.b16 %v104
    %v769 = vunpack.c.h.b16 %v104
    %v770 = vunpack.c.l.b16 %v105
    %v771 = vunpack.c.h.b16 %v105
    %v772 = vunpack.c.l.b16 %v106
    %v773 = vunpack.c.h.b16 %v106
    %v774 = vunpack.c.l.b16 %v107
    %v775 = vunpack.c.h.b16 %v107
    %v776 = vunpack.c.l.b16 %v108
    %v777 = vunpack.c.h.b16 %v108
    %v778 = vunpack.c.l.b16 %v109
    %v779 = vunpack.c.h.b16 %v109
    %v780 = vunpack.c.l.b16 %v110
    %v781 = vunpack.c.h.b16 %v110
    %v782 = vunpack.c.l.b16 %v111
    %v783 = vunpack.c.h.b16 %v111
    %v784 = vunpack.c.l.b16 %v112
    %v785 = vunpack.c.h.b16 %v112
    %v786 = vunpack.c.l.b16 %v113
    %v787 = vunpack.c.h.b16 %v113
    %v788 = vunpack.c.l.b16 %v114
    %v789 = vunpack.c.h.b16 %v114
    %v790 = vunpack.c.l.b16 %v115
    %v791 = vunpack.c.h.b16 %v115
    %v792 = vunpack.c.l.b16 %v116
    %v793 = vunpack.c.h.b16 %v116
    %v794 = vunpack.c.l.b16 %v117
    %v795 = vunpack.c.h.b16 %v117
    %v796 = vunpack.c.l.b16 %v118
    %v797 = vunpack.c.h.b16 %v118
    %v798 = vunpack.c.l.b16 %v119
    %v799 = vunpack.c.h.b16 %v119
    %v800 = vunpack.c.l.b16 %v120
    %v801 = vunpack.c.h.b16 %v120
    %v802 = vunpack.c.l.b16 %v121
    %v803 = vunpack.c.h.b16 %v121
    %v804 = vunpack.c.l.b16 %v122
    %v805 = vunpack.c.h.b16 %v122
    %v806 = vunpack.c.l.b16 %v123
    %v807 = vunpack.c.h.b16 %v123
    %v808 = vunpack.c.l.b16 %v124
    %v809 = vunpack.c.h.b16 %v124
    %v810 = vunpack.c.l.b16 %v125
    %v811 = vunpack.c.h.b16 %v125
    %v812 = vunpack.c.l.b16 %v126
    %v813 = vunpack.c.h.b16 %v126
    %v814 = vunpack.c.l.b16 %v127
    %v815 = vunpack.c.h.b16 %v127
    %v816 = vunpack.c.l.b16 %v128
    %v817 = vunpack.c.h.b16 %v128
    %v818 = vunpack.c.l.b16 %v129
    %v819 = vunpack.c.h.b16 %v129
    %v820 = vunpack.c.l.b16 %v130
    %v821 = vunpack.c.h.b16 %v130
    %v822 = vunpack.c.l.b16 %v131
    %v823 = vunpack.c.h.b16 %v131
    %v824 = vunpack.c.l.b16 %v132
    %v825 = vunpack.c.h.b16 %v132
    %v826 = vunpack.c.l.b16 %v133
    %v827 = vunpack.c.h.b16 %v133
    %v828 = vunpack.c.l.b16 %v134
    %v829 = vunpack.c.h.b16 %v134
    %v830 = vunpack.c.l.b16 %v135
    %v831 = vunpack.c.h.b16 %v135
    %v832 = vunpack.c.l.b16 %v136
    %v833 = vunpack.c.h.b16 %v136
    %v834 = vunpack.c.l.b16 %v137
    %v835 = vunpack.c.h.b16 %v137
    %v836 = vunpack.c.l.b16 %v138
    %v837 = vunpack.c.h.b16 %v138
    %v838 = vunpack.c.l.b16 %v139
    %v839 = vunpack.c.h.b16 %v139
    %v840 = vunpack.c.l.b16 %v140
    %v841 = vunpack.c.h.b16 %v140
    %v842 = vunpack.c.l.b16 %v141
    %v843 = vunpack.c.h.b16 %v141
    %v844 = vunpack.c.l.b16 %v142
    %v845 = vunpack.c.h.b16 %v142
    %v846 = vunpack.c.l.b16 %v143
    %v847 = vunpack.c.h.b16 %v143
    %v848 = vunpack.c.l.b16 %v144
    %v849 = vunpack.c.h.b16 %v144
    %v850 = vunpack.c.l.b16 %v145
    %v851 = vunpack.c.h.b16 %v145
    %v852 = vunpack.c.l.b16 %v146
    %v853 = vunpack.c.h.b16 %v146
    %v854 = vunpack.c.l.b16 %v147
    %v855 = vunpack.c.h.b16 %v147
    %v856 = vunpack.c.l.b16 %v148
    %v857 = vunpack.c.h.b16 %v148
    %v858 = vunpack.c.l.b16 %v149
    %v859 = vunpack.c.h.b16 %v149
    %v860 = vunpack.c.l.b16 %v150
    %v861 = vunpack.c.h.b16 %v150
    %v862 = vunpack.c.l.b16 %v151
    %v863 = vunpack.c.h.b16 %v151
    %v864 = vunpack.c.l.b16 %v152
    %v865 = vunpack.c.h.b16 %v152
    %v866 = vunpack.c.l.b16 %v153
    %v867 = vunpack.c.h.b16 %v153
    %v868 = vunpack.c.l.b16 %v154
    %v869 = vunpack.c.h.b16 %v154
    %v870 = vunpack.c.l.b16 %v155
    %v871 = vunpack.c.h.b16 %v155
    %v872 = vunpack.c.l.b16 %v156
    %v873 = vunpack.c.h.b16 %v156
    %v874 = vunpack.c.l.b16 %v157
    %v875 = vunpack.c.h.b16 %v157
    %v876 = vunpack.c.l.b16 %v158
    %v877 = vunpack.c.h.b16 %v158
    %v878 = vunpack.c.l.b16 %v159
    %v879 = vunpack.c.h.b16 %v159
    %v880 = vunpack.c.l.b16 %v160
    %v881 = vunpack.c.h.b16 %v160
    %v882 = vunpack.c.l.b16 %v161
    %v883 = vunpack.c.h.b16 %v161
    %v884 = vunpack.c.l.b16 %v162
    %v885 = vunpack.c.h.b16 %v162
    %v886 = vunpack.c.l.b16 %v163
    %v887 = vunpack.c.h.b16 %v163
    %v888 = vunpack.c.l.b16 %v164
    %v889 = vunpack.c.h.b16 %v164
    %v890 = vunpack.c.l.b16 %v165
    %v891 = vunpack.c.h.b16 %v165
    %v892 = vunpack.c.l.b16 %v166
    %v893 = vunpack.c.h.b16 %v166
    %v894 = vunpack.c.l.b16 %v167
    %v895 = vunpack.c.h.b16 %v167
    %v896 = vunpack.c.l.b16 %v168
    %v897 = vunpack.c.h.b16 %v168
    %v898 = vunpack.c.l.b16 %v169
    %v899 = vunpack.c.h.b16 %v169
    %v900 = vunpack.c.l.b16 %v170
    %v901 = vunpack.c.h.b16 %v170
    %v902 = vunpack.c.l.b16 %v171
    %v903 = vunpack.c.h.b16 %v171
    %v904 = vunpack.c.l.b16 %v172
    %v905 = vunpack.c.h.b16 %v172
    %v906 = vunpack.c.l.b16 %v173
    %v907 = vunpack.c.h.b16 %v173
    %v908 = vunpack.c.l.b16 %v174
    %v909 = vunpack.c.h.b16 %v174
    %v910 = vunpack.c.l.b16 %v175
    %v911 = vunpack.c.h.b16 %v175
    %v912 = vunpack.c.l.b16 %v176
    %v913 = vunpack.c.h.b16 %v176
    %v914 = vunpack.c.l.b16 %v177
    %v915 = vunpack.c.h.b16 %v177
    %v916 = vunpack.c.l.b16 %v178
    %v917 = vunpack.c.h.b16 %v178
    %v918 = vunpack.c.l.b16 %v179
    %v919 = vunpack.c.h.b16 %v179
    %v920 = vunpack.c.l.b16 %v180
    %v921 = vunpack.c.h.b16 %v180
    %v922 = vunpack.c.l.b16 %v181
    %v923 = vunpack.c.h.b16 %v181
    %v924 = vunpack.c.l.b16 %v182
    %v925 = vunpack.c.h.b16 %v182
    %v926 = vunpack.c.l.b16 %v183
    %v927 = vunpack.c.h.b16 %v183
    %v928 = vunpack.c.l.b16 %v184
    %v929 = vunpack.c.h.b16 %v184
    %v930 = vunpack.c.l.b16 %v185
    %v931 = vunpack.c.h.b16 %v185
    %v932 = vunpack.c.l.b16 %v186
    %v933 = vunpack.c.h.b16 %v186
    %v934 = vunpack.c.l.b16 %v187
    %v935 = vunpack.c.h.b16 %v187
    %v936 = vunpack.c.l.b16 %v188
    %v937 = vunpack.c.h.b16 %v188
    %v938 = vunpack.c.l.b16 %v189
    %v939 = vunpack.c.h.b16 %v189
    %v940 = vunpack.c.l.b16 %v190
    %v941 = vunpack.c.h.b16 %v190
    %v942 = vunpack.c.l.b16 %v191
    %v943 = vunpack.c.h.b16 %v191
    %v944 = vunpack.c.l.b16 %v192
    %v945 = vunpack.c.h.b16 %v192
    %v946 = vunpack.c.l.b16 %v193
    %v947 = vunpack.c.h.b16 %v193
    %v948 = vunpack.c.l.b16 %v194
    %v949 = vunpack.c.h.b16 %v194
    %v950 = vunpack.c.l.b16 %v195
    %v951 = vunpack.c.h.b16 %v195
    %v952 = vunpack.c.l.b16 %v196
    %v953 = vunpack.c.h.b16 %v196
    %v954 = vunpack.c.l.b16 %v197
    %v955 = vunpack.c.h.b16 %v197
    %v956 = vunpack.c.l.b16 %v198
    %v957 = vunpack.c.h.b16 %v198
    %v958 = vunpack.c.l.b16 %v199
    %v959 = vunpack.c.h.b16 %v199
    %v960 = vunpack.c.l.b16 %v200
    %v961 = vunpack.c.h.b16 %v200
    %v962 = vunpack.c.l.b16 %v201
    %v963 = vunpack.c.h.b16 %v201
    %v964 = vunpack.c.l.b16 %v202
    %v965 = vunpack.c.h.b16 %v202
    %v966 = vunpack.c.l.b16 %v203
    %v967 = vunpack.c.h.b16 %v203
    %v968 = vunpack.c.l.b16 %v204
    %v969 = vunpack.c.h.b16 %v204
    %v970 = vunpack.c.l.b16 %v205
    %v971 = vunpack.c.h.b16 %v205
    %v972 = vunpack.c.l.b16 %v206
    %v973 = vunpack.c.h.b16 %v206
    %v974 = vunpack.c.l.b16 %v207
    %v975 = vunpack.c.h.b16 %v207
    %v976 = vunpack.c.l.b16 %v208
    %v977 = vunpack.c.h.b16 %v208
    %v978 = vunpack.c.l.b16 %v209
    %v979 = vunpack.c.h.b16 %v209
    %v980 = vunpack.c.l.b16 %v210
    %v981 = vunpack.c.h.b16 %v210
    %v982 = vunpack.c.l.b16 %v211
    %v983 = vunpack.c.h.b16 %v211
    %v984 = vunpack.c.l.b16 %v212
    %v985 = vunpack.c.h.b16 %v212
    %v986 = vunpack.c.l.b16 %v213
    %v987 = vunpack.c.h.b16 %v213
    %v988 = vunpack.c.l.b16 %v214
    %v989 = vunpack.c.h.b16 %v214
    %v990 = vunpack.c.l.b16 %v215
    %v991 = vunpack.c.h.b16 %v215
    %v992 = vunpack.c.l.b16 %v216
    %v993 = vunpack.c.h.b16 %v216
    %v994 = vunpack.c.l.b16 %v217
    %v995 = vunpack.c.h.b16 %v217
    %v996 = vunpack.c.l.b16 %v218
    %v997 = vunpack.c.h.b16 %v218
    %v998 = vunpack.c.l.b16 %v219
    %v999 = vunpack.c.h.b16 %v219
    %v1000 = vunpack.c.l.b16 %v220
    %v1001 = vunpack.c.h.b16 %v220
    %v1002 = vunpack.c.l.b16 %v221
    %v1003 = vunpack.c.h.b16 %v221
    %v1004 = vunpack.c.l.b16 %v222
    %v1005 = vunpack.c.h.b16 %v222
    %v1006 = vunpack.c.l.b16 %v223
    %v1007 = vunpack.c.h.b16 %v223
    %v1008 = vunpack.c.l.b16 %v224
    %v1009 = vunpack.c.h.b16 %v224
    %v1010 = vunpack.c.l.b16 %v225
    %v1011 = vunpack.c.h.b16 %v225
    %v1012 = vunpack.c.l.b16 %v226
    %v1013 = vunpack.c.h.b16 %v226
    %v1014 = vunpack.c.l.b16 %v227
    %v1015 = vunpack.c.h.b16 %v227
    %v1016 = vunpack.c.l.b16 %v228
    %v1017 = vunpack.c.h.b16 %v228
    %v1018 = vunpack.c.l.b16 %v229
    %v1019 = vunpack.c.h.b16 %v229
    %v1020 = vunpack.c.l.b16 %v230
    %v1021 = vunpack.c.h.b16 %v230
    %v1022 = vunpack.c.l.b16 %v231
    %v1023 = vunpack.c.h.b16 %v231
    %v1024 = vunpack.c.l.b16 %v232
    %v1025 = vunpack.c.h.b16 %v232
    %v1026 = vunpack.c.l.b16 %v233
    %v1027 = vunpack.c.h.b16 %v233
    %v1028 = vunpack.c.l.b16 %v234
    %v1029 = vunpack.c.h.b16 %v234
    %v1030 = vunpack.c.l.b16 %v235
    %v1031 = vunpack.c.h.b16 %v235
    %v1032 = vunpack.c.l.b16 %v236
    %v1033 = vunpack.c.h.b16 %v236
    %v1034 = vunpack.c.l.b16 %v237
    %v1035 = vunpack.c.h.b16 %v237
    %v1036 = vunpack.c.l.b16 %v238
    %v1037 = vunpack.c.h.b16 %v238
    %v1038 = vunpack.c.l.b16 %v239
    %v1039 = vunpack.c.h.b16 %v239
    %v1040 = vunpack.c.l.b16 %v240
    %v1041 = vunpack.c.h.b16 %v240
    %v1042 = vunpack.c.l.b16 %v241
    %v1043 = vunpack.c.h.b16 %v241
    %v1044 = vunpack.c.l.b16 %v242
    %v1045 = vunpack.c.h.b16 %v242
    %v1046 = vunpack.c.l.b16 %v243
    %v1047 = vunpack.c.h.b16 %v243
    %v1048 = vunpack.c.l.b16 %v244
    %v1049 = vunpack.c.h.b16 %v244
    %v1050 = vunpack.c.l.b16 %v245
    %v1051 = vunpack.c.h.b16 %v245
    %v1052 = vunpack.c.l.b16 %v246
    %v1053 = vunpack.c.h.b16 %v246
    %v1054 = vunpack.c.l.b16 %v247
    %v1055 = vunpack.c.h.b16 %v247
    %v1056 = vunpack.c.l.b16 %v248
    %v1057 = vunpack.c.h.b16 %v248
    %v1058 = vunpack.c.l.b16 %v249
    %v1059 = vunpack.c.h.b16 %v249
    %v1060 = vunpack.c.l.b16 %v250
    %v1061 = vunpack.c.h.b16 %v250
    %v1062 = vunpack.c.l.b16 %v251
    %v1063 = vunpack.c.h.b16 %v251
    %v1064 = vunpack.c.l.b16 %v252
    %v1065 = vunpack.c.h.b16 %v252
    %v1066 = vunpack.c.l.b16 %v253
    %v1067 = vunpack.c.h.b16 %v253
    %v1068 = vunpack.c.l.b16 %v254
    %v1069 = vunpack.c.h.b16 %v254
    %v1070 = vunpack.c.l.b16 %v255
    %v1071 = vunpack.c.h.b16 %v255
    %v1072 = vunpack.c.l.b16 %v256
    %v1073 = vunpack.c.h.b16 %v256
    %v1074 = vunpack.c.l.b16 %v257
    %v1075 = vunpack.c.h.b16 %v257
    %v1076 = vunpack.c.l.b16 %v258
    %v1077 = vunpack.c.h.b16 %v258
    %v1078 = vunpack.c.l.b16 %v259
    %v1079 = vunpack.c.h.b16 %v259
    %v1080 = vunpack.c.l.b16 %v260
    %v1081 = vunpack.c.h.b16 %v260
    %v1082 = vunpack.c.l.b16 %v261
    %v1083 = vunpack.c.h.b16 %v261
    %v1084 = vunpack.c.l.b16 %v262
    %v1085 = vunpack.c.h.b16 %v262
    %v1086 = vunpack.c.l.b16 %v263
    %v1087 = vunpack.c.h.b16 %v263
    %v1088 = vunpack.c.l.b16 %v264
    %v1089 = vunpack.c.h.b16 %v264
    %v1090 = vunpack.c.l.b16 %v265
    %v1091 = vunpack.c.h.b16 %v265
    %v1092 = vunpack.c.l.b16 %v266
    %v1093 = vunpack.c.h.b16 %v266
    %v1094 = vunpack.c.l.b16 %v267
    %v1095 = vunpack.c.h.b16 %v267
    %v1096 = vunpack.c.l.b16 %v268
    %v1097 = vunpack.c.h.b16 %v268
    %v1098 = vunpack.c.l.b16 %v269
    %v1099 = vunpack.c.h.b16 %v269
    %v1100 = vunpack.c.l.b16 %v270
    %v1101 = vunpack.c.h.b16 %v270
    %v1102 = vunpack.c.l.b16 %v271
    %v1103 = vunpack.c.h.b16 %v271
    %v1104 = vunpack.c.l.b16 %v272
    %v1105 = vunpack.c.h.b16 %v272
    %v1106 = vunpack.c.l.b16 %v273
    %v1107 = vunpack.c.h.b16 %v273
    %v1108 = vunpack.c.l.b16 %v274
    %v1109 = vunpack.c.h.b16 %v274
    %v1110 = vunpack.c.l.b16 %v275
    %v1111 = vunpack.c.h.b16 %v275
    %v1112 = vunpack.c.l.b16 %v276
    %v1113 = vunpack.c.h.b16 %v276
    %v1114 = vunpack.c.l.b16 %v277
    %v1115 = vunpack.c.h.b16 %v277
    %v1116 = vunpack.c.l.b16 %v278
    %v1117 = vunpack.c.h.b16 %v278
    %v1118 = vunpack.c.l.b16 %v279
    %v1119 = vunpack.c.h.b16 %v279
    %v1120 = vunpack.c.l.b16 %v280
    %v1121 = vunpack.c.h.b16 %v280
    %v1122 = vunpack.c.l.b16 %v281
    %v1123 = vunpack.c.h.b16 %v281
    %v1124 = vunpack.c.l.b16 %v282
    %v1125 = vunpack.c.h.b16 %v282
    %v1126 = vunpack.c.l.b16 %v283
    %v1127 = vunpack.c.h.b16 %v283
    %v1128 = vunpack.c.l.b16 %v284
    %v1129 = vunpack.c.h.b16 %v284
    %v1130 = vunpack.c.l.b16 %v285
    %v1131 = vunpack.c.h.b16 %v285
    %v1132 = vunpack.c.l.b16 %v286
    %v1133 = vunpack.c.h.b16 %v286
    %v1134 = vunpack.c.l.b16 %v287
    %v1135 = vunpack.c.h.b16 %v287
    %v1136 = vunpack.c.l.b16 %v288
    %v1137 = vunpack.c.h.b16 %v288
    %v1138 = vunpack.c.l.b16 %v289
    %v1139 = vunpack.c.h.b16 %v289
    %v1140 = vunpack.c.l.b16 %v290
    %v1141 = vunpack.c.h.b16 %v290
    %v1142 = vunpack.c.l.b16 %v291
    %v1143 = vunpack.c.h.b16 %v291
    %v1144 = vunpack.c.l.b16 %v292
    %v1145 = vunpack.c.h.b16 %v292
    %v1146 = vunpack.c.l.b16 %v293
    %v1147 = vunpack.c.h.b16 %v293
    %v1148 = vunpack.c.l.b16 %v294
    %v1149 = vunpack.c.h.b16 %v294
    %v1150 = vunpack.c.l.b16 %v295
    %v1151 = vunpack.c.h.b16 %v295
    %v1152 = vunpack.c.l.b16 %v296
    %v1153 = vunpack.c.h.b16 %v296
    %v1154 = vunpack.c.l.b16 %v297
    %v1155 = vunpack.c.h.b16 %v297
    %v1156 = vunpack.c.l.b16 %v298
    %v1157 = vunpack.c.h.b16 %v298
    %v1158 = vunpack.c.l.b16 %v299
    %v1159 = vunpack.c.h.b16 %v299
    %v1160 = vunpack.c.l.b16 %v300
    %v1161 = vunpack.c.h.b16 %v300
    %v1162 = vunpack.c.l.b16 %v301
    %v1163 = vunpack.c.h.b16 %v301
    %v1164 = vunpack.c.l.b16 %v302
    %v1165 = vunpack.c.h.b16 %v302
    %v1166 = vunpack.c.l.b16 %v303
    %v1167 = vunpack.c.h.b16 %v303
    %v1168 = vunpack.c.l.b16 %v304
    %v1169 = vunpack.c.h.b16 %v304
    %v1170 = vunpack.c.l.b16 %v305
    %v1171 = vunpack.c.h.b16 %v305
    %v1172 = vunpack.c.l.b16 %v306
    %v1173 = vunpack.c.h.b16 %v306
    %v1174 = vunpack.c.l.b16 %v307
    %v1175 = vunpack.c.h.b16 %v307
    %v1176 = vunpack.c.l.b16 %v308
    %v1177 = vunpack.c.h.b16 %v308
    %v1178 = vunpack.c.l.b16 %v309
    %v1179 = vunpack.c.h.b16 %v309
    %v1180 = vunpack.c.l.b16 %v310
    %v1181 = vunpack.c.h.b16 %v310
    %v1182 = vunpack.c.l.b16 %v311
    %v1183 = vunpack.c.h.b16 %v311
    %v1184 = vunpack.c.l.b16 %v312
    %v1185 = vunpack.c.h.b16 %v312
    %v1186 = vunpack.c.l.b16 %v313
    %v1187 = vunpack.c.h.b16 %v313
    %v1188 = vunpack.c.l.b16 %v314
    %v1189 = vunpack.c.h.b16 %v314
    %v1190 = vunpack.c.l.b16 %v315
    %v1191 = vunpack.c.h.b16 %v315
    %v1192 = vunpack.c.l.b16 %v316
    %v1193 = vunpack.c.h.b16 %v316
    %v1194 = vunpack.c.l.b16 %v317
    %v1195 = vunpack.c.h.b16 %v317
    %v1196 = vunpack.c.l.b16 %v318
    %v1197 = vunpack.c.h.b16 %v318
    %v1198 = vunpack.c.l.b16 %v319
    %v1199 = vunpack.c.h.b16 %v319
    %v1200 = vunpack.c.l.b16 %v320
    %v1201 = vunpack.c.h.b16 %v320
    %v1202 = vunpack.c.l.b16 %v321
    %v1203 = vunpack.c.h.b16 %v321
    %v1204 = vunpack.c.l.b16 %v322
    %v1205 = vunpack.c.h.b16 %v322
    %v1206 = vunpack.c.l.b16 %v323
    %v1207 = vunpack.c.h.b16 %v323
    %v1208 = vunpack.c.l.b16 %v324
    %v1209 = vunpack.c.h.b16 %v324
    %v1210 = vunpack.c.l.b16 %v325
    %v1211 = vunpack.c.h.b16 %v325
    %v1212 = vunpack.c.l.b16 %v326
    %v1213 = vunpack.c.h.b16 %v326
    %v1214 = vunpack.c.l.b16 %v327
    %v1215 = vunpack.c.h.b16 %v327
    %v1216 = vunpack.c.l.b16 %v328
    %v1217 = vunpack.c.h.b16 %v328
    %v1218 = vunpack.c.l.b16 %v329
    %v1219 = vunpack.c.h.b16 %v329
    %v1220 = vunpack.c.l.b16 %v330
    %v1221 = vunpack.c.h.b16 %v330
    %v1222 = vunpack.c.l.b16 %v331
    %v1223 = vunpack.c.h.b16 %v331
    %v1224 = vunpack.c.l.b16 %v332
    %v1225 = vunpack.c.h.b16 %v332
    %v1226 = vunpack.c.l.b16 %v333
    %v1227 = vunpack.c.h.b16 %v333
    %v1228 = vunpack.c.l.b16 %v334
    %v1229 = vunpack.c.h.b16 %v334
    %v1230 = vunpack.c.l.b16 %v335
    %v1231 = vunpack.c.h.b16 %v335
    %v1232 = vunpack.c.l.b16 %v336
    %v1233 = vunpack.c.h.b16 %v336
    %v1234 = vunpack.c.l.b16 %v337
    %v1235 = vunpack.c.h.b16 %v337
    %v1236 = vunpack.c.l.b16 %v338
    %v1237 = vunpack.c.h.b16 %v338
    %v1238 = vunpack.c.l.b16 %v339
    %v1239 = vunpack.c.h.b16 %v339
    %v1240 = vunpack.c.l.b16 %v340
    %v1241 = vunpack.c.h.b16 %v340
    %v1242 = vunpack.c.l.b16 %v341
    %v1243 = vunpack.c.h.b16 %v341
    %v1244 = vunpack.c.l.b16 %v342
    %v1245 = vunpack.c.h.b16 %v342
    %v1246 = vunpack.c.l.b16 %v343
    %v1247 = vunpack.c.h.b16 %v343
    %v1248 = vunpack.c.l.b16 %v344
    %v1249 = vunpack.c.h.b16 %v344
    %v1250 = vunpack.c.l.b16 %v345
    %v1251 = vunpack.c.h.b16 %v345
    %v1252 = vunpack.c.l.b16 %v346
    %v1253 = vunpack.c.h.b16 %v346
    %v1254 = vunpack.c.l.b16 %v347
    %v1255 = vunpack.c.h.b16 %v347
    %v1256 = vunpack.c.l.b16 %v348
    %v1257 = vunpack.c.h.b16 %v348
    %v1258 = vunpack.c.l.b16 %v349
    %v1259 = vunpack.c.h.b16 %v349
    %v1260 = vunpack.c.l.b16 %v350
    %v1261 = vunpack.c.h.b16 %v350
    %v1262 = vunpack.c.l.b16 %v351
    %v1263 = vunpack.c.h.b16 %v351
    %v1264 = vunpack.c.l.b16 %v352
    %v1265 = vunpack.c.h.b16 %v352
    %v1266 = vunpack.c.l.b16 %v353
    %v1267 = vunpack.c.h.b16 %v353
    %v1268 = vunpack.c.l.b16 %v354
    %v1269 = vunpack.c.h.b16 %v354
    %v1270 = vunpack.c.l.b16 %v355
    %v1271 = vunpack.c.h.b16 %v355
    %v1272 = vunpack.c.l.b16 %v356
    %v1273 = vunpack.c.h.b16 %v356
    %v1274 = vunpack.c.l.b16 %v357
    %v1275 = vunpack.c.h.b16 %v357
    %v1276 = vunpack.c.l.b16 %v358
    %v1277 = vunpack.c.h.b16 %v358
    %v1278 = vunpack.c.l.b16 %v359
    %v1279 = vunpack.c.h.b16 %v359
    %v1280 = vunpack.c.l.b16 %v360
    %v1281 = vunpack.c.h.b16 %v360
    %v1282 = vunpack.c.l.b16 %v361
    %v1283 = vunpack.c.h.b16 %v361
    %v1284 = vunpack.c.l.b16 %v362
    %v1285 = vunpack.c.h.b16 %v362
    %v1286 = vunpack.c.l.b16 %v363
    %v1287 = vunpack.c.h.b16 %v363
    %v1288 = vunpack.c.l.b16 %v364
    %v1289 = vunpack.c.h.b16 %v364
    %v1290 = vunpack.c.l.b16 %v365
    %v1291 = vunpack.c.h.b16 %v365
    %v1292 = vunpack.c.l.b16 %v366
    %v1293 = vunpack.c.h.b16 %v366
    %v1294 = vunpack.c.l.b16 %v367
    %v1295 = vunpack.c.h.b16 %v367
    %v1296 = vunpack.c.l.b16 %v368
    %v1297 = vunpack.c.h.b16 %v368
    %v1298 = vunpack.c.l.b16 %v369
    %v1299 = vunpack.c.h.b16 %v369
    %v1300 = vunpack.c.l.b16 %v370
    %v1301 = vunpack.c.h.b16 %v370
    %v1302 = vunpack.c.l.b16 %v371
    %v1303 = vunpack.c.h.b16 %v371
    %v1304 = vunpack.c.l.b16 %v372
    %v1305 = vunpack.c.h.b16 %v372
    %v1306 = vunpack.c.l.b16 %v373
    %v1307 = vunpack.c.h.b16 %v373
    %v1308 = vunpack.c.l.b16 %v374
    %v1309 = vunpack.c.h.b16 %v374
    %v1310 = vunpack.c.l.b16 %v375
    %v1311 = vunpack.c.h.b16 %v375
    %v1312 = vunpack.c.l.b16 %v376
    %v1313 = vunpack.c.h.b16 %v376
    %v1314 = vunpack.c.l.b16 %v377
    %v1315 = vunpack.c.h.b16 %v377
    %v1316 = vunpack.c.l.b16 %v378
    %v1317 = vunpack.c.h.b16 %v378
    %v1318 = vunpack.c.l.b16 %v379
    %v1319 = vunpack.c.h.b16 %v379
    %v1320 = vunpack.c.l.b16 %v380
    %v1321 = vunpack.c.h.b16 %v380
    %v1322 = vunpack.c.l.b16 %v381
    %v1323 = vunpack.c.h.b16 %v381
    %v1324 = vunpack.c.l.b16 %v382
    %v1325 = vunpack.c.h.b16 %v382
    %v1326 = vunpack.c.l.b16 %v383
    %v1327 = vunpack.c.h.b16 %v383
    %v1328 = vunpack.c.l.b16 %v384
    %v1329 = vunpack.c.h.b16 %v384
    %v1330 = vunpack.c.l.b16 %v385
    %v1331 = vunpack.c.h.b16 %v385
    %v1332 = vunpack.c.l.b16 %v386
    %v1333 = vunpack.c.h.b16 %v386
    %v1334 = vunpack.c.l.b16 %v387
    %v1335 = vunpack.c.h.b16 %v387
    %v1336 = vunpack.c.l.b16 %v388
    %v1337 = vunpack.c.h.b16 %v388
    %v1338 = vunpack.c.l.b16 %v389
    %v1339 = vunpack.c.h.b16 %v389
    %v1340 = vunpack.c.l.b16 %v390
    %v1341 = vunpack.c.h.b16 %v390
    %v1342 = vunpack.c.l.b16 %v391
    %v1343 = vunpack.c.h.b16 %v391
    %v1344 = vunpack.c.l.b16 %v392
    %v1345 = vunpack.c.h.b16 %v392
    %v1346 = vunpack.c.l.b16 %v393
    %v1347 = vunpack.c.h.b16 %v393
    %v1348 = vunpack.c.l.b16 %v394
    %v1349 = vunpack.c.h.b16 %v394
    %v1350 = vunpack.c.l.b16 %v395
    %v1351 = vunpack.c.h.b16 %v395
    %v1352 = vunpack.c.l.b16 %v396
    %v1353 = vunpack.c.h.b16 %v396
    %v1354 = vunpack.c.l.b16 %v397
    %v1355 = vunpack.c.h.b16 %v397
    %v1356 = vunpack.c.l.b16 %v398
    %v1357 = vunpack.c.h.b16 %v398
    %v1358 = vunpack.c.l.b16 %v399
    %v1359 = vunpack.c.h.b16 %v399
    %v1360 = vunpack.c.l.b16 %v400
    %v1361 = vunpack.c.h.b16 %v400
    %v1362 = vunpack.c.l.b16 %v401
    %v1363 = vunpack.c.h.b16 %v401
    %v1364 = vunpack.c.l.b16 %v402
    %v1365 = vunpack.c.h.b16 %v402
    %v1366 = vunpack.c.l.b16 %v403
    %v1367 = vunpack.c.h.b16 %v403
    %v1368 = vunpack.c.l.b16 %v404
    %v1369 = vunpack.c.h.b16 %v404
    %v1370 = vunpack.c.l.b16 %v405
    %v1371 = vunpack.c.h.b16 %v405
    %v1372 = vunpack.c.l.b16 %v406
    %v1373 = vunpack.c.h.b16 %v406
    %v1374 = vunpack.c.l.b16 %v407
    %v1375 = vunpack.c.h.b16 %v407
    %v1376 = vunpack.c.l.b16 %v408
    %v1377 = vunpack.c.h.b16 %v408
    %v1378 = vunpack.c.l.b16 %v409
    %v1379 = vunpack.c.h.b16 %v409
    %v1380 = vunpack.c.l.b16 %v410
    %v1381 = vunpack.c.h.b16 %v410
    %v1382 = vunpack.c.l.b16 %v411
    %v1383 = vunpack.c.h.b16 %v411
    %v1384 = vunpack.c.l.b16 %v412
    %v1385 = vunpack.c.h.b16 %v412
    %v1386 = vunpack.c.l.b16 %v413
    %v1387 = vunpack.c.h.b16 %v413
    %v1388 = vunpack.c.l.b16 %v414
    %v1389 = vunpack.c.h.b16 %v414
    %v1390 = vunpack.c.l.b16 %v415
    %v1391 = vunpack.c.h.b16 %v415
    %v1392 = vunpack.c.l.b16 %v416
    %v1393 = vunpack.c.h.b16 %v416
    %v1394 = vunpack.c.l.b16 %v417
    %v1395 = vunpack.c.h.b16 %v417
    %v1396 = vunpack.c.l.b16 %v418
    %v1397 = vunpack.c.h.b16 %v418
    %v1398 = vunpack.c.l.b16 %v419
    %v1399 = vunpack.c.h.b16 %v419
    %v1400 = vunpack.c.l.b16 %v420
    %v1401 = vunpack.c.h.b16 %v420
    %v1402 = vunpack.c.l.b16 %v421
    %v1403 = vunpack.c.h.b16 %v421
    %v1404 = vpack.c.b16 %v768, %v764
    %v1405 = vpack.c.b16 %v769, %v765
    %v1406 = vpack.c.b16 %v770, %v766
    %v1407 = vpack.c.b16 %v771, %v767
    %v1408 = vpack.c.b16 %v776, %v772
    %v1409 = vpack.c.b16 %v777, %v773
    %v1410 = vpack.c.b16 %v778, %v774
    %v1411 = vpack.c.b16 %v779, %v775
    %v1412 = vpack.c.b16 %v784, %v780
    %v1413 = vpack.c.b16 %v785, %v781
    %v1414 = vpack.c.b16 %v786, %v782
    %v1415 = vpack.c.b16 %v787, %v783
    %v1416 = vpack.c.b16 %v792, %v788
    %v1417 = vpack.c.b16 %v793, %v789
    %v1418 = vpack.c.b16 %v794, %v790
    %v1419 = vpack.c.b16 %v795, %v791
    %v1420 = vpack.c.b16 %v800, %v796
    %v1421 = vpack.c.b16 %v801, %v797
    %v1422 = vpack.c.b16 %v802, %v798
    %v1423 = vpack.c.b16 %v803, %v799
    %v1424 = vpack.c.b16 %v808, %v804
    %v1425 = vpack.c.b16 %v809, %v805
    %v1426 = vpack.c.b16 %v810, %v806
    %v1427 = vpack.c.b16 %v811, %v807
    %v1428 = vpack.c.b16 %v816, %v812
    %v1429 = vpack.c.b16 %v817, %v813
    %v1430 = vpack.c.b16 %v818, %v814
    %v1431 = vpack.c.b16 %v819, %v815
    %v1432 = vpack.c.b16 %v824, %v820
    %v1433 = vpack.c.b16 %v825, %v821
    %v1434 = vpack.c.b16 %v826, %v822
    %v1435 = vpack.c.b16 %v827, %v823
    %v1436 = vpack.c.b16 %v832, %v828
    %v1437 = vpack.c.b16 %v833, %v829
    %v1438 = vpack.c.b16 %v834, %v830
    %v1439 = vpack.c.b16 %v835, %v831
    %v1440 = vpack.c.b16 %v840, %v836
    %v1441 = vpack.c.b16 %v841, %v837
    %v1442 = vpack.c.b16 %v842, %v838
    %v1443 = vpack.c.b16 %v843, %v839
    %v1444 = vpack.c.b16 %v848, %v844
    %v1445 = vpack.c.b16 %v849, %v845
    %v1446 = vpack.c.b16 %v850, %v846
    %v1447 = vpack.c.b16 %v851, %v847
    %v1448 = vpack.c.b16 %v856, %v852
    %v1449 = vpack.c.b16 %v857, %v853
    %v1450 = vpack.c.b16 %v858, %v854
    %v1451 = vpack.c.b16 %v859, %v855
    %v1452 = vpack.c.b16 %v864, %v860
    %v1453 = vpack.c.b16 %v865, %v861
    %v1454 = vpack.c.b16 %v866, %v862
    %v1455 = vpack.c.b16 %v867, %v863
    %v1456 = vpack.c.b16 %v872, %v868
    %v1457 = vpack.c.b16 %v873, %v869
    %v1458 = vpack.c.b16 %v874, %v870
    %v1459 = vpack.c.b16 %v875, %v871
    %v1460 = vpack.c.b16 %v880, %v876
    %v1461 = vpack.c.b16 %v881, %v877
    %v1462 = vpack.c.b16 %v882, %v878
    %v1463 = vpack.c.b16 %v883, %v879
    %v1464 = vpack.c.b16 %v888, %v884
    %v1465 = vpack.c.b16 %v889, %v885
    %v1466 = vpack.c.b16 %v890, %v886
    %v1467 = vpack.c.b16 %v891, %v887
    %v1468 = vpack.c.b16 %v896, %v892
    %v1469 = vpack.c.b16 %v897, %v893
    %v1470 = vpack.c.b16 %v898, %v894
    %v1471 = vpack.c.b16 %v899, %v895
    %v1472 = vpack.c.b16 %v904, %v900
    %v1473 = vpack.c.b16 %v905, %v901
    %v1474 = vpack.c.b16 %v906, %v902
    %v1475 = vpack.c.b16 %v907, %v903
    %v1476 = vpack.c.b16 %v912, %v908
    %v1477 = vpack.c.b16 %v913, %v909
    %v1478 = vpack.c.b16 %v914, %v910
    %v1479 = vpack.c.b16 %v915, %v911
    %v1480 = vpack.c.b16 %v920, %v916
    %v1481 = vpack.c.b16 %v921, %v917
    %v1482 = vpack.c.b16 %v922, %v918
    %v1483 = vpack.c.b16 %v923, %v919
    %v1484 = vpack.c.b16 %v928, %v924
    %v1485 = vpack.c.b16 %v929, %v925
    %v1486 = vpack.c.b16 %v930, %v926
    %v1487 = vpack.c.b16 %v931, %v927
    %v1488 = vpack.c.b16 %v936, %v932
    %v1489 = vpack.c.b16 %v937, %v933
    %v1490 = vpack.c.b16 %v938, %v934
    %v1491 = vpack.c.b16 %v939, %v935
    %v1492 = vpack.c.b16 %v944, %v940
    %v1493 = vpack.c.b16 %v945, %v941
    %v1494 = vpack.c.b16 %v946, %v942
    %v1495 = vpack.c.b16 %v947, %v943
    %v1496 = vpack.c.b16 %v952, %v948
    %v1497 = vpack.c.b16 %v953, %v949
    %v1498 = vpack.c.b16 %v954, %v950
    %v1499 = vpack.c.b16 %v955, %v951
    %v1500 = vpack.c.b16 %v960, %v956
    %v1501 = vpack.c.b16 %v961, %v957
    %v1502 = vpack.c.b16 %v962, %v958
    %v1503 = vpack.c.b16 %v963, %v959
    %v1504 = vpack.c.b16 %v968, %v964
    %v1505 = vpack.c.b16 %v969, %v965
    %v1506 = vpack.c.b16 %v970, %v966
    %v1507 = vpack.c.b16 %v971, %v967
    %v1508 = vpack.c.b16 %v976, %v972
    %v1509 = vpack.c.b16 %v977, %v973
    %v1510 = vpack.c.b16 %v978, %v974
    %v1511 = vpack.c.b16 %v979, %v975
    %v1512 = vpack.c.b16 %v984, %v980
    %v1513 = vpack.c.b16 %v985, %v981
    %v1514 = vpack.c.b16 %v986, %v982
    %v1515 = vpack.c.b16 %v987, %v983
    %v1516 = vpack.c.b16 %v992, %v988
    %v1517 = vpack.c.b16 %v993, %v989
    %v1518 = vpack.c.b16 %v994, %v990
    %v1519 = vpack.c.b16 %v995, %v991
    %v1520 = vpack.c.b16 %v1000, %v996
    %v1521 = vpack.c.b16 %v1001, %v997
    %v1522 = vpack.c.b16 %v1002, %v998
    %v1523 = vpack.c.b16 %v1003, %v999
    %v1524 = vpack.c.b16 %v1008, %v1004
    %v1525 = vpack.c.b16 %v1009, %v1005
    %v1526 = vpack.c.b16 %v1010, %v1006
    %v1527 = vpack.c.b16 %v1011, %v1007
    %v1528 = vpack.c.b16 %v1016, %v1012
    %v1529 = vpack.c.b16 %v1017, %v1013
    %v1530 = vpack.c.b16 %v1018, %v1014
    %v1531 = vpack.c.b16 %v1019, %v1015
    %v1532 = vpack.c.b16 %v1024, %v1020
    %v1533 = vpack.c.b16 %v1025, %v1021
    %v1534 = vpack.c.b16 %v1026, %v1022
    %v1535 = vpack.c.b16 %v1027, %v1023
    %v1536 = vpack.c.b16 %v1032, %v1028
    %v1537 = vpack.c.b16 %v1033, %v1029
    %v1538 = vpack.c.b16 %v1034, %v1030
    %v1539 = vpack.c.b16 %v1035, %v1031
    %v1540 = vpack.c.b16 %v1040, %v1036
    %v1541 = vpack.c.b16 %v1041, %v1037
    %v1542 = vpack.c.b16 %v1042, %v1038
    %v1543 = vpack.c.b16 %v1043, %v1039
    %v1544 = vpack.c.b16 %v1048, %v1044
    %v1545 = vpack.c.b16 %v1049, %v1045
    %v1546 = vpack.c.b16 %v1050, %v1046
    %v1547 = vpack.c.b16 %v1051, %v1047
    %v1548 = vpack.c.b16 %v1056, %v1052
    %v1549 = vpack.c.b16 %v1057, %v1053
    %v1550 = vpack.c.b16 %v1058, %v1054
    %v1551 = vpack.c.b16 %v1059, %v1055
    %v1552 = vpack.c.b16 %v1064, %v1060
    %v1553 = vpack.c.b16 %v1065, %v1061
    %v1554 = vpack.c.b16 %v1066, %v1062
    %v1555 = vpack.c.b16 %v1067, %v1063
    %v1556 = vpack.c.b16 %v1072, %v1068
    %v1557 = vpack.c.b16 %v1073, %v1069
    %v1558 = vpack.c.b16 %v1074, %v1070
    %v1559 = vpack.c.b16 %v1075, %v1071
    %v1560 = vpack.c.b16 %v1080, %v1076
    %v1561 = vpack.c.b16 %v1081, %v1077
    %v1562 = vpack.c.b16 %v1082, %v1078
    %v1563 = vpack.c.b16 %v1083, %v1079
    %v1564 = vpack.c.b16 %v1088, %v1084
    %v1565 = vpack.c.b16 %v1089, %v1085
    %v1566 = vpack.c.b16 %v1090, %v1086
    %v1567 = vpack.c.b16 %v1091, %v1087
    %v1568 = vpack.c.b16 %v1096, %v1092
    %v1569 = vpack.c.b16 %v1097, %v1093
    %v1570 = vpack.c.b16 %v1098, %v1094
    %v1571 = vpack.c.b16 %v1099, %v1095
    %v1572 = vpack.c.b16 %v1104, %v1100
    %v1573 = vpack.c.b16 %v1105, %v1101
    %v1574 = vpack.c.b16 %v1106, %v1102
    %v1575 = vpack.c.b16 %v1107, %v1103
    %v1576 = vpack.c.b16 %v1112, %v1108
    %v1577 = vpack.c.b16 %v1113, %v1109
    %v1578 = vpack.c.b16 %v1114, %v1110
    %v1579 = vpack.c.b16 %v1115, %v1111
    %v1580 = vpack.c.b16 %v1120, %v1116
    %v1581 = vpack.c.b16 %v1121, %v1117
    %v1582 = vpack.c.b16 %v1122, %v1118
    %v1583 = vpack.c.b16 %v1123, %v1119
    %v1584 = vpack.c.b16 %v1128, %v1124
    %v1585 = vpack.c.b16 %v1129, %v1125
    %v1586 = vpack.c.b16 %v1130, %v1126
    %v1587 = vpack.c.b16 %v1131, %v1127
    %v1588 = vpack.c.b16 %v1136, %v1132
    %v1589 = vpack.c.b16 %v1137, %v1133
    %v1590 = vpack.c.b16 %v1138, %v1134
    %v1591 = vpack.c.b16 %v1139, %v1135
    %v1592 = vpack.c.b16 %v1144, %v1140
    %v1593 = vpack.c.b16 %v1145, %v1141
    %v1594 = vpack.c.b16 %v1146, %v1142
    %v1595 = vpack.c.b16 %v1147, %v1143
    %v1596 = vpack.c.b16 %v1152, %v1148
    %v1597 = vpack.c.b16 %v1153, %v1149
    %v1598 = vpack.c.b16 %v1154, %v1150
    %v1599 = vpack.c.b16 %v1155, %v1151
    %v1600 = vpack.c.b16 %v1160, %v1156
    %v1601 = vpack.c.b16 %v1161, %v1157
    %v1602 = vpack.c.b16 %v1162, %v1158
    %v1603 = vpack.c.b16 %v1163, %v1159
    %v1604 = vpack.c.b16 %v1168, %v1164
    %v1605 = vpack.c.b16 %v1169, %v1165
    %v1606 = vpack.c.b16 %v1170, %v1166
    %v1607 = vpack.c.b16 %v1171, %v1167
    %v1608 = vpack.c.b16 %v1176, %v1172
    %v1609 = vpack.c.b16 %v1177, %v1173
    %v1610 = vpack.c.b16 %v1178, %v1174
    %v1611 = vpack.c.b16 %v1179, %v1175
    %v1612 = vpack.c.b16 %v1184, %v1180
    %v1613 = vpack.c.b16 %v1185, %v1181
    %v1614 = vpack.c.b16 %v1186, %v1182
    %v1615 = vpack.c.b16 %v1187, %v1183
    %v1616 = vpack.c.b16 %v1192, %v1188
    %v1617 = vpack.c.b16 %v1193, %v1189
    %v1618 = vpack.c.b16 %v1194, %v1190
    %v1619 = vpack.c.b16 %v1195, %v1191
    %v1620 = vpack.c.b16 %v1200, %v1196
    %v1621 = vpack.c.b16 %v1201, %v1197
    %v1622 = vpack.c.b16 %v1202, %v1198
    %v1623 = vpack.c.b16 %v1203, %v1199
    %v1624 = vpack.c.b16 %v1208, %v1204
    %v1625 = vpack.c.b16 %v1209, %v1205
    %v1626 = vpack.c.b16 %v1210, %v1206
    %v1627 = vpack.c.b16 %v1211, %v1207
    %v1628 = vpack.c.b16 %v1216, %v1212
    %v1629 = vpack.c.b16 %v1217, %v1213
    %v1630 = vpack.c.b16 %v1218, %v1214
    %v1631 = vpack.c.b16 %v1219, %v1215
    %v1632 = vpack.c.b16 %v1224, %v1220
    %v1633 = vpack.c.b16 %v1225, %v1221
    %v1634 = vpack.c.b16 %v1226, %v1222
    %v1635 = vpack.c.b16 %v1227, %v1223
    %v1636 = vpack.c.b16 %v1232, %v1228
    %v1637 = vpack.c.b16 %v1233, %v1229
    %v1638 = vpack.c.b16 %v1234, %v1230
    %v1639 = vpack.c.b16 %v1235, %v1231
    %v1640 = vpack.c.b16 %v1240, %v1236
    %v1641 = vpack.c.b16 %v1241, %v1237
    %v1642 = vpack.c.b16 %v1242, %v1238
    %v1643 = vpack.c.b16 %v1243, %v1239
    %v1644 = vpack.c.b16 %v1248, %v1244
    %v1645 = vpack.c.b16 %v1249, %v1245
    %v1646 = vpack.c.b16 %v1250, %v1246
    %v1647 = vpack.c.b16 %v1251, %v1247
    %v1648 = vpack.c.b16 %v1256, %v1252
    %v1649 = vpack.c.b16 %v1257, %v1253
    %v1650 = vpack.c.b16 %v1258, %v1254
    %v1651 = vpack.c.b16 %v1259, %v1255
    %v1652 = vpack.c.b16 %v1264, %v1260
    %v1653 = vpack.c.b16 %v1265, %v1261
    %v1654 = vpack.c.b16 %v1266, %v1262
    %v1655 = vpack.c.b16 %v1267, %v1263
    %v1656 = vpack.c.b16 %v1272, %v1268
    %v1657 = vpack.c.b16 %v1273, %v1269
    %v1658 = vpack.c.b16 %v1274, %v1270
    %v1659 = vpack.c.b16 %v1275, %v1271
    %v1660 = vpack.c.b16 %v1280, %v1276
    %v1661 = vpack.c.b16 %v1281, %v1277
    %v1662 = vpack.c.b16 %v1282, %v1278
    %v1663 = vpack.c.b16 %v1283, %v1279
    %v1664 = vpack.c.b16 %v1288, %v1284
    %v1665 = vpack.c.b16 %v1289, %v1285
    %v1666 = vpack.c.b16 %v1290, %v1286
    %v1667 = vpack.c.b16 %v1291, %v1287
    %v1668 = vpack.c.b16 %v1296, %v1292
    %v1669 = vpack.c.b16 %v1297, %v1293
    %v1670 = vpack.c.b16 %v1298, %v1294
    %v1671 = vpack.c.b16 %v1299, %v1295
    %v1672 = vpack.c.b16 %v1304, %v1300
    %v1673 = vpack.c.b16 %v1305, %v1301
    %v1674 = vpack.c.b16 %v1306, %v1302
    %v1675 = vpack.c.b16 %v1307, %v1303
    %v1676 = vpack.c.b16 %v1312, %v1308
    %v1677 = vpack.c.b16 %v1313, %v1309
    %v1678 = vpack.c.b16 %v1314, %v1310
    %v1679 = vpack.c.b16 %v1315, %v1311
    %v1680 = vpack.c.b16 %v1320, %v1316
    %v1681 = vpack.c.b16 %v1321, %v1317
    %v1682 = vpack.c.b16 %v1322, %v1318
    %v1683 = vpack.c.b16 %v1323, %v1319
    %v1684 = vpack.c.b16 %v1328, %v1324
    %v1685 = vpack.c.b16 %v1329, %v1325
    %v1686 = vpack.c.b16 %v1330, %v1326
    %v1687 = vpack.c.b16 %v1331, %v1327
    %v1688 = vpack.c.b16 %v1336, %v1332
    %v1689 = vpack.c.b16 %v1337, %v1333
    %v1690 = vpack.c.b16 %v1338, %v1334
    %v1691 = vpack.c.b16 %v1339, %v1335
    %v1692 = vpack.c.b16 %v1344, %v1340
    %v1693 = vpack.c.b16 %v1345, %v1341
    %v1694 = vpack.c.b16 %v1346, %v1342
    %v1695 = vpack.c.b16 %v1347, %v1343
    %v1696 = vpack.c.b16 %v1352, %v1348
    %v1697 = vpack.c.b16 %v1353, %v1349
    %v1698 = vpack.c.b16 %v1354, %v1350
    %v1699 = vpack.c.b16 %v1355, %v1351
    %v1700 = vpack.c.b16 %v1360, %v1356
    %v1701 = vpack.c.b16 %v1361, %v1357
    %v1702 = vpack.c.b16 %v1362, %v1358
    %v1703 = vpack.c.b16 %v1363, %v1359
    %v1704 = vpack.c.b16 %v1368, %v1364
    %v1705 = vpack.c.b16 %v1369, %v1365
    %v1706 = vpack.c.b16 %v1370, %v1366
    %v1707 = vpack.c.b16 %v1371, %v1367
    %v1708 = vpack.c.b16 %v1376, %v1372
    %v1709 = vpack.c.b16 %v1377, %v1373
    %v1710 = vpack.c.b16 %v1378, %v1374
    %v1711 = vpack.c.b16 %v1379, %v1375
    %v1712 = vpack.c.b16 %v1384, %v1380
    %v1713 = vpack.c.b16 %v1385, %v1381
    %v1714 = vpack.c.b16 %v1386, %v1382
    %v1715 = vpack.c.b16 %v1387, %v1383
    %v1716 = vpack.c.b16 %v1392, %v1388
    %v1717 = vpack.c.b16 %v1393, %v1389
    %v1718 = vpack.c.b16 %v1394, %v1390
    %v1719 = vpack.c.b16 %v1395, %v1391
    %v1720 = vpack.c.b16 %v1400, %v1396
    %v1721 = vpack.c.b16 %v1401, %v1397
    %v1722 = vpack.c.b16 %v1402, %v1398
    %v1723 = vpack.c.b16 %v1403, %v1399
    %2044 = vmatprep.subr.bf16.mxu0 %v1405
    %2045 = vmatpush1.bf16.msra.mxu0 %v1404
    %2046 = vmatprep.subr.bf16.mxu0 %v1409
    %2047 = vmatpush1.bf16.msra.mxu0 %v1408
    %2048 = vmatprep.subr.bf16.mxu0 %v1413
    %2049 = vmatpush1.bf16.msra.mxu0 %v1412
    %2050 = vmatprep.subr.bf16.mxu0 %v1417
    %2051 = vmatpush1.bf16.msra.mxu0 %v1416
    %2052 = vmatprep.subr.bf16.mxu0 %v1421
    %2053 = vmatpush1.bf16.msra.mxu0 %v1420
    %2054 = vmatprep.subr.bf16.mxu0 %v1425
    %2055 = vmatpush1.bf16.msra.mxu0 %v1424
    %2056 = vmatprep.subr.bf16.mxu0 %v1429
    %2057 = vmatpush1.bf16.msra.mxu0 %v1428
    %2058 = vmatprep.subr.bf16.mxu0 %v1433
    %2059 = vmatpush1.bf16.msra.mxu0 %v1432
    %2060 = vmatprep.subr.bf16.mxu0 %v1437
    %2061 = vmatpush1.bf16.msra.mxu0 %v1436
    %2062 = vmatprep.subr.bf16.mxu0 %v1441
    %2063 = vmatpush1.bf16.msra.mxu0 %v1440
    %2064 = vmatprep.subr.bf16.mxu0 %v1445
    %2065 = vmatpush1.bf16.msra.mxu0 %v1444
    %2066 = vmatprep.subr.bf16.mxu0 %v1449
    %2067 = vmatpush1.bf16.msra.mxu0 %v1448
    %2068 = vmatprep.subr.bf16.mxu0 %v1453
    %2069 = vmatpush1.bf16.msra.mxu0 %v1452
    %2070 = vmatprep.subr.bf16.mxu0 %v1457
    %2071 = vmatpush1.bf16.msra.mxu0 %v1456
    %2072 = vmatprep.subr.bf16.mxu0 %v1461
    %2073 = vmatpush1.bf16.msra.mxu0 %v1460
    %2074 = vmatprep.subr.bf16.mxu0 %v1465
    %2075 = vmatpush1.bf16.msra.mxu0 %v1464
    %2076 = vmatprep.mubr.bf16.mxu0 %v93
    %2077 = vmatmul.mubr.bf16.gmra.mrb[0].mxu0 %v92
    %v2078 = vpop.f32.mrb[0].mxu0
    %v2079 = vadd.f32 %v427, %v2078
    %v2080 = vpop.f32.mrb[0].mxu0
    %v2081 = vadd.f32 %v431, %v2080
    %v2082 = vpop.f32.mrb[0].mxu0
    %v2083 = vpop.f32.mrb[0].mxu0
    %2084 = vdwg.mxu0
    %2085 = vmatprep.subr.bf16.mxu0 %v1469
    %2086 = vmatpush1.bf16.msra.mxu0 %v1468
    %2087 = vmatprep.subr.bf16.mxu0 %v1473
    %2088 = vmatpush1.bf16.msra.mxu0 %v1472
    %2089 = vmatprep.subr.bf16.mxu0 %v1477
    %2090 = vmatpush1.bf16.msra.mxu0 %v1476
    %2091 = vmatprep.subr.bf16.mxu0 %v1481
    %2092 = vmatpush1.bf16.msra.mxu0 %v1480
    %2093 = vmatprep.subr.bf16.mxu0 %v1485
    %2094 = vmatpush1.bf16.msra.mxu0 %v1484
    %2095 = vmatprep.subr.bf16.mxu0 %v1489
    %2096 = vmatpush1.bf16.msra.mxu0 %v1488
    %2097 = vmatprep.subr.bf16.mxu0 %v1493
    %2098 = vmatpush1.bf16.msra.mxu0 %v1492
    %2099 = vmatprep.subr.bf16.mxu0 %v1497
    %2100 = vmatpush1.bf16.msra.mxu0 %v1496
    %2101 = vmatprep.subr.bf16.mxu0 %v1501
    %2102 = vmatpush1.bf16.msra.mxu0 %v1500
    %2103 = vmatprep.subr.bf16.mxu0 %v1505
    %2104 = vmatpush1.bf16.msra.mxu0 %v1504
    %2105 = vmatprep.subr.bf16.mxu0 %v1509
    %2106 = vmatpush1.bf16.msra.mxu0 %v1508
    %2107 = vmatprep.subr.bf16.mxu0 %v1513
    %2108 = vmatpush1.bf16.msra.mxu0 %v1512
    %2109 = vmatprep.subr.bf16.mxu0 %v1517
    %2110 = vmatpush1.bf16.msra.mxu0 %v1516
    %2111 = vmatprep.subr.bf16.mxu0 %v1521
    %2112 = vmatpush1.bf16.msra.mxu0 %v1520
    %2113 = vmatprep.subr.bf16.mxu0 %v1525
    %2114 = vmatpush1.bf16.msra.mxu0 %v1524
    %2115 = vmatprep.subr.bf16.mxu0 %v1529
    %2116 = vmatpush1.bf16.msra.mxu0 %v1528
    %2117 = vmatprep.mubr.bf16.mxu0 %v95
    %2118 = vmatmul.mubr.bf16.gmra.mrb[0].mxu0 %v94
    %v2119 = vpop.f32.mrb[0].mxu0
    %v2120 = vadd.f32 %v2079, %v2119
    %v2121 = vpop.f32.mrb[0].mxu0
    %v2122 = vadd.f32 %v2081, %v2121
    %v2123 = vpop.f32.mrb[0].mxu0
    %v2124 = vpop.f32.mrb[0].mxu0
    %2125 = vdwg.mxu0
    %2126 = vmatprep.subr.bf16.mxu0 %v1533
    %2127 = vmatpush1.bf16.msra.mxu0 %v1532
    %2128 = vmatprep.subr.bf16.mxu0 %v1537
    %2129 = vmatpush1.bf16.msra.mxu0 %v1536
    %2130 = vmatprep.subr.bf16.mxu0 %v1541
    %2131 = vmatpush1.bf16.msra.mxu0 %v1540
    %2132 = vmatprep.subr.bf16.mxu0 %v1545
    %2133 = vmatpush1.bf16.msra.mxu0 %v1544
    %2134 = vmatprep.subr.bf16.mxu0 %v1549
    %2135 = vmatpush1.bf16.msra.mxu0 %v1548
    %2136 = vmatprep.subr.bf16.mxu0 %v1553
    %2137 = vmatpush1.bf16.msra.mxu0 %v1552
    %2138 = vmatprep.subr.bf16.mxu0 %v1557
    %2139 = vmatpush1.bf16.msra.mxu0 %v1556
    %2140 = vmatprep.subr.bf16.mxu0 %v1561
    %2141 = vmatpush1.bf16.msra.mxu0 %v1560
    %2142 = vmatprep.subr.bf16.mxu0 %v1565
    %2143 = vmatpush1.bf16.msra.mxu0 %v1564
    %2144 = vmatprep.subr.bf16.mxu0 %v1569
    %2145 = vmatpush1.bf16.msra.mxu0 %v1568
    %2146 = vmatprep.subr.bf16.mxu0 %v1573
    %2147 = vmatpush1.bf16.msra.mxu0 %v1572
    %2148 = vmatprep.subr.bf16.mxu0 %v1577
    %2149 = vmatpush1.bf16.msra.mxu0 %v1576
    %2150 = vmatprep.subr.bf16.mxu0 %v1581
    %2151 = vmatpush1.bf16.msra.mxu0 %v1580
    %2152 = vmatprep.subr.bf16.mxu0 %v1585
    %2153 = vmatpush1.bf16.msra.mxu0 %v1584
    %2154 = vmatprep.subr.bf16.mxu0 %v1589
    %2155 = vmatpush1.bf16.msra.mxu0 %v1588
    %2156 = vmatprep.subr.bf16.mxu0 %v1593
    %2157 = vmatpush1.bf16.msra.mxu0 %v1592
    %2158 = vmatprep.mubr.bf16.mxu0 %v97
    %2159 = vmatmul.mubr.bf16.gmra.mrb[0].mxu0 %v96
    %v2160 = vpop.f32.mrb[0].mxu0
    %v2161 = vadd.f32 %v2120, %v2160
    %v2162 = vpop.f32.mrb[0].mxu0
    %v2163 = vadd.f32 %v2122, %v2162
    %v2164 = vpop.f32.mrb[0].mxu0
    %v2165 = vpop.f32.mrb[0].mxu0
    %2166 = vdwg.mxu0
    %2167 = vmatprep.subr.bf16.mxu0 %v1597
    %2168 = vmatpush1.bf16.msra.mxu0 %v1596
    %2169 = vmatprep.subr.bf16.mxu0 %v1601
    %2170 = vmatpush1.bf16.msra.mxu0 %v1600
    %2171 = vmatprep.subr.bf16.mxu0 %v1605
    %2172 = vmatpush1.bf16.msra.mxu0 %v1604
    %2173 = vmatprep.subr.bf16.mxu0 %v1609
    %2174 = vmatpush1.bf16.msra.mxu0 %v1608
    %2175 = vmatprep.subr.bf16.mxu0 %v1613
    %2176 = vmatpush1.bf16.msra.mxu0 %v1612
    %2177 = vmatprep.subr.bf16.mxu0 %v1617
    %2178 = vmatpush1.bf16.msra.mxu0 %v1616
    %2179 = vmatprep.subr.bf16.mxu0 %v1621
    %2180 = vmatpush1.bf16.msra.mxu0 %v1620
    %2181 = vmatprep.subr.bf16.mxu0 %v1625
    %2182 = vmatpush1.bf16.msra.mxu0 %v1624
    %2183 = vmatprep.subr.bf16.mxu0 %v1629
    %2184 = vmatpush1.bf16.msra.mxu0 %v1628
    %2185 = vmatprep.subr.bf16.mxu0 %v1633
    %2186 = vmatpush1.bf16.msra.mxu0 %v1632
    %2187 = vmatprep.subr.bf16.mxu0 %v1637
    %2188 = vmatpush1.bf16.msra.mxu0 %v1636
    %2189 = vmatprep.subr.bf16.mxu0 %v1641
    %2190 = vmatpush1.bf16.msra.mxu0 %v1640
    %2191 = vmatprep.subr.bf16.mxu0 %v1645
    %2192 = vmatpush1.bf16.msra.mxu0 %v1644
    %2193 = vmatprep.subr.bf16.mxu0 %v1649
    %2194 = vmatpush1.bf16.msra.mxu0 %v1648
    %2195 = vmatprep.subr.bf16.mxu0 %v1653
    %2196 = vmatpush1.bf16.msra.mxu0 %v1652
    %2197 = vmatprep.subr.bf16.mxu0 %v1657
    %2198 = vmatpush1.bf16.msra.mxu0 %v1656
    %2199 = vmatprep.mubr.bf16.mxu0 %v99
    %2200 = vmatmul.mubr.bf16.gmra.mrb[0].mxu0 %v98
    %v2201 = vpop.f32.mrb[0].mxu0
    %v2202 = vadd.f32 %v2161, %v2201
    %v2203 = vpop.f32.mrb[0].mxu0
    %v2204 = vadd.f32 %v2163, %v2203
    %v2205 = vpop.f32.mrb[0].mxu0
    %v2206 = vpop.f32.mrb[0].mxu0
    %2207 = vdwg.mxu0
    %2208 = vmatprep.subr.bf16.mxu0 %v1661
    %2209 = vmatpush1.bf16.msra.mxu0 %v1660
    %2210 = vmatprep.subr.bf16.mxu0 %v1665
    %2211 = vmatpush1.bf16.msra.mxu0 %v1664
    %2212 = vmatprep.subr.bf16.mxu0 %v1669
    %2213 = vmatpush1.bf16.msra.mxu0 %v1668
    %2214 = vmatprep.subr.bf16.mxu0 %v1673
    %2215 = vmatpush1.bf16.msra.mxu0 %v1672
    %2216 = vmatprep.subr.bf16.mxu0 %v1677
    %2217 = vmatpush1.bf16.msra.mxu0 %v1676
    %2218 = vmatprep.subr.bf16.mxu0 %v1681
    %2219 = vmatpush1.bf16.msra.mxu0 %v1680
    %2220 = vmatprep.subr.bf16.mxu0 %v1685
    %2221 = vmatpush1.bf16.msra.mxu0 %v1684
    %2222 = vmatprep.subr.bf16.mxu0 %v1689
    %2223 = vmatpush1.bf16.msra.mxu0 %v1688
    %2224 = vmatprep.subr.bf16.mxu0 %v1693
    %2225 = vmatpush1.bf16.msra.mxu0 %v1692
    %2226 = vmatprep.subr.bf16.mxu0 %v1697
    %2227 = vmatpush1.bf16.msra.mxu0 %v1696
    %2228 = vmatprep.subr.bf16.mxu0 %v1701
    %2229 = vmatpush1.bf16.msra.mxu0 %v1700
    %2230 = vmatprep.subr.bf16.mxu0 %v1705
    %2231 = vmatpush1.bf16.msra.mxu0 %v1704
    %2232 = vmatprep.subr.bf16.mxu0 %v1709
    %2233 = vmatpush1.bf16.msra.mxu0 %v1708
    %2234 = vmatprep.subr.bf16.mxu0 %v1713
    %2235 = vmatpush1.bf16.msra.mxu0 %v1712
    %2236 = vmatprep.subr.bf16.mxu0 %v1717
    %2237 = vmatpush1.bf16.msra.mxu0 %v1716
    %2238 = vmatprep.subr.bf16.mxu0 %v1721
    %2239 = vmatpush1.bf16.msra.mxu0 %v1720
    %2240 = vmatprep.mubr.bf16.mxu0 %v101
    %2241 = vmatmul.mubr.bf16.gmra.mrb[0].mxu0 %v100
    %v2242 = vpop.f32.mrb[0].mxu0
    %v2243 = vadd.f32 %v2202, %v2242
    %v2244 = vpop.f32.mrb[0].mxu0
    %v2245 = vadd.f32 %v2204, %v2244
    %v2246 = vpop.f32.mrb[0].mxu0
    %v2247 = vpop.f32.mrb[0].mxu0
    %2248 = vdwg.mxu0
    %2249 = vmatprep.subr.bf16.mxu0 %v1407
    %2250 = vmatpush1.bf16.msra.mxu0 %v1406
    %2251 = vmatprep.subr.bf16.mxu0 %v1411
    %2252 = vmatpush1.bf16.msra.mxu0 %v1410
    %2253 = vmatprep.subr.bf16.mxu0 %v1415
    %2254 = vmatpush1.bf16.msra.mxu0 %v1414
    %2255 = vmatprep.subr.bf16.mxu0 %v1419
    %2256 = vmatpush1.bf16.msra.mxu0 %v1418
    %2257 = vmatprep.subr.bf16.mxu0 %v1423
    %2258 = vmatpush1.bf16.msra.mxu0 %v1422
    %2259 = vmatprep.subr.bf16.mxu0 %v1427
    %2260 = vmatpush1.bf16.msra.mxu0 %v1426
    %2261 = vmatprep.subr.bf16.mxu0 %v1431
    %2262 = vmatpush1.bf16.msra.mxu0 %v1430
    %2263 = vmatprep.subr.bf16.mxu0 %v1435
    %2264 = vmatpush1.bf16.msra.mxu0 %v1434
    %2265 = vmatprep.subr.bf16.mxu0 %v1439
    %2266 = vmatpush1.bf16.msra.mxu0 %v1438
    %2267 = vmatprep.subr.bf16.mxu0 %v1443
    %2268 = vmatpush1.bf16.msra.mxu0 %v1442
    %2269 = vmatprep.subr.bf16.mxu0 %v1447
    %2270 = vmatpush1.bf16.msra.mxu0 %v1446
    %2271 = vmatprep.subr.bf16.mxu0 %v1451
    %2272 = vmatpush1.bf16.msra.mxu0 %v1450
    %2273 = vmatprep.subr.bf16.mxu0 %v1455
    %2274 = vmatpush1.bf16.msra.mxu0 %v1454
    %2275 = vmatprep.subr.bf16.mxu0 %v1459
    %2276 = vmatpush1.bf16.msra.mxu0 %v1458
    %2277 = vmatprep.subr.bf16.mxu0 %v1463
    %2278 = vmatpush1.bf16.msra.mxu0 %v1462
    %2279 = vmatprep.subr.bf16.mxu0 %v1467
    %2280 = vmatpush1.bf16.msra.mxu0 %v1466
    %2281 = vmatprep.mubr.bf16.mxu0 %v93
    %2282 = vmatmul.mubr.bf16.gmra.mrb[0].mxu0 %v92
    %v2283 = vpop.f32.mrb[0].mxu0
    %v2284 = vadd.f32 %v435, %v2283
    %v2285 = vpop.f32.mrb[0].mxu0
    %v2286 = vadd.f32 %v439, %v2285
    %v2287 = vpop.f32.mrb[0].mxu0
    %v2288 = vpop.f32.mrb[0].mxu0
    %2289 = vdwg.mxu0
    %2290 = vmatprep.subr.bf16.mxu0 %v1471
    %2291 = vmatpush1.bf16.msra.mxu0 %v1470
    %2292 = vmatprep.subr.bf16.mxu0 %v1475
    %2293 = vmatpush1.bf16.msra.mxu0 %v1474
    %2294 = vmatprep.subr.bf16.mxu0 %v1479
    %2295 = vmatpush1.bf16.msra.mxu0 %v1478
    %2296 = vmatprep.subr.bf16.mxu0 %v1483
    %2297 = vmatpush1.bf16.msra.mxu0 %v1482
    %2298 = vmatprep.subr.bf16.mxu0 %v1487
    %2299 = vmatpush1.bf16.msra.mxu0 %v1486
    %2300 = vmatprep.subr.bf16.mxu0 %v1491
    %2301 = vmatpush1.bf16.msra.mxu0 %v1490
    %2302 = vmatprep.subr.bf16.mxu0 %v1495
    %2303 = vmatpush1.bf16.msra.mxu0 %v1494
    %2304 = vmatprep.subr.bf16.mxu0 %v1499
    %2305 = vmatpush1.bf16.msra.mxu0 %v1498
    %2306 = vmatprep.subr.bf16.mxu0 %v1503
    %2307 = vmatpush1.bf16.msra.mxu0 %v1502
    %2308 = vmatprep.subr.bf16.mxu0 %v1507
    %2309 = vmatpush1.bf16.msra.mxu0 %v1506
    %2310 = vmatprep.subr.bf16.mxu0 %v1511
    %2311 = vmatpush1.bf16.msra.mxu0 %v1510
    %2312 = vmatprep.subr.bf16.mxu0 %v1515
    %2313 = vmatpush1.bf16.msra.mxu0 %v1514
    %2314 = vmatprep.subr.bf16.mxu0 %v1519
    %2315 = vmatpush1.bf16.msra.mxu0 %v1518
    %2316 = vmatprep.subr.bf16.mxu0 %v1523
    %2317 = vmatpush1.bf16.msra.mxu0 %v1522
    %2318 = vmatprep.subr.bf16.mxu0 %v1527
    %2319 = vmatpush1.bf16.msra.mxu0 %v1526
    %2320 = vmatprep.subr.bf16.mxu0 %v1531
    %2321 = vmatpush1.bf16.msra.mxu0 %v1530
    %2322 = vmatprep.mubr.bf16.mxu0 %v95
    %2323 = vmatmul.mubr.bf16.gmra.mrb[0].mxu0 %v94
    %v2324 = vpop.f32.mrb[0].mxu0
    %v2325 = vadd.f32 %v2284, %v2324
    %v2326 = vpop.f32.mrb[0].mxu0
    %v2327 = vadd.f32 %v2286, %v2326
    %v2328 = vpop.f32.mrb[0].mxu0
    %v2329 = vpop.f32.mrb[0].mxu0
    %2330 = vdwg.mxu0
    %2331 = vmatprep.subr.bf16.mxu0 %v1535
    %2332 = vmatpush1.bf16.msra.mxu0 %v1534
    %2333 = vmatprep.subr.bf16.mxu0 %v1539
    %2334 = vmatpush1.bf16.msra.mxu0 %v1538
    %2335 = vmatprep.subr.bf16.mxu0 %v1543
    %2336 = vmatpush1.bf16.msra.mxu0 %v1542
    %2337 = vmatprep.subr.bf16.mxu0 %v1547
    %2338 = vmatpush1.bf16.msra.mxu0 %v1546
    %2339 = vmatprep.subr.bf16.mxu0 %v1551
    %2340 = vmatpush1.bf16.msra.mxu0 %v1550
    %2341 = vmatprep.subr.bf16.mxu0 %v1555
    %2342 = vmatpush1.bf16.msra.mxu0 %v1554
    %2343 = vmatprep.subr.bf16.mxu0 %v1559
    %2344 = vmatpush1.bf16.msra.mxu0 %v1558
    %2345 = vmatprep.subr.bf16.mxu0 %v1563
    %2346 = vmatpush1.bf16.msra.mxu0 %v1562
    %2347 = vmatprep.subr.bf16.mxu0 %v1567
    %2348 = vmatpush1.bf16.msra.mxu0 %v1566
    %2349 = vmatprep.subr.bf16.mxu0 %v1571
    %2350 = vmatpush1.bf16.msra.mxu0 %v1570
    %2351 = vmatprep.subr.bf16.mxu0 %v1575
    %2352 = vmatpush1.bf16.msra.mxu0 %v1574
    %2353 = vmatprep.subr.bf16.mxu0 %v1579
    %2354 = vmatpush1.bf16.msra.mxu0 %v1578
    %2355 = vmatprep.subr.bf16.mxu0 %v1583
    %2356 = vmatpush1.bf16.msra.mxu0 %v1582
    %2357 = vmatprep.subr.bf16.mxu0 %v1587
    %2358 = vmatpush1.bf16.msra.mxu0 %v1586
    %2359 = vmatprep.subr.bf16.mxu0 %v1591
    %2360 = vmatpush1.bf16.msra.mxu0 %v1590
    %2361 = vmatprep.subr.bf16.mxu0 %v1595
    %2362 = vmatpush1.bf16.msra.mxu0 %v1594
    %2363 = vmatprep.mubr.bf16.mxu0 %v97
    %2364 = vmatmul.mubr.bf16.gmra.mrb[0].mxu0 %v96
    %v2365 = vpop.f32.mrb[0].mxu0
    %v2366 = vadd.f32 %v2325, %v2365
    %v2367 = vpop.f32.mrb[0].mxu0
    %v2368 = vadd.f32 %v2327, %v2367
    %v2369 = vpop.f32.mrb[0].mxu0
    %v2370 = vpop.f32.mrb[0].mxu0
    %2371 = vdwg.mxu0
    %2372 = vmatprep.subr.bf16.mxu0 %v1599
    %2373 = vmatpush1.bf16.msra.mxu0 %v1598
    %2374 = vmatprep.subr.bf16.mxu0 %v1603
    %2375 = vmatpush1.bf16.msra.mxu0 %v1602
    %2376 = vmatprep.subr.bf16.mxu0 %v1607
    %2377 = vmatpush1.bf16.msra.mxu0 %v1606
    %2378 = vmatprep.subr.bf16.mxu0 %v1611
    %2379 = vmatpush1.bf16.msra.mxu0 %v1610
    %2380 = vmatprep.subr.bf16.mxu0 %v1615
    %2381 = vmatpush1.bf16.msra.mxu0 %v1614
    %2382 = vmatprep.subr.bf16.mxu0 %v1619
    %2383 = vmatpush1.bf16.msra.mxu0 %v1618
    %2384 = vmatprep.subr.bf16.mxu0 %v1623
    %2385 = vmatpush1.bf16.msra.mxu0 %v1622
    %2386 = vmatprep.subr.bf16.mxu0 %v1627
    %2387 = vmatpush1.bf16.msra.mxu0 %v1626
    %2388 = vmatprep.subr.bf16.mxu0 %v1631
    %2389 = vmatpush1.bf16.msra.mxu0 %v1630
    %2390 = vmatprep.subr.bf16.mxu0 %v1635
    %2391 = vmatpush1.bf16.msra.mxu0 %v1634
    %2392 = vmatprep.subr.bf16.mxu0 %v1639
    %2393 = vmatpush1.bf16.msra.mxu0 %v1638
    %2394 = vmatprep.subr.bf16.mxu0 %v1643
    %2395 = vmatpush1.bf16.msra.mxu0 %v1642
    %2396 = vmatprep.subr.bf16.mxu0 %v1647
    %2397 = vmatpush1.bf16.msra.mxu0 %v1646
    %2398 = vmatprep.subr.bf16.mxu0 %v1651
    %2399 = vmatpush1.bf16.msra.mxu0 %v1650
    %2400 = vmatprep.subr.bf16.mxu0 %v1655
    %2401 = vmatpush1.bf16.msra.mxu0 %v1654
    %2402 = vmatprep.subr.bf16.mxu0 %v1659
    %2403 = vmatpush1.bf16.msra.mxu0 %v1658
    %2404 = vmatprep.mubr.bf16.mxu0 %v99
    %2405 = vmatmul.mubr.bf16.gmra.mrb[0].mxu0 %v98
    %v2406 = vpop.f32.mrb[0].mxu0
    %v2407 = vadd.f32 %v2366, %v2406
    %v2408 = vpop.f32.mrb[0].mxu0
    %v2409 = vadd.f32 %v2368, %v2408
    %v2410 = vpop.f32.mrb[0].mxu0
    %v2411 = vpop.f32.mrb[0].mxu0
    %2412 = vdwg.mxu0
    %2413 = vmatprep.subr.bf16.mxu0 %v1663
    %2414 = vmatpush1.bf16.msra.mxu0 %v1662
    %2415 = vmatprep.subr.bf16.mxu0 %v1667
    %2416 = vmatpush1.bf16.msra.mxu0 %v1666
    %2417 = vmatprep.subr.bf16.mxu0 %v1671
    %2418 = vmatpush1.bf16.msra.mxu0 %v1670
    %2419 = vmatprep.subr.bf16.mxu0 %v1675
    %2420 = vmatpush1.bf16.msra.mxu0 %v1674
    %2421 = vmatprep.subr.bf16.mxu0 %v1679
    %2422 = vmatpush1.bf16.msra.mxu0 %v1678
    %2423 = vmatprep.subr.bf16.mxu0 %v1683
    %2424 = vmatpush1.bf16.msra.mxu0 %v1682
    %2425 = vmatprep.subr.bf16.mxu0 %v1687
    %2426 = vmatpush1.bf16.msra.mxu0 %v1686
    %2427 = vmatprep.subr.bf16.mxu0 %v1691
    %2428 = vmatpush1.bf16.msra.mxu0 %v1690
    %2429 = vmatprep.subr.bf16.mxu0 %v1695
    %2430 = vmatpush1.bf16.msra.mxu0 %v1694
    %2431 = vmatprep.subr.bf16.mxu0 %v1699
    %2432 = vmatpush1.bf16.msra.mxu0 %v1698
    %2433 = vmatprep.subr.bf16.mxu0 %v1703
    %2434 = vmatpush1.bf16.msra.mxu0 %v1702
    %2435 = vmatprep.subr.bf16.mxu0 %v1707
    %2436 = vmatpush1.bf16.msra.mxu0 %v1706
    %2437 = vmatprep.subr.bf16.mxu0 %v1711
    %2438 = vmatpush1.bf16.msra.mxu0 %v1710
    %2439 = vmatprep.subr.bf16.mxu0 %v1715
    %2440 = vmatpush1.bf16.msra.mxu0 %v1714
    %2441 = vmatprep.subr.bf16.mxu0 %v1719
    %2442 = vmatpush1.bf16.msra.mxu0 %v1718
    %2443 = vmatprep.subr.bf16.mxu0 %v1723
    %2444 = vmatpush1.bf16.msra.mxu0 %v1722
    %2445 = vmatprep.mubr.bf16.mxu0 %v101
    %2446 = vmatmul.mubr.bf16.gmra.mrb[0].mxu0 %v100
    %v2447 = vpop.f32.mrb[0].mxu0
    %v2448 = vadd.f32 %v2407, %v2447
    %v2449 = vpop.f32.mrb[0].mxu0
    %v2450 = vadd.f32 %v2409, %v2449
    %v2451 = vpop.f32.mrb[0].mxu0
    %v2452 = vpop.f32.mrb[0].mxu0
    %2453 = vdwg.mxu0
    %v2454 = vmul.f32 %v2243, %v2243
    %v2455 = vmul.f32 %v2245, %v2245
    %v2456 = vmul.f32 %v2448, %v2448
    %v2457 = vmul.f32 %v2450, %v2450
    %vm2458 = vcmask 1041408
    %v2459 = vsel %vm2458, %v2454, 0.0
    %v2460 = vsel %vm2458, %v2455, 0.0
    %v2461 = vadd.f32 %v2459, %v2460
    %v2462 = vsel %vm2458, %v2456, 0.0
    %v2463 = vadd.f32 %v2461, %v2462
    %v2464 = vsel %vm2458, %v2457, 0.0
    %v2465 = vadd.f32 %v2463, %v2464
    %2466 = vadd.xlane.f32.xlu0 %v2465
    %v2467 = vpop.xlane.xlu0 %2466
    %v2468 = vmax.f32 %v2467, 1e-24
    %v2469 = vrsqrt.pop %v2468
    %v2470 = vmul.f32 %v2243, %v2469
    %v2471 = vmul.f32 %v2245, %v2469
    %v2472 = vmul.f32 %v2448, %v2469
    %v2473 = vmul.f32 %v2450, %v2469
    %2474 = vmatprep.subr.mxu0 %v2471
    %2475 = vmatpush1.xpose.msra.mxu0 %v2470
    %2476 = vmatprep.subr.mxu0 0.0
    %2477 = vmatpush1.xpose.msra.mxu0 0.0
    %2478 = vmatprep.subr.mxu0 0.0
    %2479 = vmatpush1.xpose.msra.mxu0 0.0
    %2480 = vmatprep.subr.mxu0 0.0
    %2481 = vmatpush1.xpose.msra.mxu0 0.0
    %2482 = vmatprep.subr.mxu0 0.0
    %2483 = vmatpush1.xpose.msra.mxu0 0.0
    %2484 = vmatprep.subr.mxu0 0.0
    %2485 = vmatpush1.xpose.msra.mxu0 0.0
    %2486 = vmatprep.subr.mxu0 0.0
    %2487 = vmatpush1.xpose.msra.mxu0 0.0
    %2488 = vmatprep.subr.mxu0 0.0
    %2489 = vmatpush1.xpose.msra.mxu0 0.0
    %2490 = vmatprep.subr.mxu0 0.0
    %2491 = vmatpush1.xpose.msra.mxu0 0.0
    %2492 = vmatprep.subr.mxu0 0.0
    %2493 = vmatpush1.xpose.msra.mxu0 0.0
    %2494 = vmatprep.subr.mxu0 0.0
    %2495 = vmatpush1.xpose.msra.mxu0 0.0
    %2496 = vmatprep.subr.mxu0 0.0
    %2497 = vmatpush1.xpose.msra.mxu0 0.0
    %2498 = vmatprep.subr.mxu0 0.0
    %2499 = vmatpush1.xpose.msra.mxu0 0.0
    %2500 = vmatprep.subr.mxu0 0.0
    %2501 = vmatpush1.xpose.msra.mxu0 0.0
    %2502 = vmatprep.subr.mxu0 0.0
    %2503 = vmatpush1.xpose.msra.mxu0 0.0
    %2504 = vmatprep.subr.mxu0 0.0
    %2505 = vmatpush1.xpose.msra.mxu0 0.0
    %2506 = vmatprep.subr.mxu0 0.0
    %2507 = vmatpush1.xpose.msra.mxu0 0.0
    %2508 = vmatprep.subr.mxu0 0.0
    %2509 = vmatpush1.xpose.msra.mxu0 0.0
    %2510 = vmatprep.subr.mxu0 0.0
    %2511 = vmatpush1.xpose.msra.mxu0 0.0
    %2512 = vmatprep.subr.mxu0 0.0
    %2513 = vmatpush1.xpose.msra.mxu0 0.0
    %2514 = vmatprep.subr.mxu0 0.0
    %2515 = vmatpush1.xpose.msra.mxu0 0.0
    %2516 = vmatprep.subr.mxu0 0.0
    %2517 = vmatpush1.xpose.msra.mxu0 0.0
    %2518 = vmatprep.subr.mxu0 0.0
    %2519 = vmatpush1.xpose.msra.mxu0 0.0
    %2520 = vmatprep.subr.mxu0 0.0
    %2521 = vmatpush1.xpose.msra.mxu0 0.0
    %2522 = vmatprep.subr.mxu0 0.0
    %2523 = vmatpush1.xpose.msra.mxu0 0.0
    %2524 = vmatprep.subr.mxu0 0.0
    %2525 = vmatpush1.xpose.msra.mxu0 0.0
    %2526 = vmatprep.subr.mxu0 0.0
    %2527 = vmatpush1.xpose.msra.mxu0 0.0
    %2528 = vmatprep.subr.mxu0 0.0
    %2529 = vmatpush1.xpose.msra.mxu0 0.0
    %2530 = vmatprep.subr.mxu0 0.0
    %2531 = vmatpush1.xpose.msra.mxu0 0.0
    %2532 = vmatprep.subr.mxu0 0.0
    %2533 = vmatpush1.xpose.msra.mxu0 0.0
    %2534 = vmatprep.subr.mxu0 0.0
    %2535 = vmatpush1.xpose.msra.mxu0 0.0
    %2536 = vmatprep.subr.mxu0 0.0
    %2537 = vmatpush1.xpose.msra.mxu0 0.0
    %2538 = vmatprep.mubr.f32.mxu0 %v2471
    %2539 = vmatmul.mubr.f32.gmra.mrb[0].mxu0 %v2470
    %v2540 = vpop.f32.mrb[0].mxu0
    %v2541 = vadd.f32 0.0, %v2540
    %v2542 = vpop.f32.mrb[0].mxu0
    %2543 = vdwg.mxu0
    %2544 = vmatprep.subr.mxu0 %v2473
    %2545 = vmatpush1.xpose.msra.mxu0 %v2472
    %2546 = vmatprep.subr.mxu0 0.0
    %2547 = vmatpush1.xpose.msra.mxu0 0.0
    %2548 = vmatprep.subr.mxu0 0.0
    %2549 = vmatpush1.xpose.msra.mxu0 0.0
    %2550 = vmatprep.subr.mxu0 0.0
    %2551 = vmatpush1.xpose.msra.mxu0 0.0
    %2552 = vmatprep.subr.mxu0 0.0
    %2553 = vmatpush1.xpose.msra.mxu0 0.0
    %2554 = vmatprep.subr.mxu0 0.0
    %2555 = vmatpush1.xpose.msra.mxu0 0.0
    %2556 = vmatprep.subr.mxu0 0.0
    %2557 = vmatpush1.xpose.msra.mxu0 0.0
    %2558 = vmatprep.subr.mxu0 0.0
    %2559 = vmatpush1.xpose.msra.mxu0 0.0
    %2560 = vmatprep.subr.mxu0 0.0
    %2561 = vmatpush1.xpose.msra.mxu0 0.0
    %2562 = vmatprep.subr.mxu0 0.0
    %2563 = vmatpush1.xpose.msra.mxu0 0.0
    %2564 = vmatprep.subr.mxu0 0.0
    %2565 = vmatpush1.xpose.msra.mxu0 0.0
    %2566 = vmatprep.subr.mxu0 0.0
    %2567 = vmatpush1.xpose.msra.mxu0 0.0
    %2568 = vmatprep.subr.mxu0 0.0
    %2569 = vmatpush1.xpose.msra.mxu0 0.0
    %2570 = vmatprep.subr.mxu0 0.0
    %2571 = vmatpush1.xpose.msra.mxu0 0.0
    %2572 = vmatprep.subr.mxu0 0.0
    %2573 = vmatpush1.xpose.msra.mxu0 0.0
    %2574 = vmatprep.subr.mxu0 0.0
    %2575 = vmatpush1.xpose.msra.mxu0 0.0
    %2576 = vmatprep.subr.mxu0 0.0
    %2577 = vmatpush1.xpose.msra.mxu0 0.0
    %2578 = vmatprep.subr.mxu0 0.0
    %2579 = vmatpush1.xpose.msra.mxu0 0.0
    %2580 = vmatprep.subr.mxu0 0.0
    %2581 = vmatpush1.xpose.msra.mxu0 0.0
    %2582 = vmatprep.subr.mxu0 0.0
    %2583 = vmatpush1.xpose.msra.mxu0 0.0
    %2584 = vmatprep.subr.mxu0 0.0
    %2585 = vmatpush1.xpose.msra.mxu0 0.0
    %2586 = vmatprep.subr.mxu0 0.0
    %2587 = vmatpush1.xpose.msra.mxu0 0.0
    %2588 = vmatprep.subr.mxu0 0.0
    %2589 = vmatpush1.xpose.msra.mxu0 0.0
    %2590 = vmatprep.subr.mxu0 0.0
    %2591 = vmatpush1.xpose.msra.mxu0 0.0
    %2592 = vmatprep.subr.mxu0 0.0
    %2593 = vmatpush1.xpose.msra.mxu0 0.0
    %2594 = vmatprep.subr.mxu0 0.0
    %2595 = vmatpush1.xpose.msra.mxu0 0.0
    %2596 = vmatprep.subr.mxu0 0.0
    %2597 = vmatpush1.xpose.msra.mxu0 0.0
    %2598 = vmatprep.subr.mxu0 0.0
    %2599 = vmatpush1.xpose.msra.mxu0 0.0
    %2600 = vmatprep.subr.mxu0 0.0
    %2601 = vmatpush1.xpose.msra.mxu0 0.0
    %2602 = vmatprep.subr.mxu0 0.0
    %2603 = vmatpush1.xpose.msra.mxu0 0.0
    %2604 = vmatprep.subr.mxu0 0.0
    %2605 = vmatpush1.xpose.msra.mxu0 0.0
    %2606 = vmatprep.subr.mxu0 0.0
    %2607 = vmatpush1.xpose.msra.mxu0 0.0
    %2608 = vmatprep.mubr.f32.mxu0 %v2473
    %2609 = vmatmul.mubr.f32.gmra.mrb[0].mxu0 %v2472
    %v2610 = vpop.f32.mrb[0].mxu0
    %v2611 = vadd.f32 %v2541, %v2610
    %v2612 = vpop.f32.mrb[0].mxu0
    %2613 = vdwg.mxu0
    %vm2614 = vcmp.gt.f32.partialorder %v2611, 0.5
    %v2615 = vsel %vm2614, 1, 0
    %v2616 = vcvt.s32.f32 %v2615
    %vm2617 = vcmask 9216
    %v2618 = vsel %vm2617, %v2616, 0.0
    %2619 = vadd.xlane.f32.xlu0 %v2618
    %v2620 = vpop.xlane.xlu0 %2619
    %v2621 = vmax.f32 %v2620, 1.0
    %v2622 = vrcp.pop %v2621
    %v2623 = vmul.f32 %v2616, %v2622
    %vm2624 = vcmask 15360
    %v2626 = vsel %vm2624, %v2623, 0
    %v2629 = vsel %vm2458, %v2243, 0
    %v2632 = vsel %vm2458, %v2245, 0
    %v2635 = vsel %vm2458, %v2448, 0
    %v2638 = vsel %vm2458, %v2450, 0
    %2640 = vmatprep.subr.mxu0 %v2632
    %2641 = vmatpush1.msra.mxu0 %v2629
    %2642 = vmatprep.subr.mxu0 0.0
    %2643 = vmatpush1.msra.mxu0 0.0
    %2644 = vmatprep.subr.mxu0 0.0
    %2645 = vmatpush1.msra.mxu0 0.0
    %2646 = vmatprep.subr.mxu0 0.0
    %2647 = vmatpush1.msra.mxu0 0.0
    %2648 = vmatprep.subr.mxu0 0.0
    %2649 = vmatpush1.msra.mxu0 0.0
    %2650 = vmatprep.subr.mxu0 0.0
    %2651 = vmatpush1.msra.mxu0 0.0
    %2652 = vmatprep.subr.mxu0 0.0
    %2653 = vmatpush1.msra.mxu0 0.0
    %2654 = vmatprep.subr.mxu0 0.0
    %2655 = vmatpush1.msra.mxu0 0.0
    %2656 = vmatprep.subr.mxu0 0.0
    %2657 = vmatpush1.msra.mxu0 0.0
    %2658 = vmatprep.subr.mxu0 0.0
    %2659 = vmatpush1.msra.mxu0 0.0
    %2660 = vmatprep.subr.mxu0 0.0
    %2661 = vmatpush1.msra.mxu0 0.0
    %2662 = vmatprep.subr.mxu0 0.0
    %2663 = vmatpush1.msra.mxu0 0.0
    %2664 = vmatprep.subr.mxu0 0.0
    %2665 = vmatpush1.msra.mxu0 0.0
    %2666 = vmatprep.subr.mxu0 0.0
    %2667 = vmatpush1.msra.mxu0 0.0
    %2668 = vmatprep.subr.mxu0 0.0
    %2669 = vmatpush1.msra.mxu0 0.0
    %2670 = vmatprep.subr.mxu0 0.0
    %2671 = vmatpush1.msra.mxu0 0.0
    %2672 = vmatprep.subr.mxu0 0.0
    %2673 = vmatpush1.msra.mxu0 0.0
    %2674 = vmatprep.subr.mxu0 0.0
    %2675 = vmatpush1.msra.mxu0 0.0
    %2676 = vmatprep.subr.mxu0 0.0
    %2677 = vmatpush1.msra.mxu0 0.0
    %2678 = vmatprep.subr.mxu0 0.0
    %2679 = vmatpush1.msra.mxu0 0.0
    %2680 = vmatprep.subr.mxu0 0.0
    %2681 = vmatpush1.msra.mxu0 0.0
    %2682 = vmatprep.subr.mxu0 0.0
    %2683 = vmatpush1.msra.mxu0 0.0
    %2684 = vmatprep.subr.mxu0 0.0
    %2685 = vmatpush1.msra.mxu0 0.0
    %2686 = vmatprep.subr.mxu0 0.0
    %2687 = vmatpush1.msra.mxu0 0.0
    %2688 = vmatprep.subr.mxu0 0.0
    %2689 = vmatpush1.msra.mxu0 0.0
    %2690 = vmatprep.subr.mxu0 0.0
    %2691 = vmatpush1.msra.mxu0 0.0
    %2692 = vmatprep.subr.mxu0 0.0
    %2693 = vmatpush1.msra.mxu0 0.0
    %2694 = vmatprep.subr.mxu0 0.0
    %2695 = vmatpush1.msra.mxu0 0.0
    %2696 = vmatprep.subr.mxu0 0.0
    %2697 = vmatpush1.msra.mxu0 0.0
    %2698 = vmatprep.subr.mxu0 0.0
    %2699 = vmatpush1.msra.mxu0 0.0
    %2700 = vmatprep.subr.mxu0 0.0
    %2701 = vmatpush1.msra.mxu0 0.0
    %2702 = vmatprep.subr.mxu0 0.0
    %2703 = vmatpush1.msra.mxu0 0.0
    %2704 = vmatprep.mubr.f32.mxu0 0.0
    %2705 = vmatmul.mubr.f32.gmra.mrb[0].mxu0 %v2626
    %v2706 = vpop.f32.mrb[0].mxu0
    %v2707 = vadd.f32 0.0, %v2706
    %v2708 = vpop.f32.mrb[0].mxu0
    %v2709 = vadd.f32 0.0, %v2708
    %2710 = vdwg.mxu0
    %2711 = vmatprep.subr.mxu0 %v2638
    %2712 = vmatpush1.msra.mxu0 %v2635
    %2713 = vmatprep.subr.mxu0 0.0
    %2714 = vmatpush1.msra.mxu0 0.0
    %2715 = vmatprep.subr.mxu0 0.0
    %2716 = vmatpush1.msra.mxu0 0.0
    %2717 = vmatprep.subr.mxu0 0.0
    %2718 = vmatpush1.msra.mxu0 0.0
    %2719 = vmatprep.subr.mxu0 0.0
    %2720 = vmatpush1.msra.mxu0 0.0
    %2721 = vmatprep.subr.mxu0 0.0
    %2722 = vmatpush1.msra.mxu0 0.0
    %2723 = vmatprep.subr.mxu0 0.0
    %2724 = vmatpush1.msra.mxu0 0.0
    %2725 = vmatprep.subr.mxu0 0.0
    %2726 = vmatpush1.msra.mxu0 0.0
    %2727 = vmatprep.subr.mxu0 0.0
    %2728 = vmatpush1.msra.mxu0 0.0
    %2729 = vmatprep.subr.mxu0 0.0
    %2730 = vmatpush1.msra.mxu0 0.0
    %2731 = vmatprep.subr.mxu0 0.0
    %2732 = vmatpush1.msra.mxu0 0.0
    %2733 = vmatprep.subr.mxu0 0.0
    %2734 = vmatpush1.msra.mxu0 0.0
    %2735 = vmatprep.subr.mxu0 0.0
    %2736 = vmatpush1.msra.mxu0 0.0
    %2737 = vmatprep.subr.mxu0 0.0
    %2738 = vmatpush1.msra.mxu0 0.0
    %2739 = vmatprep.subr.mxu0 0.0
    %2740 = vmatpush1.msra.mxu0 0.0
    %2741 = vmatprep.subr.mxu0 0.0
    %2742 = vmatpush1.msra.mxu0 0.0
    %2743 = vmatprep.subr.mxu0 0.0
    %2744 = vmatpush1.msra.mxu0 0.0
    %2745 = vmatprep.subr.mxu0 0.0
    %2746 = vmatpush1.msra.mxu0 0.0
    %2747 = vmatprep.subr.mxu0 0.0
    %2748 = vmatpush1.msra.mxu0 0.0
    %2749 = vmatprep.subr.mxu0 0.0
    %2750 = vmatpush1.msra.mxu0 0.0
    %2751 = vmatprep.subr.mxu0 0.0
    %2752 = vmatpush1.msra.mxu0 0.0
    %2753 = vmatprep.subr.mxu0 0.0
    %2754 = vmatpush1.msra.mxu0 0.0
    %2755 = vmatprep.subr.mxu0 0.0
    %2756 = vmatpush1.msra.mxu0 0.0
    %2757 = vmatprep.subr.mxu0 0.0
    %2758 = vmatpush1.msra.mxu0 0.0
    %2759 = vmatprep.subr.mxu0 0.0
    %2760 = vmatpush1.msra.mxu0 0.0
    %2761 = vmatprep.subr.mxu0 0.0
    %2762 = vmatpush1.msra.mxu0 0.0
    %2763 = vmatprep.subr.mxu0 0.0
    %2764 = vmatpush1.msra.mxu0 0.0
    %2765 = vmatprep.subr.mxu0 0.0
    %2766 = vmatpush1.msra.mxu0 0.0
    %2767 = vmatprep.subr.mxu0 0.0
    %2768 = vmatpush1.msra.mxu0 0.0
    %2769 = vmatprep.subr.mxu0 0.0
    %2770 = vmatpush1.msra.mxu0 0.0
    %2771 = vmatprep.subr.mxu0 0.0
    %2772 = vmatpush1.msra.mxu0 0.0
    %2773 = vmatprep.subr.mxu0 0.0
    %2774 = vmatpush1.msra.mxu0 0.0
    %2775 = vmatprep.mubr.f32.mxu0 0.0
    %2776 = vmatmul.mubr.f32.gmra.mrb[0].mxu0 %v2626
    %v2777 = vpop.f32.mrb[0].mxu0
    %v2778 = vadd.f32 0.0, %v2777
    %v2779 = vpop.f32.mrb[0].mxu0
    %v2780 = vadd.f32 0.0, %v2779
    %2781 = vdwg.mxu0
    %v2782 = vpack.c.bf16 %v2707, %v2707
    %v2783 = vpack.c.bf16 %v2709, %v2709
    %v2784 = vpack.c.bf16 %v2778, %v2778
    %v2785 = vpack.c.bf16 %v2780, %v2780
    %v2786 = vld [vmem:[%s3] sm:$0xff]
    %v2787 = vld [vmem:[%s3 + $0x8] sm:$0xff]
    %v2788 = vld [vmem:[%s3 + $0x10] sm:$0xff]
    %v2789 = vld [vmem:[%s3 + $0x18] sm:$0xff]
    %v2790 = vld [vmem:[%s3 + $0x20] sm:$0xff]
    %v2791 = vld [vmem:[%s3 + $0x28] sm:$0xff]
    %v2792 = vld [vmem:[%s3 + $0x30] sm:$0xff]
    %v2793 = vld [vmem:[%s3 + $0x38] sm:$0xff]
    %v2794 = vld [vmem:[%s3 + $0x40] sm:$0xff]
    %v2795 = vld [vmem:[%s3 + $0x48] sm:$0xff]
    %v2796 = vld [vmem:[%s3 + $0x50] sm:$0xff]
    %v2797 = vld [vmem:[%s3 + $0x58] sm:$0xff]
    %v2798 = vld [vmem:[%s3 + $0x60] sm:$0xff]
    %v2799 = vld [vmem:[%s3 + $0x68] sm:$0xff]
    %v2800 = vld [vmem:[%s3 + $0x70] sm:$0xff]
    %v2801 = vld [vmem:[%s3 + $0x78] sm:$0xff]
    %v2802 = vld [vmem:[%s3 + $0x80] sm:$0xff]
    %v2803 = vld [vmem:[%s3 + $0x88] sm:$0xff]
    %v2804 = vld [vmem:[%s3 + $0x90] sm:$0xff]
    %v2805 = vld [vmem:[%s3 + $0x98] sm:$0xff]
    %v2806 = vld [vmem:[%s3 + $0xa0] sm:$0xff]
    %v2807 = vld [vmem:[%s3 + $0xa8] sm:$0xff]
    %v2808 = vld [vmem:[%s3 + $0xb0] sm:$0xff]
    %v2809 = vld [vmem:[%s3 + $0xb8] sm:$0xff]
    %v2810 = vld [vmem:[%s3 + $0xc0] sm:$0xff]
    %v2811 = vld [vmem:[%s3 + $0xc8] sm:$0xff]
    %v2812 = vld [vmem:[%s3 + $0xd0] sm:$0xff]
    %v2813 = vld [vmem:[%s3 + $0xd8] sm:$0xff]
    %v2814 = vld [vmem:[%s3 + $0xe0] sm:$0xff]
    %v2815 = vld [vmem:[%s3 + $0xe8] sm:$0xff]
    %v2816 = vld [vmem:[%s3 + $0xf0] sm:$0xff]
    %v2817 = vld [vmem:[%s3 + $0xf8] sm:$0xff]
    %v2818 = vld [vmem:[%s3 + $0x100] sm:$0xff]
    %v2819 = vld [vmem:[%s3 + $0x108] sm:$0xff]
    %v2820 = vld [vmem:[%s3 + $0x110] sm:$0xff]
    %v2821 = vld [vmem:[%s3 + $0x118] sm:$0xff]
    %v2822 = vld [vmem:[%s3 + $0x120] sm:$0xff]
    %v2823 = vld [vmem:[%s3 + $0x128] sm:$0xff]
    %v2824 = vld [vmem:[%s3 + $0x130] sm:$0xff]
    %v2825 = vld [vmem:[%s3 + $0x138] sm:$0xff]
    %v2826 = vld [vmem:[%s3 + $0x140] sm:$0xff]
    %v2827 = vld [vmem:[%s3 + $0x148] sm:$0xff]
    %v2828 = vld [vmem:[%s3 + $0x150] sm:$0xff]
    %v2829 = vld [vmem:[%s3 + $0x158] sm:$0xff]
    %v2830 = vld [vmem:[%s3 + $0x160] sm:$0xff]
    %v2831 = vld [vmem:[%s3 + $0x168] sm:$0xff]
    %v2832 = vld [vmem:[%s3 + $0x170] sm:$0xff]
    %v2833 = vld [vmem:[%s3 + $0x178] sm:$0xff]
    %v2834 = vld [vmem:[%s3 + $0x180] sm:$0xff]
    %v2835 = vld [vmem:[%s3 + $0x188] sm:$0xff]
    %v2836 = vld [vmem:[%s3 + $0x190] sm:$0xff]
    %v2837 = vld [vmem:[%s3 + $0x198] sm:$0xff]
    %v2838 = vld [vmem:[%s3 + $0x1a0] sm:$0xff]
    %v2839 = vld [vmem:[%s3 + $0x1a8] sm:$0xff]
    %v2840 = vld [vmem:[%s3 + $0x1b0] sm:$0xff]
    %v2841 = vld [vmem:[%s3 + $0x1b8] sm:$0xff]
    %v2842 = vld [vmem:[%s3 + $0x1c0] sm:$0xff]
    %v2843 = vld [vmem:[%s3 + $0x1c8] sm:$0xff]
    %v2844 = vld [vmem:[%s3 + $0x1d0] sm:$0xff]
    %v2845 = vld [vmem:[%s3 + $0x1d8] sm:$0xff]
    %v2846 = vld [vmem:[%s3 + $0x1e0] sm:$0xff]
    %v2847 = vld [vmem:[%s3 + $0x1e8] sm:$0xff]
    %v2848 = vld [vmem:[%s3 + $0x1f0] sm:$0xff]
    %v2849 = vld [vmem:[%s3 + $0x1f8] sm:$0xff]
    %v2850 = vld [vmem:[%s3 + $0x200] sm:$0xff]
    %v2851 = vld [vmem:[%s3 + $0x208] sm:$0xff]
    %v2852 = vld [vmem:[%s3 + $0x210] sm:$0xff]
    %v2853 = vld [vmem:[%s3 + $0x218] sm:$0xff]
    %v2854 = vld [vmem:[%s3 + $0x220] sm:$0xff]
    %v2855 = vld [vmem:[%s3 + $0x228] sm:$0xff]
    %v2856 = vld [vmem:[%s3 + $0x230] sm:$0xff]
    %v2857 = vld [vmem:[%s3 + $0x238] sm:$0xff]
    %v2858 = vld [vmem:[%s3 + $0x240] sm:$0xff]
    %v2859 = vld [vmem:[%s3 + $0x248] sm:$0xff]
    %v2860 = vld [vmem:[%s3 + $0x250] sm:$0xff]
    %v2861 = vld [vmem:[%s3 + $0x258] sm:$0xff]
    %v2862 = vld [vmem:[%s3 + $0x260] sm:$0xff]
    %v2863 = vld [vmem:[%s3 + $0x268] sm:$0xff]
    %v2864 = vld [vmem:[%s3 + $0x270] sm:$0xff]
    %v2865 = vld [vmem:[%s3 + $0x278] sm:$0xff]
    %v2866 = vld [vmem:[%s3 + $0x280] sm:$0xff]
    %v2867 = vld [vmem:[%s3 + $0x288] sm:$0xff]
    %v2868 = vld [vmem:[%s3 + $0x290] sm:$0xff]
    %v2869 = vld [vmem:[%s3 + $0x298] sm:$0xff]
    %v2870 = vld [vmem:[%s3 + $0x2a0] sm:$0xff]
    %v2871 = vld [vmem:[%s3 + $0x2a8] sm:$0xff]
    %v2872 = vld [vmem:[%s3 + $0x2b0] sm:$0xff]
    %v2873 = vld [vmem:[%s3 + $0x2b8] sm:$0xff]
    %v2874 = vld [vmem:[%s3 + $0x2c0] sm:$0xff]
    %v2875 = vld [vmem:[%s3 + $0x2c8] sm:$0xff]
    %v2876 = vld [vmem:[%s3 + $0x2d0] sm:$0xff]
    %v2877 = vld [vmem:[%s3 + $0x2d8] sm:$0xff]
    %v2878 = vld [vmem:[%s3 + $0x2e0] sm:$0xff]
    %v2879 = vld [vmem:[%s3 + $0x2e8] sm:$0xff]
    %v2880 = vld [vmem:[%s3 + $0x2f0] sm:$0xff]
    %v2881 = vld [vmem:[%s3 + $0x2f8] sm:$0xff]
    %v2882 = vld [vmem:[%s3 + $0x300] sm:$0xff]
    %v2883 = vld [vmem:[%s3 + $0x308] sm:$0xff]
    %v2884 = vld [vmem:[%s3 + $0x310] sm:$0xff]
    %v2885 = vld [vmem:[%s3 + $0x318] sm:$0xff]
    %v2886 = vld [vmem:[%s3 + $0x320] sm:$0xff]
    %v2887 = vld [vmem:[%s3 + $0x328] sm:$0xff]
    %v2888 = vld [vmem:[%s3 + $0x330] sm:$0xff]
    %v2889 = vld [vmem:[%s3 + $0x338] sm:$0xff]
    %v2890 = vld [vmem:[%s3 + $0x340] sm:$0xff]
    %v2891 = vld [vmem:[%s3 + $0x348] sm:$0xff]
    %v2892 = vld [vmem:[%s3 + $0x350] sm:$0xff]
    %v2893 = vld [vmem:[%s3 + $0x358] sm:$0xff]
    %v2894 = vld [vmem:[%s3 + $0x360] sm:$0xff]
    %v2895 = vld [vmem:[%s3 + $0x368] sm:$0xff]
    %v2896 = vld [vmem:[%s3 + $0x370] sm:$0xff]
    %v2897 = vld [vmem:[%s3 + $0x378] sm:$0xff]
    %v2898 = vld [vmem:[%s3 + $0x380] sm:$0xff]
    %v2899 = vld [vmem:[%s3 + $0x388] sm:$0xff]
    %v2900 = vld [vmem:[%s3 + $0x390] sm:$0xff]
    %v2901 = vld [vmem:[%s3 + $0x398] sm:$0xff]
    %v2902 = vld [vmem:[%s3 + $0x3a0] sm:$0xff]
    %v2903 = vld [vmem:[%s3 + $0x3a8] sm:$0xff]
    %v2904 = vld [vmem:[%s3 + $0x3b0] sm:$0xff]
    %v2905 = vld [vmem:[%s3 + $0x3b8] sm:$0xff]
    %v2906 = vld [vmem:[%s3 + $0x3c0] sm:$0xff]
    %v2907 = vld [vmem:[%s3 + $0x3c8] sm:$0xff]
    %v2908 = vld [vmem:[%s3 + $0x3d0] sm:$0xff]
    %v2909 = vld [vmem:[%s3 + $0x3d8] sm:$0xff]
    %v2910 = vld [vmem:[%s3 + $0x3e0] sm:$0xff]
    %v2911 = vld [vmem:[%s3 + $0x3e8] sm:$0xff]
    %v2912 = vld [vmem:[%s3 + $0x3f0] sm:$0xff]
    %v2913 = vld [vmem:[%s3 + $0x3f8] sm:$0xff]
    %v2914 = vld [vmem:[%s4] sm:$0xf]
    %v2916 = vlaneseq
    %v2917 = vshrl.u32 %v2916, 7
    %v2918 = vsub.s32 0, %v2917
    %v2919 = vrot.slane %v2914, %v2918
    %v2920 = vlaneseq
    %v2921 = vshrl.u32 %v2920, 7
    %v2922 = vsub.s32 1, %v2921
    %v2923 = vrot.slane %v2914, %v2922
    %v2924 = vlaneseq
    %v2925 = vshrl.u32 %v2924, 7
    %v2926 = vsub.s32 2, %v2925
    %v2927 = vrot.slane %v2914, %v2926
    %v2928 = vlaneseq
    %v2929 = vshrl.u32 %v2928, 7
    %v2930 = vsub.s32 3, %v2929
    %v2931 = vrot.slane %v2914, %v2930
    %v3064 = vunpack.c.l.b16 %v2786
    %v3065 = vunpack.c.h.b16 %v2786
    %v3066 = vunpack.c.l.b16 %v2787
    %v3067 = vunpack.c.h.b16 %v2787
    %v3068 = vunpack.c.l.b16 %v2788
    %v3069 = vunpack.c.h.b16 %v2788
    %v3070 = vunpack.c.l.b16 %v2789
    %v3071 = vunpack.c.h.b16 %v2789
    %v3072 = vunpack.c.l.b16 %v2790
    %v3073 = vunpack.c.h.b16 %v2790
    %v3074 = vunpack.c.l.b16 %v2791
    %v3075 = vunpack.c.h.b16 %v2791
    %v3076 = vunpack.c.l.b16 %v2792
    %v3077 = vunpack.c.h.b16 %v2792
    %v3078 = vunpack.c.l.b16 %v2793
    %v3079 = vunpack.c.h.b16 %v2793
    %v3080 = vunpack.c.l.b16 %v2794
    %v3081 = vunpack.c.h.b16 %v2794
    %v3082 = vunpack.c.l.b16 %v2795
    %v3083 = vunpack.c.h.b16 %v2795
    %v3084 = vunpack.c.l.b16 %v2796
    %v3085 = vunpack.c.h.b16 %v2796
    %v3086 = vunpack.c.l.b16 %v2797
    %v3087 = vunpack.c.h.b16 %v2797
    %v3088 = vunpack.c.l.b16 %v2798
    %v3089 = vunpack.c.h.b16 %v2798
    %v3090 = vunpack.c.l.b16 %v2799
    %v3091 = vunpack.c.h.b16 %v2799
    %v3092 = vunpack.c.l.b16 %v2800
    %v3093 = vunpack.c.h.b16 %v2800
    %v3094 = vunpack.c.l.b16 %v2801
    %v3095 = vunpack.c.h.b16 %v2801
    %v3096 = vunpack.c.l.b16 %v2802
    %v3097 = vunpack.c.h.b16 %v2802
    %v3098 = vunpack.c.l.b16 %v2803
    %v3099 = vunpack.c.h.b16 %v2803
    %v3100 = vunpack.c.l.b16 %v2804
    %v3101 = vunpack.c.h.b16 %v2804
    %v3102 = vunpack.c.l.b16 %v2805
    %v3103 = vunpack.c.h.b16 %v2805
    %v3104 = vunpack.c.l.b16 %v2806
    %v3105 = vunpack.c.h.b16 %v2806
    %v3106 = vunpack.c.l.b16 %v2807
    %v3107 = vunpack.c.h.b16 %v2807
    %v3108 = vunpack.c.l.b16 %v2808
    %v3109 = vunpack.c.h.b16 %v2808
    %v3110 = vunpack.c.l.b16 %v2809
    %v3111 = vunpack.c.h.b16 %v2809
    %v3112 = vunpack.c.l.b16 %v2810
    %v3113 = vunpack.c.h.b16 %v2810
    %v3114 = vunpack.c.l.b16 %v2811
    %v3115 = vunpack.c.h.b16 %v2811
    %v3116 = vunpack.c.l.b16 %v2812
    %v3117 = vunpack.c.h.b16 %v2812
    %v3118 = vunpack.c.l.b16 %v2813
    %v3119 = vunpack.c.h.b16 %v2813
    %v3120 = vunpack.c.l.b16 %v2814
    %v3121 = vunpack.c.h.b16 %v2814
    %v3122 = vunpack.c.l.b16 %v2815
    %v3123 = vunpack.c.h.b16 %v2815
    %v3124 = vunpack.c.l.b16 %v2816
    %v3125 = vunpack.c.h.b16 %v2816
    %v3126 = vunpack.c.l.b16 %v2817
    %v3127 = vunpack.c.h.b16 %v2817
    %v3128 = vunpack.c.l.b16 %v2818
    %v3129 = vunpack.c.h.b16 %v2818
    %v3130 = vunpack.c.l.b16 %v2819
    %v3131 = vunpack.c.h.b16 %v2819
    %v3132 = vunpack.c.l.b16 %v2820
    %v3133 = vunpack.c.h.b16 %v2820
    %v3134 = vunpack.c.l.b16 %v2821
    %v3135 = vunpack.c.h.b16 %v2821
    %v3136 = vunpack.c.l.b16 %v2822
    %v3137 = vunpack.c.h.b16 %v2822
    %v3138 = vunpack.c.l.b16 %v2823
    %v3139 = vunpack.c.h.b16 %v2823
    %v3140 = vunpack.c.l.b16 %v2824
    %v3141 = vunpack.c.h.b16 %v2824
    %v3142 = vunpack.c.l.b16 %v2825
    %v3143 = vunpack.c.h.b16 %v2825
    %v3144 = vunpack.c.l.b16 %v2826
    %v3145 = vunpack.c.h.b16 %v2826
    %v3146 = vunpack.c.l.b16 %v2827
    %v3147 = vunpack.c.h.b16 %v2827
    %v3148 = vunpack.c.l.b16 %v2828
    %v3149 = vunpack.c.h.b16 %v2828
    %v3150 = vunpack.c.l.b16 %v2829
    %v3151 = vunpack.c.h.b16 %v2829
    %v3152 = vunpack.c.l.b16 %v2830
    %v3153 = vunpack.c.h.b16 %v2830
    %v3154 = vunpack.c.l.b16 %v2831
    %v3155 = vunpack.c.h.b16 %v2831
    %v3156 = vunpack.c.l.b16 %v2832
    %v3157 = vunpack.c.h.b16 %v2832
    %v3158 = vunpack.c.l.b16 %v2833
    %v3159 = vunpack.c.h.b16 %v2833
    %v3160 = vunpack.c.l.b16 %v2834
    %v3161 = vunpack.c.h.b16 %v2834
    %v3162 = vunpack.c.l.b16 %v2835
    %v3163 = vunpack.c.h.b16 %v2835
    %v3164 = vunpack.c.l.b16 %v2836
    %v3165 = vunpack.c.h.b16 %v2836
    %v3166 = vunpack.c.l.b16 %v2837
    %v3167 = vunpack.c.h.b16 %v2837
    %v3168 = vunpack.c.l.b16 %v2838
    %v3169 = vunpack.c.h.b16 %v2838
    %v3170 = vunpack.c.l.b16 %v2839
    %v3171 = vunpack.c.h.b16 %v2839
    %v3172 = vunpack.c.l.b16 %v2840
    %v3173 = vunpack.c.h.b16 %v2840
    %v3174 = vunpack.c.l.b16 %v2841
    %v3175 = vunpack.c.h.b16 %v2841
    %v3176 = vunpack.c.l.b16 %v2842
    %v3177 = vunpack.c.h.b16 %v2842
    %v3178 = vunpack.c.l.b16 %v2843
    %v3179 = vunpack.c.h.b16 %v2843
    %v3180 = vunpack.c.l.b16 %v2844
    %v3181 = vunpack.c.h.b16 %v2844
    %v3182 = vunpack.c.l.b16 %v2845
    %v3183 = vunpack.c.h.b16 %v2845
    %v3184 = vunpack.c.l.b16 %v2846
    %v3185 = vunpack.c.h.b16 %v2846
    %v3186 = vunpack.c.l.b16 %v2847
    %v3187 = vunpack.c.h.b16 %v2847
    %v3188 = vunpack.c.l.b16 %v2848
    %v3189 = vunpack.c.h.b16 %v2848
    %v3190 = vunpack.c.l.b16 %v2849
    %v3191 = vunpack.c.h.b16 %v2849
    %v3192 = vunpack.c.l.b16 %v2850
    %v3193 = vunpack.c.h.b16 %v2850
    %v3194 = vunpack.c.l.b16 %v2851
    %v3195 = vunpack.c.h.b16 %v2851
    %v3196 = vunpack.c.l.b16 %v2852
    %v3197 = vunpack.c.h.b16 %v2852
    %v3198 = vunpack.c.l.b16 %v2853
    %v3199 = vunpack.c.h.b16 %v2853
    %v3200 = vunpack.c.l.b16 %v2854
    %v3201 = vunpack.c.h.b16 %v2854
    %v3202 = vunpack.c.l.b16 %v2855
    %v3203 = vunpack.c.h.b16 %v2855
    %v3204 = vunpack.c.l.b16 %v2856
    %v3205 = vunpack.c.h.b16 %v2856
    %v3206 = vunpack.c.l.b16 %v2857
    %v3207 = vunpack.c.h.b16 %v2857
    %v3208 = vunpack.c.l.b16 %v2858
    %v3209 = vunpack.c.h.b16 %v2858
    %v3210 = vunpack.c.l.b16 %v2859
    %v3211 = vunpack.c.h.b16 %v2859
    %v3212 = vunpack.c.l.b16 %v2860
    %v3213 = vunpack.c.h.b16 %v2860
    %v3214 = vunpack.c.l.b16 %v2861
    %v3215 = vunpack.c.h.b16 %v2861
    %v3216 = vunpack.c.l.b16 %v2862
    %v3217 = vunpack.c.h.b16 %v2862
    %v3218 = vunpack.c.l.b16 %v2863
    %v3219 = vunpack.c.h.b16 %v2863
    %v3220 = vunpack.c.l.b16 %v2864
    %v3221 = vunpack.c.h.b16 %v2864
    %v3222 = vunpack.c.l.b16 %v2865
    %v3223 = vunpack.c.h.b16 %v2865
    %v3224 = vunpack.c.l.b16 %v2866
    %v3225 = vunpack.c.h.b16 %v2866
    %v3226 = vunpack.c.l.b16 %v2867
    %v3227 = vunpack.c.h.b16 %v2867
    %v3228 = vunpack.c.l.b16 %v2868
    %v3229 = vunpack.c.h.b16 %v2868
    %v3230 = vunpack.c.l.b16 %v2869
    %v3231 = vunpack.c.h.b16 %v2869
    %v3232 = vunpack.c.l.b16 %v2870
    %v3233 = vunpack.c.h.b16 %v2870
    %v3234 = vunpack.c.l.b16 %v2871
    %v3235 = vunpack.c.h.b16 %v2871
    %v3236 = vunpack.c.l.b16 %v2872
    %v3237 = vunpack.c.h.b16 %v2872
    %v3238 = vunpack.c.l.b16 %v2873
    %v3239 = vunpack.c.h.b16 %v2873
    %v3240 = vunpack.c.l.b16 %v2874
    %v3241 = vunpack.c.h.b16 %v2874
    %v3242 = vunpack.c.l.b16 %v2875
    %v3243 = vunpack.c.h.b16 %v2875
    %v3244 = vunpack.c.l.b16 %v2876
    %v3245 = vunpack.c.h.b16 %v2876
    %v3246 = vunpack.c.l.b16 %v2877
    %v3247 = vunpack.c.h.b16 %v2877
    %v3248 = vunpack.c.l.b16 %v2878
    %v3249 = vunpack.c.h.b16 %v2878
    %v3250 = vunpack.c.l.b16 %v2879
    %v3251 = vunpack.c.h.b16 %v2879
    %v3252 = vunpack.c.l.b16 %v2880
    %v3253 = vunpack.c.h.b16 %v2880
    %v3254 = vunpack.c.l.b16 %v2881
    %v3255 = vunpack.c.h.b16 %v2881
    %v3256 = vunpack.c.l.b16 %v2882
    %v3257 = vunpack.c.h.b16 %v2882
    %v3258 = vunpack.c.l.b16 %v2883
    %v3259 = vunpack.c.h.b16 %v2883
    %v3260 = vunpack.c.l.b16 %v2884
    %v3261 = vunpack.c.h.b16 %v2884
    %v3262 = vunpack.c.l.b16 %v2885
    %v3263 = vunpack.c.h.b16 %v2885
    %v3264 = vunpack.c.l.b16 %v2886
    %v3265 = vunpack.c.h.b16 %v2886
    %v3266 = vunpack.c.l.b16 %v2887
    %v3267 = vunpack.c.h.b16 %v2887
    %v3268 = vunpack.c.l.b16 %v2888
    %v3269 = vunpack.c.h.b16 %v2888
    %v3270 = vunpack.c.l.b16 %v2889
    %v3271 = vunpack.c.h.b16 %v2889
    %v3272 = vunpack.c.l.b16 %v2890
    %v3273 = vunpack.c.h.b16 %v2890
    %v3274 = vunpack.c.l.b16 %v2891
    %v3275 = vunpack.c.h.b16 %v2891
    %v3276 = vunpack.c.l.b16 %v2892
    %v3277 = vunpack.c.h.b16 %v2892
    %v3278 = vunpack.c.l.b16 %v2893
    %v3279 = vunpack.c.h.b16 %v2893
    %v3280 = vunpack.c.l.b16 %v2894
    %v3281 = vunpack.c.h.b16 %v2894
    %v3282 = vunpack.c.l.b16 %v2895
    %v3283 = vunpack.c.h.b16 %v2895
    %v3284 = vunpack.c.l.b16 %v2896
    %v3285 = vunpack.c.h.b16 %v2896
    %v3286 = vunpack.c.l.b16 %v2897
    %v3287 = vunpack.c.h.b16 %v2897
    %v3288 = vunpack.c.l.b16 %v2898
    %v3289 = vunpack.c.h.b16 %v2898
    %v3290 = vunpack.c.l.b16 %v2899
    %v3291 = vunpack.c.h.b16 %v2899
    %v3292 = vunpack.c.l.b16 %v2900
    %v3293 = vunpack.c.h.b16 %v2900
    %v3294 = vunpack.c.l.b16 %v2901
    %v3295 = vunpack.c.h.b16 %v2901
    %v3296 = vunpack.c.l.b16 %v2902
    %v3297 = vunpack.c.h.b16 %v2902
    %v3298 = vunpack.c.l.b16 %v2903
    %v3299 = vunpack.c.h.b16 %v2903
    %v3300 = vunpack.c.l.b16 %v2904
    %v3301 = vunpack.c.h.b16 %v2904
    %v3302 = vunpack.c.l.b16 %v2905
    %v3303 = vunpack.c.h.b16 %v2905
    %v3304 = vunpack.c.l.b16 %v2906
    %v3305 = vunpack.c.h.b16 %v2906
    %v3306 = vunpack.c.l.b16 %v2907
    %v3307 = vunpack.c.h.b16 %v2907
    %v3308 = vunpack.c.l.b16 %v2908
    %v3309 = vunpack.c.h.b16 %v2908
    %v3310 = vunpack.c.l.b16 %v2909
    %v3311 = vunpack.c.h.b16 %v2909
    %v3312 = vunpack.c.l.b16 %v2910
    %v3313 = vunpack.c.h.b16 %v2910
    %v3314 = vunpack.c.l.b16 %v2911
    %v3315 = vunpack.c.h.b16 %v2911
    %v3316 = vunpack.c.l.b16 %v2912
    %v3317 = vunpack.c.h.b16 %v2912
    %v3318 = vunpack.c.l.b16 %v2913
    %v3319 = vunpack.c.h.b16 %v2913
    %v3320 = vpack.c.b16 %v3068, %v3064
    %v3321 = vpack.c.b16 %v3069, %v3065
    %v3322 = vpack.c.b16 %v3070, %v3066
    %v3323 = vpack.c.b16 %v3071, %v3067
    %v3324 = vpack.c.b16 %v3076, %v3072
    %v3325 = vpack.c.b16 %v3077, %v3073
    %v3326 = vpack.c.b16 %v3078, %v3074
    %v3327 = vpack.c.b16 %v3079, %v3075
    %v3328 = vpack.c.b16 %v3084, %v3080
    %v3329 = vpack.c.b16 %v3085, %v3081
    %v3330 = vpack.c.b16 %v3086, %v3082
    %v3331 = vpack.c.b16 %v3087, %v3083
    %v3332 = vpack.c.b16 %v3092, %v3088
    %v3333 = vpack.c.b16 %v3093, %v3089
    %v3334 = vpack.c.b16 %v3094, %v3090
    %v3335 = vpack.c.b16 %v3095, %v3091
    %v3336 = vpack.c.b16 %v3100, %v3096
    %v3337 = vpack.c.b16 %v3101, %v3097
    %v3338 = vpack.c.b16 %v3102, %v3098
    %v3339 = vpack.c.b16 %v3103, %v3099
    %v3340 = vpack.c.b16 %v3108, %v3104
    %v3341 = vpack.c.b16 %v3109, %v3105
    %v3342 = vpack.c.b16 %v3110, %v3106
    %v3343 = vpack.c.b16 %v3111, %v3107
    %v3344 = vpack.c.b16 %v3116, %v3112
    %v3345 = vpack.c.b16 %v3117, %v3113
    %v3346 = vpack.c.b16 %v3118, %v3114
    %v3347 = vpack.c.b16 %v3119, %v3115
    %v3348 = vpack.c.b16 %v3124, %v3120
    %v3349 = vpack.c.b16 %v3125, %v3121
    %v3350 = vpack.c.b16 %v3126, %v3122
    %v3351 = vpack.c.b16 %v3127, %v3123
    %v3352 = vpack.c.b16 %v3132, %v3128
    %v3353 = vpack.c.b16 %v3133, %v3129
    %v3354 = vpack.c.b16 %v3134, %v3130
    %v3355 = vpack.c.b16 %v3135, %v3131
    %v3356 = vpack.c.b16 %v3140, %v3136
    %v3357 = vpack.c.b16 %v3141, %v3137
    %v3358 = vpack.c.b16 %v3142, %v3138
    %v3359 = vpack.c.b16 %v3143, %v3139
    %v3360 = vpack.c.b16 %v3148, %v3144
    %v3361 = vpack.c.b16 %v3149, %v3145
    %v3362 = vpack.c.b16 %v3150, %v3146
    %v3363 = vpack.c.b16 %v3151, %v3147
    %v3364 = vpack.c.b16 %v3156, %v3152
    %v3365 = vpack.c.b16 %v3157, %v3153
    %v3366 = vpack.c.b16 %v3158, %v3154
    %v3367 = vpack.c.b16 %v3159, %v3155
    %v3368 = vpack.c.b16 %v3164, %v3160
    %v3369 = vpack.c.b16 %v3165, %v3161
    %v3370 = vpack.c.b16 %v3166, %v3162
    %v3371 = vpack.c.b16 %v3167, %v3163
    %v3372 = vpack.c.b16 %v3172, %v3168
    %v3373 = vpack.c.b16 %v3173, %v3169
    %v3374 = vpack.c.b16 %v3174, %v3170
    %v3375 = vpack.c.b16 %v3175, %v3171
    %v3376 = vpack.c.b16 %v3180, %v3176
    %v3377 = vpack.c.b16 %v3181, %v3177
    %v3378 = vpack.c.b16 %v3182, %v3178
    %v3379 = vpack.c.b16 %v3183, %v3179
    %v3380 = vpack.c.b16 %v3188, %v3184
    %v3381 = vpack.c.b16 %v3189, %v3185
    %v3382 = vpack.c.b16 %v3190, %v3186
    %v3383 = vpack.c.b16 %v3191, %v3187
    %v3384 = vpack.c.b16 %v3196, %v3192
    %v3385 = vpack.c.b16 %v3197, %v3193
    %v3386 = vpack.c.b16 %v3198, %v3194
    %v3387 = vpack.c.b16 %v3199, %v3195
    %v3388 = vpack.c.b16 %v3204, %v3200
    %v3389 = vpack.c.b16 %v3205, %v3201
    %v3390 = vpack.c.b16 %v3206, %v3202
    %v3391 = vpack.c.b16 %v3207, %v3203
    %v3392 = vpack.c.b16 %v3212, %v3208
    %v3393 = vpack.c.b16 %v3213, %v3209
    %v3394 = vpack.c.b16 %v3214, %v3210
    %v3395 = vpack.c.b16 %v3215, %v3211
    %v3396 = vpack.c.b16 %v3220, %v3216
    %v3397 = vpack.c.b16 %v3221, %v3217
    %v3398 = vpack.c.b16 %v3222, %v3218
    %v3399 = vpack.c.b16 %v3223, %v3219
    %v3400 = vpack.c.b16 %v3228, %v3224
    %v3401 = vpack.c.b16 %v3229, %v3225
    %v3402 = vpack.c.b16 %v3230, %v3226
    %v3403 = vpack.c.b16 %v3231, %v3227
    %v3404 = vpack.c.b16 %v3236, %v3232
    %v3405 = vpack.c.b16 %v3237, %v3233
    %v3406 = vpack.c.b16 %v3238, %v3234
    %v3407 = vpack.c.b16 %v3239, %v3235
    %v3408 = vpack.c.b16 %v3244, %v3240
    %v3409 = vpack.c.b16 %v3245, %v3241
    %v3410 = vpack.c.b16 %v3246, %v3242
    %v3411 = vpack.c.b16 %v3247, %v3243
    %v3412 = vpack.c.b16 %v3252, %v3248
    %v3413 = vpack.c.b16 %v3253, %v3249
    %v3414 = vpack.c.b16 %v3254, %v3250
    %v3415 = vpack.c.b16 %v3255, %v3251
    %v3416 = vpack.c.b16 %v3260, %v3256
    %v3417 = vpack.c.b16 %v3261, %v3257
    %v3418 = vpack.c.b16 %v3262, %v3258
    %v3419 = vpack.c.b16 %v3263, %v3259
    %v3420 = vpack.c.b16 %v3268, %v3264
    %v3421 = vpack.c.b16 %v3269, %v3265
    %v3422 = vpack.c.b16 %v3270, %v3266
    %v3423 = vpack.c.b16 %v3271, %v3267
    %v3424 = vpack.c.b16 %v3276, %v3272
    %v3425 = vpack.c.b16 %v3277, %v3273
    %v3426 = vpack.c.b16 %v3278, %v3274
    %v3427 = vpack.c.b16 %v3279, %v3275
    %v3428 = vpack.c.b16 %v3284, %v3280
    %v3429 = vpack.c.b16 %v3285, %v3281
    %v3430 = vpack.c.b16 %v3286, %v3282
    %v3431 = vpack.c.b16 %v3287, %v3283
    %v3432 = vpack.c.b16 %v3292, %v3288
    %v3433 = vpack.c.b16 %v3293, %v3289
    %v3434 = vpack.c.b16 %v3294, %v3290
    %v3435 = vpack.c.b16 %v3295, %v3291
    %v3436 = vpack.c.b16 %v3300, %v3296
    %v3437 = vpack.c.b16 %v3301, %v3297
    %v3438 = vpack.c.b16 %v3302, %v3298
    %v3439 = vpack.c.b16 %v3303, %v3299
    %v3440 = vpack.c.b16 %v3308, %v3304
    %v3441 = vpack.c.b16 %v3309, %v3305
    %v3442 = vpack.c.b16 %v3310, %v3306
    %v3443 = vpack.c.b16 %v3311, %v3307
    %v3444 = vpack.c.b16 %v3316, %v3312
    %v3445 = vpack.c.b16 %v3317, %v3313
    %v3446 = vpack.c.b16 %v3318, %v3314
    %v3447 = vpack.c.b16 %v3319, %v3315
    %3576 = vmatprep.subr.bf16.mxu0 %v3321
    %3577 = vmatpush1.bf16.msra.mxu0 %v3320
    %3578 = vmatprep.subr.bf16.mxu0 %v3325
    %3579 = vmatpush1.bf16.msra.mxu0 %v3324
    %3580 = vmatprep.subr.bf16.mxu0 %v3329
    %3581 = vmatpush1.bf16.msra.mxu0 %v3328
    %3582 = vmatprep.subr.bf16.mxu0 %v3333
    %3583 = vmatpush1.bf16.msra.mxu0 %v3332
    %3584 = vmatprep.subr.bf16.mxu0 %v3337
    %3585 = vmatpush1.bf16.msra.mxu0 %v3336
    %3586 = vmatprep.subr.bf16.mxu0 %v3341
    %3587 = vmatpush1.bf16.msra.mxu0 %v3340
    %3588 = vmatprep.subr.bf16.mxu0 %v3345
    %3589 = vmatpush1.bf16.msra.mxu0 %v3344
    %3590 = vmatprep.subr.bf16.mxu0 %v3349
    %3591 = vmatpush1.bf16.msra.mxu0 %v3348
    %3592 = vmatprep.subr.bf16.mxu0 %v3353
    %3593 = vmatpush1.bf16.msra.mxu0 %v3352
    %3594 = vmatprep.subr.bf16.mxu0 %v3357
    %3595 = vmatpush1.bf16.msra.mxu0 %v3356
    %3596 = vmatprep.subr.bf16.mxu0 %v3361
    %3597 = vmatpush1.bf16.msra.mxu0 %v3360
    %3598 = vmatprep.subr.bf16.mxu0 %v3365
    %3599 = vmatpush1.bf16.msra.mxu0 %v3364
    %3600 = vmatprep.subr.bf16.mxu0 %v3369
    %3601 = vmatpush1.bf16.msra.mxu0 %v3368
    %3602 = vmatprep.subr.bf16.mxu0 %v3373
    %3603 = vmatpush1.bf16.msra.mxu0 %v3372
    %3604 = vmatprep.subr.bf16.mxu0 %v3377
    %3605 = vmatpush1.bf16.msra.mxu0 %v3376
    %3606 = vmatprep.subr.bf16.mxu0 %v3381
    %3607 = vmatpush1.bf16.msra.mxu0 %v3380
    %3608 = vmatprep.mubr.bf16.mxu0 %v2783
    %3609 = vmatmul.mubr.bf16.gmra.mrb[0].mxu0 %v2782
    %v3610 = vpop.f32.mrb[0].mxu0
    %v3611 = vadd.f32 %v2919, %v3610
    %v3612 = vpop.f32.mrb[0].mxu0
    %v3613 = vadd.f32 %v2923, %v3612
    %v3614 = vpop.f32.mrb[0].mxu0
    %v3615 = vpop.f32.mrb[0].mxu0
    %3616 = vdwg.mxu0
    %3617 = vmatprep.subr.bf16.mxu0 %v3385
    %3618 = vmatpush1.bf16.msra.mxu0 %v3384
    %3619 = vmatprep.subr.bf16.mxu0 %v3389
    %3620 = vmatpush1.bf16.msra.mxu0 %v3388
    %3621 = vmatprep.subr.bf16.mxu0 %v3393
    %3622 = vmatpush1.bf16.msra.mxu0 %v3392
    %3623 = vmatprep.subr.bf16.mxu0 %v3397
    %3624 = vmatpush1.bf16.msra.mxu0 %v3396
    %3625 = vmatprep.subr.bf16.mxu0 %v3401
    %3626 = vmatpush1.bf16.msra.mxu0 %v3400
    %3627 = vmatprep.subr.bf16.mxu0 %v3405
    %3628 = vmatpush1.bf16.msra.mxu0 %v3404
    %3629 = vmatprep.subr.bf16.mxu0 %v3409
    %3630 = vmatpush1.bf16.msra.mxu0 %v3408
    %3631 = vmatprep.subr.bf16.mxu0 %v3413
    %3632 = vmatpush1.bf16.msra.mxu0 %v3412
    %3633 = vmatprep.subr.bf16.mxu0 %v3417
    %3634 = vmatpush1.bf16.msra.mxu0 %v3416
    %3635 = vmatprep.subr.bf16.mxu0 %v3421
    %3636 = vmatpush1.bf16.msra.mxu0 %v3420
    %3637 = vmatprep.subr.bf16.mxu0 %v3425
    %3638 = vmatpush1.bf16.msra.mxu0 %v3424
    %3639 = vmatprep.subr.bf16.mxu0 %v3429
    %3640 = vmatpush1.bf16.msra.mxu0 %v3428
    %3641 = vmatprep.subr.bf16.mxu0 %v3433
    %3642 = vmatpush1.bf16.msra.mxu0 %v3432
    %3643 = vmatprep.subr.bf16.mxu0 %v3437
    %3644 = vmatpush1.bf16.msra.mxu0 %v3436
    %3645 = vmatprep.subr.bf16.mxu0 %v3441
    %3646 = vmatpush1.bf16.msra.mxu0 %v3440
    %3647 = vmatprep.subr.bf16.mxu0 %v3445
    %3648 = vmatpush1.bf16.msra.mxu0 %v3444
    %3649 = vmatprep.mubr.bf16.mxu0 %v2785
    %3650 = vmatmul.mubr.bf16.gmra.mrb[0].mxu0 %v2784
    %v3651 = vpop.f32.mrb[0].mxu0
    %v3652 = vadd.f32 %v3611, %v3651
    %v3653 = vpop.f32.mrb[0].mxu0
    %v3654 = vadd.f32 %v3613, %v3653
    %v3655 = vpop.f32.mrb[0].mxu0
    %v3656 = vpop.f32.mrb[0].mxu0
    %3657 = vdwg.mxu0
    %3658 = vmatprep.subr.bf16.mxu0 %v3323
    %3659 = vmatpush1.bf16.msra.mxu0 %v3322
    %3660 = vmatprep.subr.bf16.mxu0 %v3327
    %3661 = vmatpush1.bf16.msra.mxu0 %v3326
    %3662 = vmatprep.subr.bf16.mxu0 %v3331
    %3663 = vmatpush1.bf16.msra.mxu0 %v3330
    %3664 = vmatprep.subr.bf16.mxu0 %v3335
    %3665 = vmatpush1.bf16.msra.mxu0 %v3334
    %3666 = vmatprep.subr.bf16.mxu0 %v3339
    %3667 = vmatpush1.bf16.msra.mxu0 %v3338
    %3668 = vmatprep.subr.bf16.mxu0 %v3343
    %3669 = vmatpush1.bf16.msra.mxu0 %v3342
    %3670 = vmatprep.subr.bf16.mxu0 %v3347
    %3671 = vmatpush1.bf16.msra.mxu0 %v3346
    %3672 = vmatprep.subr.bf16.mxu0 %v3351
    %3673 = vmatpush1.bf16.msra.mxu0 %v3350
    %3674 = vmatprep.subr.bf16.mxu0 %v3355
    %3675 = vmatpush1.bf16.msra.mxu0 %v3354
    %3676 = vmatprep.subr.bf16.mxu0 %v3359
    %3677 = vmatpush1.bf16.msra.mxu0 %v3358
    %3678 = vmatprep.subr.bf16.mxu0 %v3363
    %3679 = vmatpush1.bf16.msra.mxu0 %v3362
    %3680 = vmatprep.subr.bf16.mxu0 %v3367
    %3681 = vmatpush1.bf16.msra.mxu0 %v3366
    %3682 = vmatprep.subr.bf16.mxu0 %v3371
    %3683 = vmatpush1.bf16.msra.mxu0 %v3370
    %3684 = vmatprep.subr.bf16.mxu0 %v3375
    %3685 = vmatpush1.bf16.msra.mxu0 %v3374
    %3686 = vmatprep.subr.bf16.mxu0 %v3379
    %3687 = vmatpush1.bf16.msra.mxu0 %v3378
    %3688 = vmatprep.subr.bf16.mxu0 %v3383
    %3689 = vmatpush1.bf16.msra.mxu0 %v3382
    %3690 = vmatprep.mubr.bf16.mxu0 %v2783
    %3691 = vmatmul.mubr.bf16.gmra.mrb[0].mxu0 %v2782
    %v3692 = vpop.f32.mrb[0].mxu0
    %v3693 = vadd.f32 %v2927, %v3692
    %v3694 = vpop.f32.mrb[0].mxu0
    %v3695 = vadd.f32 %v2931, %v3694
    %v3696 = vpop.f32.mrb[0].mxu0
    %v3697 = vpop.f32.mrb[0].mxu0
    %3698 = vdwg.mxu0
    %3699 = vmatprep.subr.bf16.mxu0 %v3387
    %3700 = vmatpush1.bf16.msra.mxu0 %v3386
    %3701 = vmatprep.subr.bf16.mxu0 %v3391
    %3702 = vmatpush1.bf16.msra.mxu0 %v3390
    %3703 = vmatprep.subr.bf16.mxu0 %v3395
    %3704 = vmatpush1.bf16.msra.mxu0 %v3394
    %3705 = vmatprep.subr.bf16.mxu0 %v3399
    %3706 = vmatpush1.bf16.msra.mxu0 %v3398
    %3707 = vmatprep.subr.bf16.mxu0 %v3403
    %3708 = vmatpush1.bf16.msra.mxu0 %v3402
    %3709 = vmatprep.subr.bf16.mxu0 %v3407
    %3710 = vmatpush1.bf16.msra.mxu0 %v3406
    %3711 = vmatprep.subr.bf16.mxu0 %v3411
    %3712 = vmatpush1.bf16.msra.mxu0 %v3410
    %3713 = vmatprep.subr.bf16.mxu0 %v3415
    %3714 = vmatpush1.bf16.msra.mxu0 %v3414
    %3715 = vmatprep.subr.bf16.mxu0 %v3419
    %3716 = vmatpush1.bf16.msra.mxu0 %v3418
    %3717 = vmatprep.subr.bf16.mxu0 %v3423
    %3718 = vmatpush1.bf16.msra.mxu0 %v3422
    %3719 = vmatprep.subr.bf16.mxu0 %v3427
    %3720 = vmatpush1.bf16.msra.mxu0 %v3426
    %3721 = vmatprep.subr.bf16.mxu0 %v3431
    %3722 = vmatpush1.bf16.msra.mxu0 %v3430
    %3723 = vmatprep.subr.bf16.mxu0 %v3435
    %3724 = vmatpush1.bf16.msra.mxu0 %v3434
    %3725 = vmatprep.subr.bf16.mxu0 %v3439
    %3726 = vmatpush1.bf16.msra.mxu0 %v3438
    %3727 = vmatprep.subr.bf16.mxu0 %v3443
    %3728 = vmatpush1.bf16.msra.mxu0 %v3442
    %3729 = vmatprep.subr.bf16.mxu0 %v3447
    %3730 = vmatpush1.bf16.msra.mxu0 %v3446
    %3731 = vmatprep.mubr.bf16.mxu0 %v2785
    %3732 = vmatmul.mubr.bf16.gmra.mrb[0].mxu0 %v2784
    %v3733 = vpop.f32.mrb[0].mxu0
    %v3734 = vadd.f32 %v3693, %v3733
    %v3735 = vpop.f32.mrb[0].mxu0
    %v3736 = vadd.f32 %v3695, %v3735
    %v3737 = vpop.f32.mrb[0].mxu0
    %v3738 = vpop.f32.mrb[0].mxu0
    %3739 = vdwg.mxu0
    %vm3740 = vcmp.ge.f32.partialorder %v3652, 0.0
    %vm3741 = vcmp.ge.f32.partialorder %v3654, 0.0
    %vm3742 = vcmp.ge.f32.partialorder %v3734, 0.0
    %vm3743 = vcmp.ge.f32.partialorder %v3736, 0.0
    %v3744 = vmul.f32 %v3652, 0.2
    %v3745 = vmul.f32 %v3654, 0.2
    %v3746 = vmul.f32 %v3734, 0.2
    %v3747 = vmul.f32 %v3736, 0.2
    %v3748 = vsel %vm3740, %v3652, %v3744
    %v3749 = vsel %vm3741, %v3654, %v3745
    %v3750 = vsel %vm3742, %v3734, %v3746
    %v3751 = vsel %vm3743, %v3736, %v3747
    %v3752 = vmul.f32 %v3748, %v3748
    %v3753 = vmul.f32 %v3749, %v3749
    %v3754 = vmul.f32 %v3750, %v3750
    %v3755 = vmul.f32 %v3751, %v3751
    %v3756 = vsel %vm2458, %v3752, 0.0
    %v3757 = vsel %vm2458, %v3753, 0.0
    %v3758 = vadd.f32 %v3756, %v3757
    %v3759 = vsel %vm2458, %v3754, 0.0
    %v3760 = vadd.f32 %v3758, %v3759
    %v3761 = vsel %vm2458, %v3755, 0.0
    %v3762 = vadd.f32 %v3760, %v3761
    %3763 = vadd.xlane.f32.xlu0 %v3762
    %v3764 = vpop.xlane.xlu0 %3763
    %v3765 = vmax.f32 %v3764, 1e-24
    %v3766 = vrsqrt.pop %v3765
    %v3767 = vmul.f32 %v3748, %v3766
    %v3768 = vmul.f32 %v3749, %v3766
    %v3769 = vmul.f32 %v3750, %v3766
    %v3770 = vmul.f32 %v3751, %v3766
    %3771 = vmatprep.subr.mxu0 %v3768
    %3772 = vmatpush1.xpose.msra.mxu0 %v3767
    %3773 = vmatprep.subr.mxu0 0.0
    %3774 = vmatpush1.xpose.msra.mxu0 0.0
    %3775 = vmatprep.subr.mxu0 0.0
    %3776 = vmatpush1.xpose.msra.mxu0 0.0
    %3777 = vmatprep.subr.mxu0 0.0
    %3778 = vmatpush1.xpose.msra.mxu0 0.0
    %3779 = vmatprep.subr.mxu0 0.0
    %3780 = vmatpush1.xpose.msra.mxu0 0.0
    %3781 = vmatprep.subr.mxu0 0.0
    %3782 = vmatpush1.xpose.msra.mxu0 0.0
    %3783 = vmatprep.subr.mxu0 0.0
    %3784 = vmatpush1.xpose.msra.mxu0 0.0
    %3785 = vmatprep.subr.mxu0 0.0
    %3786 = vmatpush1.xpose.msra.mxu0 0.0
    %3787 = vmatprep.subr.mxu0 0.0
    %3788 = vmatpush1.xpose.msra.mxu0 0.0
    %3789 = vmatprep.subr.mxu0 0.0
    %3790 = vmatpush1.xpose.msra.mxu0 0.0
    %3791 = vmatprep.subr.mxu0 0.0
    %3792 = vmatpush1.xpose.msra.mxu0 0.0
    %3793 = vmatprep.subr.mxu0 0.0
    %3794 = vmatpush1.xpose.msra.mxu0 0.0
    %3795 = vmatprep.subr.mxu0 0.0
    %3796 = vmatpush1.xpose.msra.mxu0 0.0
    %3797 = vmatprep.subr.mxu0 0.0
    %3798 = vmatpush1.xpose.msra.mxu0 0.0
    %3799 = vmatprep.subr.mxu0 0.0
    %3800 = vmatpush1.xpose.msra.mxu0 0.0
    %3801 = vmatprep.subr.mxu0 0.0
    %3802 = vmatpush1.xpose.msra.mxu0 0.0
    %3803 = vmatprep.subr.mxu0 0.0
    %3804 = vmatpush1.xpose.msra.mxu0 0.0
    %3805 = vmatprep.subr.mxu0 0.0
    %3806 = vmatpush1.xpose.msra.mxu0 0.0
    %3807 = vmatprep.subr.mxu0 0.0
    %3808 = vmatpush1.xpose.msra.mxu0 0.0
    %3809 = vmatprep.subr.mxu0 0.0
    %3810 = vmatpush1.xpose.msra.mxu0 0.0
    %3811 = vmatprep.subr.mxu0 0.0
    %3812 = vmatpush1.xpose.msra.mxu0 0.0
    %3813 = vmatprep.subr.mxu0 0.0
    %3814 = vmatpush1.xpose.msra.mxu0 0.0
    %3815 = vmatprep.subr.mxu0 0.0
    %3816 = vmatpush1.xpose.msra.mxu0 0.0
    %3817 = vmatprep.subr.mxu0 0.0
    %3818 = vmatpush1.xpose.msra.mxu0 0.0
    %3819 = vmatprep.subr.mxu0 0.0
    %3820 = vmatpush1.xpose.msra.mxu0 0.0
    %3821 = vmatprep.subr.mxu0 0.0
    %3822 = vmatpush1.xpose.msra.mxu0 0.0
    %3823 = vmatprep.subr.mxu0 0.0
    %3824 = vmatpush1.xpose.msra.mxu0 0.0
    %3825 = vmatprep.subr.mxu0 0.0
    %3826 = vmatpush1.xpose.msra.mxu0 0.0
    %3827 = vmatprep.subr.mxu0 0.0
    %3828 = vmatpush1.xpose.msra.mxu0 0.0
    %3829 = vmatprep.subr.mxu0 0.0
    %3830 = vmatpush1.xpose.msra.mxu0 0.0
    %3831 = vmatprep.subr.mxu0 0.0
    %3832 = vmatpush1.xpose.msra.mxu0 0.0
    %3833 = vmatprep.subr.mxu0 0.0
    %3834 = vmatpush1.xpose.msra.mxu0 0.0
    %3835 = vmatprep.mubr.f32.mxu0 %v3768
    %3836 = vmatmul.mubr.f32.gmra.mrb[0].mxu0 %v3767
    %v3837 = vpop.f32.mrb[0].mxu0
    %v3838 = vadd.f32 0.0, %v3837
    %v3839 = vpop.f32.mrb[0].mxu0
    %3840 = vdwg.mxu0
    %3841 = vmatprep.subr.mxu0 %v3770
    %3842 = vmatpush1.xpose.msra.mxu0 %v3769
    %3843 = vmatprep.subr.mxu0 0.0
    %3844 = vmatpush1.xpose.msra.mxu0 0.0
    %3845 = vmatprep.subr.mxu0 0.0
    %3846 = vmatpush1.xpose.msra.mxu0 0.0
    %3847 = vmatprep.subr.mxu0 0.0
    %3848 = vmatpush1.xpose.msra.mxu0 0.0
    %3849 = vmatprep.subr.mxu0 0.0
    %3850 = vmatpush1.xpose.msra.mxu0 0.0
    %3851 = vmatprep.subr.mxu0 0.0
    %3852 = vmatpush1.xpose.msra.mxu0 0.0
    %3853 = vmatprep.subr.mxu0 0.0
    %3854 = vmatpush1.xpose.msra.mxu0 0.0
    %3855 = vmatprep.subr.mxu0 0.0
    %3856 = vmatpush1.xpose.msra.mxu0 0.0
    %3857 = vmatprep.subr.mxu0 0.0
    %3858 = vmatpush1.xpose.msra.mxu0 0.0
    %3859 = vmatprep.subr.mxu0 0.0
    %3860 = vmatpush1.xpose.msra.mxu0 0.0
    %3861 = vmatprep.subr.mxu0 0.0
    %3862 = vmatpush1.xpose.msra.mxu0 0.0
    %3863 = vmatprep.subr.mxu0 0.0
    %3864 = vmatpush1.xpose.msra.mxu0 0.0
    %3865 = vmatprep.subr.mxu0 0.0
    %3866 = vmatpush1.xpose.msra.mxu0 0.0
    %3867 = vmatprep.subr.mxu0 0.0
    %3868 = vmatpush1.xpose.msra.mxu0 0.0
    %3869 = vmatprep.subr.mxu0 0.0
    %3870 = vmatpush1.xpose.msra.mxu0 0.0
    %3871 = vmatprep.subr.mxu0 0.0
    %3872 = vmatpush1.xpose.msra.mxu0 0.0
    %3873 = vmatprep.subr.mxu0 0.0
    %3874 = vmatpush1.xpose.msra.mxu0 0.0
    %3875 = vmatprep.subr.mxu0 0.0
    %3876 = vmatpush1.xpose.msra.mxu0 0.0
    %3877 = vmatprep.subr.mxu0 0.0
    %3878 = vmatpush1.xpose.msra.mxu0 0.0
    %3879 = vmatprep.subr.mxu0 0.0
    %3880 = vmatpush1.xpose.msra.mxu0 0.0
    %3881 = vmatprep.subr.mxu0 0.0
    %3882 = vmatpush1.xpose.msra.mxu0 0.0
    %3883 = vmatprep.subr.mxu0 0.0
    %3884 = vmatpush1.xpose.msra.mxu0 0.0
    %3885 = vmatprep.subr.mxu0 0.0
    %3886 = vmatpush1.xpose.msra.mxu0 0.0
    %3887 = vmatprep.subr.mxu0 0.0
    %3888 = vmatpush1.xpose.msra.mxu0 0.0
    %3889 = vmatprep.subr.mxu0 0.0
    %3890 = vmatpush1.xpose.msra.mxu0 0.0
    %3891 = vmatprep.subr.mxu0 0.0
    %3892 = vmatpush1.xpose.msra.mxu0 0.0
    %3893 = vmatprep.subr.mxu0 0.0
    %3894 = vmatpush1.xpose.msra.mxu0 0.0
    %3895 = vmatprep.subr.mxu0 0.0
    %3896 = vmatpush1.xpose.msra.mxu0 0.0
    %3897 = vmatprep.subr.mxu0 0.0
    %3898 = vmatpush1.xpose.msra.mxu0 0.0
    %3899 = vmatprep.subr.mxu0 0.0
    %3900 = vmatpush1.xpose.msra.mxu0 0.0
    %3901 = vmatprep.subr.mxu0 0.0
    %3902 = vmatpush1.xpose.msra.mxu0 0.0
    %3903 = vmatprep.subr.mxu0 0.0
    %3904 = vmatpush1.xpose.msra.mxu0 0.0
    %3905 = vmatprep.mubr.f32.mxu0 %v3770
    %3906 = vmatmul.mubr.f32.gmra.mrb[0].mxu0 %v3769
    %v3907 = vpop.f32.mrb[0].mxu0
    %v3908 = vadd.f32 %v3838, %v3907
    %v3909 = vpop.f32.mrb[0].mxu0
    %3910 = vdwg.mxu0
    %vm3911 = vcmp.gt.f32.partialorder %v3908, 0.5
    %v3912 = vsel %vm3911, 1, 0
    %v3913 = vcvt.s32.f32 %v3912
    %v3914 = vsel %vm2617, %v3913, 0.0
    %3915 = vadd.xlane.f32.xlu0 %v3914
    %v3916 = vpop.xlane.xlu0 %3915
    %v3917 = vmax.f32 %v3916, 1.0
    %v3918 = vrcp.pop %v3917
    %v3919 = vmul.f32 %v3913, %v3918
    %v3921 = vsel %vm2624, %v3919, 0
    %v3924 = vsel %vm2458, %v3748, 0
    %v3927 = vsel %vm2458, %v3749, 0
    %v3930 = vsel %vm2458, %v3750, 0
    %v3933 = vsel %vm2458, %v3751, 0
    %3935 = vmatprep.subr.mxu0 %v3927
    %3936 = vmatpush1.msra.mxu0 %v3924
    %3937 = vmatprep.subr.mxu0 0.0
    %3938 = vmatpush1.msra.mxu0 0.0
    %3939 = vmatprep.subr.mxu0 0.0
    %3940 = vmatpush1.msra.mxu0 0.0
    %3941 = vmatprep.subr.mxu0 0.0
    %3942 = vmatpush1.msra.mxu0 0.0
    %3943 = vmatprep.subr.mxu0 0.0
    %3944 = vmatpush1.msra.mxu0 0.0
    %3945 = vmatprep.subr.mxu0 0.0
    %3946 = vmatpush1.msra.mxu0 0.0
    %3947 = vmatprep.subr.mxu0 0.0
    %3948 = vmatpush1.msra.mxu0 0.0
    %3949 = vmatprep.subr.mxu0 0.0
    %3950 = vmatpush1.msra.mxu0 0.0
    %3951 = vmatprep.subr.mxu0 0.0
    %3952 = vmatpush1.msra.mxu0 0.0
    %3953 = vmatprep.subr.mxu0 0.0
    %3954 = vmatpush1.msra.mxu0 0.0
    %3955 = vmatprep.subr.mxu0 0.0
    %3956 = vmatpush1.msra.mxu0 0.0
    %3957 = vmatprep.subr.mxu0 0.0
    %3958 = vmatpush1.msra.mxu0 0.0
    %3959 = vmatprep.subr.mxu0 0.0
    %3960 = vmatpush1.msra.mxu0 0.0
    %3961 = vmatprep.subr.mxu0 0.0
    %3962 = vmatpush1.msra.mxu0 0.0
    %3963 = vmatprep.subr.mxu0 0.0
    %3964 = vmatpush1.msra.mxu0 0.0
    %3965 = vmatprep.subr.mxu0 0.0
    %3966 = vmatpush1.msra.mxu0 0.0
    %3967 = vmatprep.subr.mxu0 0.0
    %3968 = vmatpush1.msra.mxu0 0.0
    %3969 = vmatprep.subr.mxu0 0.0
    %3970 = vmatpush1.msra.mxu0 0.0
    %3971 = vmatprep.subr.mxu0 0.0
    %3972 = vmatpush1.msra.mxu0 0.0
    %3973 = vmatprep.subr.mxu0 0.0
    %3974 = vmatpush1.msra.mxu0 0.0
    %3975 = vmatprep.subr.mxu0 0.0
    %3976 = vmatpush1.msra.mxu0 0.0
    %3977 = vmatprep.subr.mxu0 0.0
    %3978 = vmatpush1.msra.mxu0 0.0
    %3979 = vmatprep.subr.mxu0 0.0
    %3980 = vmatpush1.msra.mxu0 0.0
    %3981 = vmatprep.subr.mxu0 0.0
    %3982 = vmatpush1.msra.mxu0 0.0
    %3983 = vmatprep.subr.mxu0 0.0
    %3984 = vmatpush1.msra.mxu0 0.0
    %3985 = vmatprep.subr.mxu0 0.0
    %3986 = vmatpush1.msra.mxu0 0.0
    %3987 = vmatprep.subr.mxu0 0.0
    %3988 = vmatpush1.msra.mxu0 0.0
    %3989 = vmatprep.subr.mxu0 0.0
    %3990 = vmatpush1.msra.mxu0 0.0
    %3991 = vmatprep.subr.mxu0 0.0
    %3992 = vmatpush1.msra.mxu0 0.0
    %3993 = vmatprep.subr.mxu0 0.0
    %3994 = vmatpush1.msra.mxu0 0.0
    %3995 = vmatprep.subr.mxu0 0.0
    %3996 = vmatpush1.msra.mxu0 0.0
    %3997 = vmatprep.subr.mxu0 0.0
    %3998 = vmatpush1.msra.mxu0 0.0
    %3999 = vmatprep.mubr.f32.mxu0 0.0
    %4000 = vmatmul.mubr.f32.gmra.mrb[0].mxu0 %v3921
    %v4001 = vpop.f32.mrb[0].mxu0
    %v4002 = vadd.f32 0.0, %v4001
    %v4003 = vpop.f32.mrb[0].mxu0
    %v4004 = vadd.f32 0.0, %v4003
    %4005 = vdwg.mxu0
    %4006 = vmatprep.subr.mxu0 %v3933
    %4007 = vmatpush1.msra.mxu0 %v3930
    %4008 = vmatprep.subr.mxu0 0.0
    %4009 = vmatpush1.msra.mxu0 0.0
    %4010 = vmatprep.subr.mxu0 0.0
    %4011 = vmatpush1.msra.mxu0 0.0
    %4012 = vmatprep.subr.mxu0 0.0
    %4013 = vmatpush1.msra.mxu0 0.0
    %4014 = vmatprep.subr.mxu0 0.0
    %4015 = vmatpush1.msra.mxu0 0.0
    %4016 = vmatprep.subr.mxu0 0.0
    %4017 = vmatpush1.msra.mxu0 0.0
    %4018 = vmatprep.subr.mxu0 0.0
    %4019 = vmatpush1.msra.mxu0 0.0
    %4020 = vmatprep.subr.mxu0 0.0
    %4021 = vmatpush1.msra.mxu0 0.0
    %4022 = vmatprep.subr.mxu0 0.0
    %4023 = vmatpush1.msra.mxu0 0.0
    %4024 = vmatprep.subr.mxu0 0.0
    %4025 = vmatpush1.msra.mxu0 0.0
    %4026 = vmatprep.subr.mxu0 0.0
    %4027 = vmatpush1.msra.mxu0 0.0
    %4028 = vmatprep.subr.mxu0 0.0
    %4029 = vmatpush1.msra.mxu0 0.0
    %4030 = vmatprep.subr.mxu0 0.0
    %4031 = vmatpush1.msra.mxu0 0.0
    %4032 = vmatprep.subr.mxu0 0.0
    %4033 = vmatpush1.msra.mxu0 0.0
    %4034 = vmatprep.subr.mxu0 0.0
    %4035 = vmatpush1.msra.mxu0 0.0
    %4036 = vmatprep.subr.mxu0 0.0
    %4037 = vmatpush1.msra.mxu0 0.0
    %4038 = vmatprep.subr.mxu0 0.0
    %4039 = vmatpush1.msra.mxu0 0.0
    %4040 = vmatprep.subr.mxu0 0.0
    %4041 = vmatpush1.msra.mxu0 0.0
    %4042 = vmatprep.subr.mxu0 0.0
    %4043 = vmatpush1.msra.mxu0 0.0
    %4044 = vmatprep.subr.mxu0 0.0
    %4045 = vmatpush1.msra.mxu0 0.0
    %4046 = vmatprep.subr.mxu0 0.0
    %4047 = vmatpush1.msra.mxu0 0.0
    %4048 = vmatprep.subr.mxu0 0.0
    %4049 = vmatpush1.msra.mxu0 0.0
    %4050 = vmatprep.subr.mxu0 0.0
    %4051 = vmatpush1.msra.mxu0 0.0
    %4052 = vmatprep.subr.mxu0 0.0
    %4053 = vmatpush1.msra.mxu0 0.0
    %4054 = vmatprep.subr.mxu0 0.0
    %4055 = vmatpush1.msra.mxu0 0.0
    %4056 = vmatprep.subr.mxu0 0.0
    %4057 = vmatpush1.msra.mxu0 0.0
    %4058 = vmatprep.subr.mxu0 0.0
    %4059 = vmatpush1.msra.mxu0 0.0
    %4060 = vmatprep.subr.mxu0 0.0
    %4061 = vmatpush1.msra.mxu0 0.0
    %4062 = vmatprep.subr.mxu0 0.0
    %4063 = vmatpush1.msra.mxu0 0.0
    %4064 = vmatprep.subr.mxu0 0.0
    %4065 = vmatpush1.msra.mxu0 0.0
    %4066 = vmatprep.subr.mxu0 0.0
    %4067 = vmatpush1.msra.mxu0 0.0
    %4068 = vmatprep.subr.mxu0 0.0
    %4069 = vmatpush1.msra.mxu0 0.0
    %4070 = vmatprep.mubr.f32.mxu0 0.0
    %4071 = vmatmul.mubr.f32.gmra.mrb[0].mxu0 %v3921
    %v4072 = vpop.f32.mrb[0].mxu0
    %v4073 = vadd.f32 0.0, %v4072
    %v4074 = vpop.f32.mrb[0].mxu0
    %v4075 = vadd.f32 0.0, %v4074
    %4076 = vdwg.mxu0
    %v4077 = vpack.c.bf16 %v4002, %v4002
    %v4078 = vpack.c.bf16 %v4004, %v4004
    %v4079 = vpack.c.bf16 %v4073, %v4073
    %v4080 = vpack.c.bf16 %v4075, %v4075
    %v4081 = vld [vmem:[%s5] sm:$0xff]
    %v4082 = vld [vmem:[%s5 + $0x8] sm:$0xff]
    %v4083 = vld [vmem:[%s5 + $0x10] sm:$0xff]
    %v4084 = vld [vmem:[%s5 + $0x18] sm:$0xff]
    %v4085 = vld [vmem:[%s5 + $0x20] sm:$0xff]
    %v4086 = vld [vmem:[%s5 + $0x28] sm:$0xff]
    %v4087 = vld [vmem:[%s5 + $0x30] sm:$0xff]
    %v4088 = vld [vmem:[%s5 + $0x38] sm:$0xff]
    %v4089 = vld [vmem:[%s5 + $0x40] sm:$0xff]
    %v4090 = vld [vmem:[%s5 + $0x48] sm:$0xff]
    %v4091 = vld [vmem:[%s5 + $0x50] sm:$0xff]
    %v4092 = vld [vmem:[%s5 + $0x58] sm:$0xff]
    %v4093 = vld [vmem:[%s5 + $0x60] sm:$0xff]
    %v4094 = vld [vmem:[%s5 + $0x68] sm:$0xff]
    %v4095 = vld [vmem:[%s5 + $0x70] sm:$0xff]
    %v4096 = vld [vmem:[%s5 + $0x78] sm:$0xff]
    %v4097 = vld [vmem:[%s5 + $0x80] sm:$0xff]
    %v4098 = vld [vmem:[%s5 + $0x88] sm:$0xff]
    %v4099 = vld [vmem:[%s5 + $0x90] sm:$0xff]
    %v4100 = vld [vmem:[%s5 + $0x98] sm:$0xff]
    %v4101 = vld [vmem:[%s5 + $0xa0] sm:$0xff]
    %v4102 = vld [vmem:[%s5 + $0xa8] sm:$0xff]
    %v4103 = vld [vmem:[%s5 + $0xb0] sm:$0xff]
    %v4104 = vld [vmem:[%s5 + $0xb8] sm:$0xff]
    %v4105 = vld [vmem:[%s5 + $0xc0] sm:$0xff]
    %v4106 = vld [vmem:[%s5 + $0xc8] sm:$0xff]
    %v4107 = vld [vmem:[%s5 + $0xd0] sm:$0xff]
    %v4108 = vld [vmem:[%s5 + $0xd8] sm:$0xff]
    %v4109 = vld [vmem:[%s5 + $0xe0] sm:$0xff]
    %v4110 = vld [vmem:[%s5 + $0xe8] sm:$0xff]
    %v4111 = vld [vmem:[%s5 + $0xf0] sm:$0xff]
    %v4112 = vld [vmem:[%s5 + $0xf8] sm:$0xff]
    %v4113 = vld [vmem:[%s5 + $0x100] sm:$0xff]
    %v4114 = vld [vmem:[%s5 + $0x108] sm:$0xff]
    %v4115 = vld [vmem:[%s5 + $0x110] sm:$0xff]
    %v4116 = vld [vmem:[%s5 + $0x118] sm:$0xff]
    %v4117 = vld [vmem:[%s5 + $0x120] sm:$0xff]
    %v4118 = vld [vmem:[%s5 + $0x128] sm:$0xff]
    %v4119 = vld [vmem:[%s5 + $0x130] sm:$0xff]
    %v4120 = vld [vmem:[%s5 + $0x138] sm:$0xff]
    %v4121 = vld [vmem:[%s5 + $0x140] sm:$0xff]
    %v4122 = vld [vmem:[%s5 + $0x148] sm:$0xff]
    %v4123 = vld [vmem:[%s5 + $0x150] sm:$0xff]
    %v4124 = vld [vmem:[%s5 + $0x158] sm:$0xff]
    %v4125 = vld [vmem:[%s5 + $0x160] sm:$0xff]
    %v4126 = vld [vmem:[%s5 + $0x168] sm:$0xff]
    %v4127 = vld [vmem:[%s5 + $0x170] sm:$0xff]
    %v4128 = vld [vmem:[%s5 + $0x178] sm:$0xff]
    %v4129 = vld [vmem:[%s5 + $0x180] sm:$0xff]
    %v4130 = vld [vmem:[%s5 + $0x188] sm:$0xff]
    %v4131 = vld [vmem:[%s5 + $0x190] sm:$0xff]
    %v4132 = vld [vmem:[%s5 + $0x198] sm:$0xff]
    %v4133 = vld [vmem:[%s5 + $0x1a0] sm:$0xff]
    %v4134 = vld [vmem:[%s5 + $0x1a8] sm:$0xff]
    %v4135 = vld [vmem:[%s5 + $0x1b0] sm:$0xff]
    %v4136 = vld [vmem:[%s5 + $0x1b8] sm:$0xff]
    %v4137 = vld [vmem:[%s5 + $0x1c0] sm:$0xff]
    %v4138 = vld [vmem:[%s5 + $0x1c8] sm:$0xff]
    %v4139 = vld [vmem:[%s5 + $0x1d0] sm:$0xff]
    %v4140 = vld [vmem:[%s5 + $0x1d8] sm:$0xff]
    %v4141 = vld [vmem:[%s5 + $0x1e0] sm:$0xff]
    %v4142 = vld [vmem:[%s5 + $0x1e8] sm:$0xff]
    %v4143 = vld [vmem:[%s5 + $0x1f0] sm:$0xff]
    %v4144 = vld [vmem:[%s5 + $0x1f8] sm:$0xff]
    %v4145 = vld [vmem:[%s5 + $0x200] sm:$0xff]
    %v4146 = vld [vmem:[%s5 + $0x208] sm:$0xff]
    %v4147 = vld [vmem:[%s5 + $0x210] sm:$0xff]
    %v4148 = vld [vmem:[%s5 + $0x218] sm:$0xff]
    %v4149 = vld [vmem:[%s5 + $0x220] sm:$0xff]
    %v4150 = vld [vmem:[%s5 + $0x228] sm:$0xff]
    %v4151 = vld [vmem:[%s5 + $0x230] sm:$0xff]
    %v4152 = vld [vmem:[%s5 + $0x238] sm:$0xff]
    %v4153 = vld [vmem:[%s5 + $0x240] sm:$0xff]
    %v4154 = vld [vmem:[%s5 + $0x248] sm:$0xff]
    %v4155 = vld [vmem:[%s5 + $0x250] sm:$0xff]
    %v4156 = vld [vmem:[%s5 + $0x258] sm:$0xff]
    %v4157 = vld [vmem:[%s5 + $0x260] sm:$0xff]
    %v4158 = vld [vmem:[%s5 + $0x268] sm:$0xff]
    %v4159 = vld [vmem:[%s5 + $0x270] sm:$0xff]
    %v4160 = vld [vmem:[%s5 + $0x278] sm:$0xff]
    %v4161 = vld [vmem:[%s5 + $0x280] sm:$0xff]
    %v4162 = vld [vmem:[%s5 + $0x288] sm:$0xff]
    %v4163 = vld [vmem:[%s5 + $0x290] sm:$0xff]
    %v4164 = vld [vmem:[%s5 + $0x298] sm:$0xff]
    %v4165 = vld [vmem:[%s5 + $0x2a0] sm:$0xff]
    %v4166 = vld [vmem:[%s5 + $0x2a8] sm:$0xff]
    %v4167 = vld [vmem:[%s5 + $0x2b0] sm:$0xff]
    %v4168 = vld [vmem:[%s5 + $0x2b8] sm:$0xff]
    %v4169 = vld [vmem:[%s5 + $0x2c0] sm:$0xff]
    %v4170 = vld [vmem:[%s5 + $0x2c8] sm:$0xff]
    %v4171 = vld [vmem:[%s5 + $0x2d0] sm:$0xff]
    %v4172 = vld [vmem:[%s5 + $0x2d8] sm:$0xff]
    %v4173 = vld [vmem:[%s5 + $0x2e0] sm:$0xff]
    %v4174 = vld [vmem:[%s5 + $0x2e8] sm:$0xff]
    %v4175 = vld [vmem:[%s5 + $0x2f0] sm:$0xff]
    %v4176 = vld [vmem:[%s5 + $0x2f8] sm:$0xff]
    %v4177 = vld [vmem:[%s5 + $0x300] sm:$0xff]
    %v4178 = vld [vmem:[%s5 + $0x308] sm:$0xff]
    %v4179 = vld [vmem:[%s5 + $0x310] sm:$0xff]
    %v4180 = vld [vmem:[%s5 + $0x318] sm:$0xff]
    %v4181 = vld [vmem:[%s5 + $0x320] sm:$0xff]
    %v4182 = vld [vmem:[%s5 + $0x328] sm:$0xff]
    %v4183 = vld [vmem:[%s5 + $0x330] sm:$0xff]
    %v4184 = vld [vmem:[%s5 + $0x338] sm:$0xff]
    %v4185 = vld [vmem:[%s5 + $0x340] sm:$0xff]
    %v4186 = vld [vmem:[%s5 + $0x348] sm:$0xff]
    %v4187 = vld [vmem:[%s5 + $0x350] sm:$0xff]
    %v4188 = vld [vmem:[%s5 + $0x358] sm:$0xff]
    %v4189 = vld [vmem:[%s5 + $0x360] sm:$0xff]
    %v4190 = vld [vmem:[%s5 + $0x368] sm:$0xff]
    %v4191 = vld [vmem:[%s5 + $0x370] sm:$0xff]
    %v4192 = vld [vmem:[%s5 + $0x378] sm:$0xff]
    %v4193 = vld [vmem:[%s5 + $0x380] sm:$0xff]
    %v4194 = vld [vmem:[%s5 + $0x388] sm:$0xff]
    %v4195 = vld [vmem:[%s5 + $0x390] sm:$0xff]
    %v4196 = vld [vmem:[%s5 + $0x398] sm:$0xff]
    %v4197 = vld [vmem:[%s5 + $0x3a0] sm:$0xff]
    %v4198 = vld [vmem:[%s5 + $0x3a8] sm:$0xff]
    %v4199 = vld [vmem:[%s5 + $0x3b0] sm:$0xff]
    %v4200 = vld [vmem:[%s5 + $0x3b8] sm:$0xff]
    %v4201 = vld [vmem:[%s5 + $0x3c0] sm:$0xff]
    %v4202 = vld [vmem:[%s5 + $0x3c8] sm:$0xff]
    %v4203 = vld [vmem:[%s5 + $0x3d0] sm:$0xff]
    %v4204 = vld [vmem:[%s5 + $0x3d8] sm:$0xff]
    %v4205 = vld [vmem:[%s5 + $0x3e0] sm:$0xff]
    %v4206 = vld [vmem:[%s5 + $0x3e8] sm:$0xff]
    %v4207 = vld [vmem:[%s5 + $0x3f0] sm:$0xff]
    %v4208 = vld [vmem:[%s5 + $0x3f8] sm:$0xff]
    %v4209 = vld [vmem:[%s6] sm:$0xf]
    %v4211 = vlaneseq
    %v4212 = vshrl.u32 %v4211, 7
    %v4213 = vsub.s32 0, %v4212
    %v4214 = vrot.slane %v4209, %v4213
    %v4215 = vlaneseq
    %v4216 = vshrl.u32 %v4215, 7
    %v4217 = vsub.s32 1, %v4216
    %v4218 = vrot.slane %v4209, %v4217
    %v4219 = vlaneseq
    %v4220 = vshrl.u32 %v4219, 7
    %v4221 = vsub.s32 2, %v4220
    %v4222 = vrot.slane %v4209, %v4221
    %v4223 = vlaneseq
    %v4224 = vshrl.u32 %v4223, 7
    %v4225 = vsub.s32 3, %v4224
    %v4226 = vrot.slane %v4209, %v4225
    %v4359 = vunpack.c.l.b16 %v4081
    %v4360 = vunpack.c.h.b16 %v4081
    %v4361 = vunpack.c.l.b16 %v4082
    %v4362 = vunpack.c.h.b16 %v4082
    %v4363 = vunpack.c.l.b16 %v4083
    %v4364 = vunpack.c.h.b16 %v4083
    %v4365 = vunpack.c.l.b16 %v4084
    %v4366 = vunpack.c.h.b16 %v4084
    %v4367 = vunpack.c.l.b16 %v4085
    %v4368 = vunpack.c.h.b16 %v4085
    %v4369 = vunpack.c.l.b16 %v4086
    %v4370 = vunpack.c.h.b16 %v4086
    %v4371 = vunpack.c.l.b16 %v4087
    %v4372 = vunpack.c.h.b16 %v4087
    %v4373 = vunpack.c.l.b16 %v4088
    %v4374 = vunpack.c.h.b16 %v4088
    %v4375 = vunpack.c.l.b16 %v4089
    %v4376 = vunpack.c.h.b16 %v4089
    %v4377 = vunpack.c.l.b16 %v4090
    %v4378 = vunpack.c.h.b16 %v4090
    %v4379 = vunpack.c.l.b16 %v4091
    %v4380 = vunpack.c.h.b16 %v4091
    %v4381 = vunpack.c.l.b16 %v4092
    %v4382 = vunpack.c.h.b16 %v4092
    %v4383 = vunpack.c.l.b16 %v4093
    %v4384 = vunpack.c.h.b16 %v4093
    %v4385 = vunpack.c.l.b16 %v4094
    %v4386 = vunpack.c.h.b16 %v4094
    %v4387 = vunpack.c.l.b16 %v4095
    %v4388 = vunpack.c.h.b16 %v4095
    %v4389 = vunpack.c.l.b16 %v4096
    %v4390 = vunpack.c.h.b16 %v4096
    %v4391 = vunpack.c.l.b16 %v4097
    %v4392 = vunpack.c.h.b16 %v4097
    %v4393 = vunpack.c.l.b16 %v4098
    %v4394 = vunpack.c.h.b16 %v4098
    %v4395 = vunpack.c.l.b16 %v4099
    %v4396 = vunpack.c.h.b16 %v4099
    %v4397 = vunpack.c.l.b16 %v4100
    %v4398 = vunpack.c.h.b16 %v4100
    %v4399 = vunpack.c.l.b16 %v4101
    %v4400 = vunpack.c.h.b16 %v4101
    %v4401 = vunpack.c.l.b16 %v4102
    %v4402 = vunpack.c.h.b16 %v4102
    %v4403 = vunpack.c.l.b16 %v4103
    %v4404 = vunpack.c.h.b16 %v4103
    %v4405 = vunpack.c.l.b16 %v4104
    %v4406 = vunpack.c.h.b16 %v4104
    %v4407 = vunpack.c.l.b16 %v4105
    %v4408 = vunpack.c.h.b16 %v4105
    %v4409 = vunpack.c.l.b16 %v4106
    %v4410 = vunpack.c.h.b16 %v4106
    %v4411 = vunpack.c.l.b16 %v4107
    %v4412 = vunpack.c.h.b16 %v4107
    %v4413 = vunpack.c.l.b16 %v4108
    %v4414 = vunpack.c.h.b16 %v4108
    %v4415 = vunpack.c.l.b16 %v4109
    %v4416 = vunpack.c.h.b16 %v4109
    %v4417 = vunpack.c.l.b16 %v4110
    %v4418 = vunpack.c.h.b16 %v4110
    %v4419 = vunpack.c.l.b16 %v4111
    %v4420 = vunpack.c.h.b16 %v4111
    %v4421 = vunpack.c.l.b16 %v4112
    %v4422 = vunpack.c.h.b16 %v4112
    %v4423 = vunpack.c.l.b16 %v4113
    %v4424 = vunpack.c.h.b16 %v4113
    %v4425 = vunpack.c.l.b16 %v4114
    %v4426 = vunpack.c.h.b16 %v4114
    %v4427 = vunpack.c.l.b16 %v4115
    %v4428 = vunpack.c.h.b16 %v4115
    %v4429 = vunpack.c.l.b16 %v4116
    %v4430 = vunpack.c.h.b16 %v4116
    %v4431 = vunpack.c.l.b16 %v4117
    %v4432 = vunpack.c.h.b16 %v4117
    %v4433 = vunpack.c.l.b16 %v4118
    %v4434 = vunpack.c.h.b16 %v4118
    %v4435 = vunpack.c.l.b16 %v4119
    %v4436 = vunpack.c.h.b16 %v4119
    %v4437 = vunpack.c.l.b16 %v4120
    %v4438 = vunpack.c.h.b16 %v4120
    %v4439 = vunpack.c.l.b16 %v4121
    %v4440 = vunpack.c.h.b16 %v4121
    %v4441 = vunpack.c.l.b16 %v4122
    %v4442 = vunpack.c.h.b16 %v4122
    %v4443 = vunpack.c.l.b16 %v4123
    %v4444 = vunpack.c.h.b16 %v4123
    %v4445 = vunpack.c.l.b16 %v4124
    %v4446 = vunpack.c.h.b16 %v4124
    %v4447 = vunpack.c.l.b16 %v4125
    %v4448 = vunpack.c.h.b16 %v4125
    %v4449 = vunpack.c.l.b16 %v4126
    %v4450 = vunpack.c.h.b16 %v4126
    %v4451 = vunpack.c.l.b16 %v4127
    %v4452 = vunpack.c.h.b16 %v4127
    %v4453 = vunpack.c.l.b16 %v4128
    %v4454 = vunpack.c.h.b16 %v4128
    %v4455 = vunpack.c.l.b16 %v4129
    %v4456 = vunpack.c.h.b16 %v4129
    %v4457 = vunpack.c.l.b16 %v4130
    %v4458 = vunpack.c.h.b16 %v4130
    %v4459 = vunpack.c.l.b16 %v4131
    %v4460 = vunpack.c.h.b16 %v4131
    %v4461 = vunpack.c.l.b16 %v4132
    %v4462 = vunpack.c.h.b16 %v4132
    %v4463 = vunpack.c.l.b16 %v4133
    %v4464 = vunpack.c.h.b16 %v4133
    %v4465 = vunpack.c.l.b16 %v4134
    %v4466 = vunpack.c.h.b16 %v4134
    %v4467 = vunpack.c.l.b16 %v4135
    %v4468 = vunpack.c.h.b16 %v4135
    %v4469 = vunpack.c.l.b16 %v4136
    %v4470 = vunpack.c.h.b16 %v4136
    %v4471 = vunpack.c.l.b16 %v4137
    %v4472 = vunpack.c.h.b16 %v4137
    %v4473 = vunpack.c.l.b16 %v4138
    %v4474 = vunpack.c.h.b16 %v4138
    %v4475 = vunpack.c.l.b16 %v4139
    %v4476 = vunpack.c.h.b16 %v4139
    %v4477 = vunpack.c.l.b16 %v4140
    %v4478 = vunpack.c.h.b16 %v4140
    %v4479 = vunpack.c.l.b16 %v4141
    %v4480 = vunpack.c.h.b16 %v4141
    %v4481 = vunpack.c.l.b16 %v4142
    %v4482 = vunpack.c.h.b16 %v4142
    %v4483 = vunpack.c.l.b16 %v4143
    %v4484 = vunpack.c.h.b16 %v4143
    %v4485 = vunpack.c.l.b16 %v4144
    %v4486 = vunpack.c.h.b16 %v4144
    %v4487 = vunpack.c.l.b16 %v4145
    %v4488 = vunpack.c.h.b16 %v4145
    %v4489 = vunpack.c.l.b16 %v4146
    %v4490 = vunpack.c.h.b16 %v4146
    %v4491 = vunpack.c.l.b16 %v4147
    %v4492 = vunpack.c.h.b16 %v4147
    %v4493 = vunpack.c.l.b16 %v4148
    %v4494 = vunpack.c.h.b16 %v4148
    %v4495 = vunpack.c.l.b16 %v4149
    %v4496 = vunpack.c.h.b16 %v4149
    %v4497 = vunpack.c.l.b16 %v4150
    %v4498 = vunpack.c.h.b16 %v4150
    %v4499 = vunpack.c.l.b16 %v4151
    %v4500 = vunpack.c.h.b16 %v4151
    %v4501 = vunpack.c.l.b16 %v4152
    %v4502 = vunpack.c.h.b16 %v4152
    %v4503 = vunpack.c.l.b16 %v4153
    %v4504 = vunpack.c.h.b16 %v4153
    %v4505 = vunpack.c.l.b16 %v4154
    %v4506 = vunpack.c.h.b16 %v4154
    %v4507 = vunpack.c.l.b16 %v4155
    %v4508 = vunpack.c.h.b16 %v4155
    %v4509 = vunpack.c.l.b16 %v4156
    %v4510 = vunpack.c.h.b16 %v4156
    %v4511 = vunpack.c.l.b16 %v4157
    %v4512 = vunpack.c.h.b16 %v4157
    %v4513 = vunpack.c.l.b16 %v4158
    %v4514 = vunpack.c.h.b16 %v4158
    %v4515 = vunpack.c.l.b16 %v4159
    %v4516 = vunpack.c.h.b16 %v4159
    %v4517 = vunpack.c.l.b16 %v4160
    %v4518 = vunpack.c.h.b16 %v4160
    %v4519 = vunpack.c.l.b16 %v4161
    %v4520 = vunpack.c.h.b16 %v4161
    %v4521 = vunpack.c.l.b16 %v4162
    %v4522 = vunpack.c.h.b16 %v4162
    %v4523 = vunpack.c.l.b16 %v4163
    %v4524 = vunpack.c.h.b16 %v4163
    %v4525 = vunpack.c.l.b16 %v4164
    %v4526 = vunpack.c.h.b16 %v4164
    %v4527 = vunpack.c.l.b16 %v4165
    %v4528 = vunpack.c.h.b16 %v4165
    %v4529 = vunpack.c.l.b16 %v4166
    %v4530 = vunpack.c.h.b16 %v4166
    %v4531 = vunpack.c.l.b16 %v4167
    %v4532 = vunpack.c.h.b16 %v4167
    %v4533 = vunpack.c.l.b16 %v4168
    %v4534 = vunpack.c.h.b16 %v4168
    %v4535 = vunpack.c.l.b16 %v4169
    %v4536 = vunpack.c.h.b16 %v4169
    %v4537 = vunpack.c.l.b16 %v4170
    %v4538 = vunpack.c.h.b16 %v4170
    %v4539 = vunpack.c.l.b16 %v4171
    %v4540 = vunpack.c.h.b16 %v4171
    %v4541 = vunpack.c.l.b16 %v4172
    %v4542 = vunpack.c.h.b16 %v4172
    %v4543 = vunpack.c.l.b16 %v4173
    %v4544 = vunpack.c.h.b16 %v4173
    %v4545 = vunpack.c.l.b16 %v4174
    %v4546 = vunpack.c.h.b16 %v4174
    %v4547 = vunpack.c.l.b16 %v4175
    %v4548 = vunpack.c.h.b16 %v4175
    %v4549 = vunpack.c.l.b16 %v4176
    %v4550 = vunpack.c.h.b16 %v4176
    %v4551 = vunpack.c.l.b16 %v4177
    %v4552 = vunpack.c.h.b16 %v4177
    %v4553 = vunpack.c.l.b16 %v4178
    %v4554 = vunpack.c.h.b16 %v4178
    %v4555 = vunpack.c.l.b16 %v4179
    %v4556 = vunpack.c.h.b16 %v4179
    %v4557 = vunpack.c.l.b16 %v4180
    %v4558 = vunpack.c.h.b16 %v4180
    %v4559 = vunpack.c.l.b16 %v4181
    %v4560 = vunpack.c.h.b16 %v4181
    %v4561 = vunpack.c.l.b16 %v4182
    %v4562 = vunpack.c.h.b16 %v4182
    %v4563 = vunpack.c.l.b16 %v4183
    %v4564 = vunpack.c.h.b16 %v4183
    %v4565 = vunpack.c.l.b16 %v4184
    %v4566 = vunpack.c.h.b16 %v4184
    %v4567 = vunpack.c.l.b16 %v4185
    %v4568 = vunpack.c.h.b16 %v4185
    %v4569 = vunpack.c.l.b16 %v4186
    %v4570 = vunpack.c.h.b16 %v4186
    %v4571 = vunpack.c.l.b16 %v4187
    %v4572 = vunpack.c.h.b16 %v4187
    %v4573 = vunpack.c.l.b16 %v4188
    %v4574 = vunpack.c.h.b16 %v4188
    %v4575 = vunpack.c.l.b16 %v4189
    %v4576 = vunpack.c.h.b16 %v4189
    %v4577 = vunpack.c.l.b16 %v4190
    %v4578 = vunpack.c.h.b16 %v4190
    %v4579 = vunpack.c.l.b16 %v4191
    %v4580 = vunpack.c.h.b16 %v4191
    %v4581 = vunpack.c.l.b16 %v4192
    %v4582 = vunpack.c.h.b16 %v4192
    %v4583 = vunpack.c.l.b16 %v4193
    %v4584 = vunpack.c.h.b16 %v4193
    %v4585 = vunpack.c.l.b16 %v4194
    %v4586 = vunpack.c.h.b16 %v4194
    %v4587 = vunpack.c.l.b16 %v4195
    %v4588 = vunpack.c.h.b16 %v4195
    %v4589 = vunpack.c.l.b16 %v4196
    %v4590 = vunpack.c.h.b16 %v4196
    %v4591 = vunpack.c.l.b16 %v4197
    %v4592 = vunpack.c.h.b16 %v4197
    %v4593 = vunpack.c.l.b16 %v4198
    %v4594 = vunpack.c.h.b16 %v4198
    %v4595 = vunpack.c.l.b16 %v4199
    %v4596 = vunpack.c.h.b16 %v4199
    %v4597 = vunpack.c.l.b16 %v4200
    %v4598 = vunpack.c.h.b16 %v4200
    %v4599 = vunpack.c.l.b16 %v4201
    %v4600 = vunpack.c.h.b16 %v4201
    %v4601 = vunpack.c.l.b16 %v4202
    %v4602 = vunpack.c.h.b16 %v4202
    %v4603 = vunpack.c.l.b16 %v4203
    %v4604 = vunpack.c.h.b16 %v4203
    %v4605 = vunpack.c.l.b16 %v4204
    %v4606 = vunpack.c.h.b16 %v4204
    %v4607 = vunpack.c.l.b16 %v4205
    %v4608 = vunpack.c.h.b16 %v4205
    %v4609 = vunpack.c.l.b16 %v4206
    %v4610 = vunpack.c.h.b16 %v4206
    %v4611 = vunpack.c.l.b16 %v4207
    %v4612 = vunpack.c.h.b16 %v4207
    %v4613 = vunpack.c.l.b16 %v4208
    %v4614 = vunpack.c.h.b16 %v4208
    %v4615 = vpack.c.b16 %v4363, %v4359
    %v4616 = vpack.c.b16 %v4364, %v4360
    %v4617 = vpack.c.b16 %v4365, %v4361
    %v4618 = vpack.c.b16 %v4366, %v4362
    %v4619 = vpack.c.b16 %v4371, %v4367
    %v4620 = vpack.c.b16 %v4372, %v4368
    %v4621 = vpack.c.b16 %v4373, %v4369
    %v4622 = vpack.c.b16 %v4374, %v4370
    %v4623 = vpack.c.b16 %v4379, %v4375
    %v4624 = vpack.c.b16 %v4380, %v4376
    %v4625 = vpack.c.b16 %v4381, %v4377
    %v4626 = vpack.c.b16 %v4382, %v4378
    %v4627 = vpack.c.b16 %v4387, %v4383
    %v4628 = vpack.c.b16 %v4388, %v4384
    %v4629 = vpack.c.b16 %v4389, %v4385
    %v4630 = vpack.c.b16 %v4390, %v4386
    %v4631 = vpack.c.b16 %v4395, %v4391
    %v4632 = vpack.c.b16 %v4396, %v4392
    %v4633 = vpack.c.b16 %v4397, %v4393
    %v4634 = vpack.c.b16 %v4398, %v4394
    %v4635 = vpack.c.b16 %v4403, %v4399
    %v4636 = vpack.c.b16 %v4404, %v4400
    %v4637 = vpack.c.b16 %v4405, %v4401
    %v4638 = vpack.c.b16 %v4406, %v4402
    %v4639 = vpack.c.b16 %v4411, %v4407
    %v4640 = vpack.c.b16 %v4412, %v4408
    %v4641 = vpack.c.b16 %v4413, %v4409
    %v4642 = vpack.c.b16 %v4414, %v4410
    %v4643 = vpack.c.b16 %v4419, %v4415
    %v4644 = vpack.c.b16 %v4420, %v4416
    %v4645 = vpack.c.b16 %v4421, %v4417
    %v4646 = vpack.c.b16 %v4422, %v4418
    %v4647 = vpack.c.b16 %v4427, %v4423
    %v4648 = vpack.c.b16 %v4428, %v4424
    %v4649 = vpack.c.b16 %v4429, %v4425
    %v4650 = vpack.c.b16 %v4430, %v4426
    %v4651 = vpack.c.b16 %v4435, %v4431
    %v4652 = vpack.c.b16 %v4436, %v4432
    %v4653 = vpack.c.b16 %v4437, %v4433
    %v4654 = vpack.c.b16 %v4438, %v4434
    %v4655 = vpack.c.b16 %v4443, %v4439
    %v4656 = vpack.c.b16 %v4444, %v4440
    %v4657 = vpack.c.b16 %v4445, %v4441
    %v4658 = vpack.c.b16 %v4446, %v4442
    %v4659 = vpack.c.b16 %v4451, %v4447
    %v4660 = vpack.c.b16 %v4452, %v4448
    %v4661 = vpack.c.b16 %v4453, %v4449
    %v4662 = vpack.c.b16 %v4454, %v4450
    %v4663 = vpack.c.b16 %v4459, %v4455
    %v4664 = vpack.c.b16 %v4460, %v4456
    %v4665 = vpack.c.b16 %v4461, %v4457
    %v4666 = vpack.c.b16 %v4462, %v4458
    %v4667 = vpack.c.b16 %v4467, %v4463
    %v4668 = vpack.c.b16 %v4468, %v4464
    %v4669 = vpack.c.b16 %v4469, %v4465
    %v4670 = vpack.c.b16 %v4470, %v4466
    %v4671 = vpack.c.b16 %v4475, %v4471
    %v4672 = vpack.c.b16 %v4476, %v4472
    %v4673 = vpack.c.b16 %v4477, %v4473
    %v4674 = vpack.c.b16 %v4478, %v4474
    %v4675 = vpack.c.b16 %v4483, %v4479
    %v4676 = vpack.c.b16 %v4484, %v4480
    %v4677 = vpack.c.b16 %v4485, %v4481
    %v4678 = vpack.c.b16 %v4486, %v4482
    %v4679 = vpack.c.b16 %v4491, %v4487
    %v4680 = vpack.c.b16 %v4492, %v4488
    %v4681 = vpack.c.b16 %v4493, %v4489
    %v4682 = vpack.c.b16 %v4494, %v4490
    %v4683 = vpack.c.b16 %v4499, %v4495
    %v4684 = vpack.c.b16 %v4500, %v4496
    %v4685 = vpack.c.b16 %v4501, %v4497
    %v4686 = vpack.c.b16 %v4502, %v4498
    %v4687 = vpack.c.b16 %v4507, %v4503
    %v4688 = vpack.c.b16 %v4508, %v4504
    %v4689 = vpack.c.b16 %v4509, %v4505
    %v4690 = vpack.c.b16 %v4510, %v4506
    %v4691 = vpack.c.b16 %v4515, %v4511
    %v4692 = vpack.c.b16 %v4516, %v4512
    %v4693 = vpack.c.b16 %v4517, %v4513
    %v4694 = vpack.c.b16 %v4518, %v4514
    %v4695 = vpack.c.b16 %v4523, %v4519
    %v4696 = vpack.c.b16 %v4524, %v4520
    %v4697 = vpack.c.b16 %v4525, %v4521
    %v4698 = vpack.c.b16 %v4526, %v4522
    %v4699 = vpack.c.b16 %v4531, %v4527
    %v4700 = vpack.c.b16 %v4532, %v4528
    %v4701 = vpack.c.b16 %v4533, %v4529
    %v4702 = vpack.c.b16 %v4534, %v4530
    %v4703 = vpack.c.b16 %v4539, %v4535
    %v4704 = vpack.c.b16 %v4540, %v4536
    %v4705 = vpack.c.b16 %v4541, %v4537
    %v4706 = vpack.c.b16 %v4542, %v4538
    %v4707 = vpack.c.b16 %v4547, %v4543
    %v4708 = vpack.c.b16 %v4548, %v4544
    %v4709 = vpack.c.b16 %v4549, %v4545
    %v4710 = vpack.c.b16 %v4550, %v4546
    %v4711 = vpack.c.b16 %v4555, %v4551
    %v4712 = vpack.c.b16 %v4556, %v4552
    %v4713 = vpack.c.b16 %v4557, %v4553
    %v4714 = vpack.c.b16 %v4558, %v4554
    %v4715 = vpack.c.b16 %v4563, %v4559
    %v4716 = vpack.c.b16 %v4564, %v4560
    %v4717 = vpack.c.b16 %v4565, %v4561
    %v4718 = vpack.c.b16 %v4566, %v4562
    %v4719 = vpack.c.b16 %v4571, %v4567
    %v4720 = vpack.c.b16 %v4572, %v4568
    %v4721 = vpack.c.b16 %v4573, %v4569
    %v4722 = vpack.c.b16 %v4574, %v4570
    %v4723 = vpack.c.b16 %v4579, %v4575
    %v4724 = vpack.c.b16 %v4580, %v4576
    %v4725 = vpack.c.b16 %v4581, %v4577
    %v4726 = vpack.c.b16 %v4582, %v4578
    %v4727 = vpack.c.b16 %v4587, %v4583
    %v4728 = vpack.c.b16 %v4588, %v4584
    %v4729 = vpack.c.b16 %v4589, %v4585
    %v4730 = vpack.c.b16 %v4590, %v4586
    %v4731 = vpack.c.b16 %v4595, %v4591
    %v4732 = vpack.c.b16 %v4596, %v4592
    %v4733 = vpack.c.b16 %v4597, %v4593
    %v4734 = vpack.c.b16 %v4598, %v4594
    %v4735 = vpack.c.b16 %v4603, %v4599
    %v4736 = vpack.c.b16 %v4604, %v4600
    %v4737 = vpack.c.b16 %v4605, %v4601
    %v4738 = vpack.c.b16 %v4606, %v4602
    %v4739 = vpack.c.b16 %v4611, %v4607
    %v4740 = vpack.c.b16 %v4612, %v4608
    %v4741 = vpack.c.b16 %v4613, %v4609
    %v4742 = vpack.c.b16 %v4614, %v4610
    %4871 = vmatprep.subr.bf16.mxu0 %v4616
    %4872 = vmatpush1.bf16.msra.mxu0 %v4615
    %4873 = vmatprep.subr.bf16.mxu0 %v4620
    %4874 = vmatpush1.bf16.msra.mxu0 %v4619
    %4875 = vmatprep.subr.bf16.mxu0 %v4624
    %4876 = vmatpush1.bf16.msra.mxu0 %v4623
    %4877 = vmatprep.subr.bf16.mxu0 %v4628
    %4878 = vmatpush1.bf16.msra.mxu0 %v4627
    %4879 = vmatprep.subr.bf16.mxu0 %v4632
    %4880 = vmatpush1.bf16.msra.mxu0 %v4631
    %4881 = vmatprep.subr.bf16.mxu0 %v4636
    %4882 = vmatpush1.bf16.msra.mxu0 %v4635
    %4883 = vmatprep.subr.bf16.mxu0 %v4640
    %4884 = vmatpush1.bf16.msra.mxu0 %v4639
    %4885 = vmatprep.subr.bf16.mxu0 %v4644
    %4886 = vmatpush1.bf16.msra.mxu0 %v4643
    %4887 = vmatprep.subr.bf16.mxu0 %v4648
    %4888 = vmatpush1.bf16.msra.mxu0 %v4647
    %4889 = vmatprep.subr.bf16.mxu0 %v4652
    %4890 = vmatpush1.bf16.msra.mxu0 %v4651
    %4891 = vmatprep.subr.bf16.mxu0 %v4656
    %4892 = vmatpush1.bf16.msra.mxu0 %v4655
    %4893 = vmatprep.subr.bf16.mxu0 %v4660
    %4894 = vmatpush1.bf16.msra.mxu0 %v4659
    %4895 = vmatprep.subr.bf16.mxu0 %v4664
    %4896 = vmatpush1.bf16.msra.mxu0 %v4663
    %4897 = vmatprep.subr.bf16.mxu0 %v4668
    %4898 = vmatpush1.bf16.msra.mxu0 %v4667
    %4899 = vmatprep.subr.bf16.mxu0 %v4672
    %4900 = vmatpush1.bf16.msra.mxu0 %v4671
    %4901 = vmatprep.subr.bf16.mxu0 %v4676
    %4902 = vmatpush1.bf16.msra.mxu0 %v4675
    %4903 = vmatprep.mubr.bf16.mxu0 %v4078
    %4904 = vmatmul.mubr.bf16.gmra.mrb[0].mxu0 %v4077
    %v4905 = vpop.f32.mrb[0].mxu0
    %v4906 = vadd.f32 %v4214, %v4905
    %v4907 = vpop.f32.mrb[0].mxu0
    %v4908 = vadd.f32 %v4218, %v4907
    %v4909 = vpop.f32.mrb[0].mxu0
    %v4910 = vpop.f32.mrb[0].mxu0
    %4911 = vdwg.mxu0
    %4912 = vmatprep.subr.bf16.mxu0 %v4680
    %4913 = vmatpush1.bf16.msra.mxu0 %v4679
    %4914 = vmatprep.subr.bf16.mxu0 %v4684
    %4915 = vmatpush1.bf16.msra.mxu0 %v4683
    %4916 = vmatprep.subr.bf16.mxu0 %v4688
    %4917 = vmatpush1.bf16.msra.mxu0 %v4687
    %4918 = vmatprep.subr.bf16.mxu0 %v4692
    %4919 = vmatpush1.bf16.msra.mxu0 %v4691
    %4920 = vmatprep.subr.bf16.mxu0 %v4696
    %4921 = vmatpush1.bf16.msra.mxu0 %v4695
    %4922 = vmatprep.subr.bf16.mxu0 %v4700
    %4923 = vmatpush1.bf16.msra.mxu0 %v4699
    %4924 = vmatprep.subr.bf16.mxu0 %v4704
    %4925 = vmatpush1.bf16.msra.mxu0 %v4703
    %4926 = vmatprep.subr.bf16.mxu0 %v4708
    %4927 = vmatpush1.bf16.msra.mxu0 %v4707
    %4928 = vmatprep.subr.bf16.mxu0 %v4712
    %4929 = vmatpush1.bf16.msra.mxu0 %v4711
    %4930 = vmatprep.subr.bf16.mxu0 %v4716
    %4931 = vmatpush1.bf16.msra.mxu0 %v4715
    %4932 = vmatprep.subr.bf16.mxu0 %v4720
    %4933 = vmatpush1.bf16.msra.mxu0 %v4719
    %4934 = vmatprep.subr.bf16.mxu0 %v4724
    %4935 = vmatpush1.bf16.msra.mxu0 %v4723
    %4936 = vmatprep.subr.bf16.mxu0 %v4728
    %4937 = vmatpush1.bf16.msra.mxu0 %v4727
    %4938 = vmatprep.subr.bf16.mxu0 %v4732
    %4939 = vmatpush1.bf16.msra.mxu0 %v4731
    %4940 = vmatprep.subr.bf16.mxu0 %v4736
    %4941 = vmatpush1.bf16.msra.mxu0 %v4735
    %4942 = vmatprep.subr.bf16.mxu0 %v4740
    %4943 = vmatpush1.bf16.msra.mxu0 %v4739
    %4944 = vmatprep.mubr.bf16.mxu0 %v4080
    %4945 = vmatmul.mubr.bf16.gmra.mrb[0].mxu0 %v4079
    %v4946 = vpop.f32.mrb[0].mxu0
    %v4947 = vadd.f32 %v4906, %v4946
    %v4948 = vpop.f32.mrb[0].mxu0
    %v4949 = vadd.f32 %v4908, %v4948
    %v4950 = vpop.f32.mrb[0].mxu0
    %v4951 = vpop.f32.mrb[0].mxu0
    %4952 = vdwg.mxu0
    %4953 = vmatprep.subr.bf16.mxu0 %v4618
    %4954 = vmatpush1.bf16.msra.mxu0 %v4617
    %4955 = vmatprep.subr.bf16.mxu0 %v4622
    %4956 = vmatpush1.bf16.msra.mxu0 %v4621
    %4957 = vmatprep.subr.bf16.mxu0 %v4626
    %4958 = vmatpush1.bf16.msra.mxu0 %v4625
    %4959 = vmatprep.subr.bf16.mxu0 %v4630
    %4960 = vmatpush1.bf16.msra.mxu0 %v4629
    %4961 = vmatprep.subr.bf16.mxu0 %v4634
    %4962 = vmatpush1.bf16.msra.mxu0 %v4633
    %4963 = vmatprep.subr.bf16.mxu0 %v4638
    %4964 = vmatpush1.bf16.msra.mxu0 %v4637
    %4965 = vmatprep.subr.bf16.mxu0 %v4642
    %4966 = vmatpush1.bf16.msra.mxu0 %v4641
    %4967 = vmatprep.subr.bf16.mxu0 %v4646
    %4968 = vmatpush1.bf16.msra.mxu0 %v4645
    %4969 = vmatprep.subr.bf16.mxu0 %v4650
    %4970 = vmatpush1.bf16.msra.mxu0 %v4649
    %4971 = vmatprep.subr.bf16.mxu0 %v4654
    %4972 = vmatpush1.bf16.msra.mxu0 %v4653
    %4973 = vmatprep.subr.bf16.mxu0 %v4658
    %4974 = vmatpush1.bf16.msra.mxu0 %v4657
    %4975 = vmatprep.subr.bf16.mxu0 %v4662
    %4976 = vmatpush1.bf16.msra.mxu0 %v4661
    %4977 = vmatprep.subr.bf16.mxu0 %v4666
    %4978 = vmatpush1.bf16.msra.mxu0 %v4665
    %4979 = vmatprep.subr.bf16.mxu0 %v4670
    %4980 = vmatpush1.bf16.msra.mxu0 %v4669
    %4981 = vmatprep.subr.bf16.mxu0 %v4674
    %4982 = vmatpush1.bf16.msra.mxu0 %v4673
    %4983 = vmatprep.subr.bf16.mxu0 %v4678
    %4984 = vmatpush1.bf16.msra.mxu0 %v4677
    %4985 = vmatprep.mubr.bf16.mxu0 %v4078
    %4986 = vmatmul.mubr.bf16.gmra.mrb[0].mxu0 %v4077
    %v4987 = vpop.f32.mrb[0].mxu0
    %v4988 = vadd.f32 %v4222, %v4987
    %v4989 = vpop.f32.mrb[0].mxu0
    %v4990 = vadd.f32 %v4226, %v4989
    %v4991 = vpop.f32.mrb[0].mxu0
    %v4992 = vpop.f32.mrb[0].mxu0
    %4993 = vdwg.mxu0
    %4994 = vmatprep.subr.bf16.mxu0 %v4682
    %4995 = vmatpush1.bf16.msra.mxu0 %v4681
    %4996 = vmatprep.subr.bf16.mxu0 %v4686
    %4997 = vmatpush1.bf16.msra.mxu0 %v4685
    %4998 = vmatprep.subr.bf16.mxu0 %v4690
    %4999 = vmatpush1.bf16.msra.mxu0 %v4689
    %5000 = vmatprep.subr.bf16.mxu0 %v4694
    %5001 = vmatpush1.bf16.msra.mxu0 %v4693
    %5002 = vmatprep.subr.bf16.mxu0 %v4698
    %5003 = vmatpush1.bf16.msra.mxu0 %v4697
    %5004 = vmatprep.subr.bf16.mxu0 %v4702
    %5005 = vmatpush1.bf16.msra.mxu0 %v4701
    %5006 = vmatprep.subr.bf16.mxu0 %v4706
    %5007 = vmatpush1.bf16.msra.mxu0 %v4705
    %5008 = vmatprep.subr.bf16.mxu0 %v4710
    %5009 = vmatpush1.bf16.msra.mxu0 %v4709
    %5010 = vmatprep.subr.bf16.mxu0 %v4714
    %5011 = vmatpush1.bf16.msra.mxu0 %v4713
    %5012 = vmatprep.subr.bf16.mxu0 %v4718
    %5013 = vmatpush1.bf16.msra.mxu0 %v4717
    %5014 = vmatprep.subr.bf16.mxu0 %v4722
    %5015 = vmatpush1.bf16.msra.mxu0 %v4721
    %5016 = vmatprep.subr.bf16.mxu0 %v4726
    %5017 = vmatpush1.bf16.msra.mxu0 %v4725
    %5018 = vmatprep.subr.bf16.mxu0 %v4730
    %5019 = vmatpush1.bf16.msra.mxu0 %v4729
    %5020 = vmatprep.subr.bf16.mxu0 %v4734
    %5021 = vmatpush1.bf16.msra.mxu0 %v4733
    %5022 = vmatprep.subr.bf16.mxu0 %v4738
    %5023 = vmatpush1.bf16.msra.mxu0 %v4737
    %5024 = vmatprep.subr.bf16.mxu0 %v4742
    %5025 = vmatpush1.bf16.msra.mxu0 %v4741
    %5026 = vmatprep.mubr.bf16.mxu0 %v4080
    %5027 = vmatmul.mubr.bf16.gmra.mrb[0].mxu0 %v4079
    %v5028 = vpop.f32.mrb[0].mxu0
    %v5029 = vadd.f32 %v4988, %v5028
    %v5030 = vpop.f32.mrb[0].mxu0
    %v5031 = vadd.f32 %v4990, %v5030
    %v5032 = vpop.f32.mrb[0].mxu0
    %v5033 = vpop.f32.mrb[0].mxu0
    %5034 = vdwg.mxu0
    %v5035 = vpack.c.bf16 %v4947, %v4947
    %v5036 = vpack.c.bf16 %v4949, %v4949
    %v5037 = vpack.c.bf16 %v5029, %v5029
    %v5038 = vpack.c.bf16 %v5031, %v5031
    %v5039 = vld [vmem:[%s7] sm:$0xf]
    %v5040 = vld [vmem:[%s7 + $0x4] sm:$0xf]
    %v5041 = vld [vmem:[%s7 + $0x8] sm:$0xf]
    %v5042 = vld [vmem:[%s7 + $0xc] sm:$0xf]
    %v5043 = vld [vmem:[%s7 + $0x10] sm:$0xf]
    %v5044 = vld [vmem:[%s7 + $0x14] sm:$0xf]
    %v5045 = vld [vmem:[%s7 + $0x18] sm:$0xf]
    %v5046 = vld [vmem:[%s7 + $0x1c] sm:$0xf]
    %v5047 = vld [vmem:[%s7 + $0x20] sm:$0xf]
    %v5048 = vld [vmem:[%s7 + $0x24] sm:$0xf]
    %v5049 = vld [vmem:[%s7 + $0x28] sm:$0xf]
    %v5050 = vld [vmem:[%s7 + $0x2c] sm:$0xf]
    %v5051 = vld [vmem:[%s7 + $0x30] sm:$0xf]
    %v5052 = vld [vmem:[%s7 + $0x34] sm:$0xf]
    %v5053 = vld [vmem:[%s7 + $0x38] sm:$0xf]
    %v5054 = vld [vmem:[%s7 + $0x3c] sm:$0xf]
    %v5055 = vld [vmem:[%s7 + $0x40] sm:$0xf]
    %v5056 = vld [vmem:[%s7 + $0x44] sm:$0xf]
    %v5057 = vld [vmem:[%s7 + $0x48] sm:$0xf]
    %v5058 = vld [vmem:[%s7 + $0x4c] sm:$0xf]
    %v5059 = vld [vmem:[%s7 + $0x50] sm:$0xf]
    %v5060 = vld [vmem:[%s7 + $0x54] sm:$0xf]
    %v5061 = vld [vmem:[%s7 + $0x58] sm:$0xf]
    %v5062 = vld [vmem:[%s7 + $0x5c] sm:$0xf]
    %v5063 = vld [vmem:[%s7 + $0x60] sm:$0xf]
    %v5064 = vld [vmem:[%s7 + $0x64] sm:$0xf]
    %v5065 = vld [vmem:[%s7 + $0x68] sm:$0xf]
    %v5066 = vld [vmem:[%s7 + $0x6c] sm:$0xf]
    %v5067 = vld [vmem:[%s7 + $0x70] sm:$0xf]
    %v5068 = vld [vmem:[%s7 + $0x74] sm:$0xf]
    %v5069 = vld [vmem:[%s7 + $0x78] sm:$0xf]
    %v5070 = vld [vmem:[%s7 + $0x7c] sm:$0xf]
    %v5071 = vld [vmem:[%s7 + $0x80] sm:$0xf]
    %v5072 = vld [vmem:[%s7 + $0x84] sm:$0xf]
    %v5073 = vld [vmem:[%s7 + $0x88] sm:$0xf]
    %v5074 = vld [vmem:[%s7 + $0x8c] sm:$0xf]
    %v5075 = vld [vmem:[%s7 + $0x90] sm:$0xf]
    %v5076 = vld [vmem:[%s7 + $0x94] sm:$0xf]
    %v5077 = vld [vmem:[%s7 + $0x98] sm:$0xf]
    %v5078 = vld [vmem:[%s7 + $0x9c] sm:$0xf]
    %v5079 = vld [vmem:[%s7 + $0xa0] sm:$0xf]
    %v5080 = vld [vmem:[%s7 + $0xa4] sm:$0xf]
    %v5081 = vld [vmem:[%s7 + $0xa8] sm:$0xf]
    %v5082 = vld [vmem:[%s7 + $0xac] sm:$0xf]
    %v5083 = vld [vmem:[%s7 + $0xb0] sm:$0xf]
    %v5084 = vld [vmem:[%s7 + $0xb4] sm:$0xf]
    %v5085 = vld [vmem:[%s7 + $0xb8] sm:$0xf]
    %v5086 = vld [vmem:[%s7 + $0xbc] sm:$0xf]
    %v5087 = vld [vmem:[%s7 + $0xc0] sm:$0xf]
    %v5088 = vld [vmem:[%s7 + $0xc4] sm:$0xf]
    %v5089 = vld [vmem:[%s7 + $0xc8] sm:$0xf]
    %v5090 = vld [vmem:[%s7 + $0xcc] sm:$0xf]
    %v5091 = vld [vmem:[%s7 + $0xd0] sm:$0xf]
    %v5092 = vld [vmem:[%s7 + $0xd4] sm:$0xf]
    %v5093 = vld [vmem:[%s7 + $0xd8] sm:$0xf]
    %v5094 = vld [vmem:[%s7 + $0xdc] sm:$0xf]
    %v5095 = vld [vmem:[%s7 + $0xe0] sm:$0xf]
    %v5096 = vld [vmem:[%s7 + $0xe4] sm:$0xf]
    %v5097 = vld [vmem:[%s7 + $0xe8] sm:$0xf]
    %v5098 = vld [vmem:[%s7 + $0xec] sm:$0xf]
    %v5099 = vld [vmem:[%s7 + $0xf0] sm:$0xf]
    %v5100 = vld [vmem:[%s7 + $0xf4] sm:$0xf]
    %v5101 = vld [vmem:[%s7 + $0xf8] sm:$0xf]
    %v5102 = vld [vmem:[%s7 + $0xfc] sm:$0xf]
    %v5103 = vld [vmem:[%s8] sm:$0x1]
    %v5105 = vlaneseq
    %v5106 = vshrl.u32 %v5105, 7
    %v5107 = vsub.s32 0, %v5106
    %v5108 = vrot.slane %v5103, %v5107
    %v5174 = vunpack.c.l.b16 %v5039
    %v5175 = vunpack.c.l.b16 %v5040
    %v5176 = vunpack.c.l.b16 %v5041
    %v5177 = vunpack.c.l.b16 %v5042
    %v5178 = vunpack.c.l.b16 %v5043
    %v5179 = vunpack.c.l.b16 %v5044
    %v5180 = vunpack.c.l.b16 %v5045
    %v5181 = vunpack.c.l.b16 %v5046
    %v5182 = vunpack.c.l.b16 %v5047
    %v5183 = vunpack.c.l.b16 %v5048
    %v5184 = vunpack.c.l.b16 %v5049
    %v5185 = vunpack.c.l.b16 %v5050
    %v5186 = vunpack.c.l.b16 %v5051
    %v5187 = vunpack.c.l.b16 %v5052
    %v5188 = vunpack.c.l.b16 %v5053
    %v5189 = vunpack.c.l.b16 %v5054
    %v5190 = vunpack.c.l.b16 %v5055
    %v5191 = vunpack.c.l.b16 %v5056
    %v5192 = vunpack.c.l.b16 %v5057
    %v5193 = vunpack.c.l.b16 %v5058
    %v5194 = vunpack.c.l.b16 %v5059
    %v5195 = vunpack.c.l.b16 %v5060
    %v5196 = vunpack.c.l.b16 %v5061
    %v5197 = vunpack.c.l.b16 %v5062
    %v5198 = vunpack.c.l.b16 %v5063
    %v5199 = vunpack.c.l.b16 %v5064
    %v5200 = vunpack.c.l.b16 %v5065
    %v5201 = vunpack.c.l.b16 %v5066
    %v5202 = vunpack.c.l.b16 %v5067
    %v5203 = vunpack.c.l.b16 %v5068
    %v5204 = vunpack.c.l.b16 %v5069
    %v5205 = vunpack.c.l.b16 %v5070
    %v5206 = vunpack.c.l.b16 %v5071
    %v5207 = vunpack.c.l.b16 %v5072
    %v5208 = vunpack.c.l.b16 %v5073
    %v5209 = vunpack.c.l.b16 %v5074
    %v5210 = vunpack.c.l.b16 %v5075
    %v5211 = vunpack.c.l.b16 %v5076
    %v5212 = vunpack.c.l.b16 %v5077
    %v5213 = vunpack.c.l.b16 %v5078
    %v5214 = vunpack.c.l.b16 %v5079
    %v5215 = vunpack.c.l.b16 %v5080
    %v5216 = vunpack.c.l.b16 %v5081
    %v5217 = vunpack.c.l.b16 %v5082
    %v5218 = vunpack.c.l.b16 %v5083
    %v5219 = vunpack.c.l.b16 %v5084
    %v5220 = vunpack.c.l.b16 %v5085
    %v5221 = vunpack.c.l.b16 %v5086
    %v5222 = vunpack.c.l.b16 %v5087
    %v5223 = vunpack.c.l.b16 %v5088
    %v5224 = vunpack.c.l.b16 %v5089
    %v5225 = vunpack.c.l.b16 %v5090
    %v5226 = vunpack.c.l.b16 %v5091
    %v5227 = vunpack.c.l.b16 %v5092
    %v5228 = vunpack.c.l.b16 %v5093
    %v5229 = vunpack.c.l.b16 %v5094
    %v5230 = vunpack.c.l.b16 %v5095
    %v5231 = vunpack.c.l.b16 %v5096
    %v5232 = vunpack.c.l.b16 %v5097
    %v5233 = vunpack.c.l.b16 %v5098
    %v5234 = vunpack.c.l.b16 %v5099
    %v5235 = vunpack.c.l.b16 %v5100
    %v5236 = vunpack.c.l.b16 %v5101
    %v5237 = vunpack.c.l.b16 %v5102
    %v5238 = vpack.c.b16 %v5175, %v5174
    %v5239 = vpack.c.b16 %v5177, %v5176
    %v5240 = vpack.c.b16 %v5179, %v5178
    %v5241 = vpack.c.b16 %v5181, %v5180
    %v5242 = vpack.c.b16 %v5183, %v5182
    %v5243 = vpack.c.b16 %v5185, %v5184
    %v5244 = vpack.c.b16 %v5187, %v5186
    %v5245 = vpack.c.b16 %v5189, %v5188
    %v5246 = vpack.c.b16 %v5191, %v5190
    %v5247 = vpack.c.b16 %v5193, %v5192
    %v5248 = vpack.c.b16 %v5195, %v5194
    %v5249 = vpack.c.b16 %v5197, %v5196
    %v5250 = vpack.c.b16 %v5199, %v5198
    %v5251 = vpack.c.b16 %v5201, %v5200
    %v5252 = vpack.c.b16 %v5203, %v5202
    %v5253 = vpack.c.b16 %v5205, %v5204
    %v5254 = vpack.c.b16 %v5207, %v5206
    %v5255 = vpack.c.b16 %v5209, %v5208
    %v5256 = vpack.c.b16 %v5211, %v5210
    %v5257 = vpack.c.b16 %v5213, %v5212
    %v5258 = vpack.c.b16 %v5215, %v5214
    %v5259 = vpack.c.b16 %v5217, %v5216
    %v5260 = vpack.c.b16 %v5219, %v5218
    %v5261 = vpack.c.b16 %v5221, %v5220
    %v5262 = vpack.c.b16 %v5223, %v5222
    %v5263 = vpack.c.b16 %v5225, %v5224
    %v5264 = vpack.c.b16 %v5227, %v5226
    %v5265 = vpack.c.b16 %v5229, %v5228
    %v5266 = vpack.c.b16 %v5231, %v5230
    %v5267 = vpack.c.b16 %v5233, %v5232
    %v5268 = vpack.c.b16 %v5235, %v5234
    %v5269 = vpack.c.b16 %v5237, %v5236
    %5302 = vmatprep.subr.bf16.mxu0 0
    %5303 = vmatpush1.bf16.msra.mxu0 %v5238
    %5304 = vmatprep.subr.bf16.mxu0 0
    %5305 = vmatpush1.bf16.msra.mxu0 %v5239
    %5306 = vmatprep.subr.bf16.mxu0 0
    %5307 = vmatpush1.bf16.msra.mxu0 %v5240
    %5308 = vmatprep.subr.bf16.mxu0 0
    %5309 = vmatpush1.bf16.msra.mxu0 %v5241
    %5310 = vmatprep.subr.bf16.mxu0 0
    %5311 = vmatpush1.bf16.msra.mxu0 %v5242
    %5312 = vmatprep.subr.bf16.mxu0 0
    %5313 = vmatpush1.bf16.msra.mxu0 %v5243
    %5314 = vmatprep.subr.bf16.mxu0 0
    %5315 = vmatpush1.bf16.msra.mxu0 %v5244
    %5316 = vmatprep.subr.bf16.mxu0 0
    %5317 = vmatpush1.bf16.msra.mxu0 %v5245
    %5318 = vmatprep.subr.bf16.mxu0 0
    %5319 = vmatpush1.bf16.msra.mxu0 %v5246
    %5320 = vmatprep.subr.bf16.mxu0 0
    %5321 = vmatpush1.bf16.msra.mxu0 %v5247
    %5322 = vmatprep.subr.bf16.mxu0 0
    %5323 = vmatpush1.bf16.msra.mxu0 %v5248
    %5324 = vmatprep.subr.bf16.mxu0 0
    %5325 = vmatpush1.bf16.msra.mxu0 %v5249
    %5326 = vmatprep.subr.bf16.mxu0 0
    %5327 = vmatpush1.bf16.msra.mxu0 %v5250
    %5328 = vmatprep.subr.bf16.mxu0 0
    %5329 = vmatpush1.bf16.msra.mxu0 %v5251
    %5330 = vmatprep.subr.bf16.mxu0 0
    %5331 = vmatpush1.bf16.msra.mxu0 %v5252
    %5332 = vmatprep.subr.bf16.mxu0 0
    %5333 = vmatpush1.bf16.msra.mxu0 %v5253
    %5334 = vmatprep.mubr.bf16.mxu0 %v5036
    %5335 = vmatmul.mubr.bf16.gmra.mrb[0].mxu0 %v5035
    %v5336 = vpop.f32.mrb[0].mxu0
    %v5337 = vadd.f32 %v5108, %v5336
    %v5338 = vpop.f32.mrb[0].mxu0
    %v5339 = vpop.f32.mrb[0].mxu0
    %v5340 = vpop.f32.mrb[0].mxu0
    %5341 = vdwg.mxu0
    %5342 = vmatprep.subr.bf16.mxu0 0
    %5343 = vmatpush1.bf16.msra.mxu0 %v5254
    %5344 = vmatprep.subr.bf16.mxu0 0
    %5345 = vmatpush1.bf16.msra.mxu0 %v5255
    %5346 = vmatprep.subr.bf16.mxu0 0
    %5347 = vmatpush1.bf16.msra.mxu0 %v5256
    %5348 = vmatprep.subr.bf16.mxu0 0
    %5349 = vmatpush1.bf16.msra.mxu0 %v5257
    %5350 = vmatprep.subr.bf16.mxu0 0
    %5351 = vmatpush1.bf16.msra.mxu0 %v5258
    %5352 = vmatprep.subr.bf16.mxu0 0
    %5353 = vmatpush1.bf16.msra.mxu0 %v5259
    %5354 = vmatprep.subr.bf16.mxu0 0
    %5355 = vmatpush1.bf16.msra.mxu0 %v5260
    %5356 = vmatprep.subr.bf16.mxu0 0
    %5357 = vmatpush1.bf16.msra.mxu0 %v5261
    %5358 = vmatprep.subr.bf16.mxu0 0
    %5359 = vmatpush1.bf16.msra.mxu0 %v5262
    %5360 = vmatprep.subr.bf16.mxu0 0
    %5361 = vmatpush1.bf16.msra.mxu0 %v5263
    %5362 = vmatprep.subr.bf16.mxu0 0
    %5363 = vmatpush1.bf16.msra.mxu0 %v5264
    %5364 = vmatprep.subr.bf16.mxu0 0
    %5365 = vmatpush1.bf16.msra.mxu0 %v5265
    %5366 = vmatprep.subr.bf16.mxu0 0
    %5367 = vmatpush1.bf16.msra.mxu0 %v5266
    %5368 = vmatprep.subr.bf16.mxu0 0
    %5369 = vmatpush1.bf16.msra.mxu0 %v5267
    %5370 = vmatprep.subr.bf16.mxu0 0
    %5371 = vmatpush1.bf16.msra.mxu0 %v5268
    %5372 = vmatprep.subr.bf16.mxu0 0
    %5373 = vmatpush1.bf16.msra.mxu0 %v5269
    %5374 = vmatprep.mubr.bf16.mxu0 %v5038
    %5375 = vmatmul.mubr.bf16.gmra.mrb[0].mxu0 %v5037
    %v5376 = vpop.f32.mrb[0].mxu0
    %v5377 = vadd.f32 %v5337, %v5376
    %v5378 = vpop.f32.mrb[0].mxu0
    %v5379 = vpop.f32.mrb[0].mxu0
    %v5380 = vpop.f32.mrb[0].mxu0
    %5381 = vdwg.mxu0
    %5382 = vst [vmem:[#allocation2] sm:$0x3] %v5377
    // Predicated region
    $region38: #{hsemotion_forward.3} parent=1 // pred_check
      _
    $region39: #{hsemotion_forward.3} parent=1 // pred_check_branch
      %5384 = sbr.rel (0) target = $region41
    $region40: #{hsemotion_forward.3} parent=1 // pred_region
      %s5386 = ssub.s32 32, 32
      %5387 = vsyncadd [#allocation3], %s5386
      %s5389 = sshll.u32 [#allocation2], 4
      %s5390 = int_to_ptr.vmem [resolvable:$true] %s5389
      %5392 = dma.vmem_to_hbm [thread:$0]  %s5390, 32, %s9, [#allocation3]
    $region41: #{hsemotion_forward.3} parent=1 // pred_fallthru
      _
    // Predicated region
    $region42: #{hsemotion_forward.3} parent=1 // pred_check
      _
    $region43: #{hsemotion_forward.3} parent=1 // pred_check_branch
      %5394 = sbr.rel (0) target = $region45
    $region44: #{hsemotion_forward.3} parent=1 // pred_region
      %5395 = dma.done [#allocation3], 32
    $region45: #{hsemotion_forward.3} parent=1 // pred_fallthru
      _
    %5396 = vsyncpa [#allocation3], 1

</llo_original>
